<compile_context>
chip_gen: v7x
topology: tpu7x:2x2x1
jax: 0.10.0
libtpu: 0.0.40
codegen_flags: <defaults>
</compile_context>

<pallas_src>
import functools

import jax
import jax.numpy as jnp
from jax import lax
from jax.experimental import pallas as pl
from jax.experimental.pallas import tpu as pltpu


# ---------------------------------------------------------------------------
# in-kernel helpers (operate on VMEM refs / values)
# ---------------------------------------------------------------------------
def _zero_border(pad_ref):
    """Clear the 1-pixel zero border of the (B, H+2, W+2, C) pad scratch."""
    B, Hp, Wp, C = pad_ref.shape
    z_row = jnp.zeros((B, 1, Wp, C), pad_ref.dtype)
    z_col = jnp.zeros((B, Hp, 1, C), pad_ref.dtype)
    pad_ref[:, pl.ds(0, 1), :, :] = z_row
    pad_ref[:, pl.ds(Hp - 1, 1), :, :] = z_row
    pad_ref[:, :, pl.ds(0, 1), :] = z_col
    pad_ref[:, :, pl.ds(Wp - 1, 1), :] = z_col


def _store_interior(pad_ref, x_bf16):
    """Write (B, H, W, C) activations into the interior of the pad scratch."""
    _, Hp, Wp, _ = pad_ref.shape
    pad_ref[:, pl.ds(1, Hp - 2), pl.ds(1, Wp - 2), :] = x_bf16


def _build_im2col(col_ref, pad_ref):
    """(B, H+2, W+2, C) padded bf16 scratch -> (B*H*W, 9*C) bf16 im2col."""
    B, Hp, Wp, C = pad_ref.shape
    H, W = Hp - 2, Wp - 2
    M = B * H * W
    for kh in range(3):
        for kw in range(3):
            t = kh * 3 + kw            # kh-major/kw/cin == (3,3,Cin,Cout) reshape
            patch = pad_ref[:, pl.ds(kh, H), pl.ds(kw, W), :]      # (B,H,W,C)
            col_ref[:, pl.ds(t * C, C)] = patch.reshape(M, C)


# ---------------------------------------------------------------------------
# fused BasicBlock kernel: B_TILE images per grid step
# ---------------------------------------------------------------------------
def basic_block_kernel(x_ref, w1_ref, t1_ref, w2_ref, t2_ref, out_ref,
                       pad_ref, col_ref, *, bt, H, W, C):
    M = bt * H * W
    x = x_ref[...]                                          # (bt,H,W,C) f32

    # conv1 + folded(bias, BN) + ReLU : one (M, 9C) x (9C, C) MXU matmul.
    _zero_border(pad_ref)                 # every step (megacore-safe)
    _store_interior(pad_ref, x.astype(jnp.bfloat16))
    _build_im2col(col_ref, pad_ref)
    a1 = jnp.dot(col_ref[...], w1_ref[...],
                 preferred_element_type=jnp.float32)        # (M, C) f32
    a1 = jnp.maximum(a1 + t1_ref[...], 0.0)

    # conv2 + folded(bias, BN) + f32 residual + ReLU.
    # pad/col scratch reused (border of pad_ref is still zero); out1 never
    # round-trips through HBM.
    _store_interior(pad_ref, a1.astype(jnp.bfloat16).reshape(bt, H, W, C))
    _build_im2col(col_ref, pad_ref)
    a2 = jnp.dot(col_ref[...], w2_ref[...],
                 preferred_element_type=jnp.float32)
    a2 = a2 + t2_ref[...] + x.reshape(M, C)                 # f32 epilogue
    out_ref[...] = jnp.maximum(a2, 0.0).reshape(bt, H * W, C).astype(out_ref.dtype)


# ---------------------------------------------------------------------------
# wrapper: tiling / VMEM budgeting / pallas_call
# ---------------------------------------------------------------------------
def _scratch_and_block_bytes(bt, H, W, C):
    pad = bt * (H + 2) * (W + 2) * C * 2            # bf16 pad scratch
    col = bt * H * W * 9 * C * 2                    # bf16 im2col scratch
    x_blk = 2 * bt * H * W * C * 4                  # f32 input block (dbl-buffered)
    o_blk = 2 * bt * H * W * C * 4                  # f32 output block (dbl-buffered)
    wgt = 2 * (9 * C * C * 2 + C * 4)               # folded weights + shifts
    return pad + col + x_blk + o_blk + wgt


def _choose_batch_tile(N, H, W, C, budget=16 * 1024 * 1024):
    best = 1
    for bt in range(1, N + 1):
        if N % bt:
            continue
        if N >= 2 and N // bt < 2:      # keep >= 2 parallel steps (v7x: 2 TCs)
            continue
        if _scratch_and_block_bytes(bt, H, W, C) <= budget:
            best = bt
    return best


def basic_block_forward(x_nhwc, params):
    """BasicBlock forward in NHWC, stride=1, downsample=None."""
    N, H, W, C = x_nhwc.shape
    x_f32 = x_nhwc.astype(jnp.float32)       # f32 residual fidelity
    bt = _choose_batch_tile(N, H, W, C)

    vmem_limit = int(min(64 * 2**20,
                         max(32 * 2**20,
                             2 * _scratch_and_block_bytes(bt, H, W, C))))
    flops = 2 * 2 * N * H * W * 9 * C * C            # two 3x3 convs
    bytes_accessed = (N * H * W * C * 4              # x (f32 in)
                      + N * H * W * C * 4            # out (f32)
                      + 2 * 9 * C * C * 2            # folded weights (bf16)
                      + 2 * C * 4)                   # folded shifts (f32)

    kernel = functools.partial(basic_block_kernel, bt=bt, H=H, W=W, C=C)
    out = pl.pallas_call(
        kernel,
        out_shape=jax.ShapeDtypeStruct((N, H * W, C), jnp.float32),
        grid_spec=pltpu.PrefetchScalarGridSpec(
            num_scalar_prefetch=0,
            grid=(N // bt,),
            in_specs=[
                pl.BlockSpec((bt, H, W, C), lambda n: (n, 0, 0, 0)),  # x / residual
                pl.BlockSpec((9 * C, C), lambda n: (0, 0)),           # w1 (folded, bf16)
                pl.BlockSpec((1, C), lambda n: (0, 0)),               # shift1 (folded)
                pl.BlockSpec((9 * C, C), lambda n: (0, 0)),           # w2
                pl.BlockSpec((1, C), lambda n: (0, 0)),               # shift2
            ],
            out_specs=pl.BlockSpec((bt, H * W, C), lambda n: (n, 0, 0)),
            scratch_shapes=[
                pltpu.VMEM((bt, H + 2, W + 2, C), jnp.bfloat16),      # shared pad
                pltpu.VMEM((bt * H * W, 9 * C), jnp.bfloat16),        # shared im2col
            ],
        ),
        compiler_params=pltpu.CompilerParams(
            dimension_semantics=("parallel",),
            vmem_limit_bytes=vmem_limit),
        cost_estimate=pl.CostEstimate(flops=flops, transcendentals=0,
                                      bytes_accessed=bytes_accessed),
    )(x_f32, params["w1"], params["t1"], params["w2"], params["t2"])
    return out.reshape(N, H, W, C)


# ---------------------------------------------------------------------------
# pure-JAX reference (f32, unfolded) for correctness check
# ---------------------------------------------------------------------------
def _ref_conv(x_nhwc, w_hwio, b):
    y = lax.conv_general_dilated(
        x_nhwc, w_hwio, window_strides=(1, 1), padding="SAME",
        dimension_numbers=("NHWC", "HWIO", "NHWC"))
    return y + b.reshape(1, 1, 1, -1)


def ref_basic_block(x_nhwc, raw):
    out = _ref_conv(x_nhwc, raw["w1_hwio"], raw["b1"])
    out = out * raw["s1"].reshape(1, 1, 1, -1) + raw["t1"].reshape(1, 1, 1, -1)
    out = jnp.maximum(out, 0.0)
    out = _ref_conv(out, raw["w2_hwio"], raw["b2"])
    out = out * raw["s2"].reshape(1, 1, 1, -1) + raw["t2"].reshape(1, 1, 1, -1)
    out = out + x_nhwc
    return jnp.maximum(out, 0.0)


def make_params(key, inplanes, planes):
    ks = jax.random.split(key, 12)
    eps = 1e-5

    def bn_fold(kg, kb, km, kv, c):
        gamma = 1.0 + 0.1 * jax.random.normal(kg, (c,), jnp.float32)
        beta = 0.1 * jax.random.normal(kb, (c,), jnp.float32)
        mean = 0.05 * jax.random.normal(km, (c,), jnp.float32)
        var = jax.random.uniform(kv, (c,), jnp.float32, 0.5, 1.5)
        scale = gamma / jnp.sqrt(var + eps)
        shift = beta - mean * scale
        return scale, shift

    # PyTorch conv weight layout: (C_out, C_in, 3, 3) -> HWIO (3,3,C_in,C_out)
    w1_pt = 0.1 * jax.random.normal(ks[0], (planes, inplanes, 3, 3), jnp.float32)
    b1 = 0.1 * jax.random.normal(ks[1], (planes,), jnp.float32)
    w2_pt = 0.1 * jax.random.normal(ks[2], (planes, planes, 3, 3), jnp.float32)
    b2 = 0.1 * jax.random.normal(ks[3], (planes,), jnp.float32)
    s1, t1 = bn_fold(ks[4], ks[5], ks[6], ks[7], planes)
    s2, t2 = bn_fold(ks[8], ks[9], ks[10], ks[11], planes)

    w1_hwio = jnp.transpose(w1_pt, (2, 3, 1, 0))
    w2_hwio = jnp.transpose(w2_pt, (2, 3, 1, 0))

    # Fold:  BN(conv(x)) = x @ (W * scale) + (scale * b + shift)
    params = {
        "w1": (w1_hwio * s1).reshape(9 * inplanes, planes).astype(jnp.bfloat16),
        "t1": (s1 * b1 + t1).reshape(1, planes).astype(jnp.float32),
        "w2": (w2_hwio * s2).reshape(9 * planes, planes).astype(jnp.bfloat16),
        "t2": (s2 * b2 + t2).reshape(1, planes).astype(jnp.float32),
    }
    raw = {"w1_hwio": w1_hwio, "b1": b1, "s1": s1, "t1": t1,
           "w2_hwio": w2_hwio, "b2": b2, "s2": s2, "t2": t2}
    return params, raw


if __name__ == "__main__":
    N, C, H, W = 2, 4, 16, 16          # inplanes = planes = 4, stride = 1
    key = jax.random.PRNGKey(0)
    kx, kp = jax.random.split(key)

    # PyTorch input would be NCHW; we work in NHWC (channels on TPU lanes).
    x_nchw = jax.random.normal(kx, (N, C, H, W), jnp.float32)
    x_nhwc = jnp.transpose(x_nchw, (0, 2, 3, 1))

    params, raw = make_params(kp, C, C)

    out = jax.block_until_ready(basic_block_forward(x_nhwc, params))
    ref = ref_basic_block(x_nhwc, raw)

    assert out.shape == (N, H, W, C)
    max_err = float(jnp.max(jnp.abs(out - ref)))
    # bf16 matmul operands / f32 accumulation + f32 residual -> loose tolerance
    assert jnp.allclose(out, ref, rtol=3e-2, atol=3e-2), max_err

    print("KERNEL_OK")
</pallas_src>

<mosaic_0001>
module attributes {stable_mosaic.version = 11 : i64} {
  func.func @basic_block_kernel(%arg0: i32, %arg1: memref<1x16x16x4xf32, #tpu.memory_space<vmem>>, %arg2: memref<36x4xbf16, #tpu.memory_space<vmem>>, %arg3: memref<1x4xf32, #tpu.memory_space<vmem>>, %arg4: memref<36x4xbf16, #tpu.memory_space<vmem>>, %arg5: memref<1x4xf32, #tpu.memory_space<vmem>>, %arg6: memref<1x256x4xf32, #tpu.memory_space<vmem>>, %arg7: memref<1x18x18x4xbf16, #tpu.memory_space<vmem>>, %arg8: memref<256x36xbf16, #tpu.memory_space<vmem>>) attributes {dimension_semantics = [#tpu.dimension_semantics<parallel>], iteration_bounds = array<i64: 2>, scalar_prefetch = 0 : i64, scratch_operands = 2 : i64, tpu.core_type = #tpu.core_type<tc>, window_params = [{transform_indices = @transform_0, window_bounds = array<i64: 1, 16, 16, 4>}, {pipeline_mode = #tpu.pipeline_mode<synchronous>, transform_indices = @transform_1, window_bounds = array<i64: 36, 4>}, {pipeline_mode = #tpu.pipeline_mode<synchronous>, transform_indices = @transform_2, window_bounds = array<i64: 1, 4>}, {pipeline_mode = #tpu.pipeline_mode<synchronous>, transform_indices = @transform_3, window_bounds = array<i64: 36, 4>}, {pipeline_mode = #tpu.pipeline_mode<synchronous>, transform_indices = @transform_4, window_bounds = array<i64: 1, 4>}, {transform_indices = @transform_5, window_bounds = array<i64: 1, 256, 4>}]} {
    %c0 = arith.constant 0 : index
    %c0_0 = arith.constant 0 : index
    %c0_1 = arith.constant 0 : index
    %c0_2 = arith.constant 0 : index
    %0 = vector.load %arg1[%c0, %c0_0, %c0_1, %c0_2] : memref<1x16x16x4xf32, #tpu.memory_space<vmem>>, vector<1x16x16x4xf32>
    %cst = arith.constant 0.000000e+00 : bf16
    %1 = vector.broadcast %cst : bf16 to vector<1x1x18x4xbf16>
    %cst_3 = arith.constant 0.000000e+00 : bf16
    %2 = vector.broadcast %cst_3 : bf16 to vector<1x18x1x4xbf16>
    %c0_4 = arith.constant 0 : index
    %c0_5 = arith.constant 0 : index
    %c0_6 = arith.constant 0 : index
    %c0_7 = arith.constant 0 : index
    %3 = vector.load %arg7[%c0_4, %c0_5, %c0_6, %c0_7] : memref<1x18x18x4xbf16, #tpu.memory_space<vmem>>, vector<1x1x18x4xbf16>
    tpu.vector_store %arg7[%c0_4, %c0_5, %c0_6, %c0_7], %1 {strides = array<i32>} : memref<1x18x18x4xbf16, #tpu.memory_space<vmem>>, vector<1x1x18x4xbf16>,
    %c0_8 = arith.constant 0 : index
    %c17 = arith.constant 17 : index
    %c0_9 = arith.constant 0 : index
    %c0_10 = arith.constant 0 : index
    %4 = vector.load %arg7[%c0_8, %c17, %c0_9, %c0_10] : memref<1x18x18x4xbf16, #tpu.memory_space<vmem>>, vector<1x1x18x4xbf16>
    tpu.vector_store %arg7[%c0_8, %c17, %c0_9, %c0_10], %1 {strides = array<i32>} : memref<1x18x18x4xbf16, #tpu.memory_space<vmem>>, vector<1x1x18x4xbf16>,
    %c0_11 = arith.constant 0 : index
    %c0_12 = arith.constant 0 : index
    %c0_13 = arith.constant 0 : index
    %c0_14 = arith.constant 0 : index
    %5 = vector.load %arg7[%c0_11, %c0_12, %c0_13, %c0_14] : memref<1x18x18x4xbf16, #tpu.memory_space<vmem>>, vector<1x18x1x4xbf16>
    tpu.vector_store %arg7[%c0_11, %c0_12, %c0_13, %c0_14], %2 {strides = array<i32>} : memref<1x18x18x4xbf16, #tpu.memory_space<vmem>>, vector<1x18x1x4xbf16>,
    %c0_15 = arith.constant 0 : index
    %c0_16 = arith.constant 0 : index
    %c17_17 = arith.constant 17 : index
    %c0_18 = arith.constant 0 : index
    %6 = vector.load %arg7[%c0_15, %c0_16, %c17_17, %c0_18] : memref<1x18x18x4xbf16, #tpu.memory_space<vmem>>, vector<1x18x1x4xbf16>
    tpu.vector_store %arg7[%c0_15, %c0_16, %c17_17, %c0_18], %2 {strides = array<i32>} : memref<1x18x18x4xbf16, #tpu.memory_space<vmem>>, vector<1x18x1x4xbf16>,
    %7 = arith.truncf %0 : vector<1x16x16x4xf32> to vector<1x16x16x4xbf16>
    %c0_19 = arith.constant 0 : index
    %c1 = arith.constant 1 : index
    %c1_20 = arith.constant 1 : index
    %c0_21 = arith.constant 0 : index
    %8 = vector.load %arg7[%c0_19, %c1, %c1_20, %c0_21] : memref<1x18x18x4xbf16, #tpu.memory_space<vmem>>, vector<1x16x16x4xbf16>
    tpu.vector_store %arg7[%c0_19, %c1, %c1_20, %c0_21], %7 {strides = array<i32>} : memref<1x18x18x4xbf16, #tpu.memory_space<vmem>>, vector<1x16x16x4xbf16>,
    %c0_22 = arith.constant 0 : index
    %c0_23 = arith.constant 0 : index
    %c0_24 = arith.constant 0 : index
    %c0_25 = arith.constant 0 : index
    %9 = vector.load %arg7[%c0_22, %c0_23, %c0_24, %c0_25] : memref<1x18x18x4xbf16, #tpu.memory_space<vmem>>, vector<1x16x16x4xbf16>
    %10 = vector.shape_cast %9 : vector<1x16x16x4xbf16> to vector<256x4xbf16>
    %c0_26 = arith.constant 0 : index
    %c0_27 = arith.constant 0 : index
    %11 = vector.load %arg8[%c0_26, %c0_27] : memref<256x36xbf16, #tpu.memory_space<vmem>>, vector<256x4xbf16>
    tpu.vector_store %arg8[%c0_26, %c0_27], %10 {strides = array<i32>} : memref<256x36xbf16, #tpu.memory_space<vmem>>, vector<256x4xbf16>,
    %c0_28 = arith.constant 0 : index
    %c0_29 = arith.constant 0 : index
    %c1_30 = arith.constant 1 : index
    %c0_31 = arith.constant 0 : index
    %12 = vector.load %arg7[%c0_28, %c0_29, %c1_30, %c0_31] : memref<1x18x18x4xbf16, #tpu.memory_space<vmem>>, vector<1x16x16x4xbf16>
    %13 = vector.shape_cast %12 : vector<1x16x16x4xbf16> to vector<256x4xbf16>
    %c0_32 = arith.constant 0 : index
    %c4 = arith.constant 4 : index
    %14 = vector.load %arg8[%c0_32, %c4] : memref<256x36xbf16, #tpu.memory_space<vmem>>, vector<256x4xbf16>
    tpu.vector_store %arg8[%c0_32, %c4], %13 {strides = array<i32>} : memref<256x36xbf16, #tpu.memory_space<vmem>>, vector<256x4xbf16>,
    %c0_33 = arith.constant 0 : index
    %c0_34 = arith.constant 0 : index
    %c2 = arith.constant 2 : index
    %c0_35 = arith.constant 0 : index
    %15 = vector.load %arg7[%c0_33, %c0_34, %c2, %c0_35] : memref<1x18x18x4xbf16, #tpu.memory_space<vmem>>, vector<1x16x16x4xbf16>
    %16 = vector.shape_cast %15 : vector<1x16x16x4xbf16> to vector<256x4xbf16>
    %c0_36 = arith.constant 0 : index
    %c8 = arith.constant 8 : index
    %17 = vector.load %arg8[%c0_36, %c8] : memref<256x36xbf16, #tpu.memory_space<vmem>>, vector<256x4xbf16>
    tpu.vector_store %arg8[%c0_36, %c8], %16 {strides = array<i32>} : memref<256x36xbf16, #tpu.memory_space<vmem>>, vector<256x4xbf16>,
    %c0_37 = arith.constant 0 : index
    %c1_38 = arith.constant 1 : index
    %c0_39 = arith.constant 0 : index
    %c0_40 = arith.constant 0 : index
    %18 = vector.load %arg7[%c0_37, %c1_38, %c0_39, %c0_40] : memref<1x18x18x4xbf16, #tpu.memory_space<vmem>>, vector<1x16x16x4xbf16>
    %19 = vector.shape_cast %18 : vector<1x16x16x4xbf16> to vector<256x4xbf16>
    %c0_41 = arith.constant 0 : index
    %c12 = arith.constant 12 : index
    %20 = vector.load %arg8[%c0_41, %c12] : memref<256x36xbf16, #tpu.memory_space<vmem>>, vector<256x4xbf16>
    tpu.vector_store %arg8[%c0_41, %c12], %19 {strides = array<i32>} : memref<256x36xbf16, #tpu.memory_space<vmem>>, vector<256x4xbf16>,
    %c0_42 = arith.constant 0 : index
    %c1_43 = arith.constant 1 : index
    %c1_44 = arith.constant 1 : index
    %c0_45 = arith.constant 0 : index
    %21 = vector.load %arg7[%c0_42, %c1_43, %c1_44, %c0_45] : memref<1x18x18x4xbf16, #tpu.memory_space<vmem>>, vector<1x16x16x4xbf16>
    %22 = vector.shape_cast %21 : vector<1x16x16x4xbf16> to vector<256x4xbf16>
    %c0_46 = arith.constant 0 : index
    %c16 = arith.constant 16 : index
    %23 = vector.load %arg8[%c0_46, %c16] : memref<256x36xbf16, #tpu.memory_space<vmem>>, vector<256x4xbf16>
    tpu.vector_store %arg8[%c0_46, %c16], %22 {strides = array<i32>} : memref<256x36xbf16, #tpu.memory_space<vmem>>, vector<256x4xbf16>,
    %c0_47 = arith.constant 0 : index
    %c1_48 = arith.constant 1 : index
    %c2_49 = arith.constant 2 : index
    %c0_50 = arith.constant 0 : index
    %24 = vector.load %arg7[%c0_47, %c1_48, %c2_49, %c0_50] : memref<1x18x18x4xbf16, #tpu.memory_space<vmem>>, vector<1x16x16x4xbf16>
    %25 = vector.shape_cast %24 : vector<1x16x16x4xbf16> to vector<256x4xbf16>
    %c0_51 = arith.constant 0 : index
    %c20 = arith.constant 20 : index
    %26 = vector.load %arg8[%c0_51, %c20] : memref<256x36xbf16, #tpu.memory_space<vmem>>, vector<256x4xbf16>
    tpu.vector_store %arg8[%c0_51, %c20], %25 {strides = array<i32>} : memref<256x36xbf16, #tpu.memory_space<vmem>>, vector<256x4xbf16>,
    %c0_52 = arith.constant 0 : index
    %c2_53 = arith.constant 2 : index
    %c0_54 = arith.constant 0 : index
    %c0_55 = arith.constant 0 : index
    %27 = vector.load %arg7[%c0_52, %c2_53, %c0_54, %c0_55] : memref<1x18x18x4xbf16, #tpu.memory_space<vmem>>, vector<1x16x16x4xbf16>
    %28 = vector.shape_cast %27 : vector<1x16x16x4xbf16> to vector<256x4xbf16>
    %c0_56 = arith.constant 0 : index
    %c24 = arith.constant 24 : index
    %29 = vector.load %arg8[%c0_56, %c24] : memref<256x36xbf16, #tpu.memory_space<vmem>>, vector<256x4xbf16>
    tpu.vector_store %arg8[%c0_56, %c24], %28 {strides = array<i32>} : memref<256x36xbf16, #tpu.memory_space<vmem>>, vector<256x4xbf16>,
    %c0_57 = arith.constant 0 : index
    %c2_58 = arith.constant 2 : index
    %c1_59 = arith.constant 1 : index
    %c0_60 = arith.constant 0 : index
    %30 = vector.load %arg7[%c0_57, %c2_58, %c1_59, %c0_60] : memref<1x18x18x4xbf16, #tpu.memory_space<vmem>>, vector<1x16x16x4xbf16>
    %31 = vector.shape_cast %30 : vector<1x16x16x4xbf16> to vector<256x4xbf16>
    %c0_61 = arith.constant 0 : index
    %c28 = arith.constant 28 : index
    %32 = vector.load %arg8[%c0_61, %c28] : memref<256x36xbf16, #tpu.memory_space<vmem>>, vector<256x4xbf16>
    tpu.vector_store %arg8[%c0_61, %c28], %31 {strides = array<i32>} : memref<256x36xbf16, #tpu.memory_space<vmem>>, vector<256x4xbf16>,
    %c0_62 = arith.constant 0 : index
    %c2_63 = arith.constant 2 : index
    %c2_64 = arith.constant 2 : index
    %c0_65 = arith.constant 0 : index
    %33 = vector.load %arg7[%c0_62, %c2_63, %c2_64, %c0_65] : memref<1x18x18x4xbf16, #tpu.memory_space<vmem>>, vector<1x16x16x4xbf16>
    %34 = vector.shape_cast %33 : vector<1x16x16x4xbf16> to vector<256x4xbf16>
    %c0_66 = arith.constant 0 : index
    %c32 = arith.constant 32 : index
    %35 = vector.load %arg8[%c0_66, %c32] : memref<256x36xbf16, #tpu.memory_space<vmem>>, vector<256x4xbf16>
    tpu.vector_store %arg8[%c0_66, %c32], %34 {strides = array<i32>} : memref<256x36xbf16, #tpu.memory_space<vmem>>, vector<256x4xbf16>,
    %c0_67 = arith.constant 0 : index
    %c0_68 = arith.constant 0 : index
    %36 = vector.load %arg8[%c0_67, %c0_68] : memref<256x36xbf16, #tpu.memory_space<vmem>>, vector<256x36xbf16>
    %c0_69 = arith.constant 0 : index
    %c0_70 = arith.constant 0 : index
    %37 = vector.load %arg2[%c0_69, %c0_70] : memref<36x4xbf16, #tpu.memory_space<vmem>>, vector<36x4xbf16>
    %cst_71 = arith.constant dense<0.000000e+00> : vector<256x4xf32>
    %38 = tpu.matmul %36, %37, %cst_71 {dimension_numbers = #tpu.dot_dimension_numbers<[1], [0], [0], [1], [0, 0, 1, 1], [], []>} : vector<256x36xbf16>, vector<36x4xbf16>, vector<256x4xf32> -> vector<256x4xf32>
    %c0_72 = arith.constant 0 : index
    %c0_73 = arith.constant 0 : index
    %39 = vector.load %arg3[%c0_72, %c0_73] : memref<1x4xf32, #tpu.memory_space<vmem>>, vector<1x4xf32>
    %40 = vector.broadcast %39 : vector<1x4xf32> to vector<256x4xf32>
    %41 = arith.addf %38, %40 : vector<256x4xf32>
    %cst_74 = arith.constant 0.000000e+00 : f32
    %42 = vector.broadcast %cst_74 : f32 to vector<256x4xf32>
    %43 = arith.maximumf %41, %42 : vector<256x4xf32>
    %44 = arith.truncf %43 : vector<256x4xf32> to vector<256x4xbf16>
    %45 = vector.shape_cast %44 : vector<256x4xbf16> to vector<1x16x16x4xbf16>
    %c0_75 = arith.constant 0 : index
    %c1_76 = arith.constant 1 : index
    %c1_77 = arith.constant 1 : index
    %c0_78 = arith.constant 0 : index
    %46 = vector.load %arg7[%c0_75, %c1_76, %c1_77, %c0_78] : memref<1x18x18x4xbf16, #tpu.memory_space<vmem>>, vector<1x16x16x4xbf16>
    tpu.vector_store %arg7[%c0_75, %c1_76, %c1_77, %c0_78], %45 {strides = array<i32>} : memref<1x18x18x4xbf16, #tpu.memory_space<vmem>>, vector<1x16x16x4xbf16>,
    %c0_79 = arith.constant 0 : index
    %c0_80 = arith.constant 0 : index
    %c0_81 = arith.constant 0 : index
    %c0_82 = arith.constant 0 : index
    %47 = vector.load %arg7[%c0_79, %c0_80, %c0_81, %c0_82] : memref<1x18x18x4xbf16, #tpu.memory_space<vmem>>, vector<1x16x16x4xbf16>
    %48 = vector.shape_cast %47 : vector<1x16x16x4xbf16> to vector<256x4xbf16>
    %c0_83 = arith.constant 0 : index
    %c0_84 = arith.constant 0 : index
    %49 = vector.load %arg8[%c0_83, %c0_84] : memref<256x36xbf16, #tpu.memory_space<vmem>>, vector<256x4xbf16>
    tpu.vector_store %arg8[%c0_83, %c0_84], %48 {strides = array<i32>} : memref<256x36xbf16, #tpu.memory_space<vmem>>, vector<256x4xbf16>,
    %c0_85 = arith.constant 0 : index
    %c0_86 = arith.constant 0 : index
    %c1_87 = arith.constant 1 : index
    %c0_88 = arith.constant 0 : index
    %50 = vector.load %arg7[%c0_85, %c0_86, %c1_87, %c0_88] : memref<1x18x18x4xbf16, #tpu.memory_space<vmem>>, vector<1x16x16x4xbf16>
    %51 = vector.shape_cast %50 : vector<1x16x16x4xbf16> to vector<256x4xbf16>
    %c0_89 = arith.constant 0 : index
    %c4_90 = arith.constant 4 : index
    %52 = vector.load %arg8[%c0_89, %c4_90] : memref<256x36xbf16, #tpu.memory_space<vmem>>, vector<256x4xbf16>
    tpu.vector_store %arg8[%c0_89, %c4_90], %51 {strides = array<i32>} : memref<256x36xbf16, #tpu.memory_space<vmem>>, vector<256x4xbf16>,
    %c0_91 = arith.constant 0 : index
    %c0_92 = arith.constant 0 : index
    %c2_93 = arith.constant 2 : index
    %c0_94 = arith.constant 0 : index
    %53 = vector.load %arg7[%c0_91, %c0_92, %c2_93, %c0_94] : memref<1x18x18x4xbf16, #tpu.memory_space<vmem>>, vector<1x16x16x4xbf16>
    %54 = vector.shape_cast %53 : vector<1x16x16x4xbf16> to vector<256x4xbf16>
    %c0_95 = arith.constant 0 : index
    %c8_96 = arith.constant 8 : index
    %55 = vector.load %arg8[%c0_95, %c8_96] : memref<256x36xbf16, #tpu.memory_space<vmem>>, vector<256x4xbf16>
    tpu.vector_store %arg8[%c0_95, %c8_96], %54 {strides = array<i32>} : memref<256x36xbf16, #tpu.memory_space<vmem>>, vector<256x4xbf16>,
    %c0_97 = arith.constant 0 : index
    %c1_98 = arith.constant 1 : index
    %c0_99 = arith.constant 0 : index
    %c0_100 = arith.constant 0 : index
    %56 = vector.load %arg7[%c0_97, %c1_98, %c0_99, %c0_100] : memref<1x18x18x4xbf16, #tpu.memory_space<vmem>>, vector<1x16x16x4xbf16>
    %57 = vector.shape_cast %56 : vector<1x16x16x4xbf16> to vector<256x4xbf16>
    %c0_101 = arith.constant 0 : index
    %c12_102 = arith.constant 12 : index
    %58 = vector.load %arg8[%c0_101, %c12_102] : memref<256x36xbf16, #tpu.memory_space<vmem>>, vector<256x4xbf16>
    tpu.vector_store %arg8[%c0_101, %c12_102], %57 {strides = array<i32>} : memref<256x36xbf16, #tpu.memory_space<vmem>>, vector<256x4xbf16>,
    %c0_103 = arith.constant 0 : index
    %c1_104 = arith.constant 1 : index
    %c1_105 = arith.constant 1 : index
    %c0_106 = arith.constant 0 : index
    %59 = vector.load %arg7[%c0_103, %c1_104, %c1_105, %c0_106] : memref<1x18x18x4xbf16, #tpu.memory_space<vmem>>, vector<1x16x16x4xbf16>
    %60 = vector.shape_cast %59 : vector<1x16x16x4xbf16> to vector<256x4xbf16>
    %c0_107 = arith.constant 0 : index
    %c16_108 = arith.constant 16 : index
    %61 = vector.load %arg8[%c0_107, %c16_108] : memref<256x36xbf16, #tpu.memory_space<vmem>>, vector<256x4xbf16>
    tpu.vector_store %arg8[%c0_107, %c16_108], %60 {strides = array<i32>} : memref<256x36xbf16, #tpu.memory_space<vmem>>, vector<256x4xbf16>,
    %c0_109 = arith.constant 0 : index
    %c1_110 = arith.constant 1 : index
    %c2_111 = arith.constant 2 : index
    %c0_112 = arith.constant 0 : index
    %62 = vector.load %arg7[%c0_109, %c1_110, %c2_111, %c0_112] : memref<1x18x18x4xbf16, #tpu.memory_space<vmem>>, vector<1x16x16x4xbf16>
    %63 = vector.shape_cast %62 : vector<1x16x16x4xbf16> to vector<256x4xbf16>
    %c0_113 = arith.constant 0 : index
    %c20_114 = arith.constant 20 : index
    %64 = vector.load %arg8[%c0_113, %c20_114] : memref<256x36xbf16, #tpu.memory_space<vmem>>, vector<256x4xbf16>
    tpu.vector_store %arg8[%c0_113, %c20_114], %63 {strides = array<i32>} : memref<256x36xbf16, #tpu.memory_space<vmem>>, vector<256x4xbf16>,
    %c0_115 = arith.constant 0 : index
    %c2_116 = arith.constant 2 : index
    %c0_117 = arith.constant 0 : index
    %c0_118 = arith.constant 0 : index
    %65 = vector.load %arg7[%c0_115, %c2_116, %c0_117, %c0_118] : memref<1x18x18x4xbf16, #tpu.memory_space<vmem>>, vector<1x16x16x4xbf16>
    %66 = vector.shape_cast %65 : vector<1x16x16x4xbf16> to vector<256x4xbf16>
    %c0_119 = arith.constant 0 : index
    %c24_120 = arith.constant 24 : index
    %67 = vector.load %arg8[%c0_119, %c24_120] : memref<256x36xbf16, #tpu.memory_space<vmem>>, vector<256x4xbf16>
    tpu.vector_store %arg8[%c0_119, %c24_120], %66 {strides = array<i32>} : memref<256x36xbf16, #tpu.memory_space<vmem>>, vector<256x4xbf16>,
    %c0_121 = arith.constant 0 : index
    %c2_122 = arith.constant 2 : index
    %c1_123 = arith.constant 1 : index
    %c0_124 = arith.constant 0 : index
    %68 = vector.load %arg7[%c0_121, %c2_122, %c1_123, %c0_124] : memref<1x18x18x4xbf16, #tpu.memory_space<vmem>>, vector<1x16x16x4xbf16>
    %69 = vector.shape_cast %68 : vector<1x16x16x4xbf16> to vector<256x4xbf16>
    %c0_125 = arith.constant 0 : index
    %c28_126 = arith.constant 28 : index
    %70 = vector.load %arg8[%c0_125, %c28_126] : memref<256x36xbf16, #tpu.memory_space<vmem>>, vector<256x4xbf16>
    tpu.vector_store %arg8[%c0_125, %c28_126], %69 {strides = array<i32>} : memref<256x36xbf16, #tpu.memory_space<vmem>>, vector<256x4xbf16>,
    %c0_127 = arith.constant 0 : index
    %c2_128 = arith.constant 2 : index
    %c2_129 = arith.constant 2 : index
    %c0_130 = arith.constant 0 : index
    %71 = vector.load %arg7[%c0_127, %c2_128, %c2_129, %c0_130] : memref<1x18x18x4xbf16, #tpu.memory_space<vmem>>, vector<1x16x16x4xbf16>
    %72 = vector.shape_cast %71 : vector<1x16x16x4xbf16> to vector<256x4xbf16>
    %c0_131 = arith.constant 0 : index
    %c32_132 = arith.constant 32 : index
    %73 = vector.load %arg8[%c0_131, %c32_132] : memref<256x36xbf16, #tpu.memory_space<vmem>>, vector<256x4xbf16>
    tpu.vector_store %arg8[%c0_131, %c32_132], %72 {strides = array<i32>} : memref<256x36xbf16, #tpu.memory_space<vmem>>, vector<256x4xbf16>,
    %c0_133 = arith.constant 0 : index
    %c0_134 = arith.constant 0 : index
    %74 = vector.load %arg8[%c0_133, %c0_134] : memref<256x36xbf16, #tpu.memory_space<vmem>>, vector<256x36xbf16>
    %c0_135 = arith.constant 0 : index
    %c0_136 = arith.constant 0 : index
    %75 = vector.load %arg4[%c0_135, %c0_136] : memref<36x4xbf16, #tpu.memory_space<vmem>>, vector<36x4xbf16>
    %cst_137 = arith.constant dense<0.000000e+00> : vector<256x4xf32>
    %76 = tpu.matmul %74, %75, %cst_137 {dimension_numbers = #tpu.dot_dimension_numbers<[1], [0], [0], [1], [0, 0, 1, 1], [], []>} : vector<256x36xbf16>, vector<36x4xbf16>, vector<256x4xf32> -> vector<256x4xf32>
    %c0_138 = arith.constant 0 : index
    %c0_139 = arith.constant 0 : index
    %77 = vector.load %arg5[%c0_138, %c0_139] : memref<1x4xf32, #tpu.memory_space<vmem>>, vector<1x4xf32>
    %78 = vector.broadcast %77 : vector<1x4xf32> to vector<256x4xf32>
    %79 = arith.addf %76, %78 : vector<256x4xf32>
    %80 = vector.shape_cast %0 : vector<1x16x16x4xf32> to vector<256x4xf32>
    %81 = arith.addf %79, %80 : vector<256x4xf32>
    %cst_140 = arith.constant 0.000000e+00 : f32
    %82 = vector.broadcast %cst_140 : f32 to vector<256x4xf32>
    %83 = arith.maximumf %81, %82 : vector<256x4xf32>
    %84 = vector.shape_cast %83 : vector<256x4xf32> to vector<1x256x4xf32>
    %c0_141 = arith.constant 0 : index
    %c0_142 = arith.constant 0 : index
    %c0_143 = arith.constant 0 : index
    %85 = vector.load %arg6[%c0_141, %c0_142, %c0_143] : memref<1x256x4xf32, #tpu.memory_space<vmem>>, vector<1x256x4xf32>
    tpu.vector_store %arg6[%c0_141, %c0_142, %c0_143], %84 {strides = array<i32>} : memref<1x256x4xf32, #tpu.memory_space<vmem>>, vector<1x256x4xf32>,
    return
  }
  func.func @transform_0(%arg0: i32) -> (i32, i32, i32, i32) {
    %c0_i32 = arith.constant 0 : i32
    %c0_i32_0 = arith.constant 0 : i32
    %c0_i32_1 = arith.constant 0 : i32
    %c0_i32_2 = arith.constant 0 : i32
    return %arg0, %c0_i32, %c0_i32_0, %c0_i32_1 : i32, i32, i32, i32
  }
  func.func @transform_1(%arg0: i32) -> (i32, i32) {
    %c0_i32 = arith.constant 0 : i32
    %c0_i32_0 = arith.constant 0 : i32
    %c0_i32_1 = arith.constant 0 : i32
    return %c0_i32, %c0_i32_0 : i32, i32
  }
  func.func @transform_2(%arg0: i32) -> (i32, i32) {
    %c0_i32 = arith.constant 0 : i32
    %c0_i32_0 = arith.constant 0 : i32
    %c0_i32_1 = arith.constant 0 : i32
    return %c0_i32, %c0_i32_0 : i32, i32
  }
  func.func @transform_3(%arg0: i32) -> (i32, i32) {
    %c0_i32 = arith.constant 0 : i32
    %c0_i32_0 = arith.constant 0 : i32
    %c0_i32_1 = arith.constant 0 : i32
    return %c0_i32, %c0_i32_0 : i32, i32
  }
  func.func @transform_4(%arg0: i32) -> (i32, i32) {
    %c0_i32 = arith.constant 0 : i32
    %c0_i32_0 = arith.constant 0 : i32
    %c0_i32_1 = arith.constant 0 : i32
    return %c0_i32, %c0_i32_0 : i32, i32
  }
  func.func @transform_5(%arg0: i32) -> (i32, i32, i32) {
    %c0_i32 = arith.constant 0 : i32
    %c0_i32_0 = arith.constant 0 : i32
    %c0_i32_1 = arith.constant 0 : i32
    return %arg0, %c0_i32, %c0_i32_0 : i32, i32, i32
  }
}

</mosaic_0001>

<llo_original>
// kernel: tpu_custom_call.1
$region0: #{tpu_custom_call.1}
  #allocation0 [shape = 'u32[]', space=smem, size = 0x4, offset = 0x4, fixed_abs, tag = 'smem constant byte address 0x4 - core index']
  #allocation1 [shape = 'u32[144,128]{1,0:T(1,128)}', space=vmem, size = 0x12000, scoped, tag = 'internal scratch']
  #allocation2 [shape = 'bf16[1,18,18,4]{3,2,1,0:T(8,128)(2,1)}', space=vmem, size = 0x1b000, scoped, tag = 'scratch operand']
  #allocation3 [shape = 'bf16[256,36]{1,0:T(16,128)(2,1)}', space=vmem, size = 0x10000, scoped, tag = 'scratch operand']
  %s0 = inlined_call_operand.vmem [shape: f32[2,16,16,4], index: 0, kind: input, shape index: {}]
  %s1 = inlined_call_operand.vmem [shape: bf16[36,4], index: 1, kind: input, shape index: {}]
  %s2 = inlined_call_operand.vmem [shape: f32[1,4], index: 2, kind: input, shape index: {}]
  %s3 = inlined_call_operand.vmem [shape: bf16[36,4], index: 3, kind: input, shape index: {}]
  %s4 = inlined_call_operand.vmem [shape: f32[1,4], index: 4, kind: input, shape index: {}]
  %s5 = inlined_call_operand.vmem [shape: f32[2,256,4], index: 5, kind: output, shape index: {}]
  %s6 = sld [smem:[#allocation0]]
  $region53: #{tpu_custom_call.1} parent=0
    _
  %s8 = ssub.s32 1, %s6
  %s9 = scalar_select 0, %s8, %s6
  loop: start=0, step=1, limit=4
  $region2: #{tpu_custom_call.1} parent=0 // loop_pre_header
    _
  $region3: #{tpu_custom_call.1} parent=0 // loop_header
    %s11 = sphi 0, %s15
    %p12 = scmp.ge.s32.totalorder %s11, 4
    %s21 = sphi 0, %s23
    %s24 = sphi 0, %s21
    %s25 = sphi 0, %s24
    %s41 = sphi 0, %s25
    %s45 = sphi 0, %s45
    %s47 = sphi 0, %s45
    %s48 = sphi 0, %s47
    %s62 = sphi 0, %s48
    %s66 = sphi 0, %s66
    %s68 = sphi 0, %s66
    %s69 = sphi 0, %s68
    %s83 = sphi 0, %s69
    %s87 = sphi 0, %s87
    %s89 = sphi 0, %s87
    %s90 = sphi 0, %s89
    %s104 = sphi 0, %s90
    %s108 = sphi 0, %s108
    %s110 = sphi 0, %s108
    %s111 = sphi 0, %s110
    %s125 = sphi 0, %s111
    %s131 = sphi 0, %s133
    %s134 = sphi 0, %s131
    %s135 = sphi 0, %s134
    %s151 = sphi 0, %s135
  $region4: #{tpu_custom_call.1} parent=0 // loop_header_branch
    %14 = sbr.rel (%p12) target = $region8
  $region5: #{tpu_custom_call.1} parent=0 // loop_body
    %s16 = ssub.s32 %s11, 1
    %s17 = ssub.s32 %s11, 2
    %s18 = sadd.s32 %s11, 1
    %s19 = ssub.s32 %s11, %s18
    %p20 = scmp.eq.s32.totalorder %s19, 0
    %s22 = sadd.s32 %s21, 1
    %s23 = scalar_select %p20, %s21, %s22
    %p26 = pneg %p20
    %p27 = scmp.eq.s32.totalorder %s11, 1
    %p28 = por %p26, %p27
    %p29 = scmp.ne.s32.totalorder %s21, %s24
    %p30 = scmp.eq.s32.totalorder %s11, 0
    %p31 = por %p29, %p30
    %p32 = scmp.ne.s32.totalorder %s21, %s24
    %p33 = scmp.eq.s32.totalorder %s16, 1
    %p34 = por %p32, %p33
    %p35 = scmp.ne.s32.totalorder %s24, %s25
    %p36 = scmp.eq.s32.totalorder %s16, 0
    %p37 = por %p35, %p36
    %p38 = scmp.ne.s32.totalorder %s24, %s25
    %p39 = scmp.eq.s32.totalorder %s17, 1
    %p40 = por %p38, %p39
    %p42 = scmp.ne.s32.totalorder %s25, %s41
    %p43 = scmp.eq.s32.totalorder %s17, 0
    %p44 = por %p42, %p43
    %s46 = sadd.s32 %s45, 1
    %p49 = scmp.eq.s32.totalorder %s11, 1
    %p50 = scmp.ne.s32.totalorder %s45, %s47
    %p51 = scmp.eq.s32.totalorder %s11, 0
    %p52 = por %p50, %p51
    %p53 = scmp.ne.s32.totalorder %s45, %s47
    %p54 = scmp.eq.s32.totalorder %s16, 1
    %p55 = por %p53, %p54
    %p56 = scmp.ne.s32.totalorder %s47, %s48
    %p57 = scmp.eq.s32.totalorder %s16, 0
    %p58 = por %p56, %p57
    %p59 = scmp.ne.s32.totalorder %s47, %s48
    %p60 = scmp.eq.s32.totalorder %s17, 1
    %p61 = por %p59, %p60
    %p63 = scmp.ne.s32.totalorder %s48, %s62
    %p64 = scmp.eq.s32.totalorder %s17, 0
    %p65 = por %p63, %p64
    %s67 = sadd.s32 %s66, 1
    %p70 = scmp.eq.s32.totalorder %s11, 1
    %p71 = scmp.ne.s32.totalorder %s66, %s68
    %p72 = scmp.eq.s32.totalorder %s11, 0
    %p73 = por %p71, %p72
    %p74 = scmp.ne.s32.totalorder %s66, %s68
    %p75 = scmp.eq.s32.totalorder %s16, 1
    %p76 = por %p74, %p75
    %p77 = scmp.ne.s32.totalorder %s68, %s69
    %p78 = scmp.eq.s32.totalorder %s16, 0
    %p79 = por %p77, %p78
    %p80 = scmp.ne.s32.totalorder %s68, %s69
    %p81 = scmp.eq.s32.totalorder %s17, 1
    %p82 = por %p80, %p81
    %p84 = scmp.ne.s32.totalorder %s69, %s83
    %p85 = scmp.eq.s32.totalorder %s17, 0
    %p86 = por %p84, %p85
    %s88 = sadd.s32 %s87, 1
    %p91 = scmp.eq.s32.totalorder %s11, 1
    %p92 = scmp.ne.s32.totalorder %s87, %s89
    %p93 = scmp.eq.s32.totalorder %s11, 0
    %p94 = por %p92, %p93
    %p95 = scmp.ne.s32.totalorder %s87, %s89
    %p96 = scmp.eq.s32.totalorder %s16, 1
    %p97 = por %p95, %p96
    %p98 = scmp.ne.s32.totalorder %s89, %s90
    %p99 = scmp.eq.s32.totalorder %s16, 0
    %p100 = por %p98, %p99
    %p101 = scmp.ne.s32.totalorder %s89, %s90
    %p102 = scmp.eq.s32.totalorder %s17, 1
    %p103 = por %p101, %p102
    %p105 = scmp.ne.s32.totalorder %s90, %s104
    %p106 = scmp.eq.s32.totalorder %s17, 0
    %p107 = por %p105, %p106
    %s109 = sadd.s32 %s108, 1
    %p112 = scmp.eq.s32.totalorder %s11, 1
    %p113 = scmp.ne.s32.totalorder %s108, %s110
    %p114 = scmp.eq.s32.totalorder %s11, 0
    %p115 = por %p113, %p114
    %p116 = scmp.ne.s32.totalorder %s108, %s110
    %p117 = scmp.eq.s32.totalorder %s16, 1
    %p118 = por %p116, %p117
    %p119 = scmp.ne.s32.totalorder %s110, %s111
    %p120 = scmp.eq.s32.totalorder %s16, 0
    %p121 = por %p119, %p120
    %p122 = scmp.ne.s32.totalorder %s110, %s111
    %p123 = scmp.eq.s32.totalorder %s17, 1
    %p124 = por %p122, %p123
    %p126 = scmp.ne.s32.totalorder %s111, %s125
    %p127 = scmp.eq.s32.totalorder %s17, 0
    %p128 = por %p126, %p127
    %s129 = ssub.s32 %s11, %s18
    %p130 = scmp.eq.s32.totalorder %s129, 0
    %s132 = sadd.s32 %s131, 1
    %s133 = scalar_select %p130, %s131, %s132
    %p136 = pneg %p130
    %p137 = scmp.eq.s32.totalorder %s11, 1
    %p138 = por %p136, %p137
    %p139 = scmp.ne.s32.totalorder %s131, %s134
    %p140 = scmp.eq.s32.totalorder %s11, 0
    %p141 = por %p139, %p140
    %p142 = scmp.ne.s32.totalorder %s131, %s134
    %p143 = scmp.eq.s32.totalorder %s16, 1
    %p144 = por %p142, %p143
    %p145 = scmp.ne.s32.totalorder %s134, %s135
    %p146 = scmp.eq.s32.totalorder %s16, 0
    %p147 = por %p145, %p146
    %p148 = scmp.ne.s32.totalorder %s134, %s135
    %p149 = scmp.eq.s32.totalorder %s17, 1
    %p150 = por %p148, %p149
    %p152 = scmp.ne.s32.totalorder %s135, %s151
    %p153 = scmp.eq.s32.totalorder %s17, 0
    %p154 = por %p152, %p153
    %p155 = scmp.le.s32.totalorder 1, %s11
    %p156 = scmp.lt.s32.totalorder %s11, 3
    %p157 = pnand %p155, %p156
    %p158 = pneg %p157
    // Predicated region
    $region9: #{tpu_custom_call.1} parent=5 // pred_check
      _
    $region10: #{tpu_custom_call.1} parent=5 // pred_check_branch
      %160 = sbr.rel (%p157) target = $region12
    $region11: #{tpu_custom_call.1} parent=5 // pred_region
      %s161 = ssub.s32 %s11, 1
      // Predicated region
      $region13: #{tpu_custom_call.1} parent=11 // pred_check
        %p162 = pneg %p58
      $region14: #{tpu_custom_call.1} parent=11 // pred_check_branch
        %164 = sbr.rel (%p162) target = $region16
      $region15: #{tpu_custom_call.1} parent=11 // pred_region
        _
      $region16: #{tpu_custom_call.1} parent=11 // pred_fallthru
        _
      // Predicated region
      $region17: #{tpu_custom_call.1} parent=11 // pred_check
        %p165 = pneg %p79
      $region18: #{tpu_custom_call.1} parent=11 // pred_check_branch
        %167 = sbr.rel (%p165) target = $region20
      $region19: #{tpu_custom_call.1} parent=11 // pred_region
        _
      $region20: #{tpu_custom_call.1} parent=11 // pred_fallthru
        _
      // Predicated region
      $region21: #{tpu_custom_call.1} parent=11 // pred_check
        %p168 = pneg %p100
      $region22: #{tpu_custom_call.1} parent=11 // pred_check_branch
        %170 = sbr.rel (%p168) target = $region24
      $region23: #{tpu_custom_call.1} parent=11 // pred_region
        _
      $region24: #{tpu_custom_call.1} parent=11 // pred_fallthru
        _
      // Predicated region
      $region25: #{tpu_custom_call.1} parent=11 // pred_check
        %p171 = pneg %p121
      $region26: #{tpu_custom_call.1} parent=11 // pred_check_branch
        %173 = sbr.rel (%p171) target = $region28
      $region27: #{tpu_custom_call.1} parent=11 // pred_region
        _
      $region28: #{tpu_custom_call.1} parent=11 // pred_fallthru
        _
    $region12: #{tpu_custom_call.1} parent=5 // pred_fallthru
      _
    %p174 = scmp.lt.s32.totalorder %s11, 2
    // Predicated region
    $region29: #{tpu_custom_call.1} parent=5 // pred_check
      %p175 = pneg %p174
    $region30: #{tpu_custom_call.1} parent=5 // pred_check_branch
      %177 = sbr.rel (%p175) target = $region32
    $region31: #{tpu_custom_call.1} parent=5 // pred_region
      // Predicated region
      $region33: #{tpu_custom_call.1} parent=31 // pred_check
        %p178 = pneg %p31
      $region34: #{tpu_custom_call.1} parent=31 // pred_check_branch
        %180 = sbr.rel (%p178) target = $region36
      $region35: #{tpu_custom_call.1} parent=31 // pred_region
        %p181 = scmp.lt.s32.totalorder %s11, 1
        %s182 = scalar_select %p181, %s11, 1
        %s183 = smul.addr %s182, 32
        %s184 = smul.addr %s183, 8
        %s185 = scalar_lea.vmem %s0, %s184
      $region36: #{tpu_custom_call.1} parent=31 // pred_fallthru
        _
    $region32: #{tpu_custom_call.1} parent=5 // pred_fallthru
      _
    %p186 = scmp.le.s32.totalorder 1, %s11
    %p187 = scmp.lt.s32.totalorder %s11, 3
    %p188 = pnand %p186, %p187
    %p189 = pneg %p188
    // Predicated region
    $region37: #{tpu_custom_call.1} parent=5 // pred_check
      _
    $region38: #{tpu_custom_call.1} parent=5 // pred_check_branch
      %191 = sbr.rel (%p188) target = $region40
    $region39: #{tpu_custom_call.1} parent=5 // pred_region
      %s192 = ssub.s32 %s11, 1
      %p193 = scmp.lt.s32.totalorder %s16, 1
      %s194 = scalar_select %p193, %s16, 1
      %s195 = smul.addr %s194, 32
      %s196 = smul.addr %s195, 8
      %s197 = scalar_lea.vmem %s0, %s196
      %p198 = pneg %p37
      %p199 = pneg %p34
      %p200 = pneg %p58
      %p201 = pneg %p55
      %p202 = pneg %p79
      %p203 = pneg %p76
      %p204 = pneg %p100
      %p205 = pneg %p97
      %p206 = pneg %p121
      %p207 = pneg %p118
      %p208 = pneg %p147
      %p209 = pneg %p144
      %p210 = scmp.lt.s32.totalorder %s16, 1
      %s211 = scalar_select %p210, %s16, 1
      %s212 = smul.addr %s211, 32
      %s213 = smul.addr %s212, 8
      %s214 = scalar_lea.vmem %s5, %s213
      %p215 = scmp.lt.s32.totalorder %s16, 1
      %s216 = scalar_select %p215, %s16, 1
      %s217 = smul.addr %s216, 32
      %s218 = smul.addr %s217, 8
      %s219 = scalar_lea.vmem %s0, %s218
      %p220 = scmp.lt.s32.totalorder %s16, 1
      %s221 = scalar_select %p220, %s16, 1
      %s222 = smul.addr %s221, 32
      %s223 = smul.addr %s222, 8
      %s224 = scalar_lea.vmem %s5, %s223
      %v226 = vld [vmem:[%s219] sm:$0xff]
      %v227 = vld [vmem:[%s219 + $0x8] sm:$0xff]
      %v228 = vld [vmem:[%s219 + $0x10] sm:$0xff]
      %v229 = vld [vmem:[%s219 + $0x18] sm:$0xff]
      %v230 = vld [vmem:[%s219 + $0x20] sm:$0xff]
      %v231 = vld [vmem:[%s219 + $0x28] sm:$0xff]
      %v232 = vld [vmem:[%s219 + $0x30] sm:$0xff]
      %v233 = vld [vmem:[%s219 + $0x38] sm:$0xff]
      %v234 = vld [vmem:[%s219 + $0x40] sm:$0xff]
      %v235 = vld [vmem:[%s219 + $0x48] sm:$0xff]
      %v236 = vld [vmem:[%s219 + $0x50] sm:$0xff]
      %v237 = vld [vmem:[%s219 + $0x58] sm:$0xff]
      %v238 = vld [vmem:[%s219 + $0x60] sm:$0xff]
      %v239 = vld [vmem:[%s219 + $0x68] sm:$0xff]
      %v240 = vld [vmem:[%s219 + $0x70] sm:$0xff]
      %v241 = vld [vmem:[%s219 + $0x78] sm:$0xff]
      %v242 = vld [vmem:[%s219 + $0x80] sm:$0xff]
      %v243 = vld [vmem:[%s219 + $0x88] sm:$0xff]
      %v244 = vld [vmem:[%s219 + $0x90] sm:$0xff]
      %v245 = vld [vmem:[%s219 + $0x98] sm:$0xff]
      %v246 = vld [vmem:[%s219 + $0xa0] sm:$0xff]
      %v247 = vld [vmem:[%s219 + $0xa8] sm:$0xff]
      %v248 = vld [vmem:[%s219 + $0xb0] sm:$0xff]
      %v249 = vld [vmem:[%s219 + $0xb8] sm:$0xff]
      %v250 = vld [vmem:[%s219 + $0xc0] sm:$0xff]
      %v251 = vld [vmem:[%s219 + $0xc8] sm:$0xff]
      %v252 = vld [vmem:[%s219 + $0xd0] sm:$0xff]
      %v253 = vld [vmem:[%s219 + $0xd8] sm:$0xff]
      %v254 = vld [vmem:[%s219 + $0xe0] sm:$0xff]
      %v255 = vld [vmem:[%s219 + $0xe8] sm:$0xff]
      %v256 = vld [vmem:[%s219 + $0xf0] sm:$0xff]
      %v257 = vld [vmem:[%s219 + $0xf8] sm:$0xff]
      %vm258 = vcmask 27648
      %259 = vst.msk [vmem:[#allocation2] sm:$0xf] %vm258, 0
      %260 = vst.msk [vmem:[#allocation2 + $0x4] sm:$0xf] %vm258, 0
      %vm261 = vcmask 24576
      %262 = vst.msk [vmem:[#allocation2 + $0x8] sm:$0x1] %vm261, 0
      %s263 = scalar_lea.vmem [#allocation2], 204
      %264 = vst.msk [vmem:[%s263] sm:$0xf] %vm258, 0
      %265 = vst.msk [vmem:[%s263 + $0x4] sm:$0xf] %vm258, 0
      %266 = vst.msk [vmem:[%s263 + $0x8] sm:$0x1] %vm261, 0
      %vm267 = vcmask 24576
      %vm268 = vsmask.f32 256
      %vm269 = vmand %vm267, %vm268
      %v270 = vld [vmem:[#allocation2] sm:$0x1]
      %v271 = vsel %vm269, 0, %v270
      %272 = vst [vmem:[#allocation2] sm:$0x1] %v271
      %v273 = vld [vmem:[#allocation2 + $0xc] sm:$0x1]
      %v274 = vsel %vm269, 0, %v273
      %275 = vst [vmem:[#allocation2 + $0xc] sm:$0x1] %v274
      %v276 = vld [vmem:[#allocation2 + $0x18] sm:$0x1]
      %v277 = vsel %vm269, 0, %v276
      %278 = vst [vmem:[#allocation2 + $0x18] sm:$0x1] %v277
      %v279 = vld [vmem:[#allocation2 + $0x24] sm:$0x1]
      %v280 = vsel %vm269, 0, %v279
      %281 = vst [vmem:[#allocation2 + $0x24] sm:$0x1] %v280
      %v282 = vld [vmem:[#allocation2 + $0x30] sm:$0x1]
      %v283 = vsel %vm269, 0, %v282
      %284 = vst [vmem:[#allocation2 + $0x30] sm:$0x1] %v283
      %v285 = vld [vmem:[#allocation2 + $0x3c] sm:$0x1]
      %v286 = vsel %vm269, 0, %v285
      %287 = vst [vmem:[#allocation2 + $0x3c] sm:$0x1] %v286
      %v288 = vld [vmem:[#allocation2 + $0x48] sm:$0x1]
      %v289 = vsel %vm269, 0, %v288
      %290 = vst [vmem:[#allocation2 + $0x48] sm:$0x1] %v289
      %v291 = vld [vmem:[#allocation2 + $0x54] sm:$0x1]
      %v292 = vsel %vm269, 0, %v291
      %293 = vst [vmem:[#allocation2 + $0x54] sm:$0x1] %v292
      %v294 = vld [vmem:[#allocation2 + $0x60] sm:$0x1]
      %v295 = vsel %vm269, 0, %v294
      %296 = vst [vmem:[#allocation2 + $0x60] sm:$0x1] %v295
      %v297 = vld [vmem:[#allocation2 + $0x6c] sm:$0x1]
      %v298 = vsel %vm269, 0, %v297
      %299 = vst [vmem:[#allocation2 + $0x6c] sm:$0x1] %v298
      %v300 = vld [vmem:[#allocation2 + $0x78] sm:$0x1]
      %v301 = vsel %vm269, 0, %v300
      %302 = vst [vmem:[#allocation2 + $0x78] sm:$0x1] %v301
      %v303 = vld [vmem:[#allocation2 + $0x84] sm:$0x1]
      %v304 = vsel %vm269, 0, %v303
      %305 = vst [vmem:[#allocation2 + $0x84] sm:$0x1] %v304
      %v306 = vld [vmem:[#allocation2 + $0x90] sm:$0x1]
      %v307 = vsel %vm269, 0, %v306
      %308 = vst [vmem:[#allocation2 + $0x90] sm:$0x1] %v307
      %v309 = vld [vmem:[#allocation2 + $0x9c] sm:$0x1]
      %v310 = vsel %vm269, 0, %v309
      %311 = vst [vmem:[#allocation2 + $0x9c] sm:$0x1] %v310
      %v312 = vld [vmem:[#allocation2 + $0xa8] sm:$0x1]
      %v313 = vsel %vm269, 0, %v312
      %314 = vst [vmem:[#allocation2 + $0xa8] sm:$0x1] %v313
      %v315 = vld [vmem:[#allocation2 + $0xb4] sm:$0x1]
      %v316 = vsel %vm269, 0, %v315
      %317 = vst [vmem:[#allocation2 + $0xb4] sm:$0x1] %v316
      %v318 = vld [vmem:[#allocation2 + $0xc0] sm:$0x1]
      %v319 = vsel %vm269, 0, %v318
      %320 = vst [vmem:[#allocation2 + $0xc0] sm:$0x1] %v319
      %v321 = vld [vmem:[#allocation2 + $0xcc] sm:$0x1]
      %v322 = vsel %vm269, 0, %v321
      %323 = vst [vmem:[#allocation2 + $0xcc] sm:$0x1] %v322
      %vm324 = vsmask.f32 7938
      %vm325 = vmand %vm267, %vm324
      %v326 = vld [vmem:[#allocation2 + $0x8] sm:$0x1]
      %v327 = vsel %vm325, 0, %v326
      %328 = vst [vmem:[#allocation2 + $0x8] sm:$0x1] %v327
      %v329 = vld [vmem:[#allocation2 + $0x14] sm:$0x1]
      %v330 = vsel %vm325, 0, %v329
      %331 = vst [vmem:[#allocation2 + $0x14] sm:$0x1] %v330
      %v332 = vld [vmem:[#allocation2 + $0x20] sm:$0x1]
      %v333 = vsel %vm325, 0, %v332
      %334 = vst [vmem:[#allocation2 + $0x20] sm:$0x1] %v333
      %v335 = vld [vmem:[#allocation2 + $0x2c] sm:$0x1]
      %v336 = vsel %vm325, 0, %v335
      %337 = vst [vmem:[#allocation2 + $0x2c] sm:$0x1] %v336
      %v338 = vld [vmem:[#allocation2 + $0x38] sm:$0x1]
      %v339 = vsel %vm325, 0, %v338
      %340 = vst [vmem:[#allocation2 + $0x38] sm:$0x1] %v339
      %v341 = vld [vmem:[#allocation2 + $0x44] sm:$0x1]
      %v342 = vsel %vm325, 0, %v341
      %343 = vst [vmem:[#allocation2 + $0x44] sm:$0x1] %v342
      %v344 = vld [vmem:[#allocation2 + $0x50] sm:$0x1]
      %v345 = vsel %vm325, 0, %v344
      %346 = vst [vmem:[#allocation2 + $0x50] sm:$0x1] %v345
      %v347 = vld [vmem:[#allocation2 + $0x5c] sm:$0x1]
      %v348 = vsel %vm325, 0, %v347
      %349 = vst [vmem:[#allocation2 + $0x5c] sm:$0x1] %v348
      %v350 = vld [vmem:[#allocation2 + $0x68] sm:$0x1]
      %v351 = vsel %vm325, 0, %v350
      %352 = vst [vmem:[#allocation2 + $0x68] sm:$0x1] %v351
      %v353 = vld [vmem:[#allocation2 + $0x74] sm:$0x1]
      %v354 = vsel %vm325, 0, %v353
      %355 = vst [vmem:[#allocation2 + $0x74] sm:$0x1] %v354
      %v356 = vld [vmem:[#allocation2 + $0x80] sm:$0x1]
      %v357 = vsel %vm325, 0, %v356
      %358 = vst [vmem:[#allocation2 + $0x80] sm:$0x1] %v357
      %v359 = vld [vmem:[#allocation2 + $0x8c] sm:$0x1]
      %v360 = vsel %vm325, 0, %v359
      %361 = vst [vmem:[#allocation2 + $0x8c] sm:$0x1] %v360
      %v362 = vld [vmem:[#allocation2 + $0x98] sm:$0x1]
      %v363 = vsel %vm325, 0, %v362
      %364 = vst [vmem:[#allocation2 + $0x98] sm:$0x1] %v363
      %v365 = vld [vmem:[#allocation2 + $0xa4] sm:$0x1]
      %v366 = vsel %vm325, 0, %v365
      %367 = vst [vmem:[#allocation2 + $0xa4] sm:$0x1] %v366
      %v368 = vld [vmem:[#allocation2 + $0xb0] sm:$0x1]
      %v369 = vsel %vm325, 0, %v368
      %370 = vst [vmem:[#allocation2 + $0xb0] sm:$0x1] %v369
      %v371 = vld [vmem:[#allocation2 + $0xbc] sm:$0x1]
      %v372 = vsel %vm325, 0, %v371
      %373 = vst [vmem:[#allocation2 + $0xbc] sm:$0x1] %v372
      %v374 = vld [vmem:[#allocation2 + $0xc8] sm:$0x1]
      %v375 = vsel %vm325, 0, %v374
      %376 = vst [vmem:[#allocation2 + $0xc8] sm:$0x1] %v375
      %v377 = vld [vmem:[#allocation2 + $0xd4] sm:$0x1]
      %v378 = vsel %vm325, 0, %v377
      %379 = vst [vmem:[#allocation2 + $0xd4] sm:$0x1] %v378
      %v380 = vpack.c.bf16 %v227, %v226
      %v381 = vpack.c.bf16 %v229, %v228
      %v382 = vpack.c.bf16 %v231, %v230
      %v383 = vpack.c.bf16 %v233, %v232
      %v384 = vpack.c.bf16 %v235, %v234
      %v385 = vpack.c.bf16 %v237, %v236
      %v386 = vpack.c.bf16 %v239, %v238
      %v387 = vpack.c.bf16 %v241, %v240
      %v388 = vpack.c.bf16 %v243, %v242
      %v389 = vpack.c.bf16 %v245, %v244
      %v390 = vpack.c.bf16 %v247, %v246
      %v391 = vpack.c.bf16 %v249, %v248
      %v392 = vpack.c.bf16 %v251, %v250
      %v393 = vpack.c.bf16 %v253, %v252
      %v394 = vpack.c.bf16 %v255, %v254
      %v395 = vpack.c.bf16 %v257, %v256
      %v412 = vunpack.c.l.b16 %v380
      %v413 = vunpack.c.h.b16 %v380
      %v414 = vunpack.c.l.b16 %v381
      %v415 = vunpack.c.h.b16 %v381
      %v416 = vunpack.c.l.b16 %v382
      %v417 = vunpack.c.h.b16 %v382
      %v418 = vunpack.c.l.b16 %v383
      %v419 = vunpack.c.h.b16 %v383
      %v420 = vunpack.c.l.b16 %v384
      %v421 = vunpack.c.h.b16 %v384
      %v422 = vunpack.c.l.b16 %v385
      %v423 = vunpack.c.h.b16 %v385
      %v424 = vunpack.c.l.b16 %v386
      %v425 = vunpack.c.h.b16 %v386
      %v426 = vunpack.c.l.b16 %v387
      %v427 = vunpack.c.h.b16 %v387
      %v428 = vunpack.c.l.b16 %v388
      %v429 = vunpack.c.h.b16 %v388
      %v430 = vunpack.c.l.b16 %v389
      %v431 = vunpack.c.h.b16 %v389
      %v432 = vunpack.c.l.b16 %v390
      %v433 = vunpack.c.h.b16 %v390
      %v434 = vunpack.c.l.b16 %v391
      %v435 = vunpack.c.h.b16 %v391
      %v436 = vunpack.c.l.b16 %v392
      %v437 = vunpack.c.h.b16 %v392
      %v438 = vunpack.c.l.b16 %v393
      %v439 = vunpack.c.h.b16 %v393
      %v440 = vunpack.c.l.b16 %v394
      %v441 = vunpack.c.h.b16 %v394
      %v442 = vunpack.c.l.b16 %v395
      %v443 = vunpack.c.h.b16 %v395
      %v444 = vpack.c.b16 %v412, %v412
      %v445 = vpack.c.b16 %v413, %v413
      %v446 = vpack.c.b16 %v414, %v414
      %v447 = vpack.c.b16 %v415, %v415
      %v448 = vpack.c.b16 %v416, %v416
      %v449 = vpack.c.b16 %v417, %v417
      %v450 = vpack.c.b16 %v418, %v418
      %v451 = vpack.c.b16 %v419, %v419
      %v452 = vpack.c.b16 %v420, %v420
      %v453 = vpack.c.b16 %v421, %v421
      %v454 = vpack.c.b16 %v422, %v422
      %v455 = vpack.c.b16 %v423, %v423
      %v456 = vpack.c.b16 %v424, %v424
      %v457 = vpack.c.b16 %v425, %v425
      %v458 = vpack.c.b16 %v426, %v426
      %v459 = vpack.c.b16 %v427, %v427
      %v460 = vpack.c.b16 %v428, %v428
      %v461 = vpack.c.b16 %v429, %v429
      %v462 = vpack.c.b16 %v430, %v430
      %v463 = vpack.c.b16 %v431, %v431
      %v464 = vpack.c.b16 %v432, %v432
      %v465 = vpack.c.b16 %v433, %v433
      %v466 = vpack.c.b16 %v434, %v434
      %v467 = vpack.c.b16 %v435, %v435
      %v468 = vpack.c.b16 %v436, %v436
      %v469 = vpack.c.b16 %v437, %v437
      %v470 = vpack.c.b16 %v438, %v438
      %v471 = vpack.c.b16 %v439, %v439
      %v472 = vpack.c.b16 %v440, %v440
      %v473 = vpack.c.b16 %v441, %v441
      %v474 = vpack.c.b16 %v442, %v442
      %v475 = vpack.c.b16 %v443, %v443
      %vm476 = vsmask.f32 4368
      %vm477 = vmor %vm268, %vm476
      %v479 = vshrl.u32 %v444, 16
      %v481 = vrot.slane %v479, 7
      %v482 = vshll.u32 %v444, 16
      %v484 = vor.u32 %v481, %v482
      %v485 = vrot.slane %v481, 4
      %v487 = vshrl.u32 %v445, 16
      %v489 = vrot.slane %v487, 7
      %v490 = vshll.u32 %v445, 16
      %v492 = vor.u32 %v489, %v490
      %v493 = vsel %vm477, %v485, %v492
      %v494 = vrot.slane %v489, 4
      %v496 = vshrl.u32 %v446, 16
      %v498 = vrot.slane %v496, 7
      %v499 = vshll.u32 %v446, 16
      %v501 = vor.u32 %v498, %v499
      %v502 = vrot.slane %v498, 4
      %v504 = vshrl.u32 %v447, 16
      %v506 = vrot.slane %v504, 7
      %v507 = vshll.u32 %v447, 16
      %v509 = vor.u32 %v506, %v507
      %v510 = vsel %vm477, %v502, %v509
      %v511 = vrot.slane %v506, 4
      %v513 = vshrl.u32 %v448, 16
      %v515 = vrot.slane %v513, 7
      %v516 = vshll.u32 %v448, 16
      %v518 = vor.u32 %v515, %v516
      %v519 = vrot.slane %v515, 4
      %v521 = vshrl.u32 %v449, 16
      %v523 = vrot.slane %v521, 7
      %v524 = vshll.u32 %v449, 16
      %v526 = vor.u32 %v523, %v524
      %v527 = vsel %vm477, %v519, %v526
      %v528 = vrot.slane %v523, 4
      %v530 = vshrl.u32 %v450, 16
      %v532 = vrot.slane %v530, 7
      %v533 = vshll.u32 %v450, 16
      %v535 = vor.u32 %v532, %v533
      %v536 = vrot.slane %v532, 4
      %v538 = vshrl.u32 %v451, 16
      %v540 = vrot.slane %v538, 7
      %v541 = vshll.u32 %v451, 16
      %v543 = vor.u32 %v540, %v541
      %v544 = vsel %vm477, %v536, %v543
      %v545 = vrot.slane %v540, 4
      %v547 = vshrl.u32 %v452, 16
      %v549 = vrot.slane %v547, 7
      %v550 = vshll.u32 %v452, 16
      %v552 = vor.u32 %v549, %v550
      %v553 = vrot.slane %v549, 4
      %v555 = vshrl.u32 %v453, 16
      %v557 = vrot.slane %v555, 7
      %v558 = vshll.u32 %v453, 16
      %v560 = vor.u32 %v557, %v558
      %v561 = vsel %vm477, %v553, %v560
      %v562 = vrot.slane %v557, 4
      %v564 = vshrl.u32 %v454, 16
      %v566 = vrot.slane %v564, 7
      %v567 = vshll.u32 %v454, 16
      %v569 = vor.u32 %v566, %v567
      %v570 = vrot.slane %v566, 4
      %v572 = vshrl.u32 %v455, 16
      %v574 = vrot.slane %v572, 7
      %v575 = vshll.u32 %v455, 16
      %v577 = vor.u32 %v574, %v575
      %v578 = vsel %vm477, %v570, %v577
      %v579 = vrot.slane %v574, 4
      %v581 = vshrl.u32 %v456, 16
      %v583 = vrot.slane %v581, 7
      %v584 = vshll.u32 %v456, 16
      %v586 = vor.u32 %v583, %v584
      %v587 = vrot.slane %v583, 4
      %v589 = vshrl.u32 %v457, 16
      %v591 = vrot.slane %v589, 7
      %v592 = vshll.u32 %v457, 16
      %v594 = vor.u32 %v591, %v592
      %v595 = vsel %vm477, %v587, %v594
      %v596 = vrot.slane %v591, 4
      %v598 = vshrl.u32 %v458, 16
      %v600 = vrot.slane %v598, 7
      %v601 = vshll.u32 %v458, 16
      %v603 = vor.u32 %v600, %v601
      %v604 = vrot.slane %v600, 4
      %v606 = vshrl.u32 %v459, 16
      %v608 = vrot.slane %v606, 7
      %v609 = vshll.u32 %v459, 16
      %v611 = vor.u32 %v608, %v609
      %v612 = vsel %vm477, %v604, %v611
      %v613 = vrot.slane %v608, 4
      %v615 = vshrl.u32 %v460, 16
      %v617 = vrot.slane %v615, 7
      %v618 = vshll.u32 %v460, 16
      %v620 = vor.u32 %v617, %v618
      %v621 = vrot.slane %v617, 4
      %v623 = vshrl.u32 %v461, 16
      %v625 = vrot.slane %v623, 7
      %v626 = vshll.u32 %v461, 16
      %v628 = vor.u32 %v625, %v626
      %v629 = vsel %vm477, %v621, %v628
      %v630 = vrot.slane %v625, 4
      %v632 = vshrl.u32 %v462, 16
      %v634 = vrot.slane %v632, 7
      %v635 = vshll.u32 %v462, 16
      %v637 = vor.u32 %v634, %v635
      %v638 = vrot.slane %v634, 4
      %v640 = vshrl.u32 %v463, 16
      %v642 = vrot.slane %v640, 7
      %v643 = vshll.u32 %v463, 16
      %v645 = vor.u32 %v642, %v643
      %v646 = vsel %vm477, %v638, %v645
      %v647 = vrot.slane %v642, 4
      %v649 = vshrl.u32 %v464, 16
      %v651 = vrot.slane %v649, 7
      %v652 = vshll.u32 %v464, 16
      %v654 = vor.u32 %v651, %v652
      %v655 = vrot.slane %v651, 4
      %v657 = vshrl.u32 %v465, 16
      %v659 = vrot.slane %v657, 7
      %v660 = vshll.u32 %v465, 16
      %v662 = vor.u32 %v659, %v660
      %v663 = vsel %vm477, %v655, %v662
      %v664 = vrot.slane %v659, 4
      %v666 = vshrl.u32 %v466, 16
      %v668 = vrot.slane %v666, 7
      %v669 = vshll.u32 %v466, 16
      %v671 = vor.u32 %v668, %v669
      %v672 = vrot.slane %v668, 4
      %v674 = vshrl.u32 %v467, 16
      %v676 = vrot.slane %v674, 7
      %v677 = vshll.u32 %v467, 16
      %v679 = vor.u32 %v676, %v677
      %v680 = vsel %vm477, %v672, %v679
      %v681 = vrot.slane %v676, 4
      %v683 = vshrl.u32 %v468, 16
      %v685 = vrot.slane %v683, 7
      %v686 = vshll.u32 %v468, 16
      %v688 = vor.u32 %v685, %v686
      %v689 = vrot.slane %v685, 4
      %v691 = vshrl.u32 %v469, 16
      %v693 = vrot.slane %v691, 7
      %v694 = vshll.u32 %v469, 16
      %v696 = vor.u32 %v693, %v694
      %v697 = vsel %vm477, %v689, %v696
      %v698 = vrot.slane %v693, 4
      %v700 = vshrl.u32 %v470, 16
      %v702 = vrot.slane %v700, 7
      %v703 = vshll.u32 %v470, 16
      %v705 = vor.u32 %v702, %v703
      %v706 = vrot.slane %v702, 4
      %v708 = vshrl.u32 %v471, 16
      %v710 = vrot.slane %v708, 7
      %v711 = vshll.u32 %v471, 16
      %v713 = vor.u32 %v710, %v711
      %v714 = vsel %vm477, %v706, %v713
      %v715 = vrot.slane %v710, 4
      %v717 = vshrl.u32 %v472, 16
      %v719 = vrot.slane %v717, 7
      %v720 = vshll.u32 %v472, 16
      %v722 = vor.u32 %v719, %v720
      %v723 = vrot.slane %v719, 4
      %v725 = vshrl.u32 %v473, 16
      %v727 = vrot.slane %v725, 7
      %v728 = vshll.u32 %v473, 16
      %v730 = vor.u32 %v727, %v728
      %v731 = vsel %vm477, %v723, %v730
      %v732 = vrot.slane %v727, 4
      %v734 = vshrl.u32 %v474, 16
      %v736 = vrot.slane %v734, 7
      %v737 = vshll.u32 %v474, 16
      %v739 = vor.u32 %v736, %v737
      %v740 = vrot.slane %v736, 4
      %v742 = vshrl.u32 %v475, 16
      %v744 = vrot.slane %v742, 7
      %v745 = vshll.u32 %v475, 16
      %v747 = vor.u32 %v744, %v745
      %v748 = vsel %vm477, %v740, %v747
      %v749 = vrot.slane %v744, 4
      %s798 = scalar_lea.vmem [#allocation2], 12
      %vm799 = vcmask 27648
      %vm800 = vmand %vm799, %vm324
      %v801 = vld [vmem:[%s798] sm:$0xf]
      %v802 = vsel %vm800, %v484, %v801
      %803 = vst [vmem:[%s798] sm:$0xf] %v802
      %804 = vst.msk [vmem:[%s798 + $0x4] sm:$0xf] %vm258, %v493
      %v805 = vld [vmem:[%s798 + $0x8] sm:$0x1]
      %v806 = vsel %vm269, %v494, %v805
      %807 = vst [vmem:[%s798 + $0x8] sm:$0x1] %v806
      %v808 = vld [vmem:[%s798 + $0xc] sm:$0xf]
      %v809 = vsel %vm800, %v501, %v808
      %810 = vst [vmem:[%s798 + $0xc] sm:$0xf] %v809
      %811 = vst.msk [vmem:[%s798 + $0x10] sm:$0xf] %vm258, %v510
      %v812 = vld [vmem:[%s798 + $0x14] sm:$0x1]
      %v813 = vsel %vm269, %v511, %v812
      %814 = vst [vmem:[%s798 + $0x14] sm:$0x1] %v813
      %v815 = vld [vmem:[%s798 + $0x18] sm:$0xf]
      %v816 = vsel %vm800, %v518, %v815
      %817 = vst [vmem:[%s798 + $0x18] sm:$0xf] %v816
      %818 = vst.msk [vmem:[%s798 + $0x1c] sm:$0xf] %vm258, %v527
      %v819 = vld [vmem:[%s798 + $0x20] sm:$0x1]
      %v820 = vsel %vm269, %v528, %v819
      %821 = vst [vmem:[%s798 + $0x20] sm:$0x1] %v820
      %v822 = vld [vmem:[%s798 + $0x24] sm:$0xf]
      %v823 = vsel %vm800, %v535, %v822
      %824 = vst [vmem:[%s798 + $0x24] sm:$0xf] %v823
      %825 = vst.msk [vmem:[%s798 + $0x28] sm:$0xf] %vm258, %v544
      %v826 = vld [vmem:[%s798 + $0x2c] sm:$0x1]
      %v827 = vsel %vm269, %v545, %v826
      %828 = vst [vmem:[%s798 + $0x2c] sm:$0x1] %v827
      %v829 = vld [vmem:[%s798 + $0x30] sm:$0xf]
      %v830 = vsel %vm800, %v552, %v829
      %831 = vst [vmem:[%s798 + $0x30] sm:$0xf] %v830
      %832 = vst.msk [vmem:[%s798 + $0x34] sm:$0xf] %vm258, %v561
      %v833 = vld [vmem:[%s798 + $0x38] sm:$0x1]
      %v834 = vsel %vm269, %v562, %v833
      %835 = vst [vmem:[%s798 + $0x38] sm:$0x1] %v834
      %v836 = vld [vmem:[%s798 + $0x3c] sm:$0xf]
      %v837 = vsel %vm800, %v569, %v836
      %838 = vst [vmem:[%s798 + $0x3c] sm:$0xf] %v837
      %839 = vst.msk [vmem:[%s798 + $0x40] sm:$0xf] %vm258, %v578
      %v840 = vld [vmem:[%s798 + $0x44] sm:$0x1]
      %v841 = vsel %vm269, %v579, %v840
      %842 = vst [vmem:[%s798 + $0x44] sm:$0x1] %v841
      %v843 = vld [vmem:[%s798 + $0x48] sm:$0xf]
      %v844 = vsel %vm800, %v586, %v843
      %845 = vst [vmem:[%s798 + $0x48] sm:$0xf] %v844
      %846 = vst.msk [vmem:[%s798 + $0x4c] sm:$0xf] %vm258, %v595
      %v847 = vld [vmem:[%s798 + $0x50] sm:$0x1]
      %v848 = vsel %vm269, %v596, %v847
      %849 = vst [vmem:[%s798 + $0x50] sm:$0x1] %v848
      %v850 = vld [vmem:[%s798 + $0x54] sm:$0xf]
      %v851 = vsel %vm800, %v603, %v850
      %852 = vst [vmem:[%s798 + $0x54] sm:$0xf] %v851
      %853 = vst.msk [vmem:[%s798 + $0x58] sm:$0xf] %vm258, %v612
      %v854 = vld [vmem:[%s798 + $0x5c] sm:$0x1]
      %v855 = vsel %vm269, %v613, %v854
      %856 = vst [vmem:[%s798 + $0x5c] sm:$0x1] %v855
      %v857 = vld [vmem:[%s798 + $0x60] sm:$0xf]
      %v858 = vsel %vm800, %v620, %v857
      %859 = vst [vmem:[%s798 + $0x60] sm:$0xf] %v858
      %860 = vst.msk [vmem:[%s798 + $0x64] sm:$0xf] %vm258, %v629
      %v861 = vld [vmem:[%s798 + $0x68] sm:$0x1]
      %v862 = vsel %vm269, %v630, %v861
      %863 = vst [vmem:[%s798 + $0x68] sm:$0x1] %v862
      %v864 = vld [vmem:[%s798 + $0x6c] sm:$0xf]
      %v865 = vsel %vm800, %v637, %v864
      %866 = vst [vmem:[%s798 + $0x6c] sm:$0xf] %v865
      %867 = vst.msk [vmem:[%s798 + $0x70] sm:$0xf] %vm258, %v646
      %v868 = vld [vmem:[%s798 + $0x74] sm:$0x1]
      %v869 = vsel %vm269, %v647, %v868
      %870 = vst [vmem:[%s798 + $0x74] sm:$0x1] %v869
      %v871 = vld [vmem:[%s798 + $0x78] sm:$0xf]
      %v872 = vsel %vm800, %v654, %v871
      %873 = vst [vmem:[%s798 + $0x78] sm:$0xf] %v872
      %874 = vst.msk [vmem:[%s798 + $0x7c] sm:$0xf] %vm258, %v663
      %v875 = vld [vmem:[%s798 + $0x80] sm:$0x1]
      %v876 = vsel %vm269, %v664, %v875
      %877 = vst [vmem:[%s798 + $0x80] sm:$0x1] %v876
      %v878 = vld [vmem:[%s798 + $0x84] sm:$0xf]
      %v879 = vsel %vm800, %v671, %v878
      %880 = vst [vmem:[%s798 + $0x84] sm:$0xf] %v879
      %881 = vst.msk [vmem:[%s798 + $0x88] sm:$0xf] %vm258, %v680
      %v882 = vld [vmem:[%s798 + $0x8c] sm:$0x1]
      %v883 = vsel %vm269, %v681, %v882
      %884 = vst [vmem:[%s798 + $0x8c] sm:$0x1] %v883
      %v885 = vld [vmem:[%s798 + $0x90] sm:$0xf]
      %v886 = vsel %vm800, %v688, %v885
      %887 = vst [vmem:[%s798 + $0x90] sm:$0xf] %v886
      %888 = vst.msk [vmem:[%s798 + $0x94] sm:$0xf] %vm258, %v697
      %v889 = vld [vmem:[%s798 + $0x98] sm:$0x1]
      %v890 = vsel %vm269, %v698, %v889
      %891 = vst [vmem:[%s798 + $0x98] sm:$0x1] %v890
      %v892 = vld [vmem:[%s798 + $0x9c] sm:$0xf]
      %v893 = vsel %vm800, %v705, %v892
      %894 = vst [vmem:[%s798 + $0x9c] sm:$0xf] %v893
      %895 = vst.msk [vmem:[%s798 + $0xa0] sm:$0xf] %vm258, %v714
      %v896 = vld [vmem:[%s798 + $0xa4] sm:$0x1]
      %v897 = vsel %vm269, %v715, %v896
      %898 = vst [vmem:[%s798 + $0xa4] sm:$0x1] %v897
      %v899 = vld [vmem:[%s798 + $0xa8] sm:$0xf]
      %v900 = vsel %vm800, %v722, %v899
      %901 = vst [vmem:[%s798 + $0xa8] sm:$0xf] %v900
      %902 = vst.msk [vmem:[%s798 + $0xac] sm:$0xf] %vm258, %v731
      %v903 = vld [vmem:[%s798 + $0xb0] sm:$0x1]
      %v904 = vsel %vm269, %v732, %v903
      %905 = vst [vmem:[%s798 + $0xb0] sm:$0x1] %v904
      %v906 = vld [vmem:[%s798 + $0xb4] sm:$0xf]
      %v907 = vsel %vm800, %v739, %v906
      %908 = vst [vmem:[%s798 + $0xb4] sm:$0xf] %v907
      %909 = vst.msk [vmem:[%s798 + $0xb8] sm:$0xf] %vm258, %v748
      %v910 = vld [vmem:[%s798 + $0xbc] sm:$0x1]
      %v911 = vsel %vm269, %v749, %v910
      %912 = vst [vmem:[%s798 + $0xbc] sm:$0x1] %v911
      %v913 = vld [vmem:[#allocation2] sm:$0xf]
      %v914 = vld [vmem:[#allocation2 + $0x4] sm:$0xf]
      %v915 = vld [vmem:[#allocation2 + $0xc] sm:$0xf]
      %v916 = vld [vmem:[#allocation2 + $0x10] sm:$0xf]
      %v917 = vld [vmem:[#allocation2 + $0x18] sm:$0xf]
      %v918 = vld [vmem:[#allocation2 + $0x1c] sm:$0xf]
      %v919 = vld [vmem:[#allocation2 + $0x24] sm:$0xf]
      %v920 = vld [vmem:[#allocation2 + $0x28] sm:$0xf]
      %v921 = vld [vmem:[#allocation2 + $0x30] sm:$0xf]
      %v922 = vld [vmem:[#allocation2 + $0x34] sm:$0xf]
      %v923 = vld [vmem:[#allocation2 + $0x3c] sm:$0xf]
      %v924 = vld [vmem:[#allocation2 + $0x40] sm:$0xf]
      %v925 = vld [vmem:[#allocation2 + $0x48] sm:$0xf]
      %v926 = vld [vmem:[#allocation2 + $0x4c] sm:$0xf]
      %v927 = vld [vmem:[#allocation2 + $0x54] sm:$0xf]
      %v928 = vld [vmem:[#allocation2 + $0x58] sm:$0xf]
      %v929 = vld [vmem:[#allocation2 + $0x60] sm:$0xf]
      %v930 = vld [vmem:[#allocation2 + $0x64] sm:$0xf]
      %v931 = vld [vmem:[#allocation2 + $0x6c] sm:$0xf]
      %v932 = vld [vmem:[#allocation2 + $0x70] sm:$0xf]
      %v933 = vld [vmem:[#allocation2 + $0x78] sm:$0xf]
      %v934 = vld [vmem:[#allocation2 + $0x7c] sm:$0xf]
      %v935 = vld [vmem:[#allocation2 + $0x84] sm:$0xf]
      %v936 = vld [vmem:[#allocation2 + $0x88] sm:$0xf]
      %v937 = vld [vmem:[#allocation2 + $0x90] sm:$0xf]
      %v938 = vld [vmem:[#allocation2 + $0x94] sm:$0xf]
      %v939 = vld [vmem:[#allocation2 + $0x9c] sm:$0xf]
      %v940 = vld [vmem:[#allocation2 + $0xa0] sm:$0xf]
      %v941 = vld [vmem:[#allocation2 + $0xa8] sm:$0xf]
      %v942 = vld [vmem:[#allocation2 + $0xac] sm:$0xf]
      %v943 = vld [vmem:[#allocation2 + $0xb4] sm:$0xf]
      %v944 = vld [vmem:[#allocation2 + $0xb8] sm:$0xf]
      %v977 = vunpack.c.l.b16 %v913
      %v978 = vunpack.c.l.b16 %v914
      %v979 = vunpack.c.l.b16 %v915
      %v980 = vunpack.c.l.b16 %v916
      %v981 = vunpack.c.l.b16 %v917
      %v982 = vunpack.c.l.b16 %v918
      %v983 = vunpack.c.l.b16 %v919
      %v984 = vunpack.c.l.b16 %v920
      %v985 = vunpack.c.l.b16 %v921
      %v986 = vunpack.c.l.b16 %v922
      %v987 = vunpack.c.l.b16 %v923
      %v988 = vunpack.c.l.b16 %v924
      %v989 = vunpack.c.l.b16 %v925
      %v990 = vunpack.c.l.b16 %v926
      %v991 = vunpack.c.l.b16 %v927
      %v992 = vunpack.c.l.b16 %v928
      %v993 = vunpack.c.l.b16 %v929
      %v994 = vunpack.c.l.b16 %v930
      %v995 = vunpack.c.l.b16 %v931
      %v996 = vunpack.c.l.b16 %v932
      %v997 = vunpack.c.l.b16 %v933
      %v998 = vunpack.c.l.b16 %v934
      %v999 = vunpack.c.l.b16 %v935
      %v1000 = vunpack.c.l.b16 %v936
      %v1001 = vunpack.c.l.b16 %v937
      %v1002 = vunpack.c.l.b16 %v938
      %v1003 = vunpack.c.l.b16 %v939
      %v1004 = vunpack.c.l.b16 %v940
      %v1005 = vunpack.c.l.b16 %v941
      %v1006 = vunpack.c.l.b16 %v942
      %v1007 = vunpack.c.l.b16 %v943
      %v1008 = vunpack.c.l.b16 %v944
      %v1009 = vpack.c.b16 %v978, %v977
      %v1010 = vpack.c.b16 %v980, %v979
      %v1011 = vpack.c.b16 %v982, %v981
      %v1012 = vpack.c.b16 %v984, %v983
      %v1013 = vpack.c.b16 %v986, %v985
      %v1014 = vpack.c.b16 %v988, %v987
      %v1015 = vpack.c.b16 %v990, %v989
      %v1016 = vpack.c.b16 %v992, %v991
      %v1017 = vpack.c.b16 %v994, %v993
      %v1018 = vpack.c.b16 %v996, %v995
      %v1019 = vpack.c.b16 %v998, %v997
      %v1020 = vpack.c.b16 %v1000, %v999
      %v1021 = vpack.c.b16 %v1002, %v1001
      %v1022 = vpack.c.b16 %v1004, %v1003
      %v1023 = vpack.c.b16 %v1006, %v1005
      %v1024 = vpack.c.b16 %v1008, %v1007
      %vm1041 = vcmask 31744
      %1042 = vst.msk [vmem:[#allocation3] sm:$0xff] %vm1041, %v1009
      %1043 = vst.msk [vmem:[#allocation3 + $0x8] sm:$0xff] %vm1041, %v1010
      %1044 = vst.msk [vmem:[#allocation3 + $0x10] sm:$0xff] %vm1041, %v1011
      %1045 = vst.msk [vmem:[#allocation3 + $0x18] sm:$0xff] %vm1041, %v1012
      %1046 = vst.msk [vmem:[#allocation3 + $0x20] sm:$0xff] %vm1041, %v1013
      %1047 = vst.msk [vmem:[#allocation3 + $0x28] sm:$0xff] %vm1041, %v1014
      %1048 = vst.msk [vmem:[#allocation3 + $0x30] sm:$0xff] %vm1041, %v1015
      %1049 = vst.msk [vmem:[#allocation3 + $0x38] sm:$0xff] %vm1041, %v1016
      %1050 = vst.msk [vmem:[#allocation3 + $0x40] sm:$0xff] %vm1041, %v1017
      %1051 = vst.msk [vmem:[#allocation3 + $0x48] sm:$0xff] %vm1041, %v1018
      %1052 = vst.msk [vmem:[#allocation3 + $0x50] sm:$0xff] %vm1041, %v1019
      %1053 = vst.msk [vmem:[#allocation3 + $0x58] sm:$0xff] %vm1041, %v1020
      %1054 = vst.msk [vmem:[#allocation3 + $0x60] sm:$0xff] %vm1041, %v1021
      %1055 = vst.msk [vmem:[#allocation3 + $0x68] sm:$0xff] %vm1041, %v1022
      %1056 = vst.msk [vmem:[#allocation3 + $0x70] sm:$0xff] %vm1041, %v1023
      %1057 = vst.msk [vmem:[#allocation3 + $0x78] sm:$0xff] %vm1041, %v1024
      %v1058 = vld [vmem:[#allocation2] sm:$0xf]
      %v1059 = vld [vmem:[#allocation2 + $0x4] sm:$0xf]
      %v1060 = vld [vmem:[#allocation2 + $0x8] sm:$0x1]
      %v1061 = vld [vmem:[#allocation2 + $0xc] sm:$0xf]
      %v1062 = vld [vmem:[#allocation2 + $0x10] sm:$0xf]
      %v1063 = vld [vmem:[#allocation2 + $0x14] sm:$0x1]
      %v1064 = vld [vmem:[#allocation2 + $0x18] sm:$0xf]
      %v1065 = vld [vmem:[#allocation2 + $0x1c] sm:$0xf]
      %v1066 = vld [vmem:[#allocation2 + $0x20] sm:$0x1]
      %v1067 = vld [vmem:[#allocation2 + $0x24] sm:$0xf]
      %v1068 = vld [vmem:[#allocation2 + $0x28] sm:$0xf]
      %v1069 = vld [vmem:[#allocation2 + $0x2c] sm:$0x1]
      %v1070 = vld [vmem:[#allocation2 + $0x30] sm:$0xf]
      %v1071 = vld [vmem:[#allocation2 + $0x34] sm:$0xf]
      %v1072 = vld [vmem:[#allocation2 + $0x38] sm:$0x1]
      %v1073 = vld [vmem:[#allocation2 + $0x3c] sm:$0xf]
      %v1074 = vld [vmem:[#allocation2 + $0x40] sm:$0xf]
      %v1075 = vld [vmem:[#allocation2 + $0x44] sm:$0x1]
      %v1076 = vld [vmem:[#allocation2 + $0x48] sm:$0xf]
      %v1077 = vld [vmem:[#allocation2 + $0x4c] sm:$0xf]
      %v1078 = vld [vmem:[#allocation2 + $0x50] sm:$0x1]
      %v1079 = vld [vmem:[#allocation2 + $0x54] sm:$0xf]
      %v1080 = vld [vmem:[#allocation2 + $0x58] sm:$0xf]
      %v1081 = vld [vmem:[#allocation2 + $0x5c] sm:$0x1]
      %v1082 = vld [vmem:[#allocation2 + $0x60] sm:$0xf]
      %v1083 = vld [vmem:[#allocation2 + $0x64] sm:$0xf]
      %v1084 = vld [vmem:[#allocation2 + $0x68] sm:$0x1]
      %v1085 = vld [vmem:[#allocation2 + $0x6c] sm:$0xf]
      %v1086 = vld [vmem:[#allocation2 + $0x70] sm:$0xf]
      %v1087 = vld [vmem:[#allocation2 + $0x74] sm:$0x1]
      %v1088 = vld [vmem:[#allocation2 + $0x78] sm:$0xf]
      %v1089 = vld [vmem:[#allocation2 + $0x7c] sm:$0xf]
      %v1090 = vld [vmem:[#allocation2 + $0x80] sm:$0x1]
      %v1091 = vld [vmem:[#allocation2 + $0x84] sm:$0xf]
      %v1092 = vld [vmem:[#allocation2 + $0x88] sm:$0xf]
      %v1093 = vld [vmem:[#allocation2 + $0x8c] sm:$0x1]
      %v1094 = vld [vmem:[#allocation2 + $0x90] sm:$0xf]
      %v1095 = vld [vmem:[#allocation2 + $0x94] sm:$0xf]
      %v1096 = vld [vmem:[#allocation2 + $0x98] sm:$0x1]
      %v1097 = vld [vmem:[#allocation2 + $0x9c] sm:$0xf]
      %v1098 = vld [vmem:[#allocation2 + $0xa0] sm:$0xf]
      %v1099 = vld [vmem:[#allocation2 + $0xa4] sm:$0x1]
      %v1100 = vld [vmem:[#allocation2 + $0xa8] sm:$0xf]
      %v1101 = vld [vmem:[#allocation2 + $0xac] sm:$0xf]
      %v1102 = vld [vmem:[#allocation2 + $0xb0] sm:$0x1]
      %v1103 = vld [vmem:[#allocation2 + $0xb4] sm:$0xf]
      %v1104 = vld [vmem:[#allocation2 + $0xb8] sm:$0xf]
      %v1105 = vld [vmem:[#allocation2 + $0xbc] sm:$0x1]
      %vm1106 = vsmask.f32 3328
      %vm1107 = vsmask.f32 7440
      %vm1108 = vmor %vm1106, %vm1107
      %v1110 = vshrl.u32 %v1058, 16
      %v1112 = vrot.slane %v1110, 4
      %v1113 = vshll.u32 %v1058, 16
      %v1115 = vrot.slane %v1113, 5
      %v1116 = vor.u32 %v1112, %v1115
      %v1117 = vrot.slane %v1116, 4
      %v1119 = vshll.u32 %v1059, 16
      %v1121 = vrot.slane %v1119, 5
      %v1122 = vsel %vm1108, %v1117, %v1121
      %v1123 = vshrl.u32 %v1059, 16
      %v1125 = vrot.slane %v1123, 4
      %v1126 = vor.u32 %v1125, %v1121
      %v1127 = vrot.slane %v1126, 4
      %v1129 = vshll.u32 %v1060, 16
      %v1131 = vrot.slane %v1129, 5
      %v1132 = vsel %vm1108, %v1127, %v1131
      %v1134 = vshrl.u32 %v1061, 16
      %v1136 = vrot.slane %v1134, 4
      %v1137 = vshll.u32 %v1061, 16
      %v1139 = vrot.slane %v1137, 5
      %v1140 = vor.u32 %v1136, %v1139
      %v1141 = vrot.slane %v1140, 4
      %v1143 = vshll.u32 %v1062, 16
      %v1145 = vrot.slane %v1143, 5
      %v1146 = vsel %vm1108, %v1141, %v1145
      %v1147 = vshrl.u32 %v1062, 16
      %v1149 = vrot.slane %v1147, 4
      %v1150 = vor.u32 %v1149, %v1145
      %v1151 = vrot.slane %v1150, 4
      %v1153 = vshll.u32 %v1063, 16
      %v1155 = vrot.slane %v1153, 5
      %v1156 = vsel %vm1108, %v1151, %v1155
      %v1158 = vshrl.u32 %v1064, 16
      %v1160 = vrot.slane %v1158, 4
      %v1161 = vshll.u32 %v1064, 16
      %v1163 = vrot.slane %v1161, 5
      %v1164 = vor.u32 %v1160, %v1163
      %v1165 = vrot.slane %v1164, 4
      %v1167 = vshll.u32 %v1065, 16
      %v1169 = vrot.slane %v1167, 5
      %v1170 = vsel %vm1108, %v1165, %v1169
      %v1171 = vshrl.u32 %v1065, 16
      %v1173 = vrot.slane %v1171, 4
      %v1174 = vor.u32 %v1173, %v1169
      %v1175 = vrot.slane %v1174, 4
      %v1177 = vshll.u32 %v1066, 16
      %v1179 = vrot.slane %v1177, 5
      %v1180 = vsel %vm1108, %v1175, %v1179
      %v1182 = vshrl.u32 %v1067, 16
      %v1184 = vrot.slane %v1182, 4
      %v1185 = vshll.u32 %v1067, 16
      %v1187 = vrot.slane %v1185, 5
      %v1188 = vor.u32 %v1184, %v1187
      %v1189 = vrot.slane %v1188, 4
      %v1191 = vshll.u32 %v1068, 16
      %v1193 = vrot.slane %v1191, 5
      %v1194 = vsel %vm1108, %v1189, %v1193
      %v1195 = vshrl.u32 %v1068, 16
      %v1197 = vrot.slane %v1195, 4
      %v1198 = vor.u32 %v1197, %v1193
      %v1199 = vrot.slane %v1198, 4
      %v1201 = vshll.u32 %v1069, 16
      %v1203 = vrot.slane %v1201, 5
      %v1204 = vsel %vm1108, %v1199, %v1203
      %v1206 = vshrl.u32 %v1070, 16
      %v1208 = vrot.slane %v1206, 4
      %v1209 = vshll.u32 %v1070, 16
      %v1211 = vrot.slane %v1209, 5
      %v1212 = vor.u32 %v1208, %v1211
      %v1213 = vrot.slane %v1212, 4
      %v1215 = vshll.u32 %v1071, 16
      %v1217 = vrot.slane %v1215, 5
      %v1218 = vsel %vm1108, %v1213, %v1217
      %v1219 = vshrl.u32 %v1071, 16
      %v1221 = vrot.slane %v1219, 4
      %v1222 = vor.u32 %v1221, %v1217
      %v1223 = vrot.slane %v1222, 4
      %v1225 = vshll.u32 %v1072, 16
      %v1227 = vrot.slane %v1225, 5
      %v1228 = vsel %vm1108, %v1223, %v1227
      %v1230 = vshrl.u32 %v1073, 16
      %v1232 = vrot.slane %v1230, 4
      %v1233 = vshll.u32 %v1073, 16
      %v1235 = vrot.slane %v1233, 5
      %v1236 = vor.u32 %v1232, %v1235
      %v1237 = vrot.slane %v1236, 4
      %v1239 = vshll.u32 %v1074, 16
      %v1241 = vrot.slane %v1239, 5
      %v1242 = vsel %vm1108, %v1237, %v1241
      %v1243 = vshrl.u32 %v1074, 16
      %v1245 = vrot.slane %v1243, 4
      %v1246 = vor.u32 %v1245, %v1241
      %v1247 = vrot.slane %v1246, 4
      %v1249 = vshll.u32 %v1075, 16
      %v1251 = vrot.slane %v1249, 5
      %v1252 = vsel %vm1108, %v1247, %v1251
      %v1254 = vshrl.u32 %v1076, 16
      %v1256 = vrot.slane %v1254, 4
      %v1257 = vshll.u32 %v1076, 16
      %v1259 = vrot.slane %v1257, 5
      %v1260 = vor.u32 %v1256, %v1259
      %v1261 = vrot.slane %v1260, 4
      %v1263 = vshll.u32 %v1077, 16
      %v1265 = vrot.slane %v1263, 5
      %v1266 = vsel %vm1108, %v1261, %v1265
      %v1267 = vshrl.u32 %v1077, 16
      %v1269 = vrot.slane %v1267, 4
      %v1270 = vor.u32 %v1269, %v1265
      %v1271 = vrot.slane %v1270, 4
      %v1273 = vshll.u32 %v1078, 16
      %v1275 = vrot.slane %v1273, 5
      %v1276 = vsel %vm1108, %v1271, %v1275
      %v1278 = vshrl.u32 %v1079, 16
      %v1280 = vrot.slane %v1278, 4
      %v1281 = vshll.u32 %v1079, 16
      %v1283 = vrot.slane %v1281, 5
      %v1284 = vor.u32 %v1280, %v1283
      %v1285 = vrot.slane %v1284, 4
      %v1287 = vshll.u32 %v1080, 16
      %v1289 = vrot.slane %v1287, 5
      %v1290 = vsel %vm1108, %v1285, %v1289
      %v1291 = vshrl.u32 %v1080, 16
      %v1293 = vrot.slane %v1291, 4
      %v1294 = vor.u32 %v1293, %v1289
      %v1295 = vrot.slane %v1294, 4
      %v1297 = vshll.u32 %v1081, 16
      %v1299 = vrot.slane %v1297, 5
      %v1300 = vsel %vm1108, %v1295, %v1299
      %v1302 = vshrl.u32 %v1082, 16
      %v1304 = vrot.slane %v1302, 4
      %v1305 = vshll.u32 %v1082, 16
      %v1307 = vrot.slane %v1305, 5
      %v1308 = vor.u32 %v1304, %v1307
      %v1309 = vrot.slane %v1308, 4
      %v1311 = vshll.u32 %v1083, 16
      %v1313 = vrot.slane %v1311, 5
      %v1314 = vsel %vm1108, %v1309, %v1313
      %v1315 = vshrl.u32 %v1083, 16
      %v1317 = vrot.slane %v1315, 4
      %v1318 = vor.u32 %v1317, %v1313
      %v1319 = vrot.slane %v1318, 4
      %v1321 = vshll.u32 %v1084, 16
      %v1323 = vrot.slane %v1321, 5
      %v1324 = vsel %vm1108, %v1319, %v1323
      %v1326 = vshrl.u32 %v1085, 16
      %v1328 = vrot.slane %v1326, 4
      %v1329 = vshll.u32 %v1085, 16
      %v1331 = vrot.slane %v1329, 5
      %v1332 = vor.u32 %v1328, %v1331
      %v1333 = vrot.slane %v1332, 4
      %v1335 = vshll.u32 %v1086, 16
      %v1337 = vrot.slane %v1335, 5
      %v1338 = vsel %vm1108, %v1333, %v1337
      %v1339 = vshrl.u32 %v1086, 16
      %v1341 = vrot.slane %v1339, 4
      %v1342 = vor.u32 %v1341, %v1337
      %v1343 = vrot.slane %v1342, 4
      %v1345 = vshll.u32 %v1087, 16
      %v1347 = vrot.slane %v1345, 5
      %v1348 = vsel %vm1108, %v1343, %v1347
      %v1350 = vshrl.u32 %v1088, 16
      %v1352 = vrot.slane %v1350, 4
      %v1353 = vshll.u32 %v1088, 16
      %v1355 = vrot.slane %v1353, 5
      %v1356 = vor.u32 %v1352, %v1355
      %v1357 = vrot.slane %v1356, 4
      %v1359 = vshll.u32 %v1089, 16
      %v1361 = vrot.slane %v1359, 5
      %v1362 = vsel %vm1108, %v1357, %v1361
      %v1363 = vshrl.u32 %v1089, 16
      %v1365 = vrot.slane %v1363, 4
      %v1366 = vor.u32 %v1365, %v1361
      %v1367 = vrot.slane %v1366, 4
      %v1369 = vshll.u32 %v1090, 16
      %v1371 = vrot.slane %v1369, 5
      %v1372 = vsel %vm1108, %v1367, %v1371
      %v1374 = vshrl.u32 %v1091, 16
      %v1376 = vrot.slane %v1374, 4
      %v1377 = vshll.u32 %v1091, 16
      %v1379 = vrot.slane %v1377, 5
      %v1380 = vor.u32 %v1376, %v1379
      %v1381 = vrot.slane %v1380, 4
      %v1383 = vshll.u32 %v1092, 16
      %v1385 = vrot.slane %v1383, 5
      %v1386 = vsel %vm1108, %v1381, %v1385
      %v1387 = vshrl.u32 %v1092, 16
      %v1389 = vrot.slane %v1387, 4
      %v1390 = vor.u32 %v1389, %v1385
      %v1391 = vrot.slane %v1390, 4
      %v1393 = vshll.u32 %v1093, 16
      %v1395 = vrot.slane %v1393, 5
      %v1396 = vsel %vm1108, %v1391, %v1395
      %v1398 = vshrl.u32 %v1094, 16
      %v1400 = vrot.slane %v1398, 4
      %v1401 = vshll.u32 %v1094, 16
      %v1403 = vrot.slane %v1401, 5
      %v1404 = vor.u32 %v1400, %v1403
      %v1405 = vrot.slane %v1404, 4
      %v1407 = vshll.u32 %v1095, 16
      %v1409 = vrot.slane %v1407, 5
      %v1410 = vsel %vm1108, %v1405, %v1409
      %v1411 = vshrl.u32 %v1095, 16
      %v1413 = vrot.slane %v1411, 4
      %v1414 = vor.u32 %v1413, %v1409
      %v1415 = vrot.slane %v1414, 4
      %v1417 = vshll.u32 %v1096, 16
      %v1419 = vrot.slane %v1417, 5
      %v1420 = vsel %vm1108, %v1415, %v1419
      %v1422 = vshrl.u32 %v1097, 16
      %v1424 = vrot.slane %v1422, 4
      %v1425 = vshll.u32 %v1097, 16
      %v1427 = vrot.slane %v1425, 5
      %v1428 = vor.u32 %v1424, %v1427
      %v1429 = vrot.slane %v1428, 4
      %v1431 = vshll.u32 %v1098, 16
      %v1433 = vrot.slane %v1431, 5
      %v1434 = vsel %vm1108, %v1429, %v1433
      %v1435 = vshrl.u32 %v1098, 16
      %v1437 = vrot.slane %v1435, 4
      %v1438 = vor.u32 %v1437, %v1433
      %v1439 = vrot.slane %v1438, 4
      %v1441 = vshll.u32 %v1099, 16
      %v1443 = vrot.slane %v1441, 5
      %v1444 = vsel %vm1108, %v1439, %v1443
      %v1446 = vshrl.u32 %v1100, 16
      %v1448 = vrot.slane %v1446, 4
      %v1449 = vshll.u32 %v1100, 16
      %v1451 = vrot.slane %v1449, 5
      %v1452 = vor.u32 %v1448, %v1451
      %v1453 = vrot.slane %v1452, 4
      %v1455 = vshll.u32 %v1101, 16
      %v1457 = vrot.slane %v1455, 5
      %v1458 = vsel %vm1108, %v1453, %v1457
      %v1459 = vshrl.u32 %v1101, 16
      %v1461 = vrot.slane %v1459, 4
      %v1462 = vor.u32 %v1461, %v1457
      %v1463 = vrot.slane %v1462, 4
      %v1465 = vshll.u32 %v1102, 16
      %v1467 = vrot.slane %v1465, 5
      %v1468 = vsel %vm1108, %v1463, %v1467
      %v1470 = vshrl.u32 %v1103, 16
      %v1472 = vrot.slane %v1470, 4
      %v1473 = vshll.u32 %v1103, 16
      %v1475 = vrot.slane %v1473, 5
      %v1476 = vor.u32 %v1472, %v1475
      %v1477 = vrot.slane %v1476, 4
      %v1479 = vshll.u32 %v1104, 16
      %v1481 = vrot.slane %v1479, 5
      %v1482 = vsel %vm1108, %v1477, %v1481
      %v1483 = vshrl.u32 %v1104, 16
      %v1485 = vrot.slane %v1483, 4
      %v1486 = vor.u32 %v1485, %v1481
      %v1487 = vrot.slane %v1486, 4
      %v1489 = vshll.u32 %v1105, 16
      %v1491 = vrot.slane %v1489, 5
      %v1492 = vsel %vm1108, %v1487, %v1491
      %v1493 = vunpack.c.l.b16 %v1122
      %v1494 = vunpack.c.l.b16 %v1132
      %v1495 = vunpack.c.l.b16 %v1146
      %v1496 = vunpack.c.l.b16 %v1156
      %v1497 = vunpack.c.l.b16 %v1170
      %v1498 = vunpack.c.l.b16 %v1180
      %v1499 = vunpack.c.l.b16 %v1194
      %v1500 = vunpack.c.l.b16 %v1204
      %v1501 = vunpack.c.l.b16 %v1218
      %v1502 = vunpack.c.l.b16 %v1228
      %v1503 = vunpack.c.l.b16 %v1242
      %v1504 = vunpack.c.l.b16 %v1252
      %v1505 = vunpack.c.l.b16 %v1266
      %v1506 = vunpack.c.l.b16 %v1276
      %v1507 = vunpack.c.l.b16 %v1290
      %v1508 = vunpack.c.l.b16 %v1300
      %v1509 = vunpack.c.l.b16 %v1314
      %v1510 = vunpack.c.l.b16 %v1324
      %v1511 = vunpack.c.l.b16 %v1338
      %v1512 = vunpack.c.l.b16 %v1348
      %v1513 = vunpack.c.l.b16 %v1362
      %v1514 = vunpack.c.l.b16 %v1372
      %v1515 = vunpack.c.l.b16 %v1386
      %v1516 = vunpack.c.l.b16 %v1396
      %v1517 = vunpack.c.l.b16 %v1410
      %v1518 = vunpack.c.l.b16 %v1420
      %v1519 = vunpack.c.l.b16 %v1434
      %v1520 = vunpack.c.l.b16 %v1444
      %v1521 = vunpack.c.l.b16 %v1458
      %v1522 = vunpack.c.l.b16 %v1468
      %v1523 = vunpack.c.l.b16 %v1482
      %v1524 = vunpack.c.l.b16 %v1492
      %v1525 = vpack.c.b16 %v1494, %v1493
      %v1526 = vpack.c.b16 %v1496, %v1495
      %v1527 = vpack.c.b16 %v1498, %v1497
      %v1528 = vpack.c.b16 %v1500, %v1499
      %v1529 = vpack.c.b16 %v1502, %v1501
      %v1530 = vpack.c.b16 %v1504, %v1503
      %v1531 = vpack.c.b16 %v1506, %v1505
      %v1532 = vpack.c.b16 %v1508, %v1507
      %v1533 = vpack.c.b16 %v1510, %v1509
      %v1534 = vpack.c.b16 %v1512, %v1511
      %v1535 = vpack.c.b16 %v1514, %v1513
      %v1536 = vpack.c.b16 %v1516, %v1515
      %v1537 = vpack.c.b16 %v1518, %v1517
      %v1538 = vpack.c.b16 %v1520, %v1519
      %v1539 = vpack.c.b16 %v1522, %v1521
      %v1540 = vpack.c.b16 %v1524, %v1523
      %1541 = vrot.lane.b32.xlu0 %v1525, 4
      %v1542 = vpop.permute.xlu0 %1541
      %1543 = vrot.lane.b32.xlu0 %v1526, 4
      %v1544 = vpop.permute.xlu0 %1543
      %1545 = vrot.lane.b32.xlu0 %v1527, 4
      %v1546 = vpop.permute.xlu0 %1545
      %1547 = vrot.lane.b32.xlu0 %v1528, 4
      %v1548 = vpop.permute.xlu0 %1547
      %1549 = vrot.lane.b32.xlu0 %v1529, 4
      %v1550 = vpop.permute.xlu0 %1549
      %1551 = vrot.lane.b32.xlu0 %v1530, 4
      %v1552 = vpop.permute.xlu0 %1551
      %1553 = vrot.lane.b32.xlu0 %v1531, 4
      %v1554 = vpop.permute.xlu0 %1553
      %1555 = vrot.lane.b32.xlu0 %v1532, 4
      %v1556 = vpop.permute.xlu0 %1555
      %1557 = vrot.lane.b32.xlu0 %v1533, 4
      %v1558 = vpop.permute.xlu0 %1557
      %1559 = vrot.lane.b32.xlu0 %v1534, 4
      %v1560 = vpop.permute.xlu0 %1559
      %1561 = vrot.lane.b32.xlu0 %v1535, 4
      %v1562 = vpop.permute.xlu0 %1561
      %1563 = vrot.lane.b32.xlu0 %v1536, 4
      %v1564 = vpop.permute.xlu0 %1563
      %1565 = vrot.lane.b32.xlu0 %v1537, 4
      %v1566 = vpop.permute.xlu0 %1565
      %1567 = vrot.lane.b32.xlu0 %v1538, 4
      %v1568 = vpop.permute.xlu0 %1567
      %1569 = vrot.lane.b32.xlu0 %v1539, 4
      %v1570 = vpop.permute.xlu0 %1569
      %1571 = vrot.lane.b32.xlu0 %v1540, 4
      %v1572 = vpop.permute.xlu0 %1571
      %vm1589 = vcmask 64544
      %1590 = vst.msk [vmem:[#allocation3] sm:$0xff] %vm1589, %v1542
      %1591 = vst.msk [vmem:[#allocation3 + $0x8] sm:$0xff] %vm1589, %v1544
      %1592 = vst.msk [vmem:[#allocation3 + $0x10] sm:$0xff] %vm1589, %v1546
      %1593 = vst.msk [vmem:[#allocation3 + $0x18] sm:$0xff] %vm1589, %v1548
      %1594 = vst.msk [vmem:[#allocation3 + $0x20] sm:$0xff] %vm1589, %v1550
      %1595 = vst.msk [vmem:[#allocation3 + $0x28] sm:$0xff] %vm1589, %v1552
      %1596 = vst.msk [vmem:[#allocation3 + $0x30] sm:$0xff] %vm1589, %v1554
      %1597 = vst.msk [vmem:[#allocation3 + $0x38] sm:$0xff] %vm1589, %v1556
      %1598 = vst.msk [vmem:[#allocation3 + $0x40] sm:$0xff] %vm1589, %v1558
      %1599 = vst.msk [vmem:[#allocation3 + $0x48] sm:$0xff] %vm1589, %v1560
      %1600 = vst.msk [vmem:[#allocation3 + $0x50] sm:$0xff] %vm1589, %v1562
      %1601 = vst.msk [vmem:[#allocation3 + $0x58] sm:$0xff] %vm1589, %v1564
      %1602 = vst.msk [vmem:[#allocation3 + $0x60] sm:$0xff] %vm1589, %v1566
      %1603 = vst.msk [vmem:[#allocation3 + $0x68] sm:$0xff] %vm1589, %v1568
      %1604 = vst.msk [vmem:[#allocation3 + $0x70] sm:$0xff] %vm1589, %v1570
      %1605 = vst.msk [vmem:[#allocation3 + $0x78] sm:$0xff] %vm1589, %v1572
      %v1606 = vld [vmem:[#allocation2] sm:$0xe]
      %v1607 = vld [vmem:[#allocation2 + $0x4] sm:$0xf]
      %v1608 = vld [vmem:[#allocation2 + $0x8] sm:$0x1]
      %v1609 = vld [vmem:[#allocation2 + $0xc] sm:$0xe]
      %v1610 = vld [vmem:[#allocation2 + $0x10] sm:$0xf]
      %v1611 = vld [vmem:[#allocation2 + $0x14] sm:$0x1]
      %v1612 = vld [vmem:[#allocation2 + $0x18] sm:$0xe]
      %v1613 = vld [vmem:[#allocation2 + $0x1c] sm:$0xf]
      %v1614 = vld [vmem:[#allocation2 + $0x20] sm:$0x1]
      %v1615 = vld [vmem:[#allocation2 + $0x24] sm:$0xe]
      %v1616 = vld [vmem:[#allocation2 + $0x28] sm:$0xf]
      %v1617 = vld [vmem:[#allocation2 + $0x2c] sm:$0x1]
      %v1618 = vld [vmem:[#allocation2 + $0x30] sm:$0xe]
      %v1619 = vld [vmem:[#allocation2 + $0x34] sm:$0xf]
      %v1620 = vld [vmem:[#allocation2 + $0x38] sm:$0x1]
      %v1621 = vld [vmem:[#allocation2 + $0x3c] sm:$0xe]
      %v1622 = vld [vmem:[#allocation2 + $0x40] sm:$0xf]
      %v1623 = vld [vmem:[#allocation2 + $0x44] sm:$0x1]
      %v1624 = vld [vmem:[#allocation2 + $0x48] sm:$0xe]
      %v1625 = vld [vmem:[#allocation2 + $0x4c] sm:$0xf]
      %v1626 = vld [vmem:[#allocation2 + $0x50] sm:$0x1]
      %v1627 = vld [vmem:[#allocation2 + $0x54] sm:$0xe]
      %v1628 = vld [vmem:[#allocation2 + $0x58] sm:$0xf]
      %v1629 = vld [vmem:[#allocation2 + $0x5c] sm:$0x1]
      %v1630 = vld [vmem:[#allocation2 + $0x60] sm:$0xe]
      %v1631 = vld [vmem:[#allocation2 + $0x64] sm:$0xf]
      %v1632 = vld [vmem:[#allocation2 + $0x68] sm:$0x1]
      %v1633 = vld [vmem:[#allocation2 + $0x6c] sm:$0xe]
      %v1634 = vld [vmem:[#allocation2 + $0x70] sm:$0xf]
      %v1635 = vld [vmem:[#allocation2 + $0x74] sm:$0x1]
      %v1636 = vld [vmem:[#allocation2 + $0x78] sm:$0xe]
      %v1637 = vld [vmem:[#allocation2 + $0x7c] sm:$0xf]
      %v1638 = vld [vmem:[#allocation2 + $0x80] sm:$0x1]
      %v1639 = vld [vmem:[#allocation2 + $0x84] sm:$0xe]
      %v1640 = vld [vmem:[#allocation2 + $0x88] sm:$0xf]
      %v1641 = vld [vmem:[#allocation2 + $0x8c] sm:$0x1]
      %v1642 = vld [vmem:[#allocation2 + $0x90] sm:$0xe]
      %v1643 = vld [vmem:[#allocation2 + $0x94] sm:$0xf]
      %v1644 = vld [vmem:[#allocation2 + $0x98] sm:$0x1]
      %v1645 = vld [vmem:[#allocation2 + $0x9c] sm:$0xe]
      %v1646 = vld [vmem:[#allocation2 + $0xa0] sm:$0xf]
      %v1647 = vld [vmem:[#allocation2 + $0xa4] sm:$0x1]
      %v1648 = vld [vmem:[#allocation2 + $0xa8] sm:$0xe]
      %v1649 = vld [vmem:[#allocation2 + $0xac] sm:$0xf]
      %v1650 = vld [vmem:[#allocation2 + $0xb0] sm:$0x1]
      %v1651 = vld [vmem:[#allocation2 + $0xb4] sm:$0xe]
      %v1652 = vld [vmem:[#allocation2 + $0xb8] sm:$0xf]
      %v1653 = vld [vmem:[#allocation2 + $0xbc] sm:$0x1]
      %vm1702 = vcmask 1042432
      %vm1703 = vcmask 1046532
      %vm1704 = vmor %vm1702, %vm1703
      %v1705 = vrot.slane %v1606, 5
      %v1706 = vrot.slane %v1705, 4
      %v1707 = vrot.slane %v1607, 5
      %v1708 = vsel %vm1704, %v1706, %v1707
      %v1709 = vrot.slane %v1707, 4
      %v1710 = vrot.slane %v1608, 5
      %v1711 = vsel %vm1704, %v1709, %v1710
      %v1712 = vrot.slane %v1609, 5
      %v1713 = vrot.slane %v1712, 4
      %v1714 = vrot.slane %v1610, 5
      %v1715 = vsel %vm1704, %v1713, %v1714
      %v1716 = vrot.slane %v1714, 4
      %v1717 = vrot.slane %v1611, 5
      %v1718 = vsel %vm1704, %v1716, %v1717
      %v1719 = vrot.slane %v1612, 5
      %v1720 = vrot.slane %v1719, 4
      %v1721 = vrot.slane %v1613, 5
      %v1722 = vsel %vm1704, %v1720, %v1721
      %v1723 = vrot.slane %v1721, 4
      %v1724 = vrot.slane %v1614, 5
      %v1725 = vsel %vm1704, %v1723, %v1724
      %v1726 = vrot.slane %v1615, 5
      %v1727 = vrot.slane %v1726, 4
      %v1728 = vrot.slane %v1616, 5
      %v1729 = vsel %vm1704, %v1727, %v1728
      %v1730 = vrot.slane %v1728, 4
      %v1731 = vrot.slane %v1617, 5
      %v1732 = vsel %vm1704, %v1730, %v1731
      %v1733 = vrot.slane %v1618, 5
      %v1734 = vrot.slane %v1733, 4
      %v1735 = vrot.slane %v1619, 5
      %v1736 = vsel %vm1704, %v1734, %v1735
      %v1737 = vrot.slane %v1735, 4
      %v1738 = vrot.slane %v1620, 5
      %v1739 = vsel %vm1704, %v1737, %v1738
      %v1740 = vrot.slane %v1621, 5
      %v1741 = vrot.slane %v1740, 4
      %v1742 = vrot.slane %v1622, 5
      %v1743 = vsel %vm1704, %v1741, %v1742
      %v1744 = vrot.slane %v1742, 4
      %v1745 = vrot.slane %v1623, 5
      %v1746 = vsel %vm1704, %v1744, %v1745
      %v1747 = vrot.slane %v1624, 5
      %v1748 = vrot.slane %v1747, 4
      %v1749 = vrot.slane %v1625, 5
      %v1750 = vsel %vm1704, %v1748, %v1749
      %v1751 = vrot.slane %v1749, 4
      %v1752 = vrot.slane %v1626, 5
      %v1753 = vsel %vm1704, %v1751, %v1752
      %v1754 = vrot.slane %v1627, 5
      %v1755 = vrot.slane %v1754, 4
      %v1756 = vrot.slane %v1628, 5
      %v1757 = vsel %vm1704, %v1755, %v1756
      %v1758 = vrot.slane %v1756, 4
      %v1759 = vrot.slane %v1629, 5
      %v1760 = vsel %vm1704, %v1758, %v1759
      %v1761 = vrot.slane %v1630, 5
      %v1762 = vrot.slane %v1761, 4
      %v1763 = vrot.slane %v1631, 5
      %v1764 = vsel %vm1704, %v1762, %v1763
      %v1765 = vrot.slane %v1763, 4
      %v1766 = vrot.slane %v1632, 5
      %v1767 = vsel %vm1704, %v1765, %v1766
      %v1768 = vrot.slane %v1633, 5
      %v1769 = vrot.slane %v1768, 4
      %v1770 = vrot.slane %v1634, 5
      %v1771 = vsel %vm1704, %v1769, %v1770
      %v1772 = vrot.slane %v1770, 4
      %v1773 = vrot.slane %v1635, 5
      %v1774 = vsel %vm1704, %v1772, %v1773
      %v1775 = vrot.slane %v1636, 5
      %v1776 = vrot.slane %v1775, 4
      %v1777 = vrot.slane %v1637, 5
      %v1778 = vsel %vm1704, %v1776, %v1777
      %v1779 = vrot.slane %v1777, 4
      %v1780 = vrot.slane %v1638, 5
      %v1781 = vsel %vm1704, %v1779, %v1780
      %v1782 = vrot.slane %v1639, 5
      %v1783 = vrot.slane %v1782, 4
      %v1784 = vrot.slane %v1640, 5
      %v1785 = vsel %vm1704, %v1783, %v1784
      %v1786 = vrot.slane %v1784, 4
      %v1787 = vrot.slane %v1641, 5
      %v1788 = vsel %vm1704, %v1786, %v1787
      %v1789 = vrot.slane %v1642, 5
      %v1790 = vrot.slane %v1789, 4
      %v1791 = vrot.slane %v1643, 5
      %v1792 = vsel %vm1704, %v1790, %v1791
      %v1793 = vrot.slane %v1791, 4
      %v1794 = vrot.slane %v1644, 5
      %v1795 = vsel %vm1704, %v1793, %v1794
      %v1796 = vrot.slane %v1645, 5
      %v1797 = vrot.slane %v1796, 4
      %v1798 = vrot.slane %v1646, 5
      %v1799 = vsel %vm1704, %v1797, %v1798
      %v1800 = vrot.slane %v1798, 4
      %v1801 = vrot.slane %v1647, 5
      %v1802 = vsel %vm1704, %v1800, %v1801
      %v1803 = vrot.slane %v1648, 5
      %v1804 = vrot.slane %v1803, 4
      %v1805 = vrot.slane %v1649, 5
      %v1806 = vsel %vm1704, %v1804, %v1805
      %v1807 = vrot.slane %v1805, 4
      %v1808 = vrot.slane %v1650, 5
      %v1809 = vsel %vm1704, %v1807, %v1808
      %v1810 = vrot.slane %v1651, 5
      %v1811 = vrot.slane %v1810, 4
      %v1812 = vrot.slane %v1652, 5
      %v1813 = vsel %vm1704, %v1811, %v1812
      %v1814 = vrot.slane %v1812, 4
      %v1815 = vrot.slane %v1653, 5
      %v1816 = vsel %vm1704, %v1814, %v1815
      %v1817 = vunpack.c.l.b16 %v1708
      %v1818 = vunpack.c.l.b16 %v1711
      %v1819 = vunpack.c.l.b16 %v1715
      %v1820 = vunpack.c.l.b16 %v1718
      %v1821 = vunpack.c.l.b16 %v1722
      %v1822 = vunpack.c.l.b16 %v1725
      %v1823 = vunpack.c.l.b16 %v1729
      %v1824 = vunpack.c.l.b16 %v1732
      %v1825 = vunpack.c.l.b16 %v1736
      %v1826 = vunpack.c.l.b16 %v1739
      %v1827 = vunpack.c.l.b16 %v1743
      %v1828 = vunpack.c.l.b16 %v1746
      %v1829 = vunpack.c.l.b16 %v1750
      %v1830 = vunpack.c.l.b16 %v1753
      %v1831 = vunpack.c.l.b16 %v1757
      %v1832 = vunpack.c.l.b16 %v1760
      %v1833 = vunpack.c.l.b16 %v1764
      %v1834 = vunpack.c.l.b16 %v1767
      %v1835 = vunpack.c.l.b16 %v1771
      %v1836 = vunpack.c.l.b16 %v1774
      %v1837 = vunpack.c.l.b16 %v1778
      %v1838 = vunpack.c.l.b16 %v1781
      %v1839 = vunpack.c.l.b16 %v1785
      %v1840 = vunpack.c.l.b16 %v1788
      %v1841 = vunpack.c.l.b16 %v1792
      %v1842 = vunpack.c.l.b16 %v1795
      %v1843 = vunpack.c.l.b16 %v1799
      %v1844 = vunpack.c.l.b16 %v1802
      %v1845 = vunpack.c.l.b16 %v1806
      %v1846 = vunpack.c.l.b16 %v1809
      %v1847 = vunpack.c.l.b16 %v1813
      %v1848 = vunpack.c.l.b16 %v1816
      %v1849 = vpack.c.b16 %v1818, %v1817
      %v1850 = vpack.c.b16 %v1820, %v1819
      %v1851 = vpack.c.b16 %v1822, %v1821
      %v1852 = vpack.c.b16 %v1824, %v1823
      %v1853 = vpack.c.b16 %v1826, %v1825
      %v1854 = vpack.c.b16 %v1828, %v1827
      %v1855 = vpack.c.b16 %v1830, %v1829
      %v1856 = vpack.c.b16 %v1832, %v1831
      %v1857 = vpack.c.b16 %v1834, %v1833
      %v1858 = vpack.c.b16 %v1836, %v1835
      %v1859 = vpack.c.b16 %v1838, %v1837
      %v1860 = vpack.c.b16 %v1840, %v1839
      %v1861 = vpack.c.b16 %v1842, %v1841
      %v1862 = vpack.c.b16 %v1844, %v1843
      %v1863 = vpack.c.b16 %v1846, %v1845
      %v1864 = vpack.c.b16 %v1848, %v1847
      %1865 = vrot.lane.b32.xlu0 %v1849, 8
      %v1866 = vpop.permute.xlu0 %1865
      %1867 = vrot.lane.b32.xlu0 %v1850, 8
      %v1868 = vpop.permute.xlu0 %1867
      %1869 = vrot.lane.b32.xlu0 %v1851, 8
      %v1870 = vpop.permute.xlu0 %1869
      %1871 = vrot.lane.b32.xlu0 %v1852, 8
      %v1872 = vpop.permute.xlu0 %1871
      %1873 = vrot.lane.b32.xlu0 %v1853, 8
      %v1874 = vpop.permute.xlu0 %1873
      %1875 = vrot.lane.b32.xlu0 %v1854, 8
      %v1876 = vpop.permute.xlu0 %1875
      %1877 = vrot.lane.b32.xlu0 %v1855, 8
      %v1878 = vpop.permute.xlu0 %1877
      %1879 = vrot.lane.b32.xlu0 %v1856, 8
      %v1880 = vpop.permute.xlu0 %1879
      %1881 = vrot.lane.b32.xlu0 %v1857, 8
      %v1882 = vpop.permute.xlu0 %1881
      %1883 = vrot.lane.b32.xlu0 %v1858, 8
      %v1884 = vpop.permute.xlu0 %1883
      %1885 = vrot.lane.b32.xlu0 %v1859, 8
      %v1886 = vpop.permute.xlu0 %1885
      %1887 = vrot.lane.b32.xlu0 %v1860, 8
      %v1888 = vpop.permute.xlu0 %1887
      %1889 = vrot.lane.b32.xlu0 %v1861, 8
      %v1890 = vpop.permute.xlu0 %1889
      %1891 = vrot.lane.b32.xlu0 %v1862, 8
      %v1892 = vpop.permute.xlu0 %1891
      %1893 = vrot.lane.b32.xlu0 %v1863, 8
      %v1894 = vpop.permute.xlu0 %1893
      %1895 = vrot.lane.b32.xlu0 %v1864, 8
      %v1896 = vpop.permute.xlu0 %1895
      %vm1913 = vcmask 97344
      %1914 = vst.msk [vmem:[#allocation3] sm:$0xff] %vm1913, %v1866
      %1915 = vst.msk [vmem:[#allocation3 + $0x8] sm:$0xff] %vm1913, %v1868
      %1916 = vst.msk [vmem:[#allocation3 + $0x10] sm:$0xff] %vm1913, %v1870
      %1917 = vst.msk [vmem:[#allocation3 + $0x18] sm:$0xff] %vm1913, %v1872
      %1918 = vst.msk [vmem:[#allocation3 + $0x20] sm:$0xff] %vm1913, %v1874
      %1919 = vst.msk [vmem:[#allocation3 + $0x28] sm:$0xff] %vm1913, %v1876
      %1920 = vst.msk [vmem:[#allocation3 + $0x30] sm:$0xff] %vm1913, %v1878
      %1921 = vst.msk [vmem:[#allocation3 + $0x38] sm:$0xff] %vm1913, %v1880
      %1922 = vst.msk [vmem:[#allocation3 + $0x40] sm:$0xff] %vm1913, %v1882
      %1923 = vst.msk [vmem:[#allocation3 + $0x48] sm:$0xff] %vm1913, %v1884
      %1924 = vst.msk [vmem:[#allocation3 + $0x50] sm:$0xff] %vm1913, %v1886
      %1925 = vst.msk [vmem:[#allocation3 + $0x58] sm:$0xff] %vm1913, %v1888
      %1926 = vst.msk [vmem:[#allocation3 + $0x60] sm:$0xff] %vm1913, %v1890
      %1927 = vst.msk [vmem:[#allocation3 + $0x68] sm:$0xff] %vm1913, %v1892
      %1928 = vst.msk [vmem:[#allocation3 + $0x70] sm:$0xff] %vm1913, %v1894
      %1929 = vst.msk [vmem:[#allocation3 + $0x78] sm:$0xff] %vm1913, %v1896
      %v1930 = vld [vmem:[%s798] sm:$0xf]
      %v1931 = vld [vmem:[%s798 + $0x4] sm:$0xf]
      %v1932 = vld [vmem:[%s798 + $0xc] sm:$0xf]
      %v1933 = vld [vmem:[%s798 + $0x10] sm:$0xf]
      %v1934 = vld [vmem:[%s798 + $0x18] sm:$0xf]
      %v1935 = vld [vmem:[%s798 + $0x1c] sm:$0xf]
      %v1936 = vld [vmem:[%s798 + $0x24] sm:$0xf]
      %v1937 = vld [vmem:[%s798 + $0x28] sm:$0xf]
      %v1938 = vld [vmem:[%s798 + $0x30] sm:$0xf]
      %v1939 = vld [vmem:[%s798 + $0x34] sm:$0xf]
      %v1940 = vld [vmem:[%s798 + $0x3c] sm:$0xf]
      %v1941 = vld [vmem:[%s798 + $0x40] sm:$0xf]
      %v1942 = vld [vmem:[%s798 + $0x48] sm:$0xf]
      %v1943 = vld [vmem:[%s798 + $0x4c] sm:$0xf]
      %v1944 = vld [vmem:[%s798 + $0x54] sm:$0xf]
      %v1945 = vld [vmem:[%s798 + $0x58] sm:$0xf]
      %v1946 = vld [vmem:[%s798 + $0x60] sm:$0xf]
      %v1947 = vld [vmem:[%s798 + $0x64] sm:$0xf]
      %v1948 = vld [vmem:[%s798 + $0x6c] sm:$0xf]
      %v1949 = vld [vmem:[%s798 + $0x70] sm:$0xf]
      %v1950 = vld [vmem:[%s798 + $0x78] sm:$0xf]
      %v1951 = vld [vmem:[%s798 + $0x7c] sm:$0xf]
      %v1952 = vld [vmem:[%s798 + $0x84] sm:$0xf]
      %v1953 = vld [vmem:[%s798 + $0x88] sm:$0xf]
      %v1954 = vld [vmem:[%s798 + $0x90] sm:$0xf]
      %v1955 = vld [vmem:[%s798 + $0x94] sm:$0xf]
      %v1956 = vld [vmem:[%s798 + $0x9c] sm:$0xf]
      %v1957 = vld [vmem:[%s798 + $0xa0] sm:$0xf]
      %v1958 = vld [vmem:[%s798 + $0xa8] sm:$0xf]
      %v1959 = vld [vmem:[%s798 + $0xac] sm:$0xf]
      %v1960 = vld [vmem:[%s798 + $0xb4] sm:$0xf]
      %v1961 = vld [vmem:[%s798 + $0xb8] sm:$0xf]
      %v1994 = vunpack.c.l.b16 %v1930
      %v1995 = vunpack.c.l.b16 %v1931
      %v1996 = vunpack.c.l.b16 %v1932
      %v1997 = vunpack.c.l.b16 %v1933
      %v1998 = vunpack.c.l.b16 %v1934
      %v1999 = vunpack.c.l.b16 %v1935
      %v2000 = vunpack.c.l.b16 %v1936
      %v2001 = vunpack.c.l.b16 %v1937
      %v2002 = vunpack.c.l.b16 %v1938
      %v2003 = vunpack.c.l.b16 %v1939
      %v2004 = vunpack.c.l.b16 %v1940
      %v2005 = vunpack.c.l.b16 %v1941
      %v2006 = vunpack.c.l.b16 %v1942
      %v2007 = vunpack.c.l.b16 %v1943
      %v2008 = vunpack.c.l.b16 %v1944
      %v2009 = vunpack.c.l.b16 %v1945
      %v2010 = vunpack.c.l.b16 %v1946
      %v2011 = vunpack.c.l.b16 %v1947
      %v2012 = vunpack.c.l.b16 %v1948
      %v2013 = vunpack.c.l.b16 %v1949
      %v2014 = vunpack.c.l.b16 %v1950
      %v2015 = vunpack.c.l.b16 %v1951
      %v2016 = vunpack.c.l.b16 %v1952
      %v2017 = vunpack.c.l.b16 %v1953
      %v2018 = vunpack.c.l.b16 %v1954
      %v2019 = vunpack.c.l.b16 %v1955
      %v2020 = vunpack.c.l.b16 %v1956
      %v2021 = vunpack.c.l.b16 %v1957
      %v2022 = vunpack.c.l.b16 %v1958
      %v2023 = vunpack.c.l.b16 %v1959
      %v2024 = vunpack.c.l.b16 %v1960
      %v2025 = vunpack.c.l.b16 %v1961
      %v2026 = vpack.c.b16 %v1995, %v1994
      %v2027 = vpack.c.b16 %v1997, %v1996
      %v2028 = vpack.c.b16 %v1999, %v1998
      %v2029 = vpack.c.b16 %v2001, %v2000
      %v2030 = vpack.c.b16 %v2003, %v2002
      %v2031 = vpack.c.b16 %v2005, %v2004
      %v2032 = vpack.c.b16 %v2007, %v2006
      %v2033 = vpack.c.b16 %v2009, %v2008
      %v2034 = vpack.c.b16 %v2011, %v2010
      %v2035 = vpack.c.b16 %v2013, %v2012
      %v2036 = vpack.c.b16 %v2015, %v2014
      %v2037 = vpack.c.b16 %v2017, %v2016
      %v2038 = vpack.c.b16 %v2019, %v2018
      %v2039 = vpack.c.b16 %v2021, %v2020
      %v2040 = vpack.c.b16 %v2023, %v2022
      %v2041 = vpack.c.b16 %v2025, %v2024
      %2042 = vrot.lane.b32.xlu0 %v2026, 12
      %v2043 = vpop.permute.xlu0 %2042
      %2044 = vrot.lane.b32.xlu0 %v2027, 12
      %v2045 = vpop.permute.xlu0 %2044
      %2046 = vrot.lane.b32.xlu0 %v2028, 12
      %v2047 = vpop.permute.xlu0 %2046
      %2048 = vrot.lane.b32.xlu0 %v2029, 12
      %v2049 = vpop.permute.xlu0 %2048
      %2050 = vrot.lane.b32.xlu0 %v2030, 12
      %v2051 = vpop.permute.xlu0 %2050
      %2052 = vrot.lane.b32.xlu0 %v2031, 12
      %v2053 = vpop.permute.xlu0 %2052
      %2054 = vrot.lane.b32.xlu0 %v2032, 12
      %v2055 = vpop.permute.xlu0 %2054
      %2056 = vrot.lane.b32.xlu0 %v2033, 12
      %v2057 = vpop.permute.xlu0 %2056
      %2058 = vrot.lane.b32.xlu0 %v2034, 12
      %v2059 = vpop.permute.xlu0 %2058
      %2060 = vrot.lane.b32.xlu0 %v2035, 12
      %v2061 = vpop.permute.xlu0 %2060
      %2062 = vrot.lane.b32.xlu0 %v2036, 12
      %v2063 = vpop.permute.xlu0 %2062
      %2064 = vrot.lane.b32.xlu0 %v2037, 12
      %v2065 = vpop.permute.xlu0 %2064
      %2066 = vrot.lane.b32.xlu0 %v2038, 12
      %v2067 = vpop.permute.xlu0 %2066
      %2068 = vrot.lane.b32.xlu0 %v2039, 12
      %v2069 = vpop.permute.xlu0 %2068
      %2070 = vrot.lane.b32.xlu0 %v2040, 12
      %v2071 = vpop.permute.xlu0 %2070
      %2072 = vrot.lane.b32.xlu0 %v2041, 12
      %v2073 = vpop.permute.xlu0 %2072
      %vm2090 = vcmask 130144
      %2091 = vst.msk [vmem:[#allocation3] sm:$0xff] %vm2090, %v2043
      %2092 = vst.msk [vmem:[#allocation3 + $0x8] sm:$0xff] %vm2090, %v2045
      %2093 = vst.msk [vmem:[#allocation3 + $0x10] sm:$0xff] %vm2090, %v2047
      %2094 = vst.msk [vmem:[#allocation3 + $0x18] sm:$0xff] %vm2090, %v2049
      %2095 = vst.msk [vmem:[#allocation3 + $0x20] sm:$0xff] %vm2090, %v2051
      %2096 = vst.msk [vmem:[#allocation3 + $0x28] sm:$0xff] %vm2090, %v2053
      %2097 = vst.msk [vmem:[#allocation3 + $0x30] sm:$0xff] %vm2090, %v2055
      %2098 = vst.msk [vmem:[#allocation3 + $0x38] sm:$0xff] %vm2090, %v2057
      %2099 = vst.msk [vmem:[#allocation3 + $0x40] sm:$0xff] %vm2090, %v2059
      %2100 = vst.msk [vmem:[#allocation3 + $0x48] sm:$0xff] %vm2090, %v2061
      %2101 = vst.msk [vmem:[#allocation3 + $0x50] sm:$0xff] %vm2090, %v2063
      %2102 = vst.msk [vmem:[#allocation3 + $0x58] sm:$0xff] %vm2090, %v2065
      %2103 = vst.msk [vmem:[#allocation3 + $0x60] sm:$0xff] %vm2090, %v2067
      %2104 = vst.msk [vmem:[#allocation3 + $0x68] sm:$0xff] %vm2090, %v2069
      %2105 = vst.msk [vmem:[#allocation3 + $0x70] sm:$0xff] %vm2090, %v2071
      %2106 = vst.msk [vmem:[#allocation3 + $0x78] sm:$0xff] %vm2090, %v2073
      %v2107 = vld [vmem:[%s798] sm:$0xf]
      %v2108 = vld [vmem:[%s798 + $0x4] sm:$0xf]
      %v2109 = vld [vmem:[%s798 + $0x8] sm:$0x1]
      %v2110 = vld [vmem:[%s798 + $0xc] sm:$0xf]
      %v2111 = vld [vmem:[%s798 + $0x10] sm:$0xf]
      %v2112 = vld [vmem:[%s798 + $0x14] sm:$0x1]
      %v2113 = vld [vmem:[%s798 + $0x18] sm:$0xf]
      %v2114 = vld [vmem:[%s798 + $0x1c] sm:$0xf]
      %v2115 = vld [vmem:[%s798 + $0x20] sm:$0x1]
      %v2116 = vld [vmem:[%s798 + $0x24] sm:$0xf]
      %v2117 = vld [vmem:[%s798 + $0x28] sm:$0xf]
      %v2118 = vld [vmem:[%s798 + $0x2c] sm:$0x1]
      %v2119 = vld [vmem:[%s798 + $0x30] sm:$0xf]
      %v2120 = vld [vmem:[%s798 + $0x34] sm:$0xf]
      %v2121 = vld [vmem:[%s798 + $0x38] sm:$0x1]
      %v2122 = vld [vmem:[%s798 + $0x3c] sm:$0xf]
      %v2123 = vld [vmem:[%s798 + $0x40] sm:$0xf]
      %v2124 = vld [vmem:[%s798 + $0x44] sm:$0x1]
      %v2125 = vld [vmem:[%s798 + $0x48] sm:$0xf]
      %v2126 = vld [vmem:[%s798 + $0x4c] sm:$0xf]
      %v2127 = vld [vmem:[%s798 + $0x50] sm:$0x1]
      %v2128 = vld [vmem:[%s798 + $0x54] sm:$0xf]
      %v2129 = vld [vmem:[%s798 + $0x58] sm:$0xf]
      %v2130 = vld [vmem:[%s798 + $0x5c] sm:$0x1]
      %v2131 = vld [vmem:[%s798 + $0x60] sm:$0xf]
      %v2132 = vld [vmem:[%s798 + $0x64] sm:$0xf]
      %v2133 = vld [vmem:[%s798 + $0x68] sm:$0x1]
      %v2134 = vld [vmem:[%s798 + $0x6c] sm:$0xf]
      %v2135 = vld [vmem:[%s798 + $0x70] sm:$0xf]
      %v2136 = vld [vmem:[%s798 + $0x74] sm:$0x1]
      %v2137 = vld [vmem:[%s798 + $0x78] sm:$0xf]
      %v2138 = vld [vmem:[%s798 + $0x7c] sm:$0xf]
      %v2139 = vld [vmem:[%s798 + $0x80] sm:$0x1]
      %v2140 = vld [vmem:[%s798 + $0x84] sm:$0xf]
      %v2141 = vld [vmem:[%s798 + $0x88] sm:$0xf]
      %v2142 = vld [vmem:[%s798 + $0x8c] sm:$0x1]
      %v2143 = vld [vmem:[%s798 + $0x90] sm:$0xf]
      %v2144 = vld [vmem:[%s798 + $0x94] sm:$0xf]
      %v2145 = vld [vmem:[%s798 + $0x98] sm:$0x1]
      %v2146 = vld [vmem:[%s798 + $0x9c] sm:$0xf]
      %v2147 = vld [vmem:[%s798 + $0xa0] sm:$0xf]
      %v2148 = vld [vmem:[%s798 + $0xa4] sm:$0x1]
      %v2149 = vld [vmem:[%s798 + $0xa8] sm:$0xf]
      %v2150 = vld [vmem:[%s798 + $0xac] sm:$0xf]
      %v2151 = vld [vmem:[%s798 + $0xb0] sm:$0x1]
      %v2152 = vld [vmem:[%s798 + $0xb4] sm:$0xf]
      %v2153 = vld [vmem:[%s798 + $0xb8] sm:$0xf]
      %v2154 = vld [vmem:[%s798 + $0xbc] sm:$0x1]
      %v2156 = vshrl.u32 %v2107, 16
      %v2158 = vrot.slane %v2156, 4
      %v2159 = vshll.u32 %v2107, 16
      %v2161 = vrot.slane %v2159, 5
      %v2162 = vor.u32 %v2158, %v2161
      %v2163 = vrot.slane %v2162, 4
      %v2165 = vshll.u32 %v2108, 16
      %v2167 = vrot.slane %v2165, 5
      %v2168 = vsel %vm1108, %v2163, %v2167
      %v2169 = vshrl.u32 %v2108, 16
      %v2171 = vrot.slane %v2169, 4
      %v2172 = vor.u32 %v2171, %v2167
      %v2173 = vrot.slane %v2172, 4
      %v2175 = vshll.u32 %v2109, 16
      %v2177 = vrot.slane %v2175, 5
      %v2178 = vsel %vm1108, %v2173, %v2177
      %v2180 = vshrl.u32 %v2110, 16
      %v2182 = vrot.slane %v2180, 4
      %v2183 = vshll.u32 %v2110, 16
      %v2185 = vrot.slane %v2183, 5
      %v2186 = vor.u32 %v2182, %v2185
      %v2187 = vrot.slane %v2186, 4
      %v2189 = vshll.u32 %v2111, 16
      %v2191 = vrot.slane %v2189, 5
      %v2192 = vsel %vm1108, %v2187, %v2191
      %v2193 = vshrl.u32 %v2111, 16
      %v2195 = vrot.slane %v2193, 4
      %v2196 = vor.u32 %v2195, %v2191
      %v2197 = vrot.slane %v2196, 4
      %v2199 = vshll.u32 %v2112, 16
      %v2201 = vrot.slane %v2199, 5
      %v2202 = vsel %vm1108, %v2197, %v2201
      %v2204 = vshrl.u32 %v2113, 16
      %v2206 = vrot.slane %v2204, 4
      %v2207 = vshll.u32 %v2113, 16
      %v2209 = vrot.slane %v2207, 5
      %v2210 = vor.u32 %v2206, %v2209
      %v2211 = vrot.slane %v2210, 4
      %v2213 = vshll.u32 %v2114, 16
      %v2215 = vrot.slane %v2213, 5
      %v2216 = vsel %vm1108, %v2211, %v2215
      %v2217 = vshrl.u32 %v2114, 16
      %v2219 = vrot.slane %v2217, 4
      %v2220 = vor.u32 %v2219, %v2215
      %v2221 = vrot.slane %v2220, 4
      %v2223 = vshll.u32 %v2115, 16
      %v2225 = vrot.slane %v2223, 5
      %v2226 = vsel %vm1108, %v2221, %v2225
      %v2228 = vshrl.u32 %v2116, 16
      %v2230 = vrot.slane %v2228, 4
      %v2231 = vshll.u32 %v2116, 16
      %v2233 = vrot.slane %v2231, 5
      %v2234 = vor.u32 %v2230, %v2233
      %v2235 = vrot.slane %v2234, 4
      %v2237 = vshll.u32 %v2117, 16
      %v2239 = vrot.slane %v2237, 5
      %v2240 = vsel %vm1108, %v2235, %v2239
      %v2241 = vshrl.u32 %v2117, 16
      %v2243 = vrot.slane %v2241, 4
      %v2244 = vor.u32 %v2243, %v2239
      %v2245 = vrot.slane %v2244, 4
      %v2247 = vshll.u32 %v2118, 16
      %v2249 = vrot.slane %v2247, 5
      %v2250 = vsel %vm1108, %v2245, %v2249
      %v2252 = vshrl.u32 %v2119, 16
      %v2254 = vrot.slane %v2252, 4
      %v2255 = vshll.u32 %v2119, 16
      %v2257 = vrot.slane %v2255, 5
      %v2258 = vor.u32 %v2254, %v2257
      %v2259 = vrot.slane %v2258, 4
      %v2261 = vshll.u32 %v2120, 16
      %v2263 = vrot.slane %v2261, 5
      %v2264 = vsel %vm1108, %v2259, %v2263
      %v2265 = vshrl.u32 %v2120, 16
      %v2267 = vrot.slane %v2265, 4
      %v2268 = vor.u32 %v2267, %v2263
      %v2269 = vrot.slane %v2268, 4
      %v2271 = vshll.u32 %v2121, 16
      %v2273 = vrot.slane %v2271, 5
      %v2274 = vsel %vm1108, %v2269, %v2273
      %v2276 = vshrl.u32 %v2122, 16
      %v2278 = vrot.slane %v2276, 4
      %v2279 = vshll.u32 %v2122, 16
      %v2281 = vrot.slane %v2279, 5
      %v2282 = vor.u32 %v2278, %v2281
      %v2283 = vrot.slane %v2282, 4
      %v2285 = vshll.u32 %v2123, 16
      %v2287 = vrot.slane %v2285, 5
      %v2288 = vsel %vm1108, %v2283, %v2287
      %v2289 = vshrl.u32 %v2123, 16
      %v2291 = vrot.slane %v2289, 4
      %v2292 = vor.u32 %v2291, %v2287
      %v2293 = vrot.slane %v2292, 4
      %v2295 = vshll.u32 %v2124, 16
      %v2297 = vrot.slane %v2295, 5
      %v2298 = vsel %vm1108, %v2293, %v2297
      %v2300 = vshrl.u32 %v2125, 16
      %v2302 = vrot.slane %v2300, 4
      %v2303 = vshll.u32 %v2125, 16
      %v2305 = vrot.slane %v2303, 5
      %v2306 = vor.u32 %v2302, %v2305
      %v2307 = vrot.slane %v2306, 4
      %v2309 = vshll.u32 %v2126, 16
      %v2311 = vrot.slane %v2309, 5
      %v2312 = vsel %vm1108, %v2307, %v2311
      %v2313 = vshrl.u32 %v2126, 16
      %v2315 = vrot.slane %v2313, 4
      %v2316 = vor.u32 %v2315, %v2311
      %v2317 = vrot.slane %v2316, 4
      %v2319 = vshll.u32 %v2127, 16
      %v2321 = vrot.slane %v2319, 5
      %v2322 = vsel %vm1108, %v2317, %v2321
      %v2324 = vshrl.u32 %v2128, 16
      %v2326 = vrot.slane %v2324, 4
      %v2327 = vshll.u32 %v2128, 16
      %v2329 = vrot.slane %v2327, 5
      %v2330 = vor.u32 %v2326, %v2329
      %v2331 = vrot.slane %v2330, 4
      %v2333 = vshll.u32 %v2129, 16
      %v2335 = vrot.slane %v2333, 5
      %v2336 = vsel %vm1108, %v2331, %v2335
      %v2337 = vshrl.u32 %v2129, 16
      %v2339 = vrot.slane %v2337, 4
      %v2340 = vor.u32 %v2339, %v2335
      %v2341 = vrot.slane %v2340, 4
      %v2343 = vshll.u32 %v2130, 16
      %v2345 = vrot.slane %v2343, 5
      %v2346 = vsel %vm1108, %v2341, %v2345
      %v2348 = vshrl.u32 %v2131, 16
      %v2350 = vrot.slane %v2348, 4
      %v2351 = vshll.u32 %v2131, 16
      %v2353 = vrot.slane %v2351, 5
      %v2354 = vor.u32 %v2350, %v2353
      %v2355 = vrot.slane %v2354, 4
      %v2357 = vshll.u32 %v2132, 16
      %v2359 = vrot.slane %v2357, 5
      %v2360 = vsel %vm1108, %v2355, %v2359
      %v2361 = vshrl.u32 %v2132, 16
      %v2363 = vrot.slane %v2361, 4
      %v2364 = vor.u32 %v2363, %v2359
      %v2365 = vrot.slane %v2364, 4
      %v2367 = vshll.u32 %v2133, 16
      %v2369 = vrot.slane %v2367, 5
      %v2370 = vsel %vm1108, %v2365, %v2369
      %v2372 = vshrl.u32 %v2134, 16
      %v2374 = vrot.slane %v2372, 4
      %v2375 = vshll.u32 %v2134, 16
      %v2377 = vrot.slane %v2375, 5
      %v2378 = vor.u32 %v2374, %v2377
      %v2379 = vrot.slane %v2378, 4
      %v2381 = vshll.u32 %v2135, 16
      %v2383 = vrot.slane %v2381, 5
      %v2384 = vsel %vm1108, %v2379, %v2383
      %v2385 = vshrl.u32 %v2135, 16
      %v2387 = vrot.slane %v2385, 4
      %v2388 = vor.u32 %v2387, %v2383
      %v2389 = vrot.slane %v2388, 4
      %v2391 = vshll.u32 %v2136, 16
      %v2393 = vrot.slane %v2391, 5
      %v2394 = vsel %vm1108, %v2389, %v2393
      %v2396 = vshrl.u32 %v2137, 16
      %v2398 = vrot.slane %v2396, 4
      %v2399 = vshll.u32 %v2137, 16
      %v2401 = vrot.slane %v2399, 5
      %v2402 = vor.u32 %v2398, %v2401
      %v2403 = vrot.slane %v2402, 4
      %v2405 = vshll.u32 %v2138, 16
      %v2407 = vrot.slane %v2405, 5
      %v2408 = vsel %vm1108, %v2403, %v2407
      %v2409 = vshrl.u32 %v2138, 16
      %v2411 = vrot.slane %v2409, 4
      %v2412 = vor.u32 %v2411, %v2407
      %v2413 = vrot.slane %v2412, 4
      %v2415 = vshll.u32 %v2139, 16
      %v2417 = vrot.slane %v2415, 5
      %v2418 = vsel %vm1108, %v2413, %v2417
      %v2420 = vshrl.u32 %v2140, 16
      %v2422 = vrot.slane %v2420, 4
      %v2423 = vshll.u32 %v2140, 16
      %v2425 = vrot.slane %v2423, 5
      %v2426 = vor.u32 %v2422, %v2425
      %v2427 = vrot.slane %v2426, 4
      %v2429 = vshll.u32 %v2141, 16
      %v2431 = vrot.slane %v2429, 5
      %v2432 = vsel %vm1108, %v2427, %v2431
      %v2433 = vshrl.u32 %v2141, 16
      %v2435 = vrot.slane %v2433, 4
      %v2436 = vor.u32 %v2435, %v2431
      %v2437 = vrot.slane %v2436, 4
      %v2439 = vshll.u32 %v2142, 16
      %v2441 = vrot.slane %v2439, 5
      %v2442 = vsel %vm1108, %v2437, %v2441
      %v2444 = vshrl.u32 %v2143, 16
      %v2446 = vrot.slane %v2444, 4
      %v2447 = vshll.u32 %v2143, 16
      %v2449 = vrot.slane %v2447, 5
      %v2450 = vor.u32 %v2446, %v2449
      %v2451 = vrot.slane %v2450, 4
      %v2453 = vshll.u32 %v2144, 16
      %v2455 = vrot.slane %v2453, 5
      %v2456 = vsel %vm1108, %v2451, %v2455
      %v2457 = vshrl.u32 %v2144, 16
      %v2459 = vrot.slane %v2457, 4
      %v2460 = vor.u32 %v2459, %v2455
      %v2461 = vrot.slane %v2460, 4
      %v2463 = vshll.u32 %v2145, 16
      %v2465 = vrot.slane %v2463, 5
      %v2466 = vsel %vm1108, %v2461, %v2465
      %v2468 = vshrl.u32 %v2146, 16
      %v2470 = vrot.slane %v2468, 4
      %v2471 = vshll.u32 %v2146, 16
      %v2473 = vrot.slane %v2471, 5
      %v2474 = vor.u32 %v2470, %v2473
      %v2475 = vrot.slane %v2474, 4
      %v2477 = vshll.u32 %v2147, 16
      %v2479 = vrot.slane %v2477, 5
      %v2480 = vsel %vm1108, %v2475, %v2479
      %v2481 = vshrl.u32 %v2147, 16
      %v2483 = vrot.slane %v2481, 4
      %v2484 = vor.u32 %v2483, %v2479
      %v2485 = vrot.slane %v2484, 4
      %v2487 = vshll.u32 %v2148, 16
      %v2489 = vrot.slane %v2487, 5
      %v2490 = vsel %vm1108, %v2485, %v2489
      %v2492 = vshrl.u32 %v2149, 16
      %v2494 = vrot.slane %v2492, 4
      %v2495 = vshll.u32 %v2149, 16
      %v2497 = vrot.slane %v2495, 5
      %v2498 = vor.u32 %v2494, %v2497
      %v2499 = vrot.slane %v2498, 4
      %v2501 = vshll.u32 %v2150, 16
      %v2503 = vrot.slane %v2501, 5
      %v2504 = vsel %vm1108, %v2499, %v2503
      %v2505 = vshrl.u32 %v2150, 16
      %v2507 = vrot.slane %v2505, 4
      %v2508 = vor.u32 %v2507, %v2503
      %v2509 = vrot.slane %v2508, 4
      %v2511 = vshll.u32 %v2151, 16
      %v2513 = vrot.slane %v2511, 5
      %v2514 = vsel %vm1108, %v2509, %v2513
      %v2516 = vshrl.u32 %v2152, 16
      %v2518 = vrot.slane %v2516, 4
      %v2519 = vshll.u32 %v2152, 16
      %v2521 = vrot.slane %v2519, 5
      %v2522 = vor.u32 %v2518, %v2521
      %v2523 = vrot.slane %v2522, 4
      %v2525 = vshll.u32 %v2153, 16
      %v2527 = vrot.slane %v2525, 5
      %v2528 = vsel %vm1108, %v2523, %v2527
      %v2529 = vshrl.u32 %v2153, 16
      %v2531 = vrot.slane %v2529, 4
      %v2532 = vor.u32 %v2531, %v2527
      %v2533 = vrot.slane %v2532, 4
      %v2535 = vshll.u32 %v2154, 16
      %v2537 = vrot.slane %v2535, 5
      %v2538 = vsel %vm1108, %v2533, %v2537
      %v2539 = vunpack.c.l.b16 %v2168
      %v2540 = vunpack.c.l.b16 %v2178
      %v2541 = vunpack.c.l.b16 %v2192
      %v2542 = vunpack.c.l.b16 %v2202
      %v2543 = vunpack.c.l.b16 %v2216
      %v2544 = vunpack.c.l.b16 %v2226
      %v2545 = vunpack.c.l.b16 %v2240
      %v2546 = vunpack.c.l.b16 %v2250
      %v2547 = vunpack.c.l.b16 %v2264
      %v2548 = vunpack.c.l.b16 %v2274
      %v2549 = vunpack.c.l.b16 %v2288
      %v2550 = vunpack.c.l.b16 %v2298
      %v2551 = vunpack.c.l.b16 %v2312
      %v2552 = vunpack.c.l.b16 %v2322
      %v2553 = vunpack.c.l.b16 %v2336
      %v2554 = vunpack.c.l.b16 %v2346
      %v2555 = vunpack.c.l.b16 %v2360
      %v2556 = vunpack.c.l.b16 %v2370
      %v2557 = vunpack.c.l.b16 %v2384
      %v2558 = vunpack.c.l.b16 %v2394
      %v2559 = vunpack.c.l.b16 %v2408
      %v2560 = vunpack.c.l.b16 %v2418
      %v2561 = vunpack.c.l.b16 %v2432
      %v2562 = vunpack.c.l.b16 %v2442
      %v2563 = vunpack.c.l.b16 %v2456
      %v2564 = vunpack.c.l.b16 %v2466
      %v2565 = vunpack.c.l.b16 %v2480
      %v2566 = vunpack.c.l.b16 %v2490
      %v2567 = vunpack.c.l.b16 %v2504
      %v2568 = vunpack.c.l.b16 %v2514
      %v2569 = vunpack.c.l.b16 %v2528
      %v2570 = vunpack.c.l.b16 %v2538
      %v2571 = vpack.c.b16 %v2540, %v2539
      %v2572 = vpack.c.b16 %v2542, %v2541
      %v2573 = vpack.c.b16 %v2544, %v2543
      %v2574 = vpack.c.b16 %v2546, %v2545
      %v2575 = vpack.c.b16 %v2548, %v2547
      %v2576 = vpack.c.b16 %v2550, %v2549
      %v2577 = vpack.c.b16 %v2552, %v2551
      %v2578 = vpack.c.b16 %v2554, %v2553
      %v2579 = vpack.c.b16 %v2556, %v2555
      %v2580 = vpack.c.b16 %v2558, %v2557
      %v2581 = vpack.c.b16 %v2560, %v2559
      %v2582 = vpack.c.b16 %v2562, %v2561
      %v2583 = vpack.c.b16 %v2564, %v2563
      %v2584 = vpack.c.b16 %v2566, %v2565
      %v2585 = vpack.c.b16 %v2568, %v2567
      %v2586 = vpack.c.b16 %v2570, %v2569
      %2587 = vrot.lane.b32.xlu0 %v2571, 16
      %v2588 = vpop.permute.xlu0 %2587
      %2589 = vrot.lane.b32.xlu0 %v2572, 16
      %v2590 = vpop.permute.xlu0 %2589
      %2591 = vrot.lane.b32.xlu0 %v2573, 16
      %v2592 = vpop.permute.xlu0 %2591
      %2593 = vrot.lane.b32.xlu0 %v2574, 16
      %v2594 = vpop.permute.xlu0 %2593
      %2595 = vrot.lane.b32.xlu0 %v2575, 16
      %v2596 = vpop.permute.xlu0 %2595
      %2597 = vrot.lane.b32.xlu0 %v2576, 16
      %v2598 = vpop.permute.xlu0 %2597
      %2599 = vrot.lane.b32.xlu0 %v2577, 16
      %v2600 = vpop.permute.xlu0 %2599
      %2601 = vrot.lane.b32.xlu0 %v2578, 16
      %v2602 = vpop.permute.xlu0 %2601
      %2603 = vrot.lane.b32.xlu0 %v2579, 16
      %v2604 = vpop.permute.xlu0 %2603
      %2605 = vrot.lane.b32.xlu0 %v2580, 16
      %v2606 = vpop.permute.xlu0 %2605
      %2607 = vrot.lane.b32.xlu0 %v2581, 16
      %v2608 = vpop.permute.xlu0 %2607
      %2609 = vrot.lane.b32.xlu0 %v2582, 16
      %v2610 = vpop.permute.xlu0 %2609
      %2611 = vrot.lane.b32.xlu0 %v2583, 16
      %v2612 = vpop.permute.xlu0 %2611
      %2613 = vrot.lane.b32.xlu0 %v2584, 16
      %v2614 = vpop.permute.xlu0 %2613
      %2615 = vrot.lane.b32.xlu0 %v2585, 16
      %v2616 = vpop.permute.xlu0 %2615
      %2617 = vrot.lane.b32.xlu0 %v2586, 16
      %v2618 = vpop.permute.xlu0 %2617
      %vm2635 = vcmask 162944
      %2636 = vst.msk [vmem:[#allocation3] sm:$0xff] %vm2635, %v2588
      %2637 = vst.msk [vmem:[#allocation3 + $0x8] sm:$0xff] %vm2635, %v2590
      %2638 = vst.msk [vmem:[#allocation3 + $0x10] sm:$0xff] %vm2635, %v2592
      %2639 = vst.msk [vmem:[#allocation3 + $0x18] sm:$0xff] %vm2635, %v2594
      %2640 = vst.msk [vmem:[#allocation3 + $0x20] sm:$0xff] %vm2635, %v2596
      %2641 = vst.msk [vmem:[#allocation3 + $0x28] sm:$0xff] %vm2635, %v2598
      %2642 = vst.msk [vmem:[#allocation3 + $0x30] sm:$0xff] %vm2635, %v2600
      %2643 = vst.msk [vmem:[#allocation3 + $0x38] sm:$0xff] %vm2635, %v2602
      %2644 = vst.msk [vmem:[#allocation3 + $0x40] sm:$0xff] %vm2635, %v2604
      %2645 = vst.msk [vmem:[#allocation3 + $0x48] sm:$0xff] %vm2635, %v2606
      %2646 = vst.msk [vmem:[#allocation3 + $0x50] sm:$0xff] %vm2635, %v2608
      %2647 = vst.msk [vmem:[#allocation3 + $0x58] sm:$0xff] %vm2635, %v2610
      %2648 = vst.msk [vmem:[#allocation3 + $0x60] sm:$0xff] %vm2635, %v2612
      %2649 = vst.msk [vmem:[#allocation3 + $0x68] sm:$0xff] %vm2635, %v2614
      %2650 = vst.msk [vmem:[#allocation3 + $0x70] sm:$0xff] %vm2635, %v2616
      %2651 = vst.msk [vmem:[#allocation3 + $0x78] sm:$0xff] %vm2635, %v2618
      %v2652 = vld [vmem:[%s798] sm:$0xe]
      %v2653 = vld [vmem:[%s798 + $0x4] sm:$0xf]
      %v2654 = vld [vmem:[%s798 + $0x8] sm:$0x1]
      %v2655 = vld [vmem:[%s798 + $0xc] sm:$0xe]
      %v2656 = vld [vmem:[%s798 + $0x10] sm:$0xf]
      %v2657 = vld [vmem:[%s798 + $0x14] sm:$0x1]
      %v2658 = vld [vmem:[%s798 + $0x18] sm:$0xe]
      %v2659 = vld [vmem:[%s798 + $0x1c] sm:$0xf]
      %v2660 = vld [vmem:[%s798 + $0x20] sm:$0x1]
      %v2661 = vld [vmem:[%s798 + $0x24] sm:$0xe]
      %v2662 = vld [vmem:[%s798 + $0x28] sm:$0xf]
      %v2663 = vld [vmem:[%s798 + $0x2c] sm:$0x1]
      %v2664 = vld [vmem:[%s798 + $0x30] sm:$0xe]
      %v2665 = vld [vmem:[%s798 + $0x34] sm:$0xf]
      %v2666 = vld [vmem:[%s798 + $0x38] sm:$0x1]
      %v2667 = vld [vmem:[%s798 + $0x3c] sm:$0xe]
      %v2668 = vld [vmem:[%s798 + $0x40] sm:$0xf]
      %v2669 = vld [vmem:[%s798 + $0x44] sm:$0x1]
      %v2670 = vld [vmem:[%s798 + $0x48] sm:$0xe]
      %v2671 = vld [vmem:[%s798 + $0x4c] sm:$0xf]
      %v2672 = vld [vmem:[%s798 + $0x50] sm:$0x1]
      %v2673 = vld [vmem:[%s798 + $0x54] sm:$0xe]
      %v2674 = vld [vmem:[%s798 + $0x58] sm:$0xf]
      %v2675 = vld [vmem:[%s798 + $0x5c] sm:$0x1]
      %v2676 = vld [vmem:[%s798 + $0x60] sm:$0xe]
      %v2677 = vld [vmem:[%s798 + $0x64] sm:$0xf]
      %v2678 = vld [vmem:[%s798 + $0x68] sm:$0x1]
      %v2679 = vld [vmem:[%s798 + $0x6c] sm:$0xe]
      %v2680 = vld [vmem:[%s798 + $0x70] sm:$0xf]
      %v2681 = vld [vmem:[%s798 + $0x74] sm:$0x1]
      %v2682 = vld [vmem:[%s798 + $0x78] sm:$0xe]
      %v2683 = vld [vmem:[%s798 + $0x7c] sm:$0xf]
      %v2684 = vld [vmem:[%s798 + $0x80] sm:$0x1]
      %v2685 = vld [vmem:[%s798 + $0x84] sm:$0xe]
      %v2686 = vld [vmem:[%s798 + $0x88] sm:$0xf]
      %v2687 = vld [vmem:[%s798 + $0x8c] sm:$0x1]
      %v2688 = vld [vmem:[%s798 + $0x90] sm:$0xe]
      %v2689 = vld [vmem:[%s798 + $0x94] sm:$0xf]
      %v2690 = vld [vmem:[%s798 + $0x98] sm:$0x1]
      %v2691 = vld [vmem:[%s798 + $0x9c] sm:$0xe]
      %v2692 = vld [vmem:[%s798 + $0xa0] sm:$0xf]
      %v2693 = vld [vmem:[%s798 + $0xa4] sm:$0x1]
      %v2694 = vld [vmem:[%s798 + $0xa8] sm:$0xe]
      %v2695 = vld [vmem:[%s798 + $0xac] sm:$0xf]
      %v2696 = vld [vmem:[%s798 + $0xb0] sm:$0x1]
      %v2697 = vld [vmem:[%s798 + $0xb4] sm:$0xe]
      %v2698 = vld [vmem:[%s798 + $0xb8] sm:$0xf]
      %v2699 = vld [vmem:[%s798 + $0xbc] sm:$0x1]
      %v2748 = vrot.slane %v2652, 5
      %v2749 = vrot.slane %v2748, 4
      %v2750 = vrot.slane %v2653, 5
      %v2751 = vsel %vm1704, %v2749, %v2750
      %v2752 = vrot.slane %v2750, 4
      %v2753 = vrot.slane %v2654, 5
      %v2754 = vsel %vm1704, %v2752, %v2753
      %v2755 = vrot.slane %v2655, 5
      %v2756 = vrot.slane %v2755, 4
      %v2757 = vrot.slane %v2656, 5
      %v2758 = vsel %vm1704, %v2756, %v2757
      %v2759 = vrot.slane %v2757, 4
      %v2760 = vrot.slane %v2657, 5
      %v2761 = vsel %vm1704, %v2759, %v2760
      %v2762 = vrot.slane %v2658, 5
      %v2763 = vrot.slane %v2762, 4
      %v2764 = vrot.slane %v2659, 5
      %v2765 = vsel %vm1704, %v2763, %v2764
      %v2766 = vrot.slane %v2764, 4
      %v2767 = vrot.slane %v2660, 5
      %v2768 = vsel %vm1704, %v2766, %v2767
      %v2769 = vrot.slane %v2661, 5
      %v2770 = vrot.slane %v2769, 4
      %v2771 = vrot.slane %v2662, 5
      %v2772 = vsel %vm1704, %v2770, %v2771
      %v2773 = vrot.slane %v2771, 4
      %v2774 = vrot.slane %v2663, 5
      %v2775 = vsel %vm1704, %v2773, %v2774
      %v2776 = vrot.slane %v2664, 5
      %v2777 = vrot.slane %v2776, 4
      %v2778 = vrot.slane %v2665, 5
      %v2779 = vsel %vm1704, %v2777, %v2778
      %v2780 = vrot.slane %v2778, 4
      %v2781 = vrot.slane %v2666, 5
      %v2782 = vsel %vm1704, %v2780, %v2781
      %v2783 = vrot.slane %v2667, 5
      %v2784 = vrot.slane %v2783, 4
      %v2785 = vrot.slane %v2668, 5
      %v2786 = vsel %vm1704, %v2784, %v2785
      %v2787 = vrot.slane %v2785, 4
      %v2788 = vrot.slane %v2669, 5
      %v2789 = vsel %vm1704, %v2787, %v2788
      %v2790 = vrot.slane %v2670, 5
      %v2791 = vrot.slane %v2790, 4
      %v2792 = vrot.slane %v2671, 5
      %v2793 = vsel %vm1704, %v2791, %v2792
      %v2794 = vrot.slane %v2792, 4
      %v2795 = vrot.slane %v2672, 5
      %v2796 = vsel %vm1704, %v2794, %v2795
      %v2797 = vrot.slane %v2673, 5
      %v2798 = vrot.slane %v2797, 4
      %v2799 = vrot.slane %v2674, 5
      %v2800 = vsel %vm1704, %v2798, %v2799
      %v2801 = vrot.slane %v2799, 4
      %v2802 = vrot.slane %v2675, 5
      %v2803 = vsel %vm1704, %v2801, %v2802
      %v2804 = vrot.slane %v2676, 5
      %v2805 = vrot.slane %v2804, 4
      %v2806 = vrot.slane %v2677, 5
      %v2807 = vsel %vm1704, %v2805, %v2806
      %v2808 = vrot.slane %v2806, 4
      %v2809 = vrot.slane %v2678, 5
      %v2810 = vsel %vm1704, %v2808, %v2809
      %v2811 = vrot.slane %v2679, 5
      %v2812 = vrot.slane %v2811, 4
      %v2813 = vrot.slane %v2680, 5
      %v2814 = vsel %vm1704, %v2812, %v2813
      %v2815 = vrot.slane %v2813, 4
      %v2816 = vrot.slane %v2681, 5
      %v2817 = vsel %vm1704, %v2815, %v2816
      %v2818 = vrot.slane %v2682, 5
      %v2819 = vrot.slane %v2818, 4
      %v2820 = vrot.slane %v2683, 5
      %v2821 = vsel %vm1704, %v2819, %v2820
      %v2822 = vrot.slane %v2820, 4
      %v2823 = vrot.slane %v2684, 5
      %v2824 = vsel %vm1704, %v2822, %v2823
      %v2825 = vrot.slane %v2685, 5
      %v2826 = vrot.slane %v2825, 4
      %v2827 = vrot.slane %v2686, 5
      %v2828 = vsel %vm1704, %v2826, %v2827
      %v2829 = vrot.slane %v2827, 4
      %v2830 = vrot.slane %v2687, 5
      %v2831 = vsel %vm1704, %v2829, %v2830
      %v2832 = vrot.slane %v2688, 5
      %v2833 = vrot.slane %v2832, 4
      %v2834 = vrot.slane %v2689, 5
      %v2835 = vsel %vm1704, %v2833, %v2834
      %v2836 = vrot.slane %v2834, 4
      %v2837 = vrot.slane %v2690, 5
      %v2838 = vsel %vm1704, %v2836, %v2837
      %v2839 = vrot.slane %v2691, 5
      %v2840 = vrot.slane %v2839, 4
      %v2841 = vrot.slane %v2692, 5
      %v2842 = vsel %vm1704, %v2840, %v2841
      %v2843 = vrot.slane %v2841, 4
      %v2844 = vrot.slane %v2693, 5
      %v2845 = vsel %vm1704, %v2843, %v2844
      %v2846 = vrot.slane %v2694, 5
      %v2847 = vrot.slane %v2846, 4
      %v2848 = vrot.slane %v2695, 5
      %v2849 = vsel %vm1704, %v2847, %v2848
      %v2850 = vrot.slane %v2848, 4
      %v2851 = vrot.slane %v2696, 5
      %v2852 = vsel %vm1704, %v2850, %v2851
      %v2853 = vrot.slane %v2697, 5
      %v2854 = vrot.slane %v2853, 4
      %v2855 = vrot.slane %v2698, 5
      %v2856 = vsel %vm1704, %v2854, %v2855
      %v2857 = vrot.slane %v2855, 4
      %v2858 = vrot.slane %v2699, 5
      %v2859 = vsel %vm1704, %v2857, %v2858
      %v2860 = vunpack.c.l.b16 %v2751
      %v2861 = vunpack.c.l.b16 %v2754
      %v2862 = vunpack.c.l.b16 %v2758
      %v2863 = vunpack.c.l.b16 %v2761
      %v2864 = vunpack.c.l.b16 %v2765
      %v2865 = vunpack.c.l.b16 %v2768
      %v2866 = vunpack.c.l.b16 %v2772
      %v2867 = vunpack.c.l.b16 %v2775
      %v2868 = vunpack.c.l.b16 %v2779
      %v2869 = vunpack.c.l.b16 %v2782
      %v2870 = vunpack.c.l.b16 %v2786
      %v2871 = vunpack.c.l.b16 %v2789
      %v2872 = vunpack.c.l.b16 %v2793
      %v2873 = vunpack.c.l.b16 %v2796
      %v2874 = vunpack.c.l.b16 %v2800
      %v2875 = vunpack.c.l.b16 %v2803
      %v2876 = vunpack.c.l.b16 %v2807
      %v2877 = vunpack.c.l.b16 %v2810
      %v2878 = vunpack.c.l.b16 %v2814
      %v2879 = vunpack.c.l.b16 %v2817
      %v2880 = vunpack.c.l.b16 %v2821
      %v2881 = vunpack.c.l.b16 %v2824
      %v2882 = vunpack.c.l.b16 %v2828
      %v2883 = vunpack.c.l.b16 %v2831
      %v2884 = vunpack.c.l.b16 %v2835
      %v2885 = vunpack.c.l.b16 %v2838
      %v2886 = vunpack.c.l.b16 %v2842
      %v2887 = vunpack.c.l.b16 %v2845
      %v2888 = vunpack.c.l.b16 %v2849
      %v2889 = vunpack.c.l.b16 %v2852
      %v2890 = vunpack.c.l.b16 %v2856
      %v2891 = vunpack.c.l.b16 %v2859
      %v2892 = vpack.c.b16 %v2861, %v2860
      %v2893 = vpack.c.b16 %v2863, %v2862
      %v2894 = vpack.c.b16 %v2865, %v2864
      %v2895 = vpack.c.b16 %v2867, %v2866
      %v2896 = vpack.c.b16 %v2869, %v2868
      %v2897 = vpack.c.b16 %v2871, %v2870
      %v2898 = vpack.c.b16 %v2873, %v2872
      %v2899 = vpack.c.b16 %v2875, %v2874
      %v2900 = vpack.c.b16 %v2877, %v2876
      %v2901 = vpack.c.b16 %v2879, %v2878
      %v2902 = vpack.c.b16 %v2881, %v2880
      %v2903 = vpack.c.b16 %v2883, %v2882
      %v2904 = vpack.c.b16 %v2885, %v2884
      %v2905 = vpack.c.b16 %v2887, %v2886
      %v2906 = vpack.c.b16 %v2889, %v2888
      %v2907 = vpack.c.b16 %v2891, %v2890
      %2908 = vrot.lane.b32.xlu0 %v2892, 20
      %v2909 = vpop.permute.xlu0 %2908
      %2910 = vrot.lane.b32.xlu0 %v2893, 20
      %v2911 = vpop.permute.xlu0 %2910
      %2912 = vrot.lane.b32.xlu0 %v2894, 20
      %v2913 = vpop.permute.xlu0 %2912
      %2914 = vrot.lane.b32.xlu0 %v2895, 20
      %v2915 = vpop.permute.xlu0 %2914
      %2916 = vrot.lane.b32.xlu0 %v2896, 20
      %v2917 = vpop.permute.xlu0 %2916
      %2918 = vrot.lane.b32.xlu0 %v2897, 20
      %v2919 = vpop.permute.xlu0 %2918
      %2920 = vrot.lane.b32.xlu0 %v2898, 20
      %v2921 = vpop.permute.xlu0 %2920
      %2922 = vrot.lane.b32.xlu0 %v2899, 20
      %v2923 = vpop.permute.xlu0 %2922
      %2924 = vrot.lane.b32.xlu0 %v2900, 20
      %v2925 = vpop.permute.xlu0 %2924
      %2926 = vrot.lane.b32.xlu0 %v2901, 20
      %v2927 = vpop.permute.xlu0 %2926
      %2928 = vrot.lane.b32.xlu0 %v2902, 20
      %v2929 = vpop.permute.xlu0 %2928
      %2930 = vrot.lane.b32.xlu0 %v2903, 20
      %v2931 = vpop.permute.xlu0 %2930
      %2932 = vrot.lane.b32.xlu0 %v2904, 20
      %v2933 = vpop.permute.xlu0 %2932
      %2934 = vrot.lane.b32.xlu0 %v2905, 20
      %v2935 = vpop.permute.xlu0 %2934
      %2936 = vrot.lane.b32.xlu0 %v2906, 20
      %v2937 = vpop.permute.xlu0 %2936
      %2938 = vrot.lane.b32.xlu0 %v2907, 20
      %v2939 = vpop.permute.xlu0 %2938
      %vm2956 = vcmask 195744
      %2957 = vst.msk [vmem:[#allocation3] sm:$0xff] %vm2956, %v2909
      %2958 = vst.msk [vmem:[#allocation3 + $0x8] sm:$0xff] %vm2956, %v2911
      %2959 = vst.msk [vmem:[#allocation3 + $0x10] sm:$0xff] %vm2956, %v2913
      %2960 = vst.msk [vmem:[#allocation3 + $0x18] sm:$0xff] %vm2956, %v2915
      %2961 = vst.msk [vmem:[#allocation3 + $0x20] sm:$0xff] %vm2956, %v2917
      %2962 = vst.msk [vmem:[#allocation3 + $0x28] sm:$0xff] %vm2956, %v2919
      %2963 = vst.msk [vmem:[#allocation3 + $0x30] sm:$0xff] %vm2956, %v2921
      %2964 = vst.msk [vmem:[#allocation3 + $0x38] sm:$0xff] %vm2956, %v2923
      %2965 = vst.msk [vmem:[#allocation3 + $0x40] sm:$0xff] %vm2956, %v2925
      %2966 = vst.msk [vmem:[#allocation3 + $0x48] sm:$0xff] %vm2956, %v2927
      %2967 = vst.msk [vmem:[#allocation3 + $0x50] sm:$0xff] %vm2956, %v2929
      %2968 = vst.msk [vmem:[#allocation3 + $0x58] sm:$0xff] %vm2956, %v2931
      %2969 = vst.msk [vmem:[#allocation3 + $0x60] sm:$0xff] %vm2956, %v2933
      %2970 = vst.msk [vmem:[#allocation3 + $0x68] sm:$0xff] %vm2956, %v2935
      %2971 = vst.msk [vmem:[#allocation3 + $0x70] sm:$0xff] %vm2956, %v2937
      %2972 = vst.msk [vmem:[#allocation3 + $0x78] sm:$0xff] %vm2956, %v2939
      %s2973 = scalar_lea.vmem [#allocation2], 24
      %v2974 = vld [vmem:[%s2973] sm:$0xf]
      %v2975 = vld [vmem:[%s2973 + $0x4] sm:$0xf]
      %v2976 = vld [vmem:[%s2973 + $0xc] sm:$0xf]
      %v2977 = vld [vmem:[%s2973 + $0x10] sm:$0xf]
      %v2978 = vld [vmem:[%s2973 + $0x18] sm:$0xf]
      %v2979 = vld [vmem:[%s2973 + $0x1c] sm:$0xf]
      %v2980 = vld [vmem:[%s2973 + $0x24] sm:$0xf]
      %v2981 = vld [vmem:[%s2973 + $0x28] sm:$0xf]
      %v2982 = vld [vmem:[%s2973 + $0x30] sm:$0xf]
      %v2983 = vld [vmem:[%s2973 + $0x34] sm:$0xf]
      %v2984 = vld [vmem:[%s2973 + $0x3c] sm:$0xf]
      %v2985 = vld [vmem:[%s2973 + $0x40] sm:$0xf]
      %v2986 = vld [vmem:[%s2973 + $0x48] sm:$0xf]
      %v2987 = vld [vmem:[%s2973 + $0x4c] sm:$0xf]
      %v2988 = vld [vmem:[%s2973 + $0x54] sm:$0xf]
      %v2989 = vld [vmem:[%s2973 + $0x58] sm:$0xf]
      %v2990 = vld [vmem:[%s2973 + $0x60] sm:$0xf]
      %v2991 = vld [vmem:[%s2973 + $0x64] sm:$0xf]
      %v2992 = vld [vmem:[%s2973 + $0x6c] sm:$0xf]
      %v2993 = vld [vmem:[%s2973 + $0x70] sm:$0xf]
      %v2994 = vld [vmem:[%s2973 + $0x78] sm:$0xf]
      %v2995 = vld [vmem:[%s2973 + $0x7c] sm:$0xf]
      %v2996 = vld [vmem:[%s2973 + $0x84] sm:$0xf]
      %v2997 = vld [vmem:[%s2973 + $0x88] sm:$0xf]
      %v2998 = vld [vmem:[%s2973 + $0x90] sm:$0xf]
      %v2999 = vld [vmem:[%s2973 + $0x94] sm:$0xf]
      %v3000 = vld [vmem:[%s2973 + $0x9c] sm:$0xf]
      %v3001 = vld [vmem:[%s2973 + $0xa0] sm:$0xf]
      %v3002 = vld [vmem:[%s2973 + $0xa8] sm:$0xf]
      %v3003 = vld [vmem:[%s2973 + $0xac] sm:$0xf]
      %v3004 = vld [vmem:[%s2973 + $0xb4] sm:$0xf]
      %v3005 = vld [vmem:[%s2973 + $0xb8] sm:$0xf]
      %v3038 = vunpack.c.l.b16 %v2974
      %v3039 = vunpack.c.l.b16 %v2975
      %v3040 = vunpack.c.l.b16 %v2976
      %v3041 = vunpack.c.l.b16 %v2977
      %v3042 = vunpack.c.l.b16 %v2978
      %v3043 = vunpack.c.l.b16 %v2979
      %v3044 = vunpack.c.l.b16 %v2980
      %v3045 = vunpack.c.l.b16 %v2981
      %v3046 = vunpack.c.l.b16 %v2982
      %v3047 = vunpack.c.l.b16 %v2983
      %v3048 = vunpack.c.l.b16 %v2984
      %v3049 = vunpack.c.l.b16 %v2985
      %v3050 = vunpack.c.l.b16 %v2986
      %v3051 = vunpack.c.l.b16 %v2987
      %v3052 = vunpack.c.l.b16 %v2988
      %v3053 = vunpack.c.l.b16 %v2989
      %v3054 = vunpack.c.l.b16 %v2990
      %v3055 = vunpack.c.l.b16 %v2991
      %v3056 = vunpack.c.l.b16 %v2992
      %v3057 = vunpack.c.l.b16 %v2993
      %v3058 = vunpack.c.l.b16 %v2994
      %v3059 = vunpack.c.l.b16 %v2995
      %v3060 = vunpack.c.l.b16 %v2996
      %v3061 = vunpack.c.l.b16 %v2997
      %v3062 = vunpack.c.l.b16 %v2998
      %v3063 = vunpack.c.l.b16 %v2999
      %v3064 = vunpack.c.l.b16 %v3000
      %v3065 = vunpack.c.l.b16 %v3001
      %v3066 = vunpack.c.l.b16 %v3002
      %v3067 = vunpack.c.l.b16 %v3003
      %v3068 = vunpack.c.l.b16 %v3004
      %v3069 = vunpack.c.l.b16 %v3005
      %v3070 = vpack.c.b16 %v3039, %v3038
      %v3071 = vpack.c.b16 %v3041, %v3040
      %v3072 = vpack.c.b16 %v3043, %v3042
      %v3073 = vpack.c.b16 %v3045, %v3044
      %v3074 = vpack.c.b16 %v3047, %v3046
      %v3075 = vpack.c.b16 %v3049, %v3048
      %v3076 = vpack.c.b16 %v3051, %v3050
      %v3077 = vpack.c.b16 %v3053, %v3052
      %v3078 = vpack.c.b16 %v3055, %v3054
      %v3079 = vpack.c.b16 %v3057, %v3056
      %v3080 = vpack.c.b16 %v3059, %v3058
      %v3081 = vpack.c.b16 %v3061, %v3060
      %v3082 = vpack.c.b16 %v3063, %v3062
      %v3083 = vpack.c.b16 %v3065, %v3064
      %v3084 = vpack.c.b16 %v3067, %v3066
      %v3085 = vpack.c.b16 %v3069, %v3068
      %3086 = vrot.lane.b32.xlu0 %v3070, 24
      %v3087 = vpop.permute.xlu0 %3086
      %3088 = vrot.lane.b32.xlu0 %v3071, 24
      %v3089 = vpop.permute.xlu0 %3088
      %3090 = vrot.lane.b32.xlu0 %v3072, 24
      %v3091 = vpop.permute.xlu0 %3090
      %3092 = vrot.lane.b32.xlu0 %v3073, 24
      %v3093 = vpop.permute.xlu0 %3092
      %3094 = vrot.lane.b32.xlu0 %v3074, 24
      %v3095 = vpop.permute.xlu0 %3094
      %3096 = vrot.lane.b32.xlu0 %v3075, 24
      %v3097 = vpop.permute.xlu0 %3096
      %3098 = vrot.lane.b32.xlu0 %v3076, 24
      %v3099 = vpop.permute.xlu0 %3098
      %3100 = vrot.lane.b32.xlu0 %v3077, 24
      %v3101 = vpop.permute.xlu0 %3100
      %3102 = vrot.lane.b32.xlu0 %v3078, 24
      %v3103 = vpop.permute.xlu0 %3102
      %3104 = vrot.lane.b32.xlu0 %v3079, 24
      %v3105 = vpop.permute.xlu0 %3104
      %3106 = vrot.lane.b32.xlu0 %v3080, 24
      %v3107 = vpop.permute.xlu0 %3106
      %3108 = vrot.lane.b32.xlu0 %v3081, 24
      %v3109 = vpop.permute.xlu0 %3108
      %3110 = vrot.lane.b32.xlu0 %v3082, 24
      %v3111 = vpop.permute.xlu0 %3110
      %3112 = vrot.lane.b32.xlu0 %v3083, 24
      %v3113 = vpop.permute.xlu0 %3112
      %3114 = vrot.lane.b32.xlu0 %v3084, 24
      %v3115 = vpop.permute.xlu0 %3114
      %3116 = vrot.lane.b32.xlu0 %v3085, 24
      %v3117 = vpop.permute.xlu0 %3116
      %vm3134 = vcmask 228544
      %3135 = vst.msk [vmem:[#allocation3] sm:$0xff] %vm3134, %v3087
      %3136 = vst.msk [vmem:[#allocation3 + $0x8] sm:$0xff] %vm3134, %v3089
      %3137 = vst.msk [vmem:[#allocation3 + $0x10] sm:$0xff] %vm3134, %v3091
      %3138 = vst.msk [vmem:[#allocation3 + $0x18] sm:$0xff] %vm3134, %v3093
      %3139 = vst.msk [vmem:[#allocation3 + $0x20] sm:$0xff] %vm3134, %v3095
      %3140 = vst.msk [vmem:[#allocation3 + $0x28] sm:$0xff] %vm3134, %v3097
      %3141 = vst.msk [vmem:[#allocation3 + $0x30] sm:$0xff] %vm3134, %v3099
      %3142 = vst.msk [vmem:[#allocation3 + $0x38] sm:$0xff] %vm3134, %v3101
      %3143 = vst.msk [vmem:[#allocation3 + $0x40] sm:$0xff] %vm3134, %v3103
      %3144 = vst.msk [vmem:[#allocation3 + $0x48] sm:$0xff] %vm3134, %v3105
      %3145 = vst.msk [vmem:[#allocation3 + $0x50] sm:$0xff] %vm3134, %v3107
      %3146 = vst.msk [vmem:[#allocation3 + $0x58] sm:$0xff] %vm3134, %v3109
      %3147 = vst.msk [vmem:[#allocation3 + $0x60] sm:$0xff] %vm3134, %v3111
      %3148 = vst.msk [vmem:[#allocation3 + $0x68] sm:$0xff] %vm3134, %v3113
      %3149 = vst.msk [vmem:[#allocation3 + $0x70] sm:$0xff] %vm3134, %v3115
      %3150 = vst.msk [vmem:[#allocation3 + $0x78] sm:$0xff] %vm3134, %v3117
      %v3151 = vld [vmem:[%s2973] sm:$0xf]
      %v3152 = vld [vmem:[%s2973 + $0x4] sm:$0xf]
      %v3153 = vld [vmem:[%s2973 + $0x8] sm:$0x1]
      %v3154 = vld [vmem:[%s2973 + $0xc] sm:$0xf]
      %v3155 = vld [vmem:[%s2973 + $0x10] sm:$0xf]
      %v3156 = vld [vmem:[%s2973 + $0x14] sm:$0x1]
      %v3157 = vld [vmem:[%s2973 + $0x18] sm:$0xf]
      %v3158 = vld [vmem:[%s2973 + $0x1c] sm:$0xf]
      %v3159 = vld [vmem:[%s2973 + $0x20] sm:$0x1]
      %v3160 = vld [vmem:[%s2973 + $0x24] sm:$0xf]
      %v3161 = vld [vmem:[%s2973 + $0x28] sm:$0xf]
      %v3162 = vld [vmem:[%s2973 + $0x2c] sm:$0x1]
      %v3163 = vld [vmem:[%s2973 + $0x30] sm:$0xf]
      %v3164 = vld [vmem:[%s2973 + $0x34] sm:$0xf]
      %v3165 = vld [vmem:[%s2973 + $0x38] sm:$0x1]
      %v3166 = vld [vmem:[%s2973 + $0x3c] sm:$0xf]
      %v3167 = vld [vmem:[%s2973 + $0x40] sm:$0xf]
      %v3168 = vld [vmem:[%s2973 + $0x44] sm:$0x1]
      %v3169 = vld [vmem:[%s2973 + $0x48] sm:$0xf]
      %v3170 = vld [vmem:[%s2973 + $0x4c] sm:$0xf]
      %v3171 = vld [vmem:[%s2973 + $0x50] sm:$0x1]
      %v3172 = vld [vmem:[%s2973 + $0x54] sm:$0xf]
      %v3173 = vld [vmem:[%s2973 + $0x58] sm:$0xf]
      %v3174 = vld [vmem:[%s2973 + $0x5c] sm:$0x1]
      %v3175 = vld [vmem:[%s2973 + $0x60] sm:$0xf]
      %v3176 = vld [vmem:[%s2973 + $0x64] sm:$0xf]
      %v3177 = vld [vmem:[%s2973 + $0x68] sm:$0x1]
      %v3178 = vld [vmem:[%s2973 + $0x6c] sm:$0xf]
      %v3179 = vld [vmem:[%s2973 + $0x70] sm:$0xf]
      %v3180 = vld [vmem:[%s2973 + $0x74] sm:$0x1]
      %v3181 = vld [vmem:[%s2973 + $0x78] sm:$0xf]
      %v3182 = vld [vmem:[%s2973 + $0x7c] sm:$0xf]
      %v3183 = vld [vmem:[%s2973 + $0x80] sm:$0x1]
      %v3184 = vld [vmem:[%s2973 + $0x84] sm:$0xf]
      %v3185 = vld [vmem:[%s2973 + $0x88] sm:$0xf]
      %v3186 = vld [vmem:[%s2973 + $0x8c] sm:$0x1]
      %v3187 = vld [vmem:[%s2973 + $0x90] sm:$0xf]
      %v3188 = vld [vmem:[%s2973 + $0x94] sm:$0xf]
      %v3189 = vld [vmem:[%s2973 + $0x98] sm:$0x1]
      %v3190 = vld [vmem:[%s2973 + $0x9c] sm:$0xf]
      %v3191 = vld [vmem:[%s2973 + $0xa0] sm:$0xf]
      %v3192 = vld [vmem:[%s2973 + $0xa4] sm:$0x1]
      %v3193 = vld [vmem:[%s2973 + $0xa8] sm:$0xf]
      %v3194 = vld [vmem:[%s2973 + $0xac] sm:$0xf]
      %v3195 = vld [vmem:[%s2973 + $0xb0] sm:$0x1]
      %v3196 = vld [vmem:[%s2973 + $0xb4] sm:$0xf]
      %v3197 = vld [vmem:[%s2973 + $0xb8] sm:$0xf]
      %v3198 = vld [vmem:[%s2973 + $0xbc] sm:$0x1]
      %v3200 = vshrl.u32 %v3151, 16
      %v3202 = vrot.slane %v3200, 4
      %v3203 = vshll.u32 %v3151, 16
      %v3205 = vrot.slane %v3203, 5
      %v3206 = vor.u32 %v3202, %v3205
      %v3207 = vrot.slane %v3206, 4
      %v3209 = vshll.u32 %v3152, 16
      %v3211 = vrot.slane %v3209, 5
      %v3212 = vsel %vm1108, %v3207, %v3211
      %v3213 = vshrl.u32 %v3152, 16
      %v3215 = vrot.slane %v3213, 4
      %v3216 = vor.u32 %v3215, %v3211
      %v3217 = vrot.slane %v3216, 4
      %v3219 = vshll.u32 %v3153, 16
      %v3221 = vrot.slane %v3219, 5
      %v3222 = vsel %vm1108, %v3217, %v3221
      %v3224 = vshrl.u32 %v3154, 16
      %v3226 = vrot.slane %v3224, 4
      %v3227 = vshll.u32 %v3154, 16
      %v3229 = vrot.slane %v3227, 5
      %v3230 = vor.u32 %v3226, %v3229
      %v3231 = vrot.slane %v3230, 4
      %v3233 = vshll.u32 %v3155, 16
      %v3235 = vrot.slane %v3233, 5
      %v3236 = vsel %vm1108, %v3231, %v3235
      %v3237 = vshrl.u32 %v3155, 16
      %v3239 = vrot.slane %v3237, 4
      %v3240 = vor.u32 %v3239, %v3235
      %v3241 = vrot.slane %v3240, 4
      %v3243 = vshll.u32 %v3156, 16
      %v3245 = vrot.slane %v3243, 5
      %v3246 = vsel %vm1108, %v3241, %v3245
      %v3248 = vshrl.u32 %v3157, 16
      %v3250 = vrot.slane %v3248, 4
      %v3251 = vshll.u32 %v3157, 16
      %v3253 = vrot.slane %v3251, 5
      %v3254 = vor.u32 %v3250, %v3253
      %v3255 = vrot.slane %v3254, 4
      %v3257 = vshll.u32 %v3158, 16
      %v3259 = vrot.slane %v3257, 5
      %v3260 = vsel %vm1108, %v3255, %v3259
      %v3261 = vshrl.u32 %v3158, 16
      %v3263 = vrot.slane %v3261, 4
      %v3264 = vor.u32 %v3263, %v3259
      %v3265 = vrot.slane %v3264, 4
      %v3267 = vshll.u32 %v3159, 16
      %v3269 = vrot.slane %v3267, 5
      %v3270 = vsel %vm1108, %v3265, %v3269
      %v3272 = vshrl.u32 %v3160, 16
      %v3274 = vrot.slane %v3272, 4
      %v3275 = vshll.u32 %v3160, 16
      %v3277 = vrot.slane %v3275, 5
      %v3278 = vor.u32 %v3274, %v3277
      %v3279 = vrot.slane %v3278, 4
      %v3281 = vshll.u32 %v3161, 16
      %v3283 = vrot.slane %v3281, 5
      %v3284 = vsel %vm1108, %v3279, %v3283
      %v3285 = vshrl.u32 %v3161, 16
      %v3287 = vrot.slane %v3285, 4
      %v3288 = vor.u32 %v3287, %v3283
      %v3289 = vrot.slane %v3288, 4
      %v3291 = vshll.u32 %v3162, 16
      %v3293 = vrot.slane %v3291, 5
      %v3294 = vsel %vm1108, %v3289, %v3293
      %v3296 = vshrl.u32 %v3163, 16
      %v3298 = vrot.slane %v3296, 4
      %v3299 = vshll.u32 %v3163, 16
      %v3301 = vrot.slane %v3299, 5
      %v3302 = vor.u32 %v3298, %v3301
      %v3303 = vrot.slane %v3302, 4
      %v3305 = vshll.u32 %v3164, 16
      %v3307 = vrot.slane %v3305, 5
      %v3308 = vsel %vm1108, %v3303, %v3307
      %v3309 = vshrl.u32 %v3164, 16
      %v3311 = vrot.slane %v3309, 4
      %v3312 = vor.u32 %v3311, %v3307
      %v3313 = vrot.slane %v3312, 4
      %v3315 = vshll.u32 %v3165, 16
      %v3317 = vrot.slane %v3315, 5
      %v3318 = vsel %vm1108, %v3313, %v3317
      %v3320 = vshrl.u32 %v3166, 16
      %v3322 = vrot.slane %v3320, 4
      %v3323 = vshll.u32 %v3166, 16
      %v3325 = vrot.slane %v3323, 5
      %v3326 = vor.u32 %v3322, %v3325
      %v3327 = vrot.slane %v3326, 4
      %v3329 = vshll.u32 %v3167, 16
      %v3331 = vrot.slane %v3329, 5
      %v3332 = vsel %vm1108, %v3327, %v3331
      %v3333 = vshrl.u32 %v3167, 16
      %v3335 = vrot.slane %v3333, 4
      %v3336 = vor.u32 %v3335, %v3331
      %v3337 = vrot.slane %v3336, 4
      %v3339 = vshll.u32 %v3168, 16
      %v3341 = vrot.slane %v3339, 5
      %v3342 = vsel %vm1108, %v3337, %v3341
      %v3344 = vshrl.u32 %v3169, 16
      %v3346 = vrot.slane %v3344, 4
      %v3347 = vshll.u32 %v3169, 16
      %v3349 = vrot.slane %v3347, 5
      %v3350 = vor.u32 %v3346, %v3349
      %v3351 = vrot.slane %v3350, 4
      %v3353 = vshll.u32 %v3170, 16
      %v3355 = vrot.slane %v3353, 5
      %v3356 = vsel %vm1108, %v3351, %v3355
      %v3357 = vshrl.u32 %v3170, 16
      %v3359 = vrot.slane %v3357, 4
      %v3360 = vor.u32 %v3359, %v3355
      %v3361 = vrot.slane %v3360, 4
      %v3363 = vshll.u32 %v3171, 16
      %v3365 = vrot.slane %v3363, 5
      %v3366 = vsel %vm1108, %v3361, %v3365
      %v3368 = vshrl.u32 %v3172, 16
      %v3370 = vrot.slane %v3368, 4
      %v3371 = vshll.u32 %v3172, 16
      %v3373 = vrot.slane %v3371, 5
      %v3374 = vor.u32 %v3370, %v3373
      %v3375 = vrot.slane %v3374, 4
      %v3377 = vshll.u32 %v3173, 16
      %v3379 = vrot.slane %v3377, 5
      %v3380 = vsel %vm1108, %v3375, %v3379
      %v3381 = vshrl.u32 %v3173, 16
      %v3383 = vrot.slane %v3381, 4
      %v3384 = vor.u32 %v3383, %v3379
      %v3385 = vrot.slane %v3384, 4
      %v3387 = vshll.u32 %v3174, 16
      %v3389 = vrot.slane %v3387, 5
      %v3390 = vsel %vm1108, %v3385, %v3389
      %v3392 = vshrl.u32 %v3175, 16
      %v3394 = vrot.slane %v3392, 4
      %v3395 = vshll.u32 %v3175, 16
      %v3397 = vrot.slane %v3395, 5
      %v3398 = vor.u32 %v3394, %v3397
      %v3399 = vrot.slane %v3398, 4
      %v3401 = vshll.u32 %v3176, 16
      %v3403 = vrot.slane %v3401, 5
      %v3404 = vsel %vm1108, %v3399, %v3403
      %v3405 = vshrl.u32 %v3176, 16
      %v3407 = vrot.slane %v3405, 4
      %v3408 = vor.u32 %v3407, %v3403
      %v3409 = vrot.slane %v3408, 4
      %v3411 = vshll.u32 %v3177, 16
      %v3413 = vrot.slane %v3411, 5
      %v3414 = vsel %vm1108, %v3409, %v3413
      %v3416 = vshrl.u32 %v3178, 16
      %v3418 = vrot.slane %v3416, 4
      %v3419 = vshll.u32 %v3178, 16
      %v3421 = vrot.slane %v3419, 5
      %v3422 = vor.u32 %v3418, %v3421
      %v3423 = vrot.slane %v3422, 4
      %v3425 = vshll.u32 %v3179, 16
      %v3427 = vrot.slane %v3425, 5
      %v3428 = vsel %vm1108, %v3423, %v3427
      %v3429 = vshrl.u32 %v3179, 16
      %v3431 = vrot.slane %v3429, 4
      %v3432 = vor.u32 %v3431, %v3427
      %v3433 = vrot.slane %v3432, 4
      %v3435 = vshll.u32 %v3180, 16
      %v3437 = vrot.slane %v3435, 5
      %v3438 = vsel %vm1108, %v3433, %v3437
      %v3440 = vshrl.u32 %v3181, 16
      %v3442 = vrot.slane %v3440, 4
      %v3443 = vshll.u32 %v3181, 16
      %v3445 = vrot.slane %v3443, 5
      %v3446 = vor.u32 %v3442, %v3445
      %v3447 = vrot.slane %v3446, 4
      %v3449 = vshll.u32 %v3182, 16
      %v3451 = vrot.slane %v3449, 5
      %v3452 = vsel %vm1108, %v3447, %v3451
      %v3453 = vshrl.u32 %v3182, 16
      %v3455 = vrot.slane %v3453, 4
      %v3456 = vor.u32 %v3455, %v3451
      %v3457 = vrot.slane %v3456, 4
      %v3459 = vshll.u32 %v3183, 16
      %v3461 = vrot.slane %v3459, 5
      %v3462 = vsel %vm1108, %v3457, %v3461
      %v3464 = vshrl.u32 %v3184, 16
      %v3466 = vrot.slane %v3464, 4
      %v3467 = vshll.u32 %v3184, 16
      %v3469 = vrot.slane %v3467, 5
      %v3470 = vor.u32 %v3466, %v3469
      %v3471 = vrot.slane %v3470, 4
      %v3473 = vshll.u32 %v3185, 16
      %v3475 = vrot.slane %v3473, 5
      %v3476 = vsel %vm1108, %v3471, %v3475
      %v3477 = vshrl.u32 %v3185, 16
      %v3479 = vrot.slane %v3477, 4
      %v3480 = vor.u32 %v3479, %v3475
      %v3481 = vrot.slane %v3480, 4
      %v3483 = vshll.u32 %v3186, 16
      %v3485 = vrot.slane %v3483, 5
      %v3486 = vsel %vm1108, %v3481, %v3485
      %v3488 = vshrl.u32 %v3187, 16
      %v3490 = vrot.slane %v3488, 4
      %v3491 = vshll.u32 %v3187, 16
      %v3493 = vrot.slane %v3491, 5
      %v3494 = vor.u32 %v3490, %v3493
      %v3495 = vrot.slane %v3494, 4
      %v3497 = vshll.u32 %v3188, 16
      %v3499 = vrot.slane %v3497, 5
      %v3500 = vsel %vm1108, %v3495, %v3499
      %v3501 = vshrl.u32 %v3188, 16
      %v3503 = vrot.slane %v3501, 4
      %v3504 = vor.u32 %v3503, %v3499
      %v3505 = vrot.slane %v3504, 4
      %v3507 = vshll.u32 %v3189, 16
      %v3509 = vrot.slane %v3507, 5
      %v3510 = vsel %vm1108, %v3505, %v3509
      %v3512 = vshrl.u32 %v3190, 16
      %v3514 = vrot.slane %v3512, 4
      %v3515 = vshll.u32 %v3190, 16
      %v3517 = vrot.slane %v3515, 5
      %v3518 = vor.u32 %v3514, %v3517
      %v3519 = vrot.slane %v3518, 4
      %v3521 = vshll.u32 %v3191, 16
      %v3523 = vrot.slane %v3521, 5
      %v3524 = vsel %vm1108, %v3519, %v3523
      %v3525 = vshrl.u32 %v3191, 16
      %v3527 = vrot.slane %v3525, 4
      %v3528 = vor.u32 %v3527, %v3523
      %v3529 = vrot.slane %v3528, 4
      %v3531 = vshll.u32 %v3192, 16
      %v3533 = vrot.slane %v3531, 5
      %v3534 = vsel %vm1108, %v3529, %v3533
      %v3536 = vshrl.u32 %v3193, 16
      %v3538 = vrot.slane %v3536, 4
      %v3539 = vshll.u32 %v3193, 16
      %v3541 = vrot.slane %v3539, 5
      %v3542 = vor.u32 %v3538, %v3541
      %v3543 = vrot.slane %v3542, 4
      %v3545 = vshll.u32 %v3194, 16
      %v3547 = vrot.slane %v3545, 5
      %v3548 = vsel %vm1108, %v3543, %v3547
      %v3549 = vshrl.u32 %v3194, 16
      %v3551 = vrot.slane %v3549, 4
      %v3552 = vor.u32 %v3551, %v3547
      %v3553 = vrot.slane %v3552, 4
      %v3555 = vshll.u32 %v3195, 16
      %v3557 = vrot.slane %v3555, 5
      %v3558 = vsel %vm1108, %v3553, %v3557
      %v3560 = vshrl.u32 %v3196, 16
      %v3562 = vrot.slane %v3560, 4
      %v3563 = vshll.u32 %v3196, 16
      %v3565 = vrot.slane %v3563, 5
      %v3566 = vor.u32 %v3562, %v3565
      %v3567 = vrot.slane %v3566, 4
      %v3569 = vshll.u32 %v3197, 16
      %v3571 = vrot.slane %v3569, 5
      %v3572 = vsel %vm1108, %v3567, %v3571
      %v3573 = vshrl.u32 %v3197, 16
      %v3575 = vrot.slane %v3573, 4
      %v3576 = vor.u32 %v3575, %v3571
      %v3577 = vrot.slane %v3576, 4
      %v3579 = vshll.u32 %v3198, 16
      %v3581 = vrot.slane %v3579, 5
      %v3582 = vsel %vm1108, %v3577, %v3581
      %v3583 = vunpack.c.l.b16 %v3212
      %v3584 = vunpack.c.l.b16 %v3222
      %v3585 = vunpack.c.l.b16 %v3236
      %v3586 = vunpack.c.l.b16 %v3246
      %v3587 = vunpack.c.l.b16 %v3260
      %v3588 = vunpack.c.l.b16 %v3270
      %v3589 = vunpack.c.l.b16 %v3284
      %v3590 = vunpack.c.l.b16 %v3294
      %v3591 = vunpack.c.l.b16 %v3308
      %v3592 = vunpack.c.l.b16 %v3318
      %v3593 = vunpack.c.l.b16 %v3332
      %v3594 = vunpack.c.l.b16 %v3342
      %v3595 = vunpack.c.l.b16 %v3356
      %v3596 = vunpack.c.l.b16 %v3366
      %v3597 = vunpack.c.l.b16 %v3380
      %v3598 = vunpack.c.l.b16 %v3390
      %v3599 = vunpack.c.l.b16 %v3404
      %v3600 = vunpack.c.l.b16 %v3414
      %v3601 = vunpack.c.l.b16 %v3428
      %v3602 = vunpack.c.l.b16 %v3438
      %v3603 = vunpack.c.l.b16 %v3452
      %v3604 = vunpack.c.l.b16 %v3462
      %v3605 = vunpack.c.l.b16 %v3476
      %v3606 = vunpack.c.l.b16 %v3486
      %v3607 = vunpack.c.l.b16 %v3500
      %v3608 = vunpack.c.l.b16 %v3510
      %v3609 = vunpack.c.l.b16 %v3524
      %v3610 = vunpack.c.l.b16 %v3534
      %v3611 = vunpack.c.l.b16 %v3548
      %v3612 = vunpack.c.l.b16 %v3558
      %v3613 = vunpack.c.l.b16 %v3572
      %v3614 = vunpack.c.l.b16 %v3582
      %v3615 = vpack.c.b16 %v3584, %v3583
      %v3616 = vpack.c.b16 %v3586, %v3585
      %v3617 = vpack.c.b16 %v3588, %v3587
      %v3618 = vpack.c.b16 %v3590, %v3589
      %v3619 = vpack.c.b16 %v3592, %v3591
      %v3620 = vpack.c.b16 %v3594, %v3593
      %v3621 = vpack.c.b16 %v3596, %v3595
      %v3622 = vpack.c.b16 %v3598, %v3597
      %v3623 = vpack.c.b16 %v3600, %v3599
      %v3624 = vpack.c.b16 %v3602, %v3601
      %v3625 = vpack.c.b16 %v3604, %v3603
      %v3626 = vpack.c.b16 %v3606, %v3605
      %v3627 = vpack.c.b16 %v3608, %v3607
      %v3628 = vpack.c.b16 %v3610, %v3609
      %v3629 = vpack.c.b16 %v3612, %v3611
      %v3630 = vpack.c.b16 %v3614, %v3613
      %3631 = vrot.lane.b32.xlu0 %v3615, 28
      %v3632 = vpop.permute.xlu0 %3631
      %3633 = vrot.lane.b32.xlu0 %v3616, 28
      %v3634 = vpop.permute.xlu0 %3633
      %3635 = vrot.lane.b32.xlu0 %v3617, 28
      %v3636 = vpop.permute.xlu0 %3635
      %3637 = vrot.lane.b32.xlu0 %v3618, 28
      %v3638 = vpop.permute.xlu0 %3637
      %3639 = vrot.lane.b32.xlu0 %v3619, 28
      %v3640 = vpop.permute.xlu0 %3639
      %3641 = vrot.lane.b32.xlu0 %v3620, 28
      %v3642 = vpop.permute.xlu0 %3641
      %3643 = vrot.lane.b32.xlu0 %v3621, 28
      %v3644 = vpop.permute.xlu0 %3643
      %3645 = vrot.lane.b32.xlu0 %v3622, 28
      %v3646 = vpop.permute.xlu0 %3645
      %3647 = vrot.lane.b32.xlu0 %v3623, 28
      %v3648 = vpop.permute.xlu0 %3647
      %3649 = vrot.lane.b32.xlu0 %v3624, 28
      %v3650 = vpop.permute.xlu0 %3649
      %3651 = vrot.lane.b32.xlu0 %v3625, 28
      %v3652 = vpop.permute.xlu0 %3651
      %3653 = vrot.lane.b32.xlu0 %v3626, 28
      %v3654 = vpop.permute.xlu0 %3653
      %3655 = vrot.lane.b32.xlu0 %v3627, 28
      %v3656 = vpop.permute.xlu0 %3655
      %3657 = vrot.lane.b32.xlu0 %v3628, 28
      %v3658 = vpop.permute.xlu0 %3657
      %3659 = vrot.lane.b32.xlu0 %v3629, 28
      %v3660 = vpop.permute.xlu0 %3659
      %3661 = vrot.lane.b32.xlu0 %v3630, 28
      %v3662 = vpop.permute.xlu0 %3661
      %vm3679 = vcmask 261344
      %3680 = vst.msk [vmem:[#allocation3] sm:$0xff] %vm3679, %v3632
      %3681 = vst.msk [vmem:[#allocation3 + $0x8] sm:$0xff] %vm3679, %v3634
      %3682 = vst.msk [vmem:[#allocation3 + $0x10] sm:$0xff] %vm3679, %v3636
      %3683 = vst.msk [vmem:[#allocation3 + $0x18] sm:$0xff] %vm3679, %v3638
      %3684 = vst.msk [vmem:[#allocation3 + $0x20] sm:$0xff] %vm3679, %v3640
      %3685 = vst.msk [vmem:[#allocation3 + $0x28] sm:$0xff] %vm3679, %v3642
      %3686 = vst.msk [vmem:[#allocation3 + $0x30] sm:$0xff] %vm3679, %v3644
      %3687 = vst.msk [vmem:[#allocation3 + $0x38] sm:$0xff] %vm3679, %v3646
      %3688 = vst.msk [vmem:[#allocation3 + $0x40] sm:$0xff] %vm3679, %v3648
      %3689 = vst.msk [vmem:[#allocation3 + $0x48] sm:$0xff] %vm3679, %v3650
      %3690 = vst.msk [vmem:[#allocation3 + $0x50] sm:$0xff] %vm3679, %v3652
      %3691 = vst.msk [vmem:[#allocation3 + $0x58] sm:$0xff] %vm3679, %v3654
      %3692 = vst.msk [vmem:[#allocation3 + $0x60] sm:$0xff] %vm3679, %v3656
      %3693 = vst.msk [vmem:[#allocation3 + $0x68] sm:$0xff] %vm3679, %v3658
      %3694 = vst.msk [vmem:[#allocation3 + $0x70] sm:$0xff] %vm3679, %v3660
      %3695 = vst.msk [vmem:[#allocation3 + $0x78] sm:$0xff] %vm3679, %v3662
      %v3696 = vld [vmem:[%s2973] sm:$0xe]
      %v3697 = vld [vmem:[%s2973 + $0x4] sm:$0xf]
      %v3698 = vld [vmem:[%s2973 + $0x8] sm:$0x1]
      %v3699 = vld [vmem:[%s2973 + $0xc] sm:$0xe]
      %v3700 = vld [vmem:[%s2973 + $0x10] sm:$0xf]
      %v3701 = vld [vmem:[%s2973 + $0x14] sm:$0x1]
      %v3702 = vld [vmem:[%s2973 + $0x18] sm:$0xe]
      %v3703 = vld [vmem:[%s2973 + $0x1c] sm:$0xf]
      %v3704 = vld [vmem:[%s2973 + $0x20] sm:$0x1]
      %v3705 = vld [vmem:[%s2973 + $0x24] sm:$0xe]
      %v3706 = vld [vmem:[%s2973 + $0x28] sm:$0xf]
      %v3707 = vld [vmem:[%s2973 + $0x2c] sm:$0x1]
      %v3708 = vld [vmem:[%s2973 + $0x30] sm:$0xe]
      %v3709 = vld [vmem:[%s2973 + $0x34] sm:$0xf]
      %v3710 = vld [vmem:[%s2973 + $0x38] sm:$0x1]
      %v3711 = vld [vmem:[%s2973 + $0x3c] sm:$0xe]
      %v3712 = vld [vmem:[%s2973 + $0x40] sm:$0xf]
      %v3713 = vld [vmem:[%s2973 + $0x44] sm:$0x1]
      %v3714 = vld [vmem:[%s2973 + $0x48] sm:$0xe]
      %v3715 = vld [vmem:[%s2973 + $0x4c] sm:$0xf]
      %v3716 = vld [vmem:[%s2973 + $0x50] sm:$0x1]
      %v3717 = vld [vmem:[%s2973 + $0x54] sm:$0xe]
      %v3718 = vld [vmem:[%s2973 + $0x58] sm:$0xf]
      %v3719 = vld [vmem:[%s2973 + $0x5c] sm:$0x1]
      %v3720 = vld [vmem:[%s2973 + $0x60] sm:$0xe]
      %v3721 = vld [vmem:[%s2973 + $0x64] sm:$0xf]
      %v3722 = vld [vmem:[%s2973 + $0x68] sm:$0x1]
      %v3723 = vld [vmem:[%s2973 + $0x6c] sm:$0xe]
      %v3724 = vld [vmem:[%s2973 + $0x70] sm:$0xf]
      %v3725 = vld [vmem:[%s2973 + $0x74] sm:$0x1]
      %v3726 = vld [vmem:[%s2973 + $0x78] sm:$0xe]
      %v3727 = vld [vmem:[%s2973 + $0x7c] sm:$0xf]
      %v3728 = vld [vmem:[%s2973 + $0x80] sm:$0x1]
      %v3729 = vld [vmem:[%s2973 + $0x84] sm:$0xe]
      %v3730 = vld [vmem:[%s2973 + $0x88] sm:$0xf]
      %v3731 = vld [vmem:[%s2973 + $0x8c] sm:$0x1]
      %v3732 = vld [vmem:[%s2973 + $0x90] sm:$0xe]
      %v3733 = vld [vmem:[%s2973 + $0x94] sm:$0xf]
      %v3734 = vld [vmem:[%s2973 + $0x98] sm:$0x1]
      %v3735 = vld [vmem:[%s2973 + $0x9c] sm:$0xe]
      %v3736 = vld [vmem:[%s2973 + $0xa0] sm:$0xf]
      %v3737 = vld [vmem:[%s2973 + $0xa4] sm:$0x1]
      %v3738 = vld [vmem:[%s2973 + $0xa8] sm:$0xe]
      %v3739 = vld [vmem:[%s2973 + $0xac] sm:$0xf]
      %v3740 = vld [vmem:[%s2973 + $0xb0] sm:$0x1]
      %v3741 = vld [vmem:[%s2973 + $0xb4] sm:$0xe]
      %v3742 = vld [vmem:[%s2973 + $0xb8] sm:$0xf]
      %v3743 = vld [vmem:[%s2973 + $0xbc] sm:$0x1]
      %v3792 = vrot.slane %v3696, 5
      %v3793 = vrot.slane %v3792, 4
      %v3794 = vrot.slane %v3697, 5
      %v3795 = vsel %vm1704, %v3793, %v3794
      %v3796 = vrot.slane %v3794, 4
      %v3797 = vrot.slane %v3698, 5
      %v3798 = vsel %vm1704, %v3796, %v3797
      %v3799 = vrot.slane %v3699, 5
      %v3800 = vrot.slane %v3799, 4
      %v3801 = vrot.slane %v3700, 5
      %v3802 = vsel %vm1704, %v3800, %v3801
      %v3803 = vrot.slane %v3801, 4
      %v3804 = vrot.slane %v3701, 5
      %v3805 = vsel %vm1704, %v3803, %v3804
      %v3806 = vrot.slane %v3702, 5
      %v3807 = vrot.slane %v3806, 4
      %v3808 = vrot.slane %v3703, 5
      %v3809 = vsel %vm1704, %v3807, %v3808
      %v3810 = vrot.slane %v3808, 4
      %v3811 = vrot.slane %v3704, 5
      %v3812 = vsel %vm1704, %v3810, %v3811
      %v3813 = vrot.slane %v3705, 5
      %v3814 = vrot.slane %v3813, 4
      %v3815 = vrot.slane %v3706, 5
      %v3816 = vsel %vm1704, %v3814, %v3815
      %v3817 = vrot.slane %v3815, 4
      %v3818 = vrot.slane %v3707, 5
      %v3819 = vsel %vm1704, %v3817, %v3818
      %v3820 = vrot.slane %v3708, 5
      %v3821 = vrot.slane %v3820, 4
      %v3822 = vrot.slane %v3709, 5
      %v3823 = vsel %vm1704, %v3821, %v3822
      %v3824 = vrot.slane %v3822, 4
      %v3825 = vrot.slane %v3710, 5
      %v3826 = vsel %vm1704, %v3824, %v3825
      %v3827 = vrot.slane %v3711, 5
      %v3828 = vrot.slane %v3827, 4
      %v3829 = vrot.slane %v3712, 5
      %v3830 = vsel %vm1704, %v3828, %v3829
      %v3831 = vrot.slane %v3829, 4
      %v3832 = vrot.slane %v3713, 5
      %v3833 = vsel %vm1704, %v3831, %v3832
      %v3834 = vrot.slane %v3714, 5
      %v3835 = vrot.slane %v3834, 4
      %v3836 = vrot.slane %v3715, 5
      %v3837 = vsel %vm1704, %v3835, %v3836
      %v3838 = vrot.slane %v3836, 4
      %v3839 = vrot.slane %v3716, 5
      %v3840 = vsel %vm1704, %v3838, %v3839
      %v3841 = vrot.slane %v3717, 5
      %v3842 = vrot.slane %v3841, 4
      %v3843 = vrot.slane %v3718, 5
      %v3844 = vsel %vm1704, %v3842, %v3843
      %v3845 = vrot.slane %v3843, 4
      %v3846 = vrot.slane %v3719, 5
      %v3847 = vsel %vm1704, %v3845, %v3846
      %v3848 = vrot.slane %v3720, 5
      %v3849 = vrot.slane %v3848, 4
      %v3850 = vrot.slane %v3721, 5
      %v3851 = vsel %vm1704, %v3849, %v3850
      %v3852 = vrot.slane %v3850, 4
      %v3853 = vrot.slane %v3722, 5
      %v3854 = vsel %vm1704, %v3852, %v3853
      %v3855 = vrot.slane %v3723, 5
      %v3856 = vrot.slane %v3855, 4
      %v3857 = vrot.slane %v3724, 5
      %v3858 = vsel %vm1704, %v3856, %v3857
      %v3859 = vrot.slane %v3857, 4
      %v3860 = vrot.slane %v3725, 5
      %v3861 = vsel %vm1704, %v3859, %v3860
      %v3862 = vrot.slane %v3726, 5
      %v3863 = vrot.slane %v3862, 4
      %v3864 = vrot.slane %v3727, 5
      %v3865 = vsel %vm1704, %v3863, %v3864
      %v3866 = vrot.slane %v3864, 4
      %v3867 = vrot.slane %v3728, 5
      %v3868 = vsel %vm1704, %v3866, %v3867
      %v3869 = vrot.slane %v3729, 5
      %v3870 = vrot.slane %v3869, 4
      %v3871 = vrot.slane %v3730, 5
      %v3872 = vsel %vm1704, %v3870, %v3871
      %v3873 = vrot.slane %v3871, 4
      %v3874 = vrot.slane %v3731, 5
      %v3875 = vsel %vm1704, %v3873, %v3874
      %v3876 = vrot.slane %v3732, 5
      %v3877 = vrot.slane %v3876, 4
      %v3878 = vrot.slane %v3733, 5
      %v3879 = vsel %vm1704, %v3877, %v3878
      %v3880 = vrot.slane %v3878, 4
      %v3881 = vrot.slane %v3734, 5
      %v3882 = vsel %vm1704, %v3880, %v3881
      %v3883 = vrot.slane %v3735, 5
      %v3884 = vrot.slane %v3883, 4
      %v3885 = vrot.slane %v3736, 5
      %v3886 = vsel %vm1704, %v3884, %v3885
      %v3887 = vrot.slane %v3885, 4
      %v3888 = vrot.slane %v3737, 5
      %v3889 = vsel %vm1704, %v3887, %v3888
      %v3890 = vrot.slane %v3738, 5
      %v3891 = vrot.slane %v3890, 4
      %v3892 = vrot.slane %v3739, 5
      %v3893 = vsel %vm1704, %v3891, %v3892
      %v3894 = vrot.slane %v3892, 4
      %v3895 = vrot.slane %v3740, 5
      %v3896 = vsel %vm1704, %v3894, %v3895
      %v3897 = vrot.slane %v3741, 5
      %v3898 = vrot.slane %v3897, 4
      %v3899 = vrot.slane %v3742, 5
      %v3900 = vsel %vm1704, %v3898, %v3899
      %v3901 = vrot.slane %v3899, 4
      %v3902 = vrot.slane %v3743, 5
      %v3903 = vsel %vm1704, %v3901, %v3902
      %v3904 = vunpack.c.l.b16 %v3795
      %v3905 = vunpack.c.l.b16 %v3798
      %v3906 = vunpack.c.l.b16 %v3802
      %v3907 = vunpack.c.l.b16 %v3805
      %v3908 = vunpack.c.l.b16 %v3809
      %v3909 = vunpack.c.l.b16 %v3812
      %v3910 = vunpack.c.l.b16 %v3816
      %v3911 = vunpack.c.l.b16 %v3819
      %v3912 = vunpack.c.l.b16 %v3823
      %v3913 = vunpack.c.l.b16 %v3826
      %v3914 = vunpack.c.l.b16 %v3830
      %v3915 = vunpack.c.l.b16 %v3833
      %v3916 = vunpack.c.l.b16 %v3837
      %v3917 = vunpack.c.l.b16 %v3840
      %v3918 = vunpack.c.l.b16 %v3844
      %v3919 = vunpack.c.l.b16 %v3847
      %v3920 = vunpack.c.l.b16 %v3851
      %v3921 = vunpack.c.l.b16 %v3854
      %v3922 = vunpack.c.l.b16 %v3858
      %v3923 = vunpack.c.l.b16 %v3861
      %v3924 = vunpack.c.l.b16 %v3865
      %v3925 = vunpack.c.l.b16 %v3868
      %v3926 = vunpack.c.l.b16 %v3872
      %v3927 = vunpack.c.l.b16 %v3875
      %v3928 = vunpack.c.l.b16 %v3879
      %v3929 = vunpack.c.l.b16 %v3882
      %v3930 = vunpack.c.l.b16 %v3886
      %v3931 = vunpack.c.l.b16 %v3889
      %v3932 = vunpack.c.l.b16 %v3893
      %v3933 = vunpack.c.l.b16 %v3896
      %v3934 = vunpack.c.l.b16 %v3900
      %v3935 = vunpack.c.l.b16 %v3903
      %v3936 = vpack.c.b16 %v3905, %v3904
      %v3937 = vpack.c.b16 %v3907, %v3906
      %v3938 = vpack.c.b16 %v3909, %v3908
      %v3939 = vpack.c.b16 %v3911, %v3910
      %v3940 = vpack.c.b16 %v3913, %v3912
      %v3941 = vpack.c.b16 %v3915, %v3914
      %v3942 = vpack.c.b16 %v3917, %v3916
      %v3943 = vpack.c.b16 %v3919, %v3918
      %v3944 = vpack.c.b16 %v3921, %v3920
      %v3945 = vpack.c.b16 %v3923, %v3922
      %v3946 = vpack.c.b16 %v3925, %v3924
      %v3947 = vpack.c.b16 %v3927, %v3926
      %v3948 = vpack.c.b16 %v3929, %v3928
      %v3949 = vpack.c.b16 %v3931, %v3930
      %v3950 = vpack.c.b16 %v3933, %v3932
      %v3951 = vpack.c.b16 %v3935, %v3934
      %3952 = vrot.lane.b32.xlu0 %v3936, 32
      %v3953 = vpop.permute.xlu0 %3952
      %3954 = vrot.lane.b32.xlu0 %v3937, 32
      %v3955 = vpop.permute.xlu0 %3954
      %3956 = vrot.lane.b32.xlu0 %v3938, 32
      %v3957 = vpop.permute.xlu0 %3956
      %3958 = vrot.lane.b32.xlu0 %v3939, 32
      %v3959 = vpop.permute.xlu0 %3958
      %3960 = vrot.lane.b32.xlu0 %v3940, 32
      %v3961 = vpop.permute.xlu0 %3960
      %3962 = vrot.lane.b32.xlu0 %v3941, 32
      %v3963 = vpop.permute.xlu0 %3962
      %3964 = vrot.lane.b32.xlu0 %v3942, 32
      %v3965 = vpop.permute.xlu0 %3964
      %3966 = vrot.lane.b32.xlu0 %v3943, 32
      %v3967 = vpop.permute.xlu0 %3966
      %3968 = vrot.lane.b32.xlu0 %v3944, 32
      %v3969 = vpop.permute.xlu0 %3968
      %3970 = vrot.lane.b32.xlu0 %v3945, 32
      %v3971 = vpop.permute.xlu0 %3970
      %3972 = vrot.lane.b32.xlu0 %v3946, 32
      %v3973 = vpop.permute.xlu0 %3972
      %3974 = vrot.lane.b32.xlu0 %v3947, 32
      %v3975 = vpop.permute.xlu0 %3974
      %3976 = vrot.lane.b32.xlu0 %v3948, 32
      %v3977 = vpop.permute.xlu0 %3976
      %3978 = vrot.lane.b32.xlu0 %v3949, 32
      %v3979 = vpop.permute.xlu0 %3978
      %3980 = vrot.lane.b32.xlu0 %v3950, 32
      %v3981 = vpop.permute.xlu0 %3980
      %3982 = vrot.lane.b32.xlu0 %v3951, 32
      %v3983 = vpop.permute.xlu0 %3982
      %vm4000 = vcmask 294144
      %4001 = vst.msk [vmem:[#allocation3] sm:$0xff] %vm4000, %v3953
      %4002 = vst.msk [vmem:[#allocation3 + $0x8] sm:$0xff] %vm4000, %v3955
      %4003 = vst.msk [vmem:[#allocation3 + $0x10] sm:$0xff] %vm4000, %v3957
      %4004 = vst.msk [vmem:[#allocation3 + $0x18] sm:$0xff] %vm4000, %v3959
      %4005 = vst.msk [vmem:[#allocation3 + $0x20] sm:$0xff] %vm4000, %v3961
      %4006 = vst.msk [vmem:[#allocation3 + $0x28] sm:$0xff] %vm4000, %v3963
      %4007 = vst.msk [vmem:[#allocation3 + $0x30] sm:$0xff] %vm4000, %v3965
      %4008 = vst.msk [vmem:[#allocation3 + $0x38] sm:$0xff] %vm4000, %v3967
      %4009 = vst.msk [vmem:[#allocation3 + $0x40] sm:$0xff] %vm4000, %v3969
      %4010 = vst.msk [vmem:[#allocation3 + $0x48] sm:$0xff] %vm4000, %v3971
      %4011 = vst.msk [vmem:[#allocation3 + $0x50] sm:$0xff] %vm4000, %v3973
      %4012 = vst.msk [vmem:[#allocation3 + $0x58] sm:$0xff] %vm4000, %v3975
      %4013 = vst.msk [vmem:[#allocation3 + $0x60] sm:$0xff] %vm4000, %v3977
      %4014 = vst.msk [vmem:[#allocation3 + $0x68] sm:$0xff] %vm4000, %v3979
      %4015 = vst.msk [vmem:[#allocation3 + $0x70] sm:$0xff] %vm4000, %v3981
      %4016 = vst.msk [vmem:[#allocation3 + $0x78] sm:$0xff] %vm4000, %v3983
      %v4017 = vld [vmem:[#allocation3] sm:$0xff]
      %v4018 = vld [vmem:[#allocation3 + $0x8] sm:$0xff]
      %v4019 = vld [vmem:[#allocation3 + $0x10] sm:$0xff]
      %v4020 = vld [vmem:[#allocation3 + $0x18] sm:$0xff]
      %v4021 = vld [vmem:[#allocation3 + $0x20] sm:$0xff]
      %v4022 = vld [vmem:[#allocation3 + $0x28] sm:$0xff]
      %v4023 = vld [vmem:[#allocation3 + $0x30] sm:$0xff]
      %v4024 = vld [vmem:[#allocation3 + $0x38] sm:$0xff]
      %v4025 = vld [vmem:[#allocation3 + $0x40] sm:$0xff]
      %v4026 = vld [vmem:[#allocation3 + $0x48] sm:$0xff]
      %v4027 = vld [vmem:[#allocation3 + $0x50] sm:$0xff]
      %v4028 = vld [vmem:[#allocation3 + $0x58] sm:$0xff]
      %v4029 = vld [vmem:[#allocation3 + $0x60] sm:$0xff]
      %v4030 = vld [vmem:[#allocation3 + $0x68] sm:$0xff]
      %v4031 = vld [vmem:[#allocation3 + $0x70] sm:$0xff]
      %v4032 = vld [vmem:[#allocation3 + $0x78] sm:$0xff]
      %v4033 = vld [vmem:[%s1] sm:$0xf]
      %v4034 = vld [vmem:[%s1 + $0x4] sm:$0xf]
      %v4035 = vld [vmem:[%s1 + $0x8] sm:$0xf]
      %v4036 = vld [vmem:[%s1 + $0xc] sm:$0xf]
      %v4037 = vld [vmem:[%s1 + $0x10] sm:$0x3]
      %v4038 = vld [vmem:[%s2] sm:$0x1]
      %v4040 = vlaneseq
      %v4041 = vshrl.u32 %v4040, 7
      %v4042 = vsub.s32 0, %v4041
      %v4043 = vrot.slane %v4038, %v4042
      %v4050 = vunpack.c.l.b16 %v4033
      %v4051 = vunpack.c.l.b16 %v4034
      %v4052 = vunpack.c.l.b16 %v4035
      %v4053 = vunpack.c.l.b16 %v4036
      %v4054 = vunpack.c.l.b16 %v4037
      %v4055 = vpack.c.b16 %v4051, %v4050
      %v4056 = vpack.c.b16 %v4053, %v4052
      %v4057 = vpack.c.b16 %v4054, %v4054
      %vm4060 = vcmask 293888
      %v4062 = vsel %vm4060, %v4017, 0
      %v4065 = vsel %vm4060, %v4018, 0
      %v4068 = vsel %vm4060, %v4019, 0
      %v4071 = vsel %vm4060, %v4020, 0
      %v4074 = vsel %vm4060, %v4021, 0
      %v4077 = vsel %vm4060, %v4022, 0
      %v4080 = vsel %vm4060, %v4023, 0
      %v4083 = vsel %vm4060, %v4024, 0
      %v4086 = vsel %vm4060, %v4025, 0
      %v4089 = vsel %vm4060, %v4026, 0
      %v4092 = vsel %vm4060, %v4027, 0
      %v4095 = vsel %vm4060, %v4028, 0
      %v4098 = vsel %vm4060, %v4029, 0
      %v4101 = vsel %vm4060, %v4030, 0
      %v4104 = vsel %vm4060, %v4031, 0
      %v4107 = vsel %vm4060, %v4032, 0
      %vm4109 = vcmask 1041408
      %v4111 = vsel %vm4109, %v4057, 0
      %4113 = vmatprep.subr.bf16.mxu0 0
      %4114 = vmatpush1.bf16.msra.mxu0 %v4055
      %4115 = vmatprep.subr.bf16.mxu0 0
      %4116 = vmatpush1.bf16.msra.mxu0 %v4056
      %4117 = vmatprep.subr.bf16.mxu0 0
      %4118 = vmatpush1.bf16.msra.mxu0 %v4111
      %4119 = vmatprep.subr.bf16.mxu0 0
      %4120 = vmatpush1.bf16.msra.mxu0 0
      %4121 = vmatprep.subr.bf16.mxu0 0
      %4122 = vmatpush1.bf16.msra.mxu0 0
      %4123 = vmatprep.subr.bf16.mxu0 0
      %4124 = vmatpush1.bf16.msra.mxu0 0
      %4125 = vmatprep.subr.bf16.mxu0 0
      %4126 = vmatpush1.bf16.msra.mxu0 0
      %4127 = vmatprep.subr.bf16.mxu0 0
      %4128 = vmatpush1.bf16.msra.mxu0 0
      %4129 = vmatprep.subr.bf16.mxu0 0
      %4130 = vmatpush1.bf16.msra.mxu0 0
      %4131 = vmatprep.subr.bf16.mxu0 0
      %4132 = vmatpush1.bf16.msra.mxu0 0
      %4133 = vmatprep.subr.bf16.mxu0 0
      %4134 = vmatpush1.bf16.msra.mxu0 0
      %4135 = vmatprep.subr.bf16.mxu0 0
      %4136 = vmatpush1.bf16.msra.mxu0 0
      %4137 = vmatprep.subr.bf16.mxu0 0
      %4138 = vmatpush1.bf16.msra.mxu0 0
      %4139 = vmatprep.subr.bf16.mxu0 0
      %4140 = vmatpush1.bf16.msra.mxu0 0
      %4141 = vmatprep.subr.bf16.mxu0 0
      %4142 = vmatpush1.bf16.msra.mxu0 0
      %4143 = vmatprep.subr.bf16.mxu0 0
      %4144 = vmatpush1.bf16.msra.mxu0 0
      %4145 = vmatprep.mubr.bf16.mxu0 0
      %4146 = vmatmul.mubr.bf16.gmra.mrb[0].mxu0 %v4062
      %v4147 = vpop.f32.mrb[0].mxu0
      %v4148 = vadd.f32 %v4043, %v4147
      %v4149 = vpop.f32.mrb[0].mxu0
      %v4150 = vpop.f32.mrb[0].mxu0
      %v4151 = vadd.f32 %v4043, %v4150
      %v4152 = vpop.f32.mrb[0].mxu0
      %4153 = vmatprep.mubr.bf16.mxu0 0
      %4154 = vmatmul.mubr.bf16.gmra.mrb[0].mxu0 %v4065
      %v4155 = vpop.f32.mrb[0].mxu0
      %v4156 = vadd.f32 %v4043, %v4155
      %v4157 = vpop.f32.mrb[0].mxu0
      %v4158 = vpop.f32.mrb[0].mxu0
      %v4159 = vadd.f32 %v4043, %v4158
      %v4160 = vpop.f32.mrb[0].mxu0
      %4161 = vmatprep.mubr.bf16.mxu0 0
      %4162 = vmatmul.mubr.bf16.gmra.mrb[0].mxu0 %v4068
      %v4163 = vpop.f32.mrb[0].mxu0
      %v4164 = vadd.f32 %v4043, %v4163
      %v4165 = vpop.f32.mrb[0].mxu0
      %v4166 = vpop.f32.mrb[0].mxu0
      %v4167 = vadd.f32 %v4043, %v4166
      %v4168 = vpop.f32.mrb[0].mxu0
      %4169 = vmatprep.mubr.bf16.mxu0 0
      %4170 = vmatmul.mubr.bf16.gmra.mrb[0].mxu0 %v4071
      %v4171 = vpop.f32.mrb[0].mxu0
      %v4172 = vadd.f32 %v4043, %v4171
      %v4173 = vpop.f32.mrb[0].mxu0
      %v4174 = vpop.f32.mrb[0].mxu0
      %v4175 = vadd.f32 %v4043, %v4174
      %v4176 = vpop.f32.mrb[0].mxu0
      %4177 = vmatprep.mubr.bf16.mxu0 0
      %4178 = vmatmul.mubr.bf16.gmra.mrb[0].mxu0 %v4074
      %v4179 = vpop.f32.mrb[0].mxu0
      %v4180 = vadd.f32 %v4043, %v4179
      %v4181 = vpop.f32.mrb[0].mxu0
      %v4182 = vpop.f32.mrb[0].mxu0
      %v4183 = vadd.f32 %v4043, %v4182
      %v4184 = vpop.f32.mrb[0].mxu0
      %4185 = vmatprep.mubr.bf16.mxu0 0
      %4186 = vmatmul.mubr.bf16.gmra.mrb[0].mxu0 %v4077
      %v4187 = vpop.f32.mrb[0].mxu0
      %v4188 = vadd.f32 %v4043, %v4187
      %v4189 = vpop.f32.mrb[0].mxu0
      %v4190 = vpop.f32.mrb[0].mxu0
      %v4191 = vadd.f32 %v4043, %v4190
      %v4192 = vpop.f32.mrb[0].mxu0
      %4193 = vmatprep.mubr.bf16.mxu0 0
      %4194 = vmatmul.mubr.bf16.gmra.mrb[0].mxu0 %v4080
      %v4195 = vpop.f32.mrb[0].mxu0
      %v4196 = vadd.f32 %v4043, %v4195
      %v4197 = vpop.f32.mrb[0].mxu0
      %v4198 = vpop.f32.mrb[0].mxu0
      %v4199 = vadd.f32 %v4043, %v4198
      %v4200 = vpop.f32.mrb[0].mxu0
      %4201 = vmatprep.mubr.bf16.mxu0 0
      %4202 = vmatmul.mubr.bf16.gmra.mrb[0].mxu0 %v4083
      %v4203 = vpop.f32.mrb[0].mxu0
      %v4204 = vadd.f32 %v4043, %v4203
      %v4205 = vpop.f32.mrb[0].mxu0
      %v4206 = vpop.f32.mrb[0].mxu0
      %v4207 = vadd.f32 %v4043, %v4206
      %v4208 = vpop.f32.mrb[0].mxu0
      %4209 = vmatprep.mubr.bf16.mxu0 0
      %4210 = vmatmul.mubr.bf16.gmra.mrb[0].mxu0 %v4086
      %v4211 = vpop.f32.mrb[0].mxu0
      %v4212 = vadd.f32 %v4043, %v4211
      %v4213 = vpop.f32.mrb[0].mxu0
      %v4214 = vpop.f32.mrb[0].mxu0
      %v4215 = vadd.f32 %v4043, %v4214
      %v4216 = vpop.f32.mrb[0].mxu0
      %4217 = vmatprep.mubr.bf16.mxu0 0
      %4218 = vmatmul.mubr.bf16.gmra.mrb[0].mxu0 %v4089
      %v4219 = vpop.f32.mrb[0].mxu0
      %v4220 = vadd.f32 %v4043, %v4219
      %v4221 = vpop.f32.mrb[0].mxu0
      %v4222 = vpop.f32.mrb[0].mxu0
      %v4223 = vadd.f32 %v4043, %v4222
      %v4224 = vpop.f32.mrb[0].mxu0
      %4225 = vmatprep.mubr.bf16.mxu0 0
      %4226 = vmatmul.mubr.bf16.gmra.mrb[0].mxu0 %v4092
      %v4227 = vpop.f32.mrb[0].mxu0
      %v4228 = vadd.f32 %v4043, %v4227
      %v4229 = vpop.f32.mrb[0].mxu0
      %v4230 = vpop.f32.mrb[0].mxu0
      %v4231 = vadd.f32 %v4043, %v4230
      %v4232 = vpop.f32.mrb[0].mxu0
      %4233 = vmatprep.mubr.bf16.mxu0 0
      %4234 = vmatmul.mubr.bf16.gmra.mrb[0].mxu0 %v4095
      %v4235 = vpop.f32.mrb[0].mxu0
      %v4236 = vadd.f32 %v4043, %v4235
      %v4237 = vpop.f32.mrb[0].mxu0
      %v4238 = vpop.f32.mrb[0].mxu0
      %v4239 = vadd.f32 %v4043, %v4238
      %v4240 = vpop.f32.mrb[0].mxu0
      %4241 = vmatprep.mubr.bf16.mxu0 0
      %4242 = vmatmul.mubr.bf16.gmra.mrb[0].mxu0 %v4098
      %v4243 = vpop.f32.mrb[0].mxu0
      %v4244 = vadd.f32 %v4043, %v4243
      %v4245 = vpop.f32.mrb[0].mxu0
      %v4246 = vpop.f32.mrb[0].mxu0
      %v4247 = vadd.f32 %v4043, %v4246
      %v4248 = vpop.f32.mrb[0].mxu0
      %4249 = vmatprep.mubr.bf16.mxu0 0
      %4250 = vmatmul.mubr.bf16.gmra.mrb[0].mxu0 %v4101
      %v4251 = vpop.f32.mrb[0].mxu0
      %v4252 = vadd.f32 %v4043, %v4251
      %v4253 = vpop.f32.mrb[0].mxu0
      %v4254 = vpop.f32.mrb[0].mxu0
      %v4255 = vadd.f32 %v4043, %v4254
      %v4256 = vpop.f32.mrb[0].mxu0
      %4257 = vmatprep.mubr.bf16.mxu0 0
      %4258 = vmatmul.mubr.bf16.gmra.mrb[0].mxu0 %v4104
      %v4259 = vpop.f32.mrb[0].mxu0
      %v4260 = vadd.f32 %v4043, %v4259
      %v4261 = vpop.f32.mrb[0].mxu0
      %v4262 = vpop.f32.mrb[0].mxu0
      %v4263 = vadd.f32 %v4043, %v4262
      %v4264 = vpop.f32.mrb[0].mxu0
      %4265 = vmatprep.mubr.bf16.mxu0 0
      %4266 = vmatmul.mubr.bf16.gmra.mrb[0].mxu0 %v4107
      %v4267 = vpop.f32.mrb[0].mxu0
      %v4268 = vadd.f32 %v4043, %v4267
      %v4269 = vpop.f32.mrb[0].mxu0
      %v4270 = vpop.f32.mrb[0].mxu0
      %v4271 = vadd.f32 %v4043, %v4270
      %v4272 = vpop.f32.mrb[0].mxu0
      %4273 = vdwg.mxu0
      %v4274 = vmax.f32 %v4148, 0.0
      %v4275 = vmax.f32 %v4151, 0.0
      %v4276 = vmax.f32 %v4156, 0.0
      %v4277 = vmax.f32 %v4159, 0.0
      %v4278 = vmax.f32 %v4164, 0.0
      %v4279 = vmax.f32 %v4167, 0.0
      %v4280 = vmax.f32 %v4172, 0.0
      %v4281 = vmax.f32 %v4175, 0.0
      %v4282 = vmax.f32 %v4180, 0.0
      %v4283 = vmax.f32 %v4183, 0.0
      %v4284 = vmax.f32 %v4188, 0.0
      %v4285 = vmax.f32 %v4191, 0.0
      %v4286 = vmax.f32 %v4196, 0.0
      %v4287 = vmax.f32 %v4199, 0.0
      %v4288 = vmax.f32 %v4204, 0.0
      %v4289 = vmax.f32 %v4207, 0.0
      %v4290 = vmax.f32 %v4212, 0.0
      %v4291 = vmax.f32 %v4215, 0.0
      %v4292 = vmax.f32 %v4220, 0.0
      %v4293 = vmax.f32 %v4223, 0.0
      %v4294 = vmax.f32 %v4228, 0.0
      %v4295 = vmax.f32 %v4231, 0.0
      %v4296 = vmax.f32 %v4236, 0.0
      %v4297 = vmax.f32 %v4239, 0.0
      %v4298 = vmax.f32 %v4244, 0.0
      %v4299 = vmax.f32 %v4247, 0.0
      %v4300 = vmax.f32 %v4252, 0.0
      %v4301 = vmax.f32 %v4255, 0.0
      %v4302 = vmax.f32 %v4260, 0.0
      %v4303 = vmax.f32 %v4263, 0.0
      %v4304 = vmax.f32 %v4268, 0.0
      %v4305 = vmax.f32 %v4271, 0.0
      %v4306 = vpack.c.bf16 %v4275, %v4274
      %v4307 = vpack.c.bf16 %v4277, %v4276
      %v4308 = vpack.c.bf16 %v4279, %v4278
      %v4309 = vpack.c.bf16 %v4281, %v4280
      %v4310 = vpack.c.bf16 %v4283, %v4282
      %v4311 = vpack.c.bf16 %v4285, %v4284
      %v4312 = vpack.c.bf16 %v4287, %v4286
      %v4313 = vpack.c.bf16 %v4289, %v4288
      %v4314 = vpack.c.bf16 %v4291, %v4290
      %v4315 = vpack.c.bf16 %v4293, %v4292
      %v4316 = vpack.c.bf16 %v4295, %v4294
      %v4317 = vpack.c.bf16 %v4297, %v4296
      %v4318 = vpack.c.bf16 %v4299, %v4298
      %v4319 = vpack.c.bf16 %v4301, %v4300
      %v4320 = vpack.c.bf16 %v4303, %v4302
      %v4321 = vpack.c.bf16 %v4305, %v4304
      %v4338 = vunpack.c.l.b16 %v4306
      %v4339 = vunpack.c.h.b16 %v4306
      %v4340 = vunpack.c.l.b16 %v4307
      %v4341 = vunpack.c.h.b16 %v4307
      %v4342 = vunpack.c.l.b16 %v4308
      %v4343 = vunpack.c.h.b16 %v4308
      %v4344 = vunpack.c.l.b16 %v4309
      %v4345 = vunpack.c.h.b16 %v4309
      %v4346 = vunpack.c.l.b16 %v4310
      %v4347 = vunpack.c.h.b16 %v4310
      %v4348 = vunpack.c.l.b16 %v4311
      %v4349 = vunpack.c.h.b16 %v4311
      %v4350 = vunpack.c.l.b16 %v4312
      %v4351 = vunpack.c.h.b16 %v4312
      %v4352 = vunpack.c.l.b16 %v4313
      %v4353 = vunpack.c.h.b16 %v4313
      %v4354 = vunpack.c.l.b16 %v4314
      %v4355 = vunpack.c.h.b16 %v4314
      %v4356 = vunpack.c.l.b16 %v4315
      %v4357 = vunpack.c.h.b16 %v4315
      %v4358 = vunpack.c.l.b16 %v4316
      %v4359 = vunpack.c.h.b16 %v4316
      %v4360 = vunpack.c.l.b16 %v4317
      %v4361 = vunpack.c.h.b16 %v4317
      %v4362 = vunpack.c.l.b16 %v4318
      %v4363 = vunpack.c.h.b16 %v4318
      %v4364 = vunpack.c.l.b16 %v4319
      %v4365 = vunpack.c.h.b16 %v4319
      %v4366 = vunpack.c.l.b16 %v4320
      %v4367 = vunpack.c.h.b16 %v4320
      %v4368 = vunpack.c.l.b16 %v4321
      %v4369 = vunpack.c.h.b16 %v4321
      %v4370 = vpack.c.b16 %v4338, %v4338
      %v4371 = vpack.c.b16 %v4339, %v4339
      %v4372 = vpack.c.b16 %v4340, %v4340
      %v4373 = vpack.c.b16 %v4341, %v4341
      %v4374 = vpack.c.b16 %v4342, %v4342
      %v4375 = vpack.c.b16 %v4343, %v4343
      %v4376 = vpack.c.b16 %v4344, %v4344
      %v4377 = vpack.c.b16 %v4345, %v4345
      %v4378 = vpack.c.b16 %v4346, %v4346
      %v4379 = vpack.c.b16 %v4347, %v4347
      %v4380 = vpack.c.b16 %v4348, %v4348
      %v4381 = vpack.c.b16 %v4349, %v4349
      %v4382 = vpack.c.b16 %v4350, %v4350
      %v4383 = vpack.c.b16 %v4351, %v4351
      %v4384 = vpack.c.b16 %v4352, %v4352
      %v4385 = vpack.c.b16 %v4353, %v4353
      %v4386 = vpack.c.b16 %v4354, %v4354
      %v4387 = vpack.c.b16 %v4355, %v4355
      %v4388 = vpack.c.b16 %v4356, %v4356
      %v4389 = vpack.c.b16 %v4357, %v4357
      %v4390 = vpack.c.b16 %v4358, %v4358
      %v4391 = vpack.c.b16 %v4359, %v4359
      %v4392 = vpack.c.b16 %v4360, %v4360
      %v4393 = vpack.c.b16 %v4361, %v4361
      %v4394 = vpack.c.b16 %v4362, %v4362
      %v4395 = vpack.c.b16 %v4363, %v4363
      %v4396 = vpack.c.b16 %v4364, %v4364
      %v4397 = vpack.c.b16 %v4365, %v4365
      %v4398 = vpack.c.b16 %v4366, %v4366
      %v4399 = vpack.c.b16 %v4367, %v4367
      %v4400 = vpack.c.b16 %v4368, %v4368
      %v4401 = vpack.c.b16 %v4369, %v4369
      %v4403 = vshrl.u32 %v4370, 16
      %v4405 = vrot.slane %v4403, 7
      %v4406 = vshll.u32 %v4370, 16
      %v4408 = vor.u32 %v4405, %v4406
      %v4409 = vrot.slane %v4405, 4
      %v4411 = vshrl.u32 %v4371, 16
      %v4413 = vrot.slane %v4411, 7
      %v4414 = vshll.u32 %v4371, 16
      %v4416 = vor.u32 %v4413, %v4414
      %v4417 = vsel %vm477, %v4409, %v4416
      %v4418 = vrot.slane %v4413, 4
      %v4420 = vshrl.u32 %v4372, 16
      %v4422 = vrot.slane %v4420, 7
      %v4423 = vshll.u32 %v4372, 16
      %v4425 = vor.u32 %v4422, %v4423
      %v4426 = vrot.slane %v4422, 4
      %v4428 = vshrl.u32 %v4373, 16
      %v4430 = vrot.slane %v4428, 7
      %v4431 = vshll.u32 %v4373, 16
      %v4433 = vor.u32 %v4430, %v4431
      %v4434 = vsel %vm477, %v4426, %v4433
      %v4435 = vrot.slane %v4430, 4
      %v4437 = vshrl.u32 %v4374, 16
      %v4439 = vrot.slane %v4437, 7
      %v4440 = vshll.u32 %v4374, 16
      %v4442 = vor.u32 %v4439, %v4440
      %v4443 = vrot.slane %v4439, 4
      %v4445 = vshrl.u32 %v4375, 16
      %v4447 = vrot.slane %v4445, 7
      %v4448 = vshll.u32 %v4375, 16
      %v4450 = vor.u32 %v4447, %v4448
      %v4451 = vsel %vm477, %v4443, %v4450
      %v4452 = vrot.slane %v4447, 4
      %v4454 = vshrl.u32 %v4376, 16
      %v4456 = vrot.slane %v4454, 7
      %v4457 = vshll.u32 %v4376, 16
      %v4459 = vor.u32 %v4456, %v4457
      %v4460 = vrot.slane %v4456, 4
      %v4462 = vshrl.u32 %v4377, 16
      %v4464 = vrot.slane %v4462, 7
      %v4465 = vshll.u32 %v4377, 16
      %v4467 = vor.u32 %v4464, %v4465
      %v4468 = vsel %vm477, %v4460, %v4467
      %v4469 = vrot.slane %v4464, 4
      %v4471 = vshrl.u32 %v4378, 16
      %v4473 = vrot.slane %v4471, 7
      %v4474 = vshll.u32 %v4378, 16
      %v4476 = vor.u32 %v4473, %v4474
      %v4477 = vrot.slane %v4473, 4
      %v4479 = vshrl.u32 %v4379, 16
      %v4481 = vrot.slane %v4479, 7
      %v4482 = vshll.u32 %v4379, 16
      %v4484 = vor.u32 %v4481, %v4482
      %v4485 = vsel %vm477, %v4477, %v4484
      %v4486 = vrot.slane %v4481, 4
      %v4488 = vshrl.u32 %v4380, 16
      %v4490 = vrot.slane %v4488, 7
      %v4491 = vshll.u32 %v4380, 16
      %v4493 = vor.u32 %v4490, %v4491
      %v4494 = vrot.slane %v4490, 4
      %v4496 = vshrl.u32 %v4381, 16
      %v4498 = vrot.slane %v4496, 7
      %v4499 = vshll.u32 %v4381, 16
      %v4501 = vor.u32 %v4498, %v4499
      %v4502 = vsel %vm477, %v4494, %v4501
      %v4503 = vrot.slane %v4498, 4
      %v4505 = vshrl.u32 %v4382, 16
      %v4507 = vrot.slane %v4505, 7
      %v4508 = vshll.u32 %v4382, 16
      %v4510 = vor.u32 %v4507, %v4508
      %v4511 = vrot.slane %v4507, 4
      %v4513 = vshrl.u32 %v4383, 16
      %v4515 = vrot.slane %v4513, 7
      %v4516 = vshll.u32 %v4383, 16
      %v4518 = vor.u32 %v4515, %v4516
      %v4519 = vsel %vm477, %v4511, %v4518
      %v4520 = vrot.slane %v4515, 4
      %v4522 = vshrl.u32 %v4384, 16
      %v4524 = vrot.slane %v4522, 7
      %v4525 = vshll.u32 %v4384, 16
      %v4527 = vor.u32 %v4524, %v4525
      %v4528 = vrot.slane %v4524, 4
      %v4530 = vshrl.u32 %v4385, 16
      %v4532 = vrot.slane %v4530, 7
      %v4533 = vshll.u32 %v4385, 16
      %v4535 = vor.u32 %v4532, %v4533
      %v4536 = vsel %vm477, %v4528, %v4535
      %v4537 = vrot.slane %v4532, 4
      %v4539 = vshrl.u32 %v4386, 16
      %v4541 = vrot.slane %v4539, 7
      %v4542 = vshll.u32 %v4386, 16
      %v4544 = vor.u32 %v4541, %v4542
      %v4545 = vrot.slane %v4541, 4
      %v4547 = vshrl.u32 %v4387, 16
      %v4549 = vrot.slane %v4547, 7
      %v4550 = vshll.u32 %v4387, 16
      %v4552 = vor.u32 %v4549, %v4550
      %v4553 = vsel %vm477, %v4545, %v4552
      %v4554 = vrot.slane %v4549, 4
      %v4556 = vshrl.u32 %v4388, 16
      %v4558 = vrot.slane %v4556, 7
      %v4559 = vshll.u32 %v4388, 16
      %v4561 = vor.u32 %v4558, %v4559
      %v4562 = vrot.slane %v4558, 4
      %v4564 = vshrl.u32 %v4389, 16
      %v4566 = vrot.slane %v4564, 7
      %v4567 = vshll.u32 %v4389, 16
      %v4569 = vor.u32 %v4566, %v4567
      %v4570 = vsel %vm477, %v4562, %v4569
      %v4571 = vrot.slane %v4566, 4
      %v4573 = vshrl.u32 %v4390, 16
      %v4575 = vrot.slane %v4573, 7
      %v4576 = vshll.u32 %v4390, 16
      %v4578 = vor.u32 %v4575, %v4576
      %v4579 = vrot.slane %v4575, 4
      %v4581 = vshrl.u32 %v4391, 16
      %v4583 = vrot.slane %v4581, 7
      %v4584 = vshll.u32 %v4391, 16
      %v4586 = vor.u32 %v4583, %v4584
      %v4587 = vsel %vm477, %v4579, %v4586
      %v4588 = vrot.slane %v4583, 4
      %v4590 = vshrl.u32 %v4392, 16
      %v4592 = vrot.slane %v4590, 7
      %v4593 = vshll.u32 %v4392, 16
      %v4595 = vor.u32 %v4592, %v4593
      %v4596 = vrot.slane %v4592, 4
      %v4598 = vshrl.u32 %v4393, 16
      %v4600 = vrot.slane %v4598, 7
      %v4601 = vshll.u32 %v4393, 16
      %v4603 = vor.u32 %v4600, %v4601
      %v4604 = vsel %vm477, %v4596, %v4603
      %v4605 = vrot.slane %v4600, 4
      %v4607 = vshrl.u32 %v4394, 16
      %v4609 = vrot.slane %v4607, 7
      %v4610 = vshll.u32 %v4394, 16
      %v4612 = vor.u32 %v4609, %v4610
      %v4613 = vrot.slane %v4609, 4
      %v4615 = vshrl.u32 %v4395, 16
      %v4617 = vrot.slane %v4615, 7
      %v4618 = vshll.u32 %v4395, 16
      %v4620 = vor.u32 %v4617, %v4618
      %v4621 = vsel %vm477, %v4613, %v4620
      %v4622 = vrot.slane %v4617, 4
      %v4624 = vshrl.u32 %v4396, 16
      %v4626 = vrot.slane %v4624, 7
      %v4627 = vshll.u32 %v4396, 16
      %v4629 = vor.u32 %v4626, %v4627
      %v4630 = vrot.slane %v4626, 4
      %v4632 = vshrl.u32 %v4397, 16
      %v4634 = vrot.slane %v4632, 7
      %v4635 = vshll.u32 %v4397, 16
      %v4637 = vor.u32 %v4634, %v4635
      %v4638 = vsel %vm477, %v4630, %v4637
      %v4639 = vrot.slane %v4634, 4
      %v4641 = vshrl.u32 %v4398, 16
      %v4643 = vrot.slane %v4641, 7
      %v4644 = vshll.u32 %v4398, 16
      %v4646 = vor.u32 %v4643, %v4644
      %v4647 = vrot.slane %v4643, 4
      %v4649 = vshrl.u32 %v4399, 16
      %v4651 = vrot.slane %v4649, 7
      %v4652 = vshll.u32 %v4399, 16
      %v4654 = vor.u32 %v4651, %v4652
      %v4655 = vsel %vm477, %v4647, %v4654
      %v4656 = vrot.slane %v4651, 4
      %v4658 = vshrl.u32 %v4400, 16
      %v4660 = vrot.slane %v4658, 7
      %v4661 = vshll.u32 %v4400, 16
      %v4663 = vor.u32 %v4660, %v4661
      %v4664 = vrot.slane %v4660, 4
      %v4666 = vshrl.u32 %v4401, 16
      %v4668 = vrot.slane %v4666, 7
      %v4669 = vshll.u32 %v4401, 16
      %v4671 = vor.u32 %v4668, %v4669
      %v4672 = vsel %vm477, %v4664, %v4671
      %v4673 = vrot.slane %v4668, 4
      %v4722 = vld [vmem:[%s798] sm:$0xf]
      %v4723 = vsel %vm800, %v4408, %v4722
      %4724 = vst [vmem:[%s798] sm:$0xf] %v4723
      %4725 = vst.msk [vmem:[%s798 + $0x4] sm:$0xf] %vm258, %v4417
      %v4726 = vld [vmem:[%s798 + $0x8] sm:$0x1]
      %v4727 = vsel %vm269, %v4418, %v4726
      %4728 = vst [vmem:[%s798 + $0x8] sm:$0x1] %v4727
      %v4729 = vld [vmem:[%s798 + $0xc] sm:$0xf]
      %v4730 = vsel %vm800, %v4425, %v4729
      %4731 = vst [vmem:[%s798 + $0xc] sm:$0xf] %v4730
      %4732 = vst.msk [vmem:[%s798 + $0x10] sm:$0xf] %vm258, %v4434
      %v4733 = vld [vmem:[%s798 + $0x14] sm:$0x1]
      %v4734 = vsel %vm269, %v4435, %v4733
      %4735 = vst [vmem:[%s798 + $0x14] sm:$0x1] %v4734
      %v4736 = vld [vmem:[%s798 + $0x18] sm:$0xf]
      %v4737 = vsel %vm800, %v4442, %v4736
      %4738 = vst [vmem:[%s798 + $0x18] sm:$0xf] %v4737
      %4739 = vst.msk [vmem:[%s798 + $0x1c] sm:$0xf] %vm258, %v4451
      %v4740 = vld [vmem:[%s798 + $0x20] sm:$0x1]
      %v4741 = vsel %vm269, %v4452, %v4740
      %4742 = vst [vmem:[%s798 + $0x20] sm:$0x1] %v4741
      %v4743 = vld [vmem:[%s798 + $0x24] sm:$0xf]
      %v4744 = vsel %vm800, %v4459, %v4743
      %4745 = vst [vmem:[%s798 + $0x24] sm:$0xf] %v4744
      %4746 = vst.msk [vmem:[%s798 + $0x28] sm:$0xf] %vm258, %v4468
      %v4747 = vld [vmem:[%s798 + $0x2c] sm:$0x1]
      %v4748 = vsel %vm269, %v4469, %v4747
      %4749 = vst [vmem:[%s798 + $0x2c] sm:$0x1] %v4748
      %v4750 = vld [vmem:[%s798 + $0x30] sm:$0xf]
      %v4751 = vsel %vm800, %v4476, %v4750
      %4752 = vst [vmem:[%s798 + $0x30] sm:$0xf] %v4751
      %4753 = vst.msk [vmem:[%s798 + $0x34] sm:$0xf] %vm258, %v4485
      %v4754 = vld [vmem:[%s798 + $0x38] sm:$0x1]
      %v4755 = vsel %vm269, %v4486, %v4754
      %4756 = vst [vmem:[%s798 + $0x38] sm:$0x1] %v4755
      %v4757 = vld [vmem:[%s798 + $0x3c] sm:$0xf]
      %v4758 = vsel %vm800, %v4493, %v4757
      %4759 = vst [vmem:[%s798 + $0x3c] sm:$0xf] %v4758
      %4760 = vst.msk [vmem:[%s798 + $0x40] sm:$0xf] %vm258, %v4502
      %v4761 = vld [vmem:[%s798 + $0x44] sm:$0x1]
      %v4762 = vsel %vm269, %v4503, %v4761
      %4763 = vst [vmem:[%s798 + $0x44] sm:$0x1] %v4762
      %v4764 = vld [vmem:[%s798 + $0x48] sm:$0xf]
      %v4765 = vsel %vm800, %v4510, %v4764
      %4766 = vst [vmem:[%s798 + $0x48] sm:$0xf] %v4765
      %4767 = vst.msk [vmem:[%s798 + $0x4c] sm:$0xf] %vm258, %v4519
      %v4768 = vld [vmem:[%s798 + $0x50] sm:$0x1]
      %v4769 = vsel %vm269, %v4520, %v4768
      %4770 = vst [vmem:[%s798 + $0x50] sm:$0x1] %v4769
      %v4771 = vld [vmem:[%s798 + $0x54] sm:$0xf]
      %v4772 = vsel %vm800, %v4527, %v4771
      %4773 = vst [vmem:[%s798 + $0x54] sm:$0xf] %v4772
      %4774 = vst.msk [vmem:[%s798 + $0x58] sm:$0xf] %vm258, %v4536
      %v4775 = vld [vmem:[%s798 + $0x5c] sm:$0x1]
      %v4776 = vsel %vm269, %v4537, %v4775
      %4777 = vst [vmem:[%s798 + $0x5c] sm:$0x1] %v4776
      %v4778 = vld [vmem:[%s798 + $0x60] sm:$0xf]
      %v4779 = vsel %vm800, %v4544, %v4778
      %4780 = vst [vmem:[%s798 + $0x60] sm:$0xf] %v4779
      %4781 = vst.msk [vmem:[%s798 + $0x64] sm:$0xf] %vm258, %v4553
      %v4782 = vld [vmem:[%s798 + $0x68] sm:$0x1]
      %v4783 = vsel %vm269, %v4554, %v4782
      %4784 = vst [vmem:[%s798 + $0x68] sm:$0x1] %v4783
      %v4785 = vld [vmem:[%s798 + $0x6c] sm:$0xf]
      %v4786 = vsel %vm800, %v4561, %v4785
      %4787 = vst [vmem:[%s798 + $0x6c] sm:$0xf] %v4786
      %4788 = vst.msk [vmem:[%s798 + $0x70] sm:$0xf] %vm258, %v4570
      %v4789 = vld [vmem:[%s798 + $0x74] sm:$0x1]
      %v4790 = vsel %vm269, %v4571, %v4789
      %4791 = vst [vmem:[%s798 + $0x74] sm:$0x1] %v4790
      %v4792 = vld [vmem:[%s798 + $0x78] sm:$0xf]
      %v4793 = vsel %vm800, %v4578, %v4792
      %4794 = vst [vmem:[%s798 + $0x78] sm:$0xf] %v4793
      %4795 = vst.msk [vmem:[%s798 + $0x7c] sm:$0xf] %vm258, %v4587
      %v4796 = vld [vmem:[%s798 + $0x80] sm:$0x1]
      %v4797 = vsel %vm269, %v4588, %v4796
      %4798 = vst [vmem:[%s798 + $0x80] sm:$0x1] %v4797
      %v4799 = vld [vmem:[%s798 + $0x84] sm:$0xf]
      %v4800 = vsel %vm800, %v4595, %v4799
      %4801 = vst [vmem:[%s798 + $0x84] sm:$0xf] %v4800
      %4802 = vst.msk [vmem:[%s798 + $0x88] sm:$0xf] %vm258, %v4604
      %v4803 = vld [vmem:[%s798 + $0x8c] sm:$0x1]
      %v4804 = vsel %vm269, %v4605, %v4803
      %4805 = vst [vmem:[%s798 + $0x8c] sm:$0x1] %v4804
      %v4806 = vld [vmem:[%s798 + $0x90] sm:$0xf]
      %v4807 = vsel %vm800, %v4612, %v4806
      %4808 = vst [vmem:[%s798 + $0x90] sm:$0xf] %v4807
      %4809 = vst.msk [vmem:[%s798 + $0x94] sm:$0xf] %vm258, %v4621
      %v4810 = vld [vmem:[%s798 + $0x98] sm:$0x1]
      %v4811 = vsel %vm269, %v4622, %v4810
      %4812 = vst [vmem:[%s798 + $0x98] sm:$0x1] %v4811
      %v4813 = vld [vmem:[%s798 + $0x9c] sm:$0xf]
      %v4814 = vsel %vm800, %v4629, %v4813
      %4815 = vst [vmem:[%s798 + $0x9c] sm:$0xf] %v4814
      %4816 = vst.msk [vmem:[%s798 + $0xa0] sm:$0xf] %vm258, %v4638
      %v4817 = vld [vmem:[%s798 + $0xa4] sm:$0x1]
      %v4818 = vsel %vm269, %v4639, %v4817
      %4819 = vst [vmem:[%s798 + $0xa4] sm:$0x1] %v4818
      %v4820 = vld [vmem:[%s798 + $0xa8] sm:$0xf]
      %v4821 = vsel %vm800, %v4646, %v4820
      %4822 = vst [vmem:[%s798 + $0xa8] sm:$0xf] %v4821
      %4823 = vst.msk [vmem:[%s798 + $0xac] sm:$0xf] %vm258, %v4655
      %v4824 = vld [vmem:[%s798 + $0xb0] sm:$0x1]
      %v4825 = vsel %vm269, %v4656, %v4824
      %4826 = vst [vmem:[%s798 + $0xb0] sm:$0x1] %v4825
      %v4827 = vld [vmem:[%s798 + $0xb4] sm:$0xf]
      %v4828 = vsel %vm800, %v4663, %v4827
      %4829 = vst [vmem:[%s798 + $0xb4] sm:$0xf] %v4828
      %4830 = vst.msk [vmem:[%s798 + $0xb8] sm:$0xf] %vm258, %v4672
      %v4831 = vld [vmem:[%s798 + $0xbc] sm:$0x1]
      %v4832 = vsel %vm269, %v4673, %v4831
      %4833 = vst [vmem:[%s798 + $0xbc] sm:$0x1] %v4832
      %v4834 = vld [vmem:[#allocation2] sm:$0xf]
      %v4835 = vld [vmem:[#allocation2 + $0x4] sm:$0xf]
      %v4836 = vld [vmem:[#allocation2 + $0xc] sm:$0xf]
      %v4837 = vld [vmem:[#allocation2 + $0x10] sm:$0xf]
      %v4838 = vld [vmem:[#allocation2 + $0x18] sm:$0xf]
      %v4839 = vld [vmem:[#allocation2 + $0x1c] sm:$0xf]
      %v4840 = vld [vmem:[#allocation2 + $0x24] sm:$0xf]
      %v4841 = vld [vmem:[#allocation2 + $0x28] sm:$0xf]
      %v4842 = vld [vmem:[#allocation2 + $0x30] sm:$0xf]
      %v4843 = vld [vmem:[#allocation2 + $0x34] sm:$0xf]
      %v4844 = vld [vmem:[#allocation2 + $0x3c] sm:$0xf]
      %v4845 = vld [vmem:[#allocation2 + $0x40] sm:$0xf]
      %v4846 = vld [vmem:[#allocation2 + $0x48] sm:$0xf]
      %v4847 = vld [vmem:[#allocation2 + $0x4c] sm:$0xf]
      %v4848 = vld [vmem:[#allocation2 + $0x54] sm:$0xf]
      %v4849 = vld [vmem:[#allocation2 + $0x58] sm:$0xf]
      %v4850 = vld [vmem:[#allocation2 + $0x60] sm:$0xf]
      %v4851 = vld [vmem:[#allocation2 + $0x64] sm:$0xf]
      %v4852 = vld [vmem:[#allocation2 + $0x6c] sm:$0xf]
      %v4853 = vld [vmem:[#allocation2 + $0x70] sm:$0xf]
      %v4854 = vld [vmem:[#allocation2 + $0x78] sm:$0xf]
      %v4855 = vld [vmem:[#allocation2 + $0x7c] sm:$0xf]
      %v4856 = vld [vmem:[#allocation2 + $0x84] sm:$0xf]
      %v4857 = vld [vmem:[#allocation2 + $0x88] sm:$0xf]
      %v4858 = vld [vmem:[#allocation2 + $0x90] sm:$0xf]
      %v4859 = vld [vmem:[#allocation2 + $0x94] sm:$0xf]
      %v4860 = vld [vmem:[#allocation2 + $0x9c] sm:$0xf]
      %v4861 = vld [vmem:[#allocation2 + $0xa0] sm:$0xf]
      %v4862 = vld [vmem:[#allocation2 + $0xa8] sm:$0xf]
      %v4863 = vld [vmem:[#allocation2 + $0xac] sm:$0xf]
      %v4864 = vld [vmem:[#allocation2 + $0xb4] sm:$0xf]
      %v4865 = vld [vmem:[#allocation2 + $0xb8] sm:$0xf]
      %v4898 = vunpack.c.l.b16 %v4834
      %v4899 = vunpack.c.l.b16 %v4835
      %v4900 = vunpack.c.l.b16 %v4836
      %v4901 = vunpack.c.l.b16 %v4837
      %v4902 = vunpack.c.l.b16 %v4838
      %v4903 = vunpack.c.l.b16 %v4839
      %v4904 = vunpack.c.l.b16 %v4840
      %v4905 = vunpack.c.l.b16 %v4841
      %v4906 = vunpack.c.l.b16 %v4842
      %v4907 = vunpack.c.l.b16 %v4843
      %v4908 = vunpack.c.l.b16 %v4844
      %v4909 = vunpack.c.l.b16 %v4845
      %v4910 = vunpack.c.l.b16 %v4846
      %v4911 = vunpack.c.l.b16 %v4847
      %v4912 = vunpack.c.l.b16 %v4848
      %v4913 = vunpack.c.l.b16 %v4849
      %v4914 = vunpack.c.l.b16 %v4850
      %v4915 = vunpack.c.l.b16 %v4851
      %v4916 = vunpack.c.l.b16 %v4852
      %v4917 = vunpack.c.l.b16 %v4853
      %v4918 = vunpack.c.l.b16 %v4854
      %v4919 = vunpack.c.l.b16 %v4855
      %v4920 = vunpack.c.l.b16 %v4856
      %v4921 = vunpack.c.l.b16 %v4857
      %v4922 = vunpack.c.l.b16 %v4858
      %v4923 = vunpack.c.l.b16 %v4859
      %v4924 = vunpack.c.l.b16 %v4860
      %v4925 = vunpack.c.l.b16 %v4861
      %v4926 = vunpack.c.l.b16 %v4862
      %v4927 = vunpack.c.l.b16 %v4863
      %v4928 = vunpack.c.l.b16 %v4864
      %v4929 = vunpack.c.l.b16 %v4865
      %v4930 = vpack.c.b16 %v4899, %v4898
      %v4931 = vpack.c.b16 %v4901, %v4900
      %v4932 = vpack.c.b16 %v4903, %v4902
      %v4933 = vpack.c.b16 %v4905, %v4904
      %v4934 = vpack.c.b16 %v4907, %v4906
      %v4935 = vpack.c.b16 %v4909, %v4908
      %v4936 = vpack.c.b16 %v4911, %v4910
      %v4937 = vpack.c.b16 %v4913, %v4912
      %v4938 = vpack.c.b16 %v4915, %v4914
      %v4939 = vpack.c.b16 %v4917, %v4916
      %v4940 = vpack.c.b16 %v4919, %v4918
      %v4941 = vpack.c.b16 %v4921, %v4920
      %v4942 = vpack.c.b16 %v4923, %v4922
      %v4943 = vpack.c.b16 %v4925, %v4924
      %v4944 = vpack.c.b16 %v4927, %v4926
      %v4945 = vpack.c.b16 %v4929, %v4928
      %4962 = vst.msk [vmem:[#allocation3] sm:$0xff] %vm1041, %v4930
      %4963 = vst.msk [vmem:[#allocation3 + $0x8] sm:$0xff] %vm1041, %v4931
      %4964 = vst.msk [vmem:[#allocation3 + $0x10] sm:$0xff] %vm1041, %v4932
      %4965 = vst.msk [vmem:[#allocation3 + $0x18] sm:$0xff] %vm1041, %v4933
      %4966 = vst.msk [vmem:[#allocation3 + $0x20] sm:$0xff] %vm1041, %v4934
      %4967 = vst.msk [vmem:[#allocation3 + $0x28] sm:$0xff] %vm1041, %v4935
      %4968 = vst.msk [vmem:[#allocation3 + $0x30] sm:$0xff] %vm1041, %v4936
      %4969 = vst.msk [vmem:[#allocation3 + $0x38] sm:$0xff] %vm1041, %v4937
      %4970 = vst.msk [vmem:[#allocation3 + $0x40] sm:$0xff] %vm1041, %v4938
      %4971 = vst.msk [vmem:[#allocation3 + $0x48] sm:$0xff] %vm1041, %v4939
      %4972 = vst.msk [vmem:[#allocation3 + $0x50] sm:$0xff] %vm1041, %v4940
      %4973 = vst.msk [vmem:[#allocation3 + $0x58] sm:$0xff] %vm1041, %v4941
      %4974 = vst.msk [vmem:[#allocation3 + $0x60] sm:$0xff] %vm1041, %v4942
      %4975 = vst.msk [vmem:[#allocation3 + $0x68] sm:$0xff] %vm1041, %v4943
      %4976 = vst.msk [vmem:[#allocation3 + $0x70] sm:$0xff] %vm1041, %v4944
      %4977 = vst.msk [vmem:[#allocation3 + $0x78] sm:$0xff] %vm1041, %v4945
      %v4978 = vld [vmem:[#allocation2] sm:$0xf]
      %v4979 = vld [vmem:[#allocation2 + $0x4] sm:$0xf]
      %v4980 = vld [vmem:[#allocation2 + $0x8] sm:$0x1]
      %v4981 = vld [vmem:[#allocation2 + $0xc] sm:$0xf]
      %v4982 = vld [vmem:[#allocation2 + $0x10] sm:$0xf]
      %v4983 = vld [vmem:[#allocation2 + $0x14] sm:$0x1]
      %v4984 = vld [vmem:[#allocation2 + $0x18] sm:$0xf]
      %v4985 = vld [vmem:[#allocation2 + $0x1c] sm:$0xf]
      %v4986 = vld [vmem:[#allocation2 + $0x20] sm:$0x1]
      %v4987 = vld [vmem:[#allocation2 + $0x24] sm:$0xf]
      %v4988 = vld [vmem:[#allocation2 + $0x28] sm:$0xf]
      %v4989 = vld [vmem:[#allocation2 + $0x2c] sm:$0x1]
      %v4990 = vld [vmem:[#allocation2 + $0x30] sm:$0xf]
      %v4991 = vld [vmem:[#allocation2 + $0x34] sm:$0xf]
      %v4992 = vld [vmem:[#allocation2 + $0x38] sm:$0x1]
      %v4993 = vld [vmem:[#allocation2 + $0x3c] sm:$0xf]
      %v4994 = vld [vmem:[#allocation2 + $0x40] sm:$0xf]
      %v4995 = vld [vmem:[#allocation2 + $0x44] sm:$0x1]
      %v4996 = vld [vmem:[#allocation2 + $0x48] sm:$0xf]
      %v4997 = vld [vmem:[#allocation2 + $0x4c] sm:$0xf]
      %v4998 = vld [vmem:[#allocation2 + $0x50] sm:$0x1]
      %v4999 = vld [vmem:[#allocation2 + $0x54] sm:$0xf]
      %v5000 = vld [vmem:[#allocation2 + $0x58] sm:$0xf]
      %v5001 = vld [vmem:[#allocation2 + $0x5c] sm:$0x1]
      %v5002 = vld [vmem:[#allocation2 + $0x60] sm:$0xf]
      %v5003 = vld [vmem:[#allocation2 + $0x64] sm:$0xf]
      %v5004 = vld [vmem:[#allocation2 + $0x68] sm:$0x1]
      %v5005 = vld [vmem:[#allocation2 + $0x6c] sm:$0xf]
      %v5006 = vld [vmem:[#allocation2 + $0x70] sm:$0xf]
      %v5007 = vld [vmem:[#allocation2 + $0x74] sm:$0x1]
      %v5008 = vld [vmem:[#allocation2 + $0x78] sm:$0xf]
      %v5009 = vld [vmem:[#allocation2 + $0x7c] sm:$0xf]
      %v5010 = vld [vmem:[#allocation2 + $0x80] sm:$0x1]
      %v5011 = vld [vmem:[#allocation2 + $0x84] sm:$0xf]
      %v5012 = vld [vmem:[#allocation2 + $0x88] sm:$0xf]
      %v5013 = vld [vmem:[#allocation2 + $0x8c] sm:$0x1]
      %v5014 = vld [vmem:[#allocation2 + $0x90] sm:$0xf]
      %v5015 = vld [vmem:[#allocation2 + $0x94] sm:$0xf]
      %v5016 = vld [vmem:[#allocation2 + $0x98] sm:$0x1]
      %v5017 = vld [vmem:[#allocation2 + $0x9c] sm:$0xf]
      %v5018 = vld [vmem:[#allocation2 + $0xa0] sm:$0xf]
      %v5019 = vld [vmem:[#allocation2 + $0xa4] sm:$0x1]
      %v5020 = vld [vmem:[#allocation2 + $0xa8] sm:$0xf]
      %v5021 = vld [vmem:[#allocation2 + $0xac] sm:$0xf]
      %v5022 = vld [vmem:[#allocation2 + $0xb0] sm:$0x1]
      %v5023 = vld [vmem:[#allocation2 + $0xb4] sm:$0xf]
      %v5024 = vld [vmem:[#allocation2 + $0xb8] sm:$0xf]
      %v5025 = vld [vmem:[#allocation2 + $0xbc] sm:$0x1]
      %v5027 = vshrl.u32 %v4978, 16
      %v5029 = vrot.slane %v5027, 4
      %v5030 = vshll.u32 %v4978, 16
      %v5032 = vrot.slane %v5030, 5
      %v5033 = vor.u32 %v5029, %v5032
      %v5034 = vrot.slane %v5033, 4
      %v5036 = vshll.u32 %v4979, 16
      %v5038 = vrot.slane %v5036, 5
      %v5039 = vsel %vm1108, %v5034, %v5038
      %v5040 = vshrl.u32 %v4979, 16
      %v5042 = vrot.slane %v5040, 4
      %v5043 = vor.u32 %v5042, %v5038
      %v5044 = vrot.slane %v5043, 4
      %v5046 = vshll.u32 %v4980, 16
      %v5048 = vrot.slane %v5046, 5
      %v5049 = vsel %vm1108, %v5044, %v5048
      %v5051 = vshrl.u32 %v4981, 16
      %v5053 = vrot.slane %v5051, 4
      %v5054 = vshll.u32 %v4981, 16
      %v5056 = vrot.slane %v5054, 5
      %v5057 = vor.u32 %v5053, %v5056
      %v5058 = vrot.slane %v5057, 4
      %v5060 = vshll.u32 %v4982, 16
      %v5062 = vrot.slane %v5060, 5
      %v5063 = vsel %vm1108, %v5058, %v5062
      %v5064 = vshrl.u32 %v4982, 16
      %v5066 = vrot.slane %v5064, 4
      %v5067 = vor.u32 %v5066, %v5062
      %v5068 = vrot.slane %v5067, 4
      %v5070 = vshll.u32 %v4983, 16
      %v5072 = vrot.slane %v5070, 5
      %v5073 = vsel %vm1108, %v5068, %v5072
      %v5075 = vshrl.u32 %v4984, 16
      %v5077 = vrot.slane %v5075, 4
      %v5078 = vshll.u32 %v4984, 16
      %v5080 = vrot.slane %v5078, 5
      %v5081 = vor.u32 %v5077, %v5080
      %v5082 = vrot.slane %v5081, 4
      %v5084 = vshll.u32 %v4985, 16
      %v5086 = vrot.slane %v5084, 5
      %v5087 = vsel %vm1108, %v5082, %v5086
      %v5088 = vshrl.u32 %v4985, 16
      %v5090 = vrot.slane %v5088, 4
      %v5091 = vor.u32 %v5090, %v5086
      %v5092 = vrot.slane %v5091, 4
      %v5094 = vshll.u32 %v4986, 16
      %v5096 = vrot.slane %v5094, 5
      %v5097 = vsel %vm1108, %v5092, %v5096
      %v5099 = vshrl.u32 %v4987, 16
      %v5101 = vrot.slane %v5099, 4
      %v5102 = vshll.u32 %v4987, 16
      %v5104 = vrot.slane %v5102, 5
      %v5105 = vor.u32 %v5101, %v5104
      %v5106 = vrot.slane %v5105, 4
      %v5108 = vshll.u32 %v4988, 16
      %v5110 = vrot.slane %v5108, 5
      %v5111 = vsel %vm1108, %v5106, %v5110
      %v5112 = vshrl.u32 %v4988, 16
      %v5114 = vrot.slane %v5112, 4
      %v5115 = vor.u32 %v5114, %v5110
      %v5116 = vrot.slane %v5115, 4
      %v5118 = vshll.u32 %v4989, 16
      %v5120 = vrot.slane %v5118, 5
      %v5121 = vsel %vm1108, %v5116, %v5120
      %v5123 = vshrl.u32 %v4990, 16
      %v5125 = vrot.slane %v5123, 4
      %v5126 = vshll.u32 %v4990, 16
      %v5128 = vrot.slane %v5126, 5
      %v5129 = vor.u32 %v5125, %v5128
      %v5130 = vrot.slane %v5129, 4
      %v5132 = vshll.u32 %v4991, 16
      %v5134 = vrot.slane %v5132, 5
      %v5135 = vsel %vm1108, %v5130, %v5134
      %v5136 = vshrl.u32 %v4991, 16
      %v5138 = vrot.slane %v5136, 4
      %v5139 = vor.u32 %v5138, %v5134
      %v5140 = vrot.slane %v5139, 4
      %v5142 = vshll.u32 %v4992, 16
      %v5144 = vrot.slane %v5142, 5
      %v5145 = vsel %vm1108, %v5140, %v5144
      %v5147 = vshrl.u32 %v4993, 16
      %v5149 = vrot.slane %v5147, 4
      %v5150 = vshll.u32 %v4993, 16
      %v5152 = vrot.slane %v5150, 5
      %v5153 = vor.u32 %v5149, %v5152
      %v5154 = vrot.slane %v5153, 4
      %v5156 = vshll.u32 %v4994, 16
      %v5158 = vrot.slane %v5156, 5
      %v5159 = vsel %vm1108, %v5154, %v5158
      %v5160 = vshrl.u32 %v4994, 16
      %v5162 = vrot.slane %v5160, 4
      %v5163 = vor.u32 %v5162, %v5158
      %v5164 = vrot.slane %v5163, 4
      %v5166 = vshll.u32 %v4995, 16
      %v5168 = vrot.slane %v5166, 5
      %v5169 = vsel %vm1108, %v5164, %v5168
      %v5171 = vshrl.u32 %v4996, 16
      %v5173 = vrot.slane %v5171, 4
      %v5174 = vshll.u32 %v4996, 16
      %v5176 = vrot.slane %v5174, 5
      %v5177 = vor.u32 %v5173, %v5176
      %v5178 = vrot.slane %v5177, 4
      %v5180 = vshll.u32 %v4997, 16
      %v5182 = vrot.slane %v5180, 5
      %v5183 = vsel %vm1108, %v5178, %v5182
      %v5184 = vshrl.u32 %v4997, 16
      %v5186 = vrot.slane %v5184, 4
      %v5187 = vor.u32 %v5186, %v5182
      %v5188 = vrot.slane %v5187, 4
      %v5190 = vshll.u32 %v4998, 16
      %v5192 = vrot.slane %v5190, 5
      %v5193 = vsel %vm1108, %v5188, %v5192
      %v5195 = vshrl.u32 %v4999, 16
      %v5197 = vrot.slane %v5195, 4
      %v5198 = vshll.u32 %v4999, 16
      %v5200 = vrot.slane %v5198, 5
      %v5201 = vor.u32 %v5197, %v5200
      %v5202 = vrot.slane %v5201, 4
      %v5204 = vshll.u32 %v5000, 16
      %v5206 = vrot.slane %v5204, 5
      %v5207 = vsel %vm1108, %v5202, %v5206
      %v5208 = vshrl.u32 %v5000, 16
      %v5210 = vrot.slane %v5208, 4
      %v5211 = vor.u32 %v5210, %v5206
      %v5212 = vrot.slane %v5211, 4
      %v5214 = vshll.u32 %v5001, 16
      %v5216 = vrot.slane %v5214, 5
      %v5217 = vsel %vm1108, %v5212, %v5216
      %v5219 = vshrl.u32 %v5002, 16
      %v5221 = vrot.slane %v5219, 4
      %v5222 = vshll.u32 %v5002, 16
      %v5224 = vrot.slane %v5222, 5
      %v5225 = vor.u32 %v5221, %v5224
      %v5226 = vrot.slane %v5225, 4
      %v5228 = vshll.u32 %v5003, 16
      %v5230 = vrot.slane %v5228, 5
      %v5231 = vsel %vm1108, %v5226, %v5230
      %v5232 = vshrl.u32 %v5003, 16
      %v5234 = vrot.slane %v5232, 4
      %v5235 = vor.u32 %v5234, %v5230
      %v5236 = vrot.slane %v5235, 4
      %v5238 = vshll.u32 %v5004, 16
      %v5240 = vrot.slane %v5238, 5
      %v5241 = vsel %vm1108, %v5236, %v5240
      %v5243 = vshrl.u32 %v5005, 16
      %v5245 = vrot.slane %v5243, 4
      %v5246 = vshll.u32 %v5005, 16
      %v5248 = vrot.slane %v5246, 5
      %v5249 = vor.u32 %v5245, %v5248
      %v5250 = vrot.slane %v5249, 4
      %v5252 = vshll.u32 %v5006, 16
      %v5254 = vrot.slane %v5252, 5
      %v5255 = vsel %vm1108, %v5250, %v5254
      %v5256 = vshrl.u32 %v5006, 16
      %v5258 = vrot.slane %v5256, 4
      %v5259 = vor.u32 %v5258, %v5254
      %v5260 = vrot.slane %v5259, 4
      %v5262 = vshll.u32 %v5007, 16
      %v5264 = vrot.slane %v5262, 5
      %v5265 = vsel %vm1108, %v5260, %v5264
      %v5267 = vshrl.u32 %v5008, 16
      %v5269 = vrot.slane %v5267, 4
      %v5270 = vshll.u32 %v5008, 16
      %v5272 = vrot.slane %v5270, 5
      %v5273 = vor.u32 %v5269, %v5272
      %v5274 = vrot.slane %v5273, 4
      %v5276 = vshll.u32 %v5009, 16
      %v5278 = vrot.slane %v5276, 5
      %v5279 = vsel %vm1108, %v5274, %v5278
      %v5280 = vshrl.u32 %v5009, 16
      %v5282 = vrot.slane %v5280, 4
      %v5283 = vor.u32 %v5282, %v5278
      %v5284 = vrot.slane %v5283, 4
      %v5286 = vshll.u32 %v5010, 16
      %v5288 = vrot.slane %v5286, 5
      %v5289 = vsel %vm1108, %v5284, %v5288
      %v5291 = vshrl.u32 %v5011, 16
      %v5293 = vrot.slane %v5291, 4
      %v5294 = vshll.u32 %v5011, 16
      %v5296 = vrot.slane %v5294, 5
      %v5297 = vor.u32 %v5293, %v5296
      %v5298 = vrot.slane %v5297, 4
      %v5300 = vshll.u32 %v5012, 16
      %v5302 = vrot.slane %v5300, 5
      %v5303 = vsel %vm1108, %v5298, %v5302
      %v5304 = vshrl.u32 %v5012, 16
      %v5306 = vrot.slane %v5304, 4
      %v5307 = vor.u32 %v5306, %v5302
      %v5308 = vrot.slane %v5307, 4
      %v5310 = vshll.u32 %v5013, 16
      %v5312 = vrot.slane %v5310, 5
      %v5313 = vsel %vm1108, %v5308, %v5312
      %v5315 = vshrl.u32 %v5014, 16
      %v5317 = vrot.slane %v5315, 4
      %v5318 = vshll.u32 %v5014, 16
      %v5320 = vrot.slane %v5318, 5
      %v5321 = vor.u32 %v5317, %v5320
      %v5322 = vrot.slane %v5321, 4
      %v5324 = vshll.u32 %v5015, 16
      %v5326 = vrot.slane %v5324, 5
      %v5327 = vsel %vm1108, %v5322, %v5326
      %v5328 = vshrl.u32 %v5015, 16
      %v5330 = vrot.slane %v5328, 4
      %v5331 = vor.u32 %v5330, %v5326
      %v5332 = vrot.slane %v5331, 4
      %v5334 = vshll.u32 %v5016, 16
      %v5336 = vrot.slane %v5334, 5
      %v5337 = vsel %vm1108, %v5332, %v5336
      %v5339 = vshrl.u32 %v5017, 16
      %v5341 = vrot.slane %v5339, 4
      %v5342 = vshll.u32 %v5017, 16
      %v5344 = vrot.slane %v5342, 5
      %v5345 = vor.u32 %v5341, %v5344
      %v5346 = vrot.slane %v5345, 4
      %v5348 = vshll.u32 %v5018, 16
      %v5350 = vrot.slane %v5348, 5
      %v5351 = vsel %vm1108, %v5346, %v5350
      %v5352 = vshrl.u32 %v5018, 16
      %v5354 = vrot.slane %v5352, 4
      %v5355 = vor.u32 %v5354, %v5350
      %v5356 = vrot.slane %v5355, 4
      %v5358 = vshll.u32 %v5019, 16
      %v5360 = vrot.slane %v5358, 5
      %v5361 = vsel %vm1108, %v5356, %v5360
      %v5363 = vshrl.u32 %v5020, 16
      %v5365 = vrot.slane %v5363, 4
      %v5366 = vshll.u32 %v5020, 16
      %v5368 = vrot.slane %v5366, 5
      %v5369 = vor.u32 %v5365, %v5368
      %v5370 = vrot.slane %v5369, 4
      %v5372 = vshll.u32 %v5021, 16
      %v5374 = vrot.slane %v5372, 5
      %v5375 = vsel %vm1108, %v5370, %v5374
      %v5376 = vshrl.u32 %v5021, 16
      %v5378 = vrot.slane %v5376, 4
      %v5379 = vor.u32 %v5378, %v5374
      %v5380 = vrot.slane %v5379, 4
      %v5382 = vshll.u32 %v5022, 16
      %v5384 = vrot.slane %v5382, 5
      %v5385 = vsel %vm1108, %v5380, %v5384
      %v5387 = vshrl.u32 %v5023, 16
      %v5389 = vrot.slane %v5387, 4
      %v5390 = vshll.u32 %v5023, 16
      %v5392 = vrot.slane %v5390, 5
      %v5393 = vor.u32 %v5389, %v5392
      %v5394 = vrot.slane %v5393, 4
      %v5396 = vshll.u32 %v5024, 16
      %v5398 = vrot.slane %v5396, 5
      %v5399 = vsel %vm1108, %v5394, %v5398
      %v5400 = vshrl.u32 %v5024, 16
      %v5402 = vrot.slane %v5400, 4
      %v5403 = vor.u32 %v5402, %v5398
      %v5404 = vrot.slane %v5403, 4
      %v5406 = vshll.u32 %v5025, 16
      %v5408 = vrot.slane %v5406, 5
      %v5409 = vsel %vm1108, %v5404, %v5408
      %v5410 = vunpack.c.l.b16 %v5039
      %v5411 = vunpack.c.l.b16 %v5049
      %v5412 = vunpack.c.l.b16 %v5063
      %v5413 = vunpack.c.l.b16 %v5073
      %v5414 = vunpack.c.l.b16 %v5087
      %v5415 = vunpack.c.l.b16 %v5097
      %v5416 = vunpack.c.l.b16 %v5111
      %v5417 = vunpack.c.l.b16 %v5121
      %v5418 = vunpack.c.l.b16 %v5135
      %v5419 = vunpack.c.l.b16 %v5145
      %v5420 = vunpack.c.l.b16 %v5159
      %v5421 = vunpack.c.l.b16 %v5169
      %v5422 = vunpack.c.l.b16 %v5183
      %v5423 = vunpack.c.l.b16 %v5193
      %v5424 = vunpack.c.l.b16 %v5207
      %v5425 = vunpack.c.l.b16 %v5217
      %v5426 = vunpack.c.l.b16 %v5231
      %v5427 = vunpack.c.l.b16 %v5241
      %v5428 = vunpack.c.l.b16 %v5255
      %v5429 = vunpack.c.l.b16 %v5265
      %v5430 = vunpack.c.l.b16 %v5279
      %v5431 = vunpack.c.l.b16 %v5289
      %v5432 = vunpack.c.l.b16 %v5303
      %v5433 = vunpack.c.l.b16 %v5313
      %v5434 = vunpack.c.l.b16 %v5327
      %v5435 = vunpack.c.l.b16 %v5337
      %v5436 = vunpack.c.l.b16 %v5351
      %v5437 = vunpack.c.l.b16 %v5361
      %v5438 = vunpack.c.l.b16 %v5375
      %v5439 = vunpack.c.l.b16 %v5385
      %v5440 = vunpack.c.l.b16 %v5399
      %v5441 = vunpack.c.l.b16 %v5409
      %v5442 = vpack.c.b16 %v5411, %v5410
      %v5443 = vpack.c.b16 %v5413, %v5412
      %v5444 = vpack.c.b16 %v5415, %v5414
      %v5445 = vpack.c.b16 %v5417, %v5416
      %v5446 = vpack.c.b16 %v5419, %v5418
      %v5447 = vpack.c.b16 %v5421, %v5420
      %v5448 = vpack.c.b16 %v5423, %v5422
      %v5449 = vpack.c.b16 %v5425, %v5424
      %v5450 = vpack.c.b16 %v5427, %v5426
      %v5451 = vpack.c.b16 %v5429, %v5428
      %v5452 = vpack.c.b16 %v5431, %v5430
      %v5453 = vpack.c.b16 %v5433, %v5432
      %v5454 = vpack.c.b16 %v5435, %v5434
      %v5455 = vpack.c.b16 %v5437, %v5436
      %v5456 = vpack.c.b16 %v5439, %v5438
      %v5457 = vpack.c.b16 %v5441, %v5440
      %5458 = vrot.lane.b32.xlu0 %v5442, 4
      %v5459 = vpop.permute.xlu0 %5458
      %5460 = vrot.lane.b32.xlu0 %v5443, 4
      %v5461 = vpop.permute.xlu0 %5460
      %5462 = vrot.lane.b32.xlu0 %v5444, 4
      %v5463 = vpop.permute.xlu0 %5462
      %5464 = vrot.lane.b32.xlu0 %v5445, 4
      %v5465 = vpop.permute.xlu0 %5464
      %5466 = vrot.lane.b32.xlu0 %v5446, 4
      %v5467 = vpop.permute.xlu0 %5466
      %5468 = vrot.lane.b32.xlu0 %v5447, 4
      %v5469 = vpop.permute.xlu0 %5468
      %5470 = vrot.lane.b32.xlu0 %v5448, 4
      %v5471 = vpop.permute.xlu0 %5470
      %5472 = vrot.lane.b32.xlu0 %v5449, 4
      %v5473 = vpop.permute.xlu0 %5472
      %5474 = vrot.lane.b32.xlu0 %v5450, 4
      %v5475 = vpop.permute.xlu0 %5474
      %5476 = vrot.lane.b32.xlu0 %v5451, 4
      %v5477 = vpop.permute.xlu0 %5476
      %5478 = vrot.lane.b32.xlu0 %v5452, 4
      %v5479 = vpop.permute.xlu0 %5478
      %5480 = vrot.lane.b32.xlu0 %v5453, 4
      %v5481 = vpop.permute.xlu0 %5480
      %5482 = vrot.lane.b32.xlu0 %v5454, 4
      %v5483 = vpop.permute.xlu0 %5482
      %5484 = vrot.lane.b32.xlu0 %v5455, 4
      %v5485 = vpop.permute.xlu0 %5484
      %5486 = vrot.lane.b32.xlu0 %v5456, 4
      %v5487 = vpop.permute.xlu0 %5486
      %5488 = vrot.lane.b32.xlu0 %v5457, 4
      %v5489 = vpop.permute.xlu0 %5488
      %5506 = vst.msk [vmem:[#allocation3] sm:$0xff] %vm1589, %v5459
      %5507 = vst.msk [vmem:[#allocation3 + $0x8] sm:$0xff] %vm1589, %v5461
      %5508 = vst.msk [vmem:[#allocation3 + $0x10] sm:$0xff] %vm1589, %v5463
      %5509 = vst.msk [vmem:[#allocation3 + $0x18] sm:$0xff] %vm1589, %v5465
      %5510 = vst.msk [vmem:[#allocation3 + $0x20] sm:$0xff] %vm1589, %v5467
      %5511 = vst.msk [vmem:[#allocation3 + $0x28] sm:$0xff] %vm1589, %v5469
      %5512 = vst.msk [vmem:[#allocation3 + $0x30] sm:$0xff] %vm1589, %v5471
      %5513 = vst.msk [vmem:[#allocation3 + $0x38] sm:$0xff] %vm1589, %v5473
      %5514 = vst.msk [vmem:[#allocation3 + $0x40] sm:$0xff] %vm1589, %v5475
      %5515 = vst.msk [vmem:[#allocation3 + $0x48] sm:$0xff] %vm1589, %v5477
      %5516 = vst.msk [vmem:[#allocation3 + $0x50] sm:$0xff] %vm1589, %v5479
      %5517 = vst.msk [vmem:[#allocation3 + $0x58] sm:$0xff] %vm1589, %v5481
      %5518 = vst.msk [vmem:[#allocation3 + $0x60] sm:$0xff] %vm1589, %v5483
      %5519 = vst.msk [vmem:[#allocation3 + $0x68] sm:$0xff] %vm1589, %v5485
      %5520 = vst.msk [vmem:[#allocation3 + $0x70] sm:$0xff] %vm1589, %v5487
      %5521 = vst.msk [vmem:[#allocation3 + $0x78] sm:$0xff] %vm1589, %v5489
      %v5522 = vld [vmem:[#allocation2] sm:$0xe]
      %v5523 = vld [vmem:[#allocation2 + $0x4] sm:$0xf]
      %v5524 = vld [vmem:[#allocation2 + $0x8] sm:$0x1]
      %v5525 = vld [vmem:[#allocation2 + $0xc] sm:$0xe]
      %v5526 = vld [vmem:[#allocation2 + $0x10] sm:$0xf]
      %v5527 = vld [vmem:[#allocation2 + $0x14] sm:$0x1]
      %v5528 = vld [vmem:[#allocation2 + $0x18] sm:$0xe]
      %v5529 = vld [vmem:[#allocation2 + $0x1c] sm:$0xf]
      %v5530 = vld [vmem:[#allocation2 + $0x20] sm:$0x1]
      %v5531 = vld [vmem:[#allocation2 + $0x24] sm:$0xe]
      %v5532 = vld [vmem:[#allocation2 + $0x28] sm:$0xf]
      %v5533 = vld [vmem:[#allocation2 + $0x2c] sm:$0x1]
      %v5534 = vld [vmem:[#allocation2 + $0x30] sm:$0xe]
      %v5535 = vld [vmem:[#allocation2 + $0x34] sm:$0xf]
      %v5536 = vld [vmem:[#allocation2 + $0x38] sm:$0x1]
      %v5537 = vld [vmem:[#allocation2 + $0x3c] sm:$0xe]
      %v5538 = vld [vmem:[#allocation2 + $0x40] sm:$0xf]
      %v5539 = vld [vmem:[#allocation2 + $0x44] sm:$0x1]
      %v5540 = vld [vmem:[#allocation2 + $0x48] sm:$0xe]
      %v5541 = vld [vmem:[#allocation2 + $0x4c] sm:$0xf]
      %v5542 = vld [vmem:[#allocation2 + $0x50] sm:$0x1]
      %v5543 = vld [vmem:[#allocation2 + $0x54] sm:$0xe]
      %v5544 = vld [vmem:[#allocation2 + $0x58] sm:$0xf]
      %v5545 = vld [vmem:[#allocation2 + $0x5c] sm:$0x1]
      %v5546 = vld [vmem:[#allocation2 + $0x60] sm:$0xe]
      %v5547 = vld [vmem:[#allocation2 + $0x64] sm:$0xf]
      %v5548 = vld [vmem:[#allocation2 + $0x68] sm:$0x1]
      %v5549 = vld [vmem:[#allocation2 + $0x6c] sm:$0xe]
      %v5550 = vld [vmem:[#allocation2 + $0x70] sm:$0xf]
      %v5551 = vld [vmem:[#allocation2 + $0x74] sm:$0x1]
      %v5552 = vld [vmem:[#allocation2 + $0x78] sm:$0xe]
      %v5553 = vld [vmem:[#allocation2 + $0x7c] sm:$0xf]
      %v5554 = vld [vmem:[#allocation2 + $0x80] sm:$0x1]
      %v5555 = vld [vmem:[#allocation2 + $0x84] sm:$0xe]
      %v5556 = vld [vmem:[#allocation2 + $0x88] sm:$0xf]
      %v5557 = vld [vmem:[#allocation2 + $0x8c] sm:$0x1]
      %v5558 = vld [vmem:[#allocation2 + $0x90] sm:$0xe]
      %v5559 = vld [vmem:[#allocation2 + $0x94] sm:$0xf]
      %v5560 = vld [vmem:[#allocation2 + $0x98] sm:$0x1]
      %v5561 = vld [vmem:[#allocation2 + $0x9c] sm:$0xe]
      %v5562 = vld [vmem:[#allocation2 + $0xa0] sm:$0xf]
      %v5563 = vld [vmem:[#allocation2 + $0xa4] sm:$0x1]
      %v5564 = vld [vmem:[#allocation2 + $0xa8] sm:$0xe]
      %v5565 = vld [vmem:[#allocation2 + $0xac] sm:$0xf]
      %v5566 = vld [vmem:[#allocation2 + $0xb0] sm:$0x1]
      %v5567 = vld [vmem:[#allocation2 + $0xb4] sm:$0xe]
      %v5568 = vld [vmem:[#allocation2 + $0xb8] sm:$0xf]
      %v5569 = vld [vmem:[#allocation2 + $0xbc] sm:$0x1]
      %v5618 = vrot.slane %v5522, 5
      %v5619 = vrot.slane %v5618, 4
      %v5620 = vrot.slane %v5523, 5
      %v5621 = vsel %vm1704, %v5619, %v5620
      %v5622 = vrot.slane %v5620, 4
      %v5623 = vrot.slane %v5524, 5
      %v5624 = vsel %vm1704, %v5622, %v5623
      %v5625 = vrot.slane %v5525, 5
      %v5626 = vrot.slane %v5625, 4
      %v5627 = vrot.slane %v5526, 5
      %v5628 = vsel %vm1704, %v5626, %v5627
      %v5629 = vrot.slane %v5627, 4
      %v5630 = vrot.slane %v5527, 5
      %v5631 = vsel %vm1704, %v5629, %v5630
      %v5632 = vrot.slane %v5528, 5
      %v5633 = vrot.slane %v5632, 4
      %v5634 = vrot.slane %v5529, 5
      %v5635 = vsel %vm1704, %v5633, %v5634
      %v5636 = vrot.slane %v5634, 4
      %v5637 = vrot.slane %v5530, 5
      %v5638 = vsel %vm1704, %v5636, %v5637
      %v5639 = vrot.slane %v5531, 5
      %v5640 = vrot.slane %v5639, 4
      %v5641 = vrot.slane %v5532, 5
      %v5642 = vsel %vm1704, %v5640, %v5641
      %v5643 = vrot.slane %v5641, 4
      %v5644 = vrot.slane %v5533, 5
      %v5645 = vsel %vm1704, %v5643, %v5644
      %v5646 = vrot.slane %v5534, 5
      %v5647 = vrot.slane %v5646, 4
      %v5648 = vrot.slane %v5535, 5
      %v5649 = vsel %vm1704, %v5647, %v5648
      %v5650 = vrot.slane %v5648, 4
      %v5651 = vrot.slane %v5536, 5
      %v5652 = vsel %vm1704, %v5650, %v5651
      %v5653 = vrot.slane %v5537, 5
      %v5654 = vrot.slane %v5653, 4
      %v5655 = vrot.slane %v5538, 5
      %v5656 = vsel %vm1704, %v5654, %v5655
      %v5657 = vrot.slane %v5655, 4
      %v5658 = vrot.slane %v5539, 5
      %v5659 = vsel %vm1704, %v5657, %v5658
      %v5660 = vrot.slane %v5540, 5
      %v5661 = vrot.slane %v5660, 4
      %v5662 = vrot.slane %v5541, 5
      %v5663 = vsel %vm1704, %v5661, %v5662
      %v5664 = vrot.slane %v5662, 4
      %v5665 = vrot.slane %v5542, 5
      %v5666 = vsel %vm1704, %v5664, %v5665
      %v5667 = vrot.slane %v5543, 5
      %v5668 = vrot.slane %v5667, 4
      %v5669 = vrot.slane %v5544, 5
      %v5670 = vsel %vm1704, %v5668, %v5669
      %v5671 = vrot.slane %v5669, 4
      %v5672 = vrot.slane %v5545, 5
      %v5673 = vsel %vm1704, %v5671, %v5672
      %v5674 = vrot.slane %v5546, 5
      %v5675 = vrot.slane %v5674, 4
      %v5676 = vrot.slane %v5547, 5
      %v5677 = vsel %vm1704, %v5675, %v5676
      %v5678 = vrot.slane %v5676, 4
      %v5679 = vrot.slane %v5548, 5
      %v5680 = vsel %vm1704, %v5678, %v5679
      %v5681 = vrot.slane %v5549, 5
      %v5682 = vrot.slane %v5681, 4
      %v5683 = vrot.slane %v5550, 5
      %v5684 = vsel %vm1704, %v5682, %v5683
      %v5685 = vrot.slane %v5683, 4
      %v5686 = vrot.slane %v5551, 5
      %v5687 = vsel %vm1704, %v5685, %v5686
      %v5688 = vrot.slane %v5552, 5
      %v5689 = vrot.slane %v5688, 4
      %v5690 = vrot.slane %v5553, 5
      %v5691 = vsel %vm1704, %v5689, %v5690
      %v5692 = vrot.slane %v5690, 4
      %v5693 = vrot.slane %v5554, 5
      %v5694 = vsel %vm1704, %v5692, %v5693
      %v5695 = vrot.slane %v5555, 5
      %v5696 = vrot.slane %v5695, 4
      %v5697 = vrot.slane %v5556, 5
      %v5698 = vsel %vm1704, %v5696, %v5697
      %v5699 = vrot.slane %v5697, 4
      %v5700 = vrot.slane %v5557, 5
      %v5701 = vsel %vm1704, %v5699, %v5700
      %v5702 = vrot.slane %v5558, 5
      %v5703 = vrot.slane %v5702, 4
      %v5704 = vrot.slane %v5559, 5
      %v5705 = vsel %vm1704, %v5703, %v5704
      %v5706 = vrot.slane %v5704, 4
      %v5707 = vrot.slane %v5560, 5
      %v5708 = vsel %vm1704, %v5706, %v5707
      %v5709 = vrot.slane %v5561, 5
      %v5710 = vrot.slane %v5709, 4
      %v5711 = vrot.slane %v5562, 5
      %v5712 = vsel %vm1704, %v5710, %v5711
      %v5713 = vrot.slane %v5711, 4
      %v5714 = vrot.slane %v5563, 5
      %v5715 = vsel %vm1704, %v5713, %v5714
      %v5716 = vrot.slane %v5564, 5
      %v5717 = vrot.slane %v5716, 4
      %v5718 = vrot.slane %v5565, 5
      %v5719 = vsel %vm1704, %v5717, %v5718
      %v5720 = vrot.slane %v5718, 4
      %v5721 = vrot.slane %v5566, 5
      %v5722 = vsel %vm1704, %v5720, %v5721
      %v5723 = vrot.slane %v5567, 5
      %v5724 = vrot.slane %v5723, 4
      %v5725 = vrot.slane %v5568, 5
      %v5726 = vsel %vm1704, %v5724, %v5725
      %v5727 = vrot.slane %v5725, 4
      %v5728 = vrot.slane %v5569, 5
      %v5729 = vsel %vm1704, %v5727, %v5728
      %v5730 = vunpack.c.l.b16 %v5621
      %v5731 = vunpack.c.l.b16 %v5624
      %v5732 = vunpack.c.l.b16 %v5628
      %v5733 = vunpack.c.l.b16 %v5631
      %v5734 = vunpack.c.l.b16 %v5635
      %v5735 = vunpack.c.l.b16 %v5638
      %v5736 = vunpack.c.l.b16 %v5642
      %v5737 = vunpack.c.l.b16 %v5645
      %v5738 = vunpack.c.l.b16 %v5649
      %v5739 = vunpack.c.l.b16 %v5652
      %v5740 = vunpack.c.l.b16 %v5656
      %v5741 = vunpack.c.l.b16 %v5659
      %v5742 = vunpack.c.l.b16 %v5663
      %v5743 = vunpack.c.l.b16 %v5666
      %v5744 = vunpack.c.l.b16 %v5670
      %v5745 = vunpack.c.l.b16 %v5673
      %v5746 = vunpack.c.l.b16 %v5677
      %v5747 = vunpack.c.l.b16 %v5680
      %v5748 = vunpack.c.l.b16 %v5684
      %v5749 = vunpack.c.l.b16 %v5687
      %v5750 = vunpack.c.l.b16 %v5691
      %v5751 = vunpack.c.l.b16 %v5694
      %v5752 = vunpack.c.l.b16 %v5698
      %v5753 = vunpack.c.l.b16 %v5701
      %v5754 = vunpack.c.l.b16 %v5705
      %v5755 = vunpack.c.l.b16 %v5708
      %v5756 = vunpack.c.l.b16 %v5712
      %v5757 = vunpack.c.l.b16 %v5715
      %v5758 = vunpack.c.l.b16 %v5719
      %v5759 = vunpack.c.l.b16 %v5722
      %v5760 = vunpack.c.l.b16 %v5726
      %v5761 = vunpack.c.l.b16 %v5729
      %v5762 = vpack.c.b16 %v5731, %v5730
      %v5763 = vpack.c.b16 %v5733, %v5732
      %v5764 = vpack.c.b16 %v5735, %v5734
      %v5765 = vpack.c.b16 %v5737, %v5736
      %v5766 = vpack.c.b16 %v5739, %v5738
      %v5767 = vpack.c.b16 %v5741, %v5740
      %v5768 = vpack.c.b16 %v5743, %v5742
      %v5769 = vpack.c.b16 %v5745, %v5744
      %v5770 = vpack.c.b16 %v5747, %v5746
      %v5771 = vpack.c.b16 %v5749, %v5748
      %v5772 = vpack.c.b16 %v5751, %v5750
      %v5773 = vpack.c.b16 %v5753, %v5752
      %v5774 = vpack.c.b16 %v5755, %v5754
      %v5775 = vpack.c.b16 %v5757, %v5756
      %v5776 = vpack.c.b16 %v5759, %v5758
      %v5777 = vpack.c.b16 %v5761, %v5760
      %5778 = vrot.lane.b32.xlu0 %v5762, 8
      %v5779 = vpop.permute.xlu0 %5778
      %5780 = vrot.lane.b32.xlu0 %v5763, 8
      %v5781 = vpop.permute.xlu0 %5780
      %5782 = vrot.lane.b32.xlu0 %v5764, 8
      %v5783 = vpop.permute.xlu0 %5782
      %5784 = vrot.lane.b32.xlu0 %v5765, 8
      %v5785 = vpop.permute.xlu0 %5784
      %5786 = vrot.lane.b32.xlu0 %v5766, 8
      %v5787 = vpop.permute.xlu0 %5786
      %5788 = vrot.lane.b32.xlu0 %v5767, 8
      %v5789 = vpop.permute.xlu0 %5788
      %5790 = vrot.lane.b32.xlu0 %v5768, 8
      %v5791 = vpop.permute.xlu0 %5790
      %5792 = vrot.lane.b32.xlu0 %v5769, 8
      %v5793 = vpop.permute.xlu0 %5792
      %5794 = vrot.lane.b32.xlu0 %v5770, 8
      %v5795 = vpop.permute.xlu0 %5794
      %5796 = vrot.lane.b32.xlu0 %v5771, 8
      %v5797 = vpop.permute.xlu0 %5796
      %5798 = vrot.lane.b32.xlu0 %v5772, 8
      %v5799 = vpop.permute.xlu0 %5798
      %5800 = vrot.lane.b32.xlu0 %v5773, 8
      %v5801 = vpop.permute.xlu0 %5800
      %5802 = vrot.lane.b32.xlu0 %v5774, 8
      %v5803 = vpop.permute.xlu0 %5802
      %5804 = vrot.lane.b32.xlu0 %v5775, 8
      %v5805 = vpop.permute.xlu0 %5804
      %5806 = vrot.lane.b32.xlu0 %v5776, 8
      %v5807 = vpop.permute.xlu0 %5806
      %5808 = vrot.lane.b32.xlu0 %v5777, 8
      %v5809 = vpop.permute.xlu0 %5808
      %5826 = vst.msk [vmem:[#allocation3] sm:$0xff] %vm1913, %v5779
      %5827 = vst.msk [vmem:[#allocation3 + $0x8] sm:$0xff] %vm1913, %v5781
      %5828 = vst.msk [vmem:[#allocation3 + $0x10] sm:$0xff] %vm1913, %v5783
      %5829 = vst.msk [vmem:[#allocation3 + $0x18] sm:$0xff] %vm1913, %v5785
      %5830 = vst.msk [vmem:[#allocation3 + $0x20] sm:$0xff] %vm1913, %v5787
      %5831 = vst.msk [vmem:[#allocation3 + $0x28] sm:$0xff] %vm1913, %v5789
      %5832 = vst.msk [vmem:[#allocation3 + $0x30] sm:$0xff] %vm1913, %v5791
      %5833 = vst.msk [vmem:[#allocation3 + $0x38] sm:$0xff] %vm1913, %v5793
      %5834 = vst.msk [vmem:[#allocation3 + $0x40] sm:$0xff] %vm1913, %v5795
      %5835 = vst.msk [vmem:[#allocation3 + $0x48] sm:$0xff] %vm1913, %v5797
      %5836 = vst.msk [vmem:[#allocation3 + $0x50] sm:$0xff] %vm1913, %v5799
      %5837 = vst.msk [vmem:[#allocation3 + $0x58] sm:$0xff] %vm1913, %v5801
      %5838 = vst.msk [vmem:[#allocation3 + $0x60] sm:$0xff] %vm1913, %v5803
      %5839 = vst.msk [vmem:[#allocation3 + $0x68] sm:$0xff] %vm1913, %v5805
      %5840 = vst.msk [vmem:[#allocation3 + $0x70] sm:$0xff] %vm1913, %v5807
      %5841 = vst.msk [vmem:[#allocation3 + $0x78] sm:$0xff] %vm1913, %v5809
      %v5842 = vld [vmem:[%s798] sm:$0xf]
      %v5843 = vld [vmem:[%s798 + $0x4] sm:$0xf]
      %v5844 = vld [vmem:[%s798 + $0xc] sm:$0xf]
      %v5845 = vld [vmem:[%s798 + $0x10] sm:$0xf]
      %v5846 = vld [vmem:[%s798 + $0x18] sm:$0xf]
      %v5847 = vld [vmem:[%s798 + $0x1c] sm:$0xf]
      %v5848 = vld [vmem:[%s798 + $0x24] sm:$0xf]
      %v5849 = vld [vmem:[%s798 + $0x28] sm:$0xf]
      %v5850 = vld [vmem:[%s798 + $0x30] sm:$0xf]
      %v5851 = vld [vmem:[%s798 + $0x34] sm:$0xf]
      %v5852 = vld [vmem:[%s798 + $0x3c] sm:$0xf]
      %v5853 = vld [vmem:[%s798 + $0x40] sm:$0xf]
      %v5854 = vld [vmem:[%s798 + $0x48] sm:$0xf]
      %v5855 = vld [vmem:[%s798 + $0x4c] sm:$0xf]
      %v5856 = vld [vmem:[%s798 + $0x54] sm:$0xf]
      %v5857 = vld [vmem:[%s798 + $0x58] sm:$0xf]
      %v5858 = vld [vmem:[%s798 + $0x60] sm:$0xf]
      %v5859 = vld [vmem:[%s798 + $0x64] sm:$0xf]
      %v5860 = vld [vmem:[%s798 + $0x6c] sm:$0xf]
      %v5861 = vld [vmem:[%s798 + $0x70] sm:$0xf]
      %v5862 = vld [vmem:[%s798 + $0x78] sm:$0xf]
      %v5863 = vld [vmem:[%s798 + $0x7c] sm:$0xf]
      %v5864 = vld [vmem:[%s798 + $0x84] sm:$0xf]
      %v5865 = vld [vmem:[%s798 + $0x88] sm:$0xf]
      %v5866 = vld [vmem:[%s798 + $0x90] sm:$0xf]
      %v5867 = vld [vmem:[%s798 + $0x94] sm:$0xf]
      %v5868 = vld [vmem:[%s798 + $0x9c] sm:$0xf]
      %v5869 = vld [vmem:[%s798 + $0xa0] sm:$0xf]
      %v5870 = vld [vmem:[%s798 + $0xa8] sm:$0xf]
      %v5871 = vld [vmem:[%s798 + $0xac] sm:$0xf]
      %v5872 = vld [vmem:[%s798 + $0xb4] sm:$0xf]
      %v5873 = vld [vmem:[%s798 + $0xb8] sm:$0xf]
      %v5906 = vunpack.c.l.b16 %v5842
      %v5907 = vunpack.c.l.b16 %v5843
      %v5908 = vunpack.c.l.b16 %v5844
      %v5909 = vunpack.c.l.b16 %v5845
      %v5910 = vunpack.c.l.b16 %v5846
      %v5911 = vunpack.c.l.b16 %v5847
      %v5912 = vunpack.c.l.b16 %v5848
      %v5913 = vunpack.c.l.b16 %v5849
      %v5914 = vunpack.c.l.b16 %v5850
      %v5915 = vunpack.c.l.b16 %v5851
      %v5916 = vunpack.c.l.b16 %v5852
      %v5917 = vunpack.c.l.b16 %v5853
      %v5918 = vunpack.c.l.b16 %v5854
      %v5919 = vunpack.c.l.b16 %v5855
      %v5920 = vunpack.c.l.b16 %v5856
      %v5921 = vunpack.c.l.b16 %v5857
      %v5922 = vunpack.c.l.b16 %v5858
      %v5923 = vunpack.c.l.b16 %v5859
      %v5924 = vunpack.c.l.b16 %v5860
      %v5925 = vunpack.c.l.b16 %v5861
      %v5926 = vunpack.c.l.b16 %v5862
      %v5927 = vunpack.c.l.b16 %v5863
      %v5928 = vunpack.c.l.b16 %v5864
      %v5929 = vunpack.c.l.b16 %v5865
      %v5930 = vunpack.c.l.b16 %v5866
      %v5931 = vunpack.c.l.b16 %v5867
      %v5932 = vunpack.c.l.b16 %v5868
      %v5933 = vunpack.c.l.b16 %v5869
      %v5934 = vunpack.c.l.b16 %v5870
      %v5935 = vunpack.c.l.b16 %v5871
      %v5936 = vunpack.c.l.b16 %v5872
      %v5937 = vunpack.c.l.b16 %v5873
      %v5938 = vpack.c.b16 %v5907, %v5906
      %v5939 = vpack.c.b16 %v5909, %v5908
      %v5940 = vpack.c.b16 %v5911, %v5910
      %v5941 = vpack.c.b16 %v5913, %v5912
      %v5942 = vpack.c.b16 %v5915, %v5914
      %v5943 = vpack.c.b16 %v5917, %v5916
      %v5944 = vpack.c.b16 %v5919, %v5918
      %v5945 = vpack.c.b16 %v5921, %v5920
      %v5946 = vpack.c.b16 %v5923, %v5922
      %v5947 = vpack.c.b16 %v5925, %v5924
      %v5948 = vpack.c.b16 %v5927, %v5926
      %v5949 = vpack.c.b16 %v5929, %v5928
      %v5950 = vpack.c.b16 %v5931, %v5930
      %v5951 = vpack.c.b16 %v5933, %v5932
      %v5952 = vpack.c.b16 %v5935, %v5934
      %v5953 = vpack.c.b16 %v5937, %v5936
      %5954 = vrot.lane.b32.xlu0 %v5938, 12
      %v5955 = vpop.permute.xlu0 %5954
      %5956 = vrot.lane.b32.xlu0 %v5939, 12
      %v5957 = vpop.permute.xlu0 %5956
      %5958 = vrot.lane.b32.xlu0 %v5940, 12
      %v5959 = vpop.permute.xlu0 %5958
      %5960 = vrot.lane.b32.xlu0 %v5941, 12
      %v5961 = vpop.permute.xlu0 %5960
      %5962 = vrot.lane.b32.xlu0 %v5942, 12
      %v5963 = vpop.permute.xlu0 %5962
      %5964 = vrot.lane.b32.xlu0 %v5943, 12
      %v5965 = vpop.permute.xlu0 %5964
      %5966 = vrot.lane.b32.xlu0 %v5944, 12
      %v5967 = vpop.permute.xlu0 %5966
      %5968 = vrot.lane.b32.xlu0 %v5945, 12
      %v5969 = vpop.permute.xlu0 %5968
      %5970 = vrot.lane.b32.xlu0 %v5946, 12
      %v5971 = vpop.permute.xlu0 %5970
      %5972 = vrot.lane.b32.xlu0 %v5947, 12
      %v5973 = vpop.permute.xlu0 %5972
      %5974 = vrot.lane.b32.xlu0 %v5948, 12
      %v5975 = vpop.permute.xlu0 %5974
      %5976 = vrot.lane.b32.xlu0 %v5949, 12
      %v5977 = vpop.permute.xlu0 %5976
      %5978 = vrot.lane.b32.xlu0 %v5950, 12
      %v5979 = vpop.permute.xlu0 %5978
      %5980 = vrot.lane.b32.xlu0 %v5951, 12
      %v5981 = vpop.permute.xlu0 %5980
      %5982 = vrot.lane.b32.xlu0 %v5952, 12
      %v5983 = vpop.permute.xlu0 %5982
      %5984 = vrot.lane.b32.xlu0 %v5953, 12
      %v5985 = vpop.permute.xlu0 %5984
      %6002 = vst.msk [vmem:[#allocation3] sm:$0xff] %vm2090, %v5955
      %6003 = vst.msk [vmem:[#allocation3 + $0x8] sm:$0xff] %vm2090, %v5957
      %6004 = vst.msk [vmem:[#allocation3 + $0x10] sm:$0xff] %vm2090, %v5959
      %6005 = vst.msk [vmem:[#allocation3 + $0x18] sm:$0xff] %vm2090, %v5961
      %6006 = vst.msk [vmem:[#allocation3 + $0x20] sm:$0xff] %vm2090, %v5963
      %6007 = vst.msk [vmem:[#allocation3 + $0x28] sm:$0xff] %vm2090, %v5965
      %6008 = vst.msk [vmem:[#allocation3 + $0x30] sm:$0xff] %vm2090, %v5967
      %6009 = vst.msk [vmem:[#allocation3 + $0x38] sm:$0xff] %vm2090, %v5969
      %6010 = vst.msk [vmem:[#allocation3 + $0x40] sm:$0xff] %vm2090, %v5971
      %6011 = vst.msk [vmem:[#allocation3 + $0x48] sm:$0xff] %vm2090, %v5973
      %6012 = vst.msk [vmem:[#allocation3 + $0x50] sm:$0xff] %vm2090, %v5975
      %6013 = vst.msk [vmem:[#allocation3 + $0x58] sm:$0xff] %vm2090, %v5977
      %6014 = vst.msk [vmem:[#allocation3 + $0x60] sm:$0xff] %vm2090, %v5979
      %6015 = vst.msk [vmem:[#allocation3 + $0x68] sm:$0xff] %vm2090, %v5981
      %6016 = vst.msk [vmem:[#allocation3 + $0x70] sm:$0xff] %vm2090, %v5983
      %6017 = vst.msk [vmem:[#allocation3 + $0x78] sm:$0xff] %vm2090, %v5985
      %v6018 = vld [vmem:[%s798] sm:$0xf]
      %v6019 = vld [vmem:[%s798 + $0x4] sm:$0xf]
      %v6020 = vld [vmem:[%s798 + $0x8] sm:$0x1]
      %v6021 = vld [vmem:[%s798 + $0xc] sm:$0xf]
      %v6022 = vld [vmem:[%s798 + $0x10] sm:$0xf]
      %v6023 = vld [vmem:[%s798 + $0x14] sm:$0x1]
      %v6024 = vld [vmem:[%s798 + $0x18] sm:$0xf]
      %v6025 = vld [vmem:[%s798 + $0x1c] sm:$0xf]
      %v6026 = vld [vmem:[%s798 + $0x20] sm:$0x1]
      %v6027 = vld [vmem:[%s798 + $0x24] sm:$0xf]
      %v6028 = vld [vmem:[%s798 + $0x28] sm:$0xf]
      %v6029 = vld [vmem:[%s798 + $0x2c] sm:$0x1]
      %v6030 = vld [vmem:[%s798 + $0x30] sm:$0xf]
      %v6031 = vld [vmem:[%s798 + $0x34] sm:$0xf]
      %v6032 = vld [vmem:[%s798 + $0x38] sm:$0x1]
      %v6033 = vld [vmem:[%s798 + $0x3c] sm:$0xf]
      %v6034 = vld [vmem:[%s798 + $0x40] sm:$0xf]
      %v6035 = vld [vmem:[%s798 + $0x44] sm:$0x1]
      %v6036 = vld [vmem:[%s798 + $0x48] sm:$0xf]
      %v6037 = vld [vmem:[%s798 + $0x4c] sm:$0xf]
      %v6038 = vld [vmem:[%s798 + $0x50] sm:$0x1]
      %v6039 = vld [vmem:[%s798 + $0x54] sm:$0xf]
      %v6040 = vld [vmem:[%s798 + $0x58] sm:$0xf]
      %v6041 = vld [vmem:[%s798 + $0x5c] sm:$0x1]
      %v6042 = vld [vmem:[%s798 + $0x60] sm:$0xf]
      %v6043 = vld [vmem:[%s798 + $0x64] sm:$0xf]
      %v6044 = vld [vmem:[%s798 + $0x68] sm:$0x1]
      %v6045 = vld [vmem:[%s798 + $0x6c] sm:$0xf]
      %v6046 = vld [vmem:[%s798 + $0x70] sm:$0xf]
      %v6047 = vld [vmem:[%s798 + $0x74] sm:$0x1]
      %v6048 = vld [vmem:[%s798 + $0x78] sm:$0xf]
      %v6049 = vld [vmem:[%s798 + $0x7c] sm:$0xf]
      %v6050 = vld [vmem:[%s798 + $0x80] sm:$0x1]
      %v6051 = vld [vmem:[%s798 + $0x84] sm:$0xf]
      %v6052 = vld [vmem:[%s798 + $0x88] sm:$0xf]
      %v6053 = vld [vmem:[%s798 + $0x8c] sm:$0x1]
      %v6054 = vld [vmem:[%s798 + $0x90] sm:$0xf]
      %v6055 = vld [vmem:[%s798 + $0x94] sm:$0xf]
      %v6056 = vld [vmem:[%s798 + $0x98] sm:$0x1]
      %v6057 = vld [vmem:[%s798 + $0x9c] sm:$0xf]
      %v6058 = vld [vmem:[%s798 + $0xa0] sm:$0xf]
      %v6059 = vld [vmem:[%s798 + $0xa4] sm:$0x1]
      %v6060 = vld [vmem:[%s798 + $0xa8] sm:$0xf]
      %v6061 = vld [vmem:[%s798 + $0xac] sm:$0xf]
      %v6062 = vld [vmem:[%s798 + $0xb0] sm:$0x1]
      %v6063 = vld [vmem:[%s798 + $0xb4] sm:$0xf]
      %v6064 = vld [vmem:[%s798 + $0xb8] sm:$0xf]
      %v6065 = vld [vmem:[%s798 + $0xbc] sm:$0x1]
      %v6067 = vshrl.u32 %v6018, 16
      %v6069 = vrot.slane %v6067, 4
      %v6070 = vshll.u32 %v6018, 16
      %v6072 = vrot.slane %v6070, 5
      %v6073 = vor.u32 %v6069, %v6072
      %v6074 = vrot.slane %v6073, 4
      %v6076 = vshll.u32 %v6019, 16
      %v6078 = vrot.slane %v6076, 5
      %v6079 = vsel %vm1108, %v6074, %v6078
      %v6080 = vshrl.u32 %v6019, 16
      %v6082 = vrot.slane %v6080, 4
      %v6083 = vor.u32 %v6082, %v6078
      %v6084 = vrot.slane %v6083, 4
      %v6086 = vshll.u32 %v6020, 16
      %v6088 = vrot.slane %v6086, 5
      %v6089 = vsel %vm1108, %v6084, %v6088
      %v6091 = vshrl.u32 %v6021, 16
      %v6093 = vrot.slane %v6091, 4
      %v6094 = vshll.u32 %v6021, 16
      %v6096 = vrot.slane %v6094, 5
      %v6097 = vor.u32 %v6093, %v6096
      %v6098 = vrot.slane %v6097, 4
      %v6100 = vshll.u32 %v6022, 16
      %v6102 = vrot.slane %v6100, 5
      %v6103 = vsel %vm1108, %v6098, %v6102
      %v6104 = vshrl.u32 %v6022, 16
      %v6106 = vrot.slane %v6104, 4
      %v6107 = vor.u32 %v6106, %v6102
      %v6108 = vrot.slane %v6107, 4
      %v6110 = vshll.u32 %v6023, 16
      %v6112 = vrot.slane %v6110, 5
      %v6113 = vsel %vm1108, %v6108, %v6112
      %v6115 = vshrl.u32 %v6024, 16
      %v6117 = vrot.slane %v6115, 4
      %v6118 = vshll.u32 %v6024, 16
      %v6120 = vrot.slane %v6118, 5
      %v6121 = vor.u32 %v6117, %v6120
      %v6122 = vrot.slane %v6121, 4
      %v6124 = vshll.u32 %v6025, 16
      %v6126 = vrot.slane %v6124, 5
      %v6127 = vsel %vm1108, %v6122, %v6126
      %v6128 = vshrl.u32 %v6025, 16
      %v6130 = vrot.slane %v6128, 4
      %v6131 = vor.u32 %v6130, %v6126
      %v6132 = vrot.slane %v6131, 4
      %v6134 = vshll.u32 %v6026, 16
      %v6136 = vrot.slane %v6134, 5
      %v6137 = vsel %vm1108, %v6132, %v6136
      %v6139 = vshrl.u32 %v6027, 16
      %v6141 = vrot.slane %v6139, 4
      %v6142 = vshll.u32 %v6027, 16
      %v6144 = vrot.slane %v6142, 5
      %v6145 = vor.u32 %v6141, %v6144
      %v6146 = vrot.slane %v6145, 4
      %v6148 = vshll.u32 %v6028, 16
      %v6150 = vrot.slane %v6148, 5
      %v6151 = vsel %vm1108, %v6146, %v6150
      %v6152 = vshrl.u32 %v6028, 16
      %v6154 = vrot.slane %v6152, 4
      %v6155 = vor.u32 %v6154, %v6150
      %v6156 = vrot.slane %v6155, 4
      %v6158 = vshll.u32 %v6029, 16
      %v6160 = vrot.slane %v6158, 5
      %v6161 = vsel %vm1108, %v6156, %v6160
      %v6163 = vshrl.u32 %v6030, 16
      %v6165 = vrot.slane %v6163, 4
      %v6166 = vshll.u32 %v6030, 16
      %v6168 = vrot.slane %v6166, 5
      %v6169 = vor.u32 %v6165, %v6168
      %v6170 = vrot.slane %v6169, 4
      %v6172 = vshll.u32 %v6031, 16
      %v6174 = vrot.slane %v6172, 5
      %v6175 = vsel %vm1108, %v6170, %v6174
      %v6176 = vshrl.u32 %v6031, 16
      %v6178 = vrot.slane %v6176, 4
      %v6179 = vor.u32 %v6178, %v6174
      %v6180 = vrot.slane %v6179, 4
      %v6182 = vshll.u32 %v6032, 16
      %v6184 = vrot.slane %v6182, 5
      %v6185 = vsel %vm1108, %v6180, %v6184
      %v6187 = vshrl.u32 %v6033, 16
      %v6189 = vrot.slane %v6187, 4
      %v6190 = vshll.u32 %v6033, 16
      %v6192 = vrot.slane %v6190, 5
      %v6193 = vor.u32 %v6189, %v6192
      %v6194 = vrot.slane %v6193, 4
      %v6196 = vshll.u32 %v6034, 16
      %v6198 = vrot.slane %v6196, 5
      %v6199 = vsel %vm1108, %v6194, %v6198
      %v6200 = vshrl.u32 %v6034, 16
      %v6202 = vrot.slane %v6200, 4
      %v6203 = vor.u32 %v6202, %v6198
      %v6204 = vrot.slane %v6203, 4
      %v6206 = vshll.u32 %v6035, 16
      %v6208 = vrot.slane %v6206, 5
      %v6209 = vsel %vm1108, %v6204, %v6208
      %v6211 = vshrl.u32 %v6036, 16
      %v6213 = vrot.slane %v6211, 4
      %v6214 = vshll.u32 %v6036, 16
      %v6216 = vrot.slane %v6214, 5
      %v6217 = vor.u32 %v6213, %v6216
      %v6218 = vrot.slane %v6217, 4
      %v6220 = vshll.u32 %v6037, 16
      %v6222 = vrot.slane %v6220, 5
      %v6223 = vsel %vm1108, %v6218, %v6222
      %v6224 = vshrl.u32 %v6037, 16
      %v6226 = vrot.slane %v6224, 4
      %v6227 = vor.u32 %v6226, %v6222
      %v6228 = vrot.slane %v6227, 4
      %v6230 = vshll.u32 %v6038, 16
      %v6232 = vrot.slane %v6230, 5
      %v6233 = vsel %vm1108, %v6228, %v6232
      %v6235 = vshrl.u32 %v6039, 16
      %v6237 = vrot.slane %v6235, 4
      %v6238 = vshll.u32 %v6039, 16
      %v6240 = vrot.slane %v6238, 5
      %v6241 = vor.u32 %v6237, %v6240
      %v6242 = vrot.slane %v6241, 4
      %v6244 = vshll.u32 %v6040, 16
      %v6246 = vrot.slane %v6244, 5
      %v6247 = vsel %vm1108, %v6242, %v6246
      %v6248 = vshrl.u32 %v6040, 16
      %v6250 = vrot.slane %v6248, 4
      %v6251 = vor.u32 %v6250, %v6246
      %v6252 = vrot.slane %v6251, 4
      %v6254 = vshll.u32 %v6041, 16
      %v6256 = vrot.slane %v6254, 5
      %v6257 = vsel %vm1108, %v6252, %v6256
      %v6259 = vshrl.u32 %v6042, 16
      %v6261 = vrot.slane %v6259, 4
      %v6262 = vshll.u32 %v6042, 16
      %v6264 = vrot.slane %v6262, 5
      %v6265 = vor.u32 %v6261, %v6264
      %v6266 = vrot.slane %v6265, 4
      %v6268 = vshll.u32 %v6043, 16
      %v6270 = vrot.slane %v6268, 5
      %v6271 = vsel %vm1108, %v6266, %v6270
      %v6272 = vshrl.u32 %v6043, 16
      %v6274 = vrot.slane %v6272, 4
      %v6275 = vor.u32 %v6274, %v6270
      %v6276 = vrot.slane %v6275, 4
      %v6278 = vshll.u32 %v6044, 16
      %v6280 = vrot.slane %v6278, 5
      %v6281 = vsel %vm1108, %v6276, %v6280
      %v6283 = vshrl.u32 %v6045, 16
      %v6285 = vrot.slane %v6283, 4
      %v6286 = vshll.u32 %v6045, 16
      %v6288 = vrot.slane %v6286, 5
      %v6289 = vor.u32 %v6285, %v6288
      %v6290 = vrot.slane %v6289, 4
      %v6292 = vshll.u32 %v6046, 16
      %v6294 = vrot.slane %v6292, 5
      %v6295 = vsel %vm1108, %v6290, %v6294
      %v6296 = vshrl.u32 %v6046, 16
      %v6298 = vrot.slane %v6296, 4
      %v6299 = vor.u32 %v6298, %v6294
      %v6300 = vrot.slane %v6299, 4
      %v6302 = vshll.u32 %v6047, 16
      %v6304 = vrot.slane %v6302, 5
      %v6305 = vsel %vm1108, %v6300, %v6304
      %v6307 = vshrl.u32 %v6048, 16
      %v6309 = vrot.slane %v6307, 4
      %v6310 = vshll.u32 %v6048, 16
      %v6312 = vrot.slane %v6310, 5
      %v6313 = vor.u32 %v6309, %v6312
      %v6314 = vrot.slane %v6313, 4
      %v6316 = vshll.u32 %v6049, 16
      %v6318 = vrot.slane %v6316, 5
      %v6319 = vsel %vm1108, %v6314, %v6318
      %v6320 = vshrl.u32 %v6049, 16
      %v6322 = vrot.slane %v6320, 4
      %v6323 = vor.u32 %v6322, %v6318
      %v6324 = vrot.slane %v6323, 4
      %v6326 = vshll.u32 %v6050, 16
      %v6328 = vrot.slane %v6326, 5
      %v6329 = vsel %vm1108, %v6324, %v6328
      %v6331 = vshrl.u32 %v6051, 16
      %v6333 = vrot.slane %v6331, 4
      %v6334 = vshll.u32 %v6051, 16
      %v6336 = vrot.slane %v6334, 5
      %v6337 = vor.u32 %v6333, %v6336
      %v6338 = vrot.slane %v6337, 4
      %v6340 = vshll.u32 %v6052, 16
      %v6342 = vrot.slane %v6340, 5
      %v6343 = vsel %vm1108, %v6338, %v6342
      %v6344 = vshrl.u32 %v6052, 16
      %v6346 = vrot.slane %v6344, 4
      %v6347 = vor.u32 %v6346, %v6342
      %v6348 = vrot.slane %v6347, 4
      %v6350 = vshll.u32 %v6053, 16
      %v6352 = vrot.slane %v6350, 5
      %v6353 = vsel %vm1108, %v6348, %v6352
      %v6355 = vshrl.u32 %v6054, 16
      %v6357 = vrot.slane %v6355, 4
      %v6358 = vshll.u32 %v6054, 16
      %v6360 = vrot.slane %v6358, 5
      %v6361 = vor.u32 %v6357, %v6360
      %v6362 = vrot.slane %v6361, 4
      %v6364 = vshll.u32 %v6055, 16
      %v6366 = vrot.slane %v6364, 5
      %v6367 = vsel %vm1108, %v6362, %v6366
      %v6368 = vshrl.u32 %v6055, 16
      %v6370 = vrot.slane %v6368, 4
      %v6371 = vor.u32 %v6370, %v6366
      %v6372 = vrot.slane %v6371, 4
      %v6374 = vshll.u32 %v6056, 16
      %v6376 = vrot.slane %v6374, 5
      %v6377 = vsel %vm1108, %v6372, %v6376
      %v6379 = vshrl.u32 %v6057, 16
      %v6381 = vrot.slane %v6379, 4
      %v6382 = vshll.u32 %v6057, 16
      %v6384 = vrot.slane %v6382, 5
      %v6385 = vor.u32 %v6381, %v6384
      %v6386 = vrot.slane %v6385, 4
      %v6388 = vshll.u32 %v6058, 16
      %v6390 = vrot.slane %v6388, 5
      %v6391 = vsel %vm1108, %v6386, %v6390
      %v6392 = vshrl.u32 %v6058, 16
      %v6394 = vrot.slane %v6392, 4
      %v6395 = vor.u32 %v6394, %v6390
      %v6396 = vrot.slane %v6395, 4
      %v6398 = vshll.u32 %v6059, 16
      %v6400 = vrot.slane %v6398, 5
      %v6401 = vsel %vm1108, %v6396, %v6400
      %v6403 = vshrl.u32 %v6060, 16
      %v6405 = vrot.slane %v6403, 4
      %v6406 = vshll.u32 %v6060, 16
      %v6408 = vrot.slane %v6406, 5
      %v6409 = vor.u32 %v6405, %v6408
      %v6410 = vrot.slane %v6409, 4
      %v6412 = vshll.u32 %v6061, 16
      %v6414 = vrot.slane %v6412, 5
      %v6415 = vsel %vm1108, %v6410, %v6414
      %v6416 = vshrl.u32 %v6061, 16
      %v6418 = vrot.slane %v6416, 4
      %v6419 = vor.u32 %v6418, %v6414
      %v6420 = vrot.slane %v6419, 4
      %v6422 = vshll.u32 %v6062, 16
      %v6424 = vrot.slane %v6422, 5
      %v6425 = vsel %vm1108, %v6420, %v6424
      %v6427 = vshrl.u32 %v6063, 16
      %v6429 = vrot.slane %v6427, 4
      %v6430 = vshll.u32 %v6063, 16
      %v6432 = vrot.slane %v6430, 5
      %v6433 = vor.u32 %v6429, %v6432
      %v6434 = vrot.slane %v6433, 4
      %v6436 = vshll.u32 %v6064, 16
      %v6438 = vrot.slane %v6436, 5
      %v6439 = vsel %vm1108, %v6434, %v6438
      %v6440 = vshrl.u32 %v6064, 16
      %v6442 = vrot.slane %v6440, 4
      %v6443 = vor.u32 %v6442, %v6438
      %v6444 = vrot.slane %v6443, 4
      %v6446 = vshll.u32 %v6065, 16
      %v6448 = vrot.slane %v6446, 5
      %v6449 = vsel %vm1108, %v6444, %v6448
      %v6450 = vunpack.c.l.b16 %v6079
      %v6451 = vunpack.c.l.b16 %v6089
      %v6452 = vunpack.c.l.b16 %v6103
      %v6453 = vunpack.c.l.b16 %v6113
      %v6454 = vunpack.c.l.b16 %v6127
      %v6455 = vunpack.c.l.b16 %v6137
      %v6456 = vunpack.c.l.b16 %v6151
      %v6457 = vunpack.c.l.b16 %v6161
      %v6458 = vunpack.c.l.b16 %v6175
      %v6459 = vunpack.c.l.b16 %v6185
      %v6460 = vunpack.c.l.b16 %v6199
      %v6461 = vunpack.c.l.b16 %v6209
      %v6462 = vunpack.c.l.b16 %v6223
      %v6463 = vunpack.c.l.b16 %v6233
      %v6464 = vunpack.c.l.b16 %v6247
      %v6465 = vunpack.c.l.b16 %v6257
      %v6466 = vunpack.c.l.b16 %v6271
      %v6467 = vunpack.c.l.b16 %v6281
      %v6468 = vunpack.c.l.b16 %v6295
      %v6469 = vunpack.c.l.b16 %v6305
      %v6470 = vunpack.c.l.b16 %v6319
      %v6471 = vunpack.c.l.b16 %v6329
      %v6472 = vunpack.c.l.b16 %v6343
      %v6473 = vunpack.c.l.b16 %v6353
      %v6474 = vunpack.c.l.b16 %v6367
      %v6475 = vunpack.c.l.b16 %v6377
      %v6476 = vunpack.c.l.b16 %v6391
      %v6477 = vunpack.c.l.b16 %v6401
      %v6478 = vunpack.c.l.b16 %v6415
      %v6479 = vunpack.c.l.b16 %v6425
      %v6480 = vunpack.c.l.b16 %v6439
      %v6481 = vunpack.c.l.b16 %v6449
      %v6482 = vpack.c.b16 %v6451, %v6450
      %v6483 = vpack.c.b16 %v6453, %v6452
      %v6484 = vpack.c.b16 %v6455, %v6454
      %v6485 = vpack.c.b16 %v6457, %v6456
      %v6486 = vpack.c.b16 %v6459, %v6458
      %v6487 = vpack.c.b16 %v6461, %v6460
      %v6488 = vpack.c.b16 %v6463, %v6462
      %v6489 = vpack.c.b16 %v6465, %v6464
      %v6490 = vpack.c.b16 %v6467, %v6466
      %v6491 = vpack.c.b16 %v6469, %v6468
      %v6492 = vpack.c.b16 %v6471, %v6470
      %v6493 = vpack.c.b16 %v6473, %v6472
      %v6494 = vpack.c.b16 %v6475, %v6474
      %v6495 = vpack.c.b16 %v6477, %v6476
      %v6496 = vpack.c.b16 %v6479, %v6478
      %v6497 = vpack.c.b16 %v6481, %v6480
      %6498 = vrot.lane.b32.xlu0 %v6482, 16
      %v6499 = vpop.permute.xlu0 %6498
      %6500 = vrot.lane.b32.xlu0 %v6483, 16
      %v6501 = vpop.permute.xlu0 %6500
      %6502 = vrot.lane.b32.xlu0 %v6484, 16
      %v6503 = vpop.permute.xlu0 %6502
      %6504 = vrot.lane.b32.xlu0 %v6485, 16
      %v6505 = vpop.permute.xlu0 %6504
      %6506 = vrot.lane.b32.xlu0 %v6486, 16
      %v6507 = vpop.permute.xlu0 %6506
      %6508 = vrot.lane.b32.xlu0 %v6487, 16
      %v6509 = vpop.permute.xlu0 %6508
      %6510 = vrot.lane.b32.xlu0 %v6488, 16
      %v6511 = vpop.permute.xlu0 %6510
      %6512 = vrot.lane.b32.xlu0 %v6489, 16
      %v6513 = vpop.permute.xlu0 %6512
      %6514 = vrot.lane.b32.xlu0 %v6490, 16
      %v6515 = vpop.permute.xlu0 %6514
      %6516 = vrot.lane.b32.xlu0 %v6491, 16
      %v6517 = vpop.permute.xlu0 %6516
      %6518 = vrot.lane.b32.xlu0 %v6492, 16
      %v6519 = vpop.permute.xlu0 %6518
      %6520 = vrot.lane.b32.xlu0 %v6493, 16
      %v6521 = vpop.permute.xlu0 %6520
      %6522 = vrot.lane.b32.xlu0 %v6494, 16
      %v6523 = vpop.permute.xlu0 %6522
      %6524 = vrot.lane.b32.xlu0 %v6495, 16
      %v6525 = vpop.permute.xlu0 %6524
      %6526 = vrot.lane.b32.xlu0 %v6496, 16
      %v6527 = vpop.permute.xlu0 %6526
      %6528 = vrot.lane.b32.xlu0 %v6497, 16
      %v6529 = vpop.permute.xlu0 %6528
      %6546 = vst.msk [vmem:[#allocation3] sm:$0xff] %vm2635, %v6499
      %6547 = vst.msk [vmem:[#allocation3 + $0x8] sm:$0xff] %vm2635, %v6501
      %6548 = vst.msk [vmem:[#allocation3 + $0x10] sm:$0xff] %vm2635, %v6503
      %6549 = vst.msk [vmem:[#allocation3 + $0x18] sm:$0xff] %vm2635, %v6505
      %6550 = vst.msk [vmem:[#allocation3 + $0x20] sm:$0xff] %vm2635, %v6507
      %6551 = vst.msk [vmem:[#allocation3 + $0x28] sm:$0xff] %vm2635, %v6509
      %6552 = vst.msk [vmem:[#allocation3 + $0x30] sm:$0xff] %vm2635, %v6511
      %6553 = vst.msk [vmem:[#allocation3 + $0x38] sm:$0xff] %vm2635, %v6513
      %6554 = vst.msk [vmem:[#allocation3 + $0x40] sm:$0xff] %vm2635, %v6515
      %6555 = vst.msk [vmem:[#allocation3 + $0x48] sm:$0xff] %vm2635, %v6517
      %6556 = vst.msk [vmem:[#allocation3 + $0x50] sm:$0xff] %vm2635, %v6519
      %6557 = vst.msk [vmem:[#allocation3 + $0x58] sm:$0xff] %vm2635, %v6521
      %6558 = vst.msk [vmem:[#allocation3 + $0x60] sm:$0xff] %vm2635, %v6523
      %6559 = vst.msk [vmem:[#allocation3 + $0x68] sm:$0xff] %vm2635, %v6525
      %6560 = vst.msk [vmem:[#allocation3 + $0x70] sm:$0xff] %vm2635, %v6527
      %6561 = vst.msk [vmem:[#allocation3 + $0x78] sm:$0xff] %vm2635, %v6529
      %v6562 = vld [vmem:[%s798] sm:$0xe]
      %v6563 = vld [vmem:[%s798 + $0x4] sm:$0xf]
      %v6564 = vld [vmem:[%s798 + $0x8] sm:$0x1]
      %v6565 = vld [vmem:[%s798 + $0xc] sm:$0xe]
      %v6566 = vld [vmem:[%s798 + $0x10] sm:$0xf]
      %v6567 = vld [vmem:[%s798 + $0x14] sm:$0x1]
      %v6568 = vld [vmem:[%s798 + $0x18] sm:$0xe]
      %v6569 = vld [vmem:[%s798 + $0x1c] sm:$0xf]
      %v6570 = vld [vmem:[%s798 + $0x20] sm:$0x1]
      %v6571 = vld [vmem:[%s798 + $0x24] sm:$0xe]
      %v6572 = vld [vmem:[%s798 + $0x28] sm:$0xf]
      %v6573 = vld [vmem:[%s798 + $0x2c] sm:$0x1]
      %v6574 = vld [vmem:[%s798 + $0x30] sm:$0xe]
      %v6575 = vld [vmem:[%s798 + $0x34] sm:$0xf]
      %v6576 = vld [vmem:[%s798 + $0x38] sm:$0x1]
      %v6577 = vld [vmem:[%s798 + $0x3c] sm:$0xe]
      %v6578 = vld [vmem:[%s798 + $0x40] sm:$0xf]
      %v6579 = vld [vmem:[%s798 + $0x44] sm:$0x1]
      %v6580 = vld [vmem:[%s798 + $0x48] sm:$0xe]
      %v6581 = vld [vmem:[%s798 + $0x4c] sm:$0xf]
      %v6582 = vld [vmem:[%s798 + $0x50] sm:$0x1]
      %v6583 = vld [vmem:[%s798 + $0x54] sm:$0xe]
      %v6584 = vld [vmem:[%s798 + $0x58] sm:$0xf]
      %v6585 = vld [vmem:[%s798 + $0x5c] sm:$0x1]
      %v6586 = vld [vmem:[%s798 + $0x60] sm:$0xe]
      %v6587 = vld [vmem:[%s798 + $0x64] sm:$0xf]
      %v6588 = vld [vmem:[%s798 + $0x68] sm:$0x1]
      %v6589 = vld [vmem:[%s798 + $0x6c] sm:$0xe]
      %v6590 = vld [vmem:[%s798 + $0x70] sm:$0xf]
      %v6591 = vld [vmem:[%s798 + $0x74] sm:$0x1]
      %v6592 = vld [vmem:[%s798 + $0x78] sm:$0xe]
      %v6593 = vld [vmem:[%s798 + $0x7c] sm:$0xf]
      %v6594 = vld [vmem:[%s798 + $0x80] sm:$0x1]
      %v6595 = vld [vmem:[%s798 + $0x84] sm:$0xe]
      %v6596 = vld [vmem:[%s798 + $0x88] sm:$0xf]
      %v6597 = vld [vmem:[%s798 + $0x8c] sm:$0x1]
      %v6598 = vld [vmem:[%s798 + $0x90] sm:$0xe]
      %v6599 = vld [vmem:[%s798 + $0x94] sm:$0xf]
      %v6600 = vld [vmem:[%s798 + $0x98] sm:$0x1]
      %v6601 = vld [vmem:[%s798 + $0x9c] sm:$0xe]
      %v6602 = vld [vmem:[%s798 + $0xa0] sm:$0xf]
      %v6603 = vld [vmem:[%s798 + $0xa4] sm:$0x1]
      %v6604 = vld [vmem:[%s798 + $0xa8] sm:$0xe]
      %v6605 = vld [vmem:[%s798 + $0xac] sm:$0xf]
      %v6606 = vld [vmem:[%s798 + $0xb0] sm:$0x1]
      %v6607 = vld [vmem:[%s798 + $0xb4] sm:$0xe]
      %v6608 = vld [vmem:[%s798 + $0xb8] sm:$0xf]
      %v6609 = vld [vmem:[%s798 + $0xbc] sm:$0x1]
      %v6658 = vrot.slane %v6562, 5
      %v6659 = vrot.slane %v6658, 4
      %v6660 = vrot.slane %v6563, 5
      %v6661 = vsel %vm1704, %v6659, %v6660
      %v6662 = vrot.slane %v6660, 4
      %v6663 = vrot.slane %v6564, 5
      %v6664 = vsel %vm1704, %v6662, %v6663
      %v6665 = vrot.slane %v6565, 5
      %v6666 = vrot.slane %v6665, 4
      %v6667 = vrot.slane %v6566, 5
      %v6668 = vsel %vm1704, %v6666, %v6667
      %v6669 = vrot.slane %v6667, 4
      %v6670 = vrot.slane %v6567, 5
      %v6671 = vsel %vm1704, %v6669, %v6670
      %v6672 = vrot.slane %v6568, 5
      %v6673 = vrot.slane %v6672, 4
      %v6674 = vrot.slane %v6569, 5
      %v6675 = vsel %vm1704, %v6673, %v6674
      %v6676 = vrot.slane %v6674, 4
      %v6677 = vrot.slane %v6570, 5
      %v6678 = vsel %vm1704, %v6676, %v6677
      %v6679 = vrot.slane %v6571, 5
      %v6680 = vrot.slane %v6679, 4
      %v6681 = vrot.slane %v6572, 5
      %v6682 = vsel %vm1704, %v6680, %v6681
      %v6683 = vrot.slane %v6681, 4
      %v6684 = vrot.slane %v6573, 5
      %v6685 = vsel %vm1704, %v6683, %v6684
      %v6686 = vrot.slane %v6574, 5
      %v6687 = vrot.slane %v6686, 4
      %v6688 = vrot.slane %v6575, 5
      %v6689 = vsel %vm1704, %v6687, %v6688
      %v6690 = vrot.slane %v6688, 4
      %v6691 = vrot.slane %v6576, 5
      %v6692 = vsel %vm1704, %v6690, %v6691
      %v6693 = vrot.slane %v6577, 5
      %v6694 = vrot.slane %v6693, 4
      %v6695 = vrot.slane %v6578, 5
      %v6696 = vsel %vm1704, %v6694, %v6695
      %v6697 = vrot.slane %v6695, 4
      %v6698 = vrot.slane %v6579, 5
      %v6699 = vsel %vm1704, %v6697, %v6698
      %v6700 = vrot.slane %v6580, 5
      %v6701 = vrot.slane %v6700, 4
      %v6702 = vrot.slane %v6581, 5
      %v6703 = vsel %vm1704, %v6701, %v6702
      %v6704 = vrot.slane %v6702, 4
      %v6705 = vrot.slane %v6582, 5
      %v6706 = vsel %vm1704, %v6704, %v6705
      %v6707 = vrot.slane %v6583, 5
      %v6708 = vrot.slane %v6707, 4
      %v6709 = vrot.slane %v6584, 5
      %v6710 = vsel %vm1704, %v6708, %v6709
      %v6711 = vrot.slane %v6709, 4
      %v6712 = vrot.slane %v6585, 5
      %v6713 = vsel %vm1704, %v6711, %v6712
      %v6714 = vrot.slane %v6586, 5
      %v6715 = vrot.slane %v6714, 4
      %v6716 = vrot.slane %v6587, 5
      %v6717 = vsel %vm1704, %v6715, %v6716
      %v6718 = vrot.slane %v6716, 4
      %v6719 = vrot.slane %v6588, 5
      %v6720 = vsel %vm1704, %v6718, %v6719
      %v6721 = vrot.slane %v6589, 5
      %v6722 = vrot.slane %v6721, 4
      %v6723 = vrot.slane %v6590, 5
      %v6724 = vsel %vm1704, %v6722, %v6723
      %v6725 = vrot.slane %v6723, 4
      %v6726 = vrot.slane %v6591, 5
      %v6727 = vsel %vm1704, %v6725, %v6726
      %v6728 = vrot.slane %v6592, 5
      %v6729 = vrot.slane %v6728, 4
      %v6730 = vrot.slane %v6593, 5
      %v6731 = vsel %vm1704, %v6729, %v6730
      %v6732 = vrot.slane %v6730, 4
      %v6733 = vrot.slane %v6594, 5
      %v6734 = vsel %vm1704, %v6732, %v6733
      %v6735 = vrot.slane %v6595, 5
      %v6736 = vrot.slane %v6735, 4
      %v6737 = vrot.slane %v6596, 5
      %v6738 = vsel %vm1704, %v6736, %v6737
      %v6739 = vrot.slane %v6737, 4
      %v6740 = vrot.slane %v6597, 5
      %v6741 = vsel %vm1704, %v6739, %v6740
      %v6742 = vrot.slane %v6598, 5
      %v6743 = vrot.slane %v6742, 4
      %v6744 = vrot.slane %v6599, 5
      %v6745 = vsel %vm1704, %v6743, %v6744
      %v6746 = vrot.slane %v6744, 4
      %v6747 = vrot.slane %v6600, 5
      %v6748 = vsel %vm1704, %v6746, %v6747
      %v6749 = vrot.slane %v6601, 5
      %v6750 = vrot.slane %v6749, 4
      %v6751 = vrot.slane %v6602, 5
      %v6752 = vsel %vm1704, %v6750, %v6751
      %v6753 = vrot.slane %v6751, 4
      %v6754 = vrot.slane %v6603, 5
      %v6755 = vsel %vm1704, %v6753, %v6754
      %v6756 = vrot.slane %v6604, 5
      %v6757 = vrot.slane %v6756, 4
      %v6758 = vrot.slane %v6605, 5
      %v6759 = vsel %vm1704, %v6757, %v6758
      %v6760 = vrot.slane %v6758, 4
      %v6761 = vrot.slane %v6606, 5
      %v6762 = vsel %vm1704, %v6760, %v6761
      %v6763 = vrot.slane %v6607, 5
      %v6764 = vrot.slane %v6763, 4
      %v6765 = vrot.slane %v6608, 5
      %v6766 = vsel %vm1704, %v6764, %v6765
      %v6767 = vrot.slane %v6765, 4
      %v6768 = vrot.slane %v6609, 5
      %v6769 = vsel %vm1704, %v6767, %v6768
      %v6770 = vunpack.c.l.b16 %v6661
      %v6771 = vunpack.c.l.b16 %v6664
      %v6772 = vunpack.c.l.b16 %v6668
      %v6773 = vunpack.c.l.b16 %v6671
      %v6774 = vunpack.c.l.b16 %v6675
      %v6775 = vunpack.c.l.b16 %v6678
      %v6776 = vunpack.c.l.b16 %v6682
      %v6777 = vunpack.c.l.b16 %v6685
      %v6778 = vunpack.c.l.b16 %v6689
      %v6779 = vunpack.c.l.b16 %v6692
      %v6780 = vunpack.c.l.b16 %v6696
      %v6781 = vunpack.c.l.b16 %v6699
      %v6782 = vunpack.c.l.b16 %v6703
      %v6783 = vunpack.c.l.b16 %v6706
      %v6784 = vunpack.c.l.b16 %v6710
      %v6785 = vunpack.c.l.b16 %v6713
      %v6786 = vunpack.c.l.b16 %v6717
      %v6787 = vunpack.c.l.b16 %v6720
      %v6788 = vunpack.c.l.b16 %v6724
      %v6789 = vunpack.c.l.b16 %v6727
      %v6790 = vunpack.c.l.b16 %v6731
      %v6791 = vunpack.c.l.b16 %v6734
      %v6792 = vunpack.c.l.b16 %v6738
      %v6793 = vunpack.c.l.b16 %v6741
      %v6794 = vunpack.c.l.b16 %v6745
      %v6795 = vunpack.c.l.b16 %v6748
      %v6796 = vunpack.c.l.b16 %v6752
      %v6797 = vunpack.c.l.b16 %v6755
      %v6798 = vunpack.c.l.b16 %v6759
      %v6799 = vunpack.c.l.b16 %v6762
      %v6800 = vunpack.c.l.b16 %v6766
      %v6801 = vunpack.c.l.b16 %v6769
      %v6802 = vpack.c.b16 %v6771, %v6770
      %v6803 = vpack.c.b16 %v6773, %v6772
      %v6804 = vpack.c.b16 %v6775, %v6774
      %v6805 = vpack.c.b16 %v6777, %v6776
      %v6806 = vpack.c.b16 %v6779, %v6778
      %v6807 = vpack.c.b16 %v6781, %v6780
      %v6808 = vpack.c.b16 %v6783, %v6782
      %v6809 = vpack.c.b16 %v6785, %v6784
      %v6810 = vpack.c.b16 %v6787, %v6786
      %v6811 = vpack.c.b16 %v6789, %v6788
      %v6812 = vpack.c.b16 %v6791, %v6790
      %v6813 = vpack.c.b16 %v6793, %v6792
      %v6814 = vpack.c.b16 %v6795, %v6794
      %v6815 = vpack.c.b16 %v6797, %v6796
      %v6816 = vpack.c.b16 %v6799, %v6798
      %v6817 = vpack.c.b16 %v6801, %v6800
      %6818 = vrot.lane.b32.xlu0 %v6802, 20
      %v6819 = vpop.permute.xlu0 %6818
      %6820 = vrot.lane.b32.xlu0 %v6803, 20
      %v6821 = vpop.permute.xlu0 %6820
      %6822 = vrot.lane.b32.xlu0 %v6804, 20
      %v6823 = vpop.permute.xlu0 %6822
      %6824 = vrot.lane.b32.xlu0 %v6805, 20
      %v6825 = vpop.permute.xlu0 %6824
      %6826 = vrot.lane.b32.xlu0 %v6806, 20
      %v6827 = vpop.permute.xlu0 %6826
      %6828 = vrot.lane.b32.xlu0 %v6807, 20
      %v6829 = vpop.permute.xlu0 %6828
      %6830 = vrot.lane.b32.xlu0 %v6808, 20
      %v6831 = vpop.permute.xlu0 %6830
      %6832 = vrot.lane.b32.xlu0 %v6809, 20
      %v6833 = vpop.permute.xlu0 %6832
      %6834 = vrot.lane.b32.xlu0 %v6810, 20
      %v6835 = vpop.permute.xlu0 %6834
      %6836 = vrot.lane.b32.xlu0 %v6811, 20
      %v6837 = vpop.permute.xlu0 %6836
      %6838 = vrot.lane.b32.xlu0 %v6812, 20
      %v6839 = vpop.permute.xlu0 %6838
      %6840 = vrot.lane.b32.xlu0 %v6813, 20
      %v6841 = vpop.permute.xlu0 %6840
      %6842 = vrot.lane.b32.xlu0 %v6814, 20
      %v6843 = vpop.permute.xlu0 %6842
      %6844 = vrot.lane.b32.xlu0 %v6815, 20
      %v6845 = vpop.permute.xlu0 %6844
      %6846 = vrot.lane.b32.xlu0 %v6816, 20
      %v6847 = vpop.permute.xlu0 %6846
      %6848 = vrot.lane.b32.xlu0 %v6817, 20
      %v6849 = vpop.permute.xlu0 %6848
      %6866 = vst.msk [vmem:[#allocation3] sm:$0xff] %vm2956, %v6819
      %6867 = vst.msk [vmem:[#allocation3 + $0x8] sm:$0xff] %vm2956, %v6821
      %6868 = vst.msk [vmem:[#allocation3 + $0x10] sm:$0xff] %vm2956, %v6823
      %6869 = vst.msk [vmem:[#allocation3 + $0x18] sm:$0xff] %vm2956, %v6825
      %6870 = vst.msk [vmem:[#allocation3 + $0x20] sm:$0xff] %vm2956, %v6827
      %6871 = vst.msk [vmem:[#allocation3 + $0x28] sm:$0xff] %vm2956, %v6829
      %6872 = vst.msk [vmem:[#allocation3 + $0x30] sm:$0xff] %vm2956, %v6831
      %6873 = vst.msk [vmem:[#allocation3 + $0x38] sm:$0xff] %vm2956, %v6833
      %6874 = vst.msk [vmem:[#allocation3 + $0x40] sm:$0xff] %vm2956, %v6835
      %6875 = vst.msk [vmem:[#allocation3 + $0x48] sm:$0xff] %vm2956, %v6837
      %6876 = vst.msk [vmem:[#allocation3 + $0x50] sm:$0xff] %vm2956, %v6839
      %6877 = vst.msk [vmem:[#allocation3 + $0x58] sm:$0xff] %vm2956, %v6841
      %6878 = vst.msk [vmem:[#allocation3 + $0x60] sm:$0xff] %vm2956, %v6843
      %6879 = vst.msk [vmem:[#allocation3 + $0x68] sm:$0xff] %vm2956, %v6845
      %6880 = vst.msk [vmem:[#allocation3 + $0x70] sm:$0xff] %vm2956, %v6847
      %6881 = vst.msk [vmem:[#allocation3 + $0x78] sm:$0xff] %vm2956, %v6849
      %v6882 = vld [vmem:[%s2973] sm:$0xf]
      %v6883 = vld [vmem:[%s2973 + $0x4] sm:$0xf]
      %v6884 = vld [vmem:[%s2973 + $0xc] sm:$0xf]
      %v6885 = vld [vmem:[%s2973 + $0x10] sm:$0xf]
      %v6886 = vld [vmem:[%s2973 + $0x18] sm:$0xf]
      %v6887 = vld [vmem:[%s2973 + $0x1c] sm:$0xf]
      %v6888 = vld [vmem:[%s2973 + $0x24] sm:$0xf]
      %v6889 = vld [vmem:[%s2973 + $0x28] sm:$0xf]
      %v6890 = vld [vmem:[%s2973 + $0x30] sm:$0xf]
      %v6891 = vld [vmem:[%s2973 + $0x34] sm:$0xf]
      %v6892 = vld [vmem:[%s2973 + $0x3c] sm:$0xf]
      %v6893 = vld [vmem:[%s2973 + $0x40] sm:$0xf]
      %v6894 = vld [vmem:[%s2973 + $0x48] sm:$0xf]
      %v6895 = vld [vmem:[%s2973 + $0x4c] sm:$0xf]
      %v6896 = vld [vmem:[%s2973 + $0x54] sm:$0xf]
      %v6897 = vld [vmem:[%s2973 + $0x58] sm:$0xf]
      %v6898 = vld [vmem:[%s2973 + $0x60] sm:$0xf]
      %v6899 = vld [vmem:[%s2973 + $0x64] sm:$0xf]
      %v6900 = vld [vmem:[%s2973 + $0x6c] sm:$0xf]
      %v6901 = vld [vmem:[%s2973 + $0x70] sm:$0xf]
      %v6902 = vld [vmem:[%s2973 + $0x78] sm:$0xf]
      %v6903 = vld [vmem:[%s2973 + $0x7c] sm:$0xf]
      %v6904 = vld [vmem:[%s2973 + $0x84] sm:$0xf]
      %v6905 = vld [vmem:[%s2973 + $0x88] sm:$0xf]
      %v6906 = vld [vmem:[%s2973 + $0x90] sm:$0xf]
      %v6907 = vld [vmem:[%s2973 + $0x94] sm:$0xf]
      %v6908 = vld [vmem:[%s2973 + $0x9c] sm:$0xf]
      %v6909 = vld [vmem:[%s2973 + $0xa0] sm:$0xf]
      %v6910 = vld [vmem:[%s2973 + $0xa8] sm:$0xf]
      %v6911 = vld [vmem:[%s2973 + $0xac] sm:$0xf]
      %v6912 = vld [vmem:[%s2973 + $0xb4] sm:$0xf]
      %v6913 = vld [vmem:[%s2973 + $0xb8] sm:$0xf]
      %v6946 = vunpack.c.l.b16 %v6882
      %v6947 = vunpack.c.l.b16 %v6883
      %v6948 = vunpack.c.l.b16 %v6884
      %v6949 = vunpack.c.l.b16 %v6885
      %v6950 = vunpack.c.l.b16 %v6886
      %v6951 = vunpack.c.l.b16 %v6887
      %v6952 = vunpack.c.l.b16 %v6888
      %v6953 = vunpack.c.l.b16 %v6889
      %v6954 = vunpack.c.l.b16 %v6890
      %v6955 = vunpack.c.l.b16 %v6891
      %v6956 = vunpack.c.l.b16 %v6892
      %v6957 = vunpack.c.l.b16 %v6893
      %v6958 = vunpack.c.l.b16 %v6894
      %v6959 = vunpack.c.l.b16 %v6895
      %v6960 = vunpack.c.l.b16 %v6896
      %v6961 = vunpack.c.l.b16 %v6897
      %v6962 = vunpack.c.l.b16 %v6898
      %v6963 = vunpack.c.l.b16 %v6899
      %v6964 = vunpack.c.l.b16 %v6900
      %v6965 = vunpack.c.l.b16 %v6901
      %v6966 = vunpack.c.l.b16 %v6902
      %v6967 = vunpack.c.l.b16 %v6903
      %v6968 = vunpack.c.l.b16 %v6904
      %v6969 = vunpack.c.l.b16 %v6905
      %v6970 = vunpack.c.l.b16 %v6906
      %v6971 = vunpack.c.l.b16 %v6907
      %v6972 = vunpack.c.l.b16 %v6908
      %v6973 = vunpack.c.l.b16 %v6909
      %v6974 = vunpack.c.l.b16 %v6910
      %v6975 = vunpack.c.l.b16 %v6911
      %v6976 = vunpack.c.l.b16 %v6912
      %v6977 = vunpack.c.l.b16 %v6913
      %v6978 = vpack.c.b16 %v6947, %v6946
      %v6979 = vpack.c.b16 %v6949, %v6948
      %v6980 = vpack.c.b16 %v6951, %v6950
      %v6981 = vpack.c.b16 %v6953, %v6952
      %v6982 = vpack.c.b16 %v6955, %v6954
      %v6983 = vpack.c.b16 %v6957, %v6956
      %v6984 = vpack.c.b16 %v6959, %v6958
      %v6985 = vpack.c.b16 %v6961, %v6960
      %v6986 = vpack.c.b16 %v6963, %v6962
      %v6987 = vpack.c.b16 %v6965, %v6964
      %v6988 = vpack.c.b16 %v6967, %v6966
      %v6989 = vpack.c.b16 %v6969, %v6968
      %v6990 = vpack.c.b16 %v6971, %v6970
      %v6991 = vpack.c.b16 %v6973, %v6972
      %v6992 = vpack.c.b16 %v6975, %v6974
      %v6993 = vpack.c.b16 %v6977, %v6976
      %6994 = vrot.lane.b32.xlu0 %v6978, 24
      %v6995 = vpop.permute.xlu0 %6994
      %6996 = vrot.lane.b32.xlu0 %v6979, 24
      %v6997 = vpop.permute.xlu0 %6996
      %6998 = vrot.lane.b32.xlu0 %v6980, 24
      %v6999 = vpop.permute.xlu0 %6998
      %7000 = vrot.lane.b32.xlu0 %v6981, 24
      %v7001 = vpop.permute.xlu0 %7000
      %7002 = vrot.lane.b32.xlu0 %v6982, 24
      %v7003 = vpop.permute.xlu0 %7002
      %7004 = vrot.lane.b32.xlu0 %v6983, 24
      %v7005 = vpop.permute.xlu0 %7004
      %7006 = vrot.lane.b32.xlu0 %v6984, 24
      %v7007 = vpop.permute.xlu0 %7006
      %7008 = vrot.lane.b32.xlu0 %v6985, 24
      %v7009 = vpop.permute.xlu0 %7008
      %7010 = vrot.lane.b32.xlu0 %v6986, 24
      %v7011 = vpop.permute.xlu0 %7010
      %7012 = vrot.lane.b32.xlu0 %v6987, 24
      %v7013 = vpop.permute.xlu0 %7012
      %7014 = vrot.lane.b32.xlu0 %v6988, 24
      %v7015 = vpop.permute.xlu0 %7014
      %7016 = vrot.lane.b32.xlu0 %v6989, 24
      %v7017 = vpop.permute.xlu0 %7016
      %7018 = vrot.lane.b32.xlu0 %v6990, 24
      %v7019 = vpop.permute.xlu0 %7018
      %7020 = vrot.lane.b32.xlu0 %v6991, 24
      %v7021 = vpop.permute.xlu0 %7020
      %7022 = vrot.lane.b32.xlu0 %v6992, 24
      %v7023 = vpop.permute.xlu0 %7022
      %7024 = vrot.lane.b32.xlu0 %v6993, 24
      %v7025 = vpop.permute.xlu0 %7024
      %7042 = vst.msk [vmem:[#allocation3] sm:$0xff] %vm3134, %v6995
      %7043 = vst.msk [vmem:[#allocation3 + $0x8] sm:$0xff] %vm3134, %v6997
      %7044 = vst.msk [vmem:[#allocation3 + $0x10] sm:$0xff] %vm3134, %v6999
      %7045 = vst.msk [vmem:[#allocation3 + $0x18] sm:$0xff] %vm3134, %v7001
      %7046 = vst.msk [vmem:[#allocation3 + $0x20] sm:$0xff] %vm3134, %v7003
      %7047 = vst.msk [vmem:[#allocation3 + $0x28] sm:$0xff] %vm3134, %v7005
      %7048 = vst.msk [vmem:[#allocation3 + $0x30] sm:$0xff] %vm3134, %v7007
      %7049 = vst.msk [vmem:[#allocation3 + $0x38] sm:$0xff] %vm3134, %v7009
      %7050 = vst.msk [vmem:[#allocation3 + $0x40] sm:$0xff] %vm3134, %v7011
      %7051 = vst.msk [vmem:[#allocation3 + $0x48] sm:$0xff] %vm3134, %v7013
      %7052 = vst.msk [vmem:[#allocation3 + $0x50] sm:$0xff] %vm3134, %v7015
      %7053 = vst.msk [vmem:[#allocation3 + $0x58] sm:$0xff] %vm3134, %v7017
      %7054 = vst.msk [vmem:[#allocation3 + $0x60] sm:$0xff] %vm3134, %v7019
      %7055 = vst.msk [vmem:[#allocation3 + $0x68] sm:$0xff] %vm3134, %v7021
      %7056 = vst.msk [vmem:[#allocation3 + $0x70] sm:$0xff] %vm3134, %v7023
      %7057 = vst.msk [vmem:[#allocation3 + $0x78] sm:$0xff] %vm3134, %v7025
      %v7058 = vld [vmem:[%s2973] sm:$0xf]
      %v7059 = vld [vmem:[%s2973 + $0x4] sm:$0xf]
      %v7060 = vld [vmem:[%s2973 + $0x8] sm:$0x1]
      %v7061 = vld [vmem:[%s2973 + $0xc] sm:$0xf]
      %v7062 = vld [vmem:[%s2973 + $0x10] sm:$0xf]
      %v7063 = vld [vmem:[%s2973 + $0x14] sm:$0x1]
      %v7064 = vld [vmem:[%s2973 + $0x18] sm:$0xf]
      %v7065 = vld [vmem:[%s2973 + $0x1c] sm:$0xf]
      %v7066 = vld [vmem:[%s2973 + $0x20] sm:$0x1]
      %v7067 = vld [vmem:[%s2973 + $0x24] sm:$0xf]
      %v7068 = vld [vmem:[%s2973 + $0x28] sm:$0xf]
      %v7069 = vld [vmem:[%s2973 + $0x2c] sm:$0x1]
      %v7070 = vld [vmem:[%s2973 + $0x30] sm:$0xf]
      %v7071 = vld [vmem:[%s2973 + $0x34] sm:$0xf]
      %v7072 = vld [vmem:[%s2973 + $0x38] sm:$0x1]
      %v7073 = vld [vmem:[%s2973 + $0x3c] sm:$0xf]
      %v7074 = vld [vmem:[%s2973 + $0x40] sm:$0xf]
      %v7075 = vld [vmem:[%s2973 + $0x44] sm:$0x1]
      %v7076 = vld [vmem:[%s2973 + $0x48] sm:$0xf]
      %v7077 = vld [vmem:[%s2973 + $0x4c] sm:$0xf]
      %v7078 = vld [vmem:[%s2973 + $0x50] sm:$0x1]
      %v7079 = vld [vmem:[%s2973 + $0x54] sm:$0xf]
      %v7080 = vld [vmem:[%s2973 + $0x58] sm:$0xf]
      %v7081 = vld [vmem:[%s2973 + $0x5c] sm:$0x1]
      %v7082 = vld [vmem:[%s2973 + $0x60] sm:$0xf]
      %v7083 = vld [vmem:[%s2973 + $0x64] sm:$0xf]
      %v7084 = vld [vmem:[%s2973 + $0x68] sm:$0x1]
      %v7085 = vld [vmem:[%s2973 + $0x6c] sm:$0xf]
      %v7086 = vld [vmem:[%s2973 + $0x70] sm:$0xf]
      %v7087 = vld [vmem:[%s2973 + $0x74] sm:$0x1]
      %v7088 = vld [vmem:[%s2973 + $0x78] sm:$0xf]
      %v7089 = vld [vmem:[%s2973 + $0x7c] sm:$0xf]
      %v7090 = vld [vmem:[%s2973 + $0x80] sm:$0x1]
      %v7091 = vld [vmem:[%s2973 + $0x84] sm:$0xf]
      %v7092 = vld [vmem:[%s2973 + $0x88] sm:$0xf]
      %v7093 = vld [vmem:[%s2973 + $0x8c] sm:$0x1]
      %v7094 = vld [vmem:[%s2973 + $0x90] sm:$0xf]
      %v7095 = vld [vmem:[%s2973 + $0x94] sm:$0xf]
      %v7096 = vld [vmem:[%s2973 + $0x98] sm:$0x1]
      %v7097 = vld [vmem:[%s2973 + $0x9c] sm:$0xf]
      %v7098 = vld [vmem:[%s2973 + $0xa0] sm:$0xf]
      %v7099 = vld [vmem:[%s2973 + $0xa4] sm:$0x1]
      %v7100 = vld [vmem:[%s2973 + $0xa8] sm:$0xf]
      %v7101 = vld [vmem:[%s2973 + $0xac] sm:$0xf]
      %v7102 = vld [vmem:[%s2973 + $0xb0] sm:$0x1]
      %v7103 = vld [vmem:[%s2973 + $0xb4] sm:$0xf]
      %v7104 = vld [vmem:[%s2973 + $0xb8] sm:$0xf]
      %v7105 = vld [vmem:[%s2973 + $0xbc] sm:$0x1]
      %v7107 = vshrl.u32 %v7058, 16
      %v7109 = vrot.slane %v7107, 4
      %v7110 = vshll.u32 %v7058, 16
      %v7112 = vrot.slane %v7110, 5
      %v7113 = vor.u32 %v7109, %v7112
      %v7114 = vrot.slane %v7113, 4
      %v7116 = vshll.u32 %v7059, 16
      %v7118 = vrot.slane %v7116, 5
      %v7119 = vsel %vm1108, %v7114, %v7118
      %v7120 = vshrl.u32 %v7059, 16
      %v7122 = vrot.slane %v7120, 4
      %v7123 = vor.u32 %v7122, %v7118
      %v7124 = vrot.slane %v7123, 4
      %v7126 = vshll.u32 %v7060, 16
      %v7128 = vrot.slane %v7126, 5
      %v7129 = vsel %vm1108, %v7124, %v7128
      %v7131 = vshrl.u32 %v7061, 16
      %v7133 = vrot.slane %v7131, 4
      %v7134 = vshll.u32 %v7061, 16
      %v7136 = vrot.slane %v7134, 5
      %v7137 = vor.u32 %v7133, %v7136
      %v7138 = vrot.slane %v7137, 4
      %v7140 = vshll.u32 %v7062, 16
      %v7142 = vrot.slane %v7140, 5
      %v7143 = vsel %vm1108, %v7138, %v7142
      %v7144 = vshrl.u32 %v7062, 16
      %v7146 = vrot.slane %v7144, 4
      %v7147 = vor.u32 %v7146, %v7142
      %v7148 = vrot.slane %v7147, 4
      %v7150 = vshll.u32 %v7063, 16
      %v7152 = vrot.slane %v7150, 5
      %v7153 = vsel %vm1108, %v7148, %v7152
      %v7155 = vshrl.u32 %v7064, 16
      %v7157 = vrot.slane %v7155, 4
      %v7158 = vshll.u32 %v7064, 16
      %v7160 = vrot.slane %v7158, 5
      %v7161 = vor.u32 %v7157, %v7160
      %v7162 = vrot.slane %v7161, 4
      %v7164 = vshll.u32 %v7065, 16
      %v7166 = vrot.slane %v7164, 5
      %v7167 = vsel %vm1108, %v7162, %v7166
      %v7168 = vshrl.u32 %v7065, 16
      %v7170 = vrot.slane %v7168, 4
      %v7171 = vor.u32 %v7170, %v7166
      %v7172 = vrot.slane %v7171, 4
      %v7174 = vshll.u32 %v7066, 16
      %v7176 = vrot.slane %v7174, 5
      %v7177 = vsel %vm1108, %v7172, %v7176
      %v7179 = vshrl.u32 %v7067, 16
      %v7181 = vrot.slane %v7179, 4
      %v7182 = vshll.u32 %v7067, 16
      %v7184 = vrot.slane %v7182, 5
      %v7185 = vor.u32 %v7181, %v7184
      %v7186 = vrot.slane %v7185, 4
      %v7188 = vshll.u32 %v7068, 16
      %v7190 = vrot.slane %v7188, 5
      %v7191 = vsel %vm1108, %v7186, %v7190
      %v7192 = vshrl.u32 %v7068, 16
      %v7194 = vrot.slane %v7192, 4
      %v7195 = vor.u32 %v7194, %v7190
      %v7196 = vrot.slane %v7195, 4
      %v7198 = vshll.u32 %v7069, 16
      %v7200 = vrot.slane %v7198, 5
      %v7201 = vsel %vm1108, %v7196, %v7200
      %v7203 = vshrl.u32 %v7070, 16
      %v7205 = vrot.slane %v7203, 4
      %v7206 = vshll.u32 %v7070, 16
      %v7208 = vrot.slane %v7206, 5
      %v7209 = vor.u32 %v7205, %v7208
      %v7210 = vrot.slane %v7209, 4
      %v7212 = vshll.u32 %v7071, 16
      %v7214 = vrot.slane %v7212, 5
      %v7215 = vsel %vm1108, %v7210, %v7214
      %v7216 = vshrl.u32 %v7071, 16
      %v7218 = vrot.slane %v7216, 4
      %v7219 = vor.u32 %v7218, %v7214
      %v7220 = vrot.slane %v7219, 4
      %v7222 = vshll.u32 %v7072, 16
      %v7224 = vrot.slane %v7222, 5
      %v7225 = vsel %vm1108, %v7220, %v7224
      %v7227 = vshrl.u32 %v7073, 16
      %v7229 = vrot.slane %v7227, 4
      %v7230 = vshll.u32 %v7073, 16
      %v7232 = vrot.slane %v7230, 5
      %v7233 = vor.u32 %v7229, %v7232
      %v7234 = vrot.slane %v7233, 4
      %v7236 = vshll.u32 %v7074, 16
      %v7238 = vrot.slane %v7236, 5
      %v7239 = vsel %vm1108, %v7234, %v7238
      %v7240 = vshrl.u32 %v7074, 16
      %v7242 = vrot.slane %v7240, 4
      %v7243 = vor.u32 %v7242, %v7238
      %v7244 = vrot.slane %v7243, 4
      %v7246 = vshll.u32 %v7075, 16
      %v7248 = vrot.slane %v7246, 5
      %v7249 = vsel %vm1108, %v7244, %v7248
      %v7251 = vshrl.u32 %v7076, 16
      %v7253 = vrot.slane %v7251, 4
      %v7254 = vshll.u32 %v7076, 16
      %v7256 = vrot.slane %v7254, 5
      %v7257 = vor.u32 %v7253, %v7256
      %v7258 = vrot.slane %v7257, 4
      %v7260 = vshll.u32 %v7077, 16
      %v7262 = vrot.slane %v7260, 5
      %v7263 = vsel %vm1108, %v7258, %v7262
      %v7264 = vshrl.u32 %v7077, 16
      %v7266 = vrot.slane %v7264, 4
      %v7267 = vor.u32 %v7266, %v7262
      %v7268 = vrot.slane %v7267, 4
      %v7270 = vshll.u32 %v7078, 16
      %v7272 = vrot.slane %v7270, 5
      %v7273 = vsel %vm1108, %v7268, %v7272
      %v7275 = vshrl.u32 %v7079, 16
      %v7277 = vrot.slane %v7275, 4
      %v7278 = vshll.u32 %v7079, 16
      %v7280 = vrot.slane %v7278, 5
      %v7281 = vor.u32 %v7277, %v7280
      %v7282 = vrot.slane %v7281, 4
      %v7284 = vshll.u32 %v7080, 16
      %v7286 = vrot.slane %v7284, 5
      %v7287 = vsel %vm1108, %v7282, %v7286
      %v7288 = vshrl.u32 %v7080, 16
      %v7290 = vrot.slane %v7288, 4
      %v7291 = vor.u32 %v7290, %v7286
      %v7292 = vrot.slane %v7291, 4
      %v7294 = vshll.u32 %v7081, 16
      %v7296 = vrot.slane %v7294, 5
      %v7297 = vsel %vm1108, %v7292, %v7296
      %v7299 = vshrl.u32 %v7082, 16
      %v7301 = vrot.slane %v7299, 4
      %v7302 = vshll.u32 %v7082, 16
      %v7304 = vrot.slane %v7302, 5
      %v7305 = vor.u32 %v7301, %v7304
      %v7306 = vrot.slane %v7305, 4
      %v7308 = vshll.u32 %v7083, 16
      %v7310 = vrot.slane %v7308, 5
      %v7311 = vsel %vm1108, %v7306, %v7310
      %v7312 = vshrl.u32 %v7083, 16
      %v7314 = vrot.slane %v7312, 4
      %v7315 = vor.u32 %v7314, %v7310
      %v7316 = vrot.slane %v7315, 4
      %v7318 = vshll.u32 %v7084, 16
      %v7320 = vrot.slane %v7318, 5
      %v7321 = vsel %vm1108, %v7316, %v7320
      %v7323 = vshrl.u32 %v7085, 16
      %v7325 = vrot.slane %v7323, 4
      %v7326 = vshll.u32 %v7085, 16
      %v7328 = vrot.slane %v7326, 5
      %v7329 = vor.u32 %v7325, %v7328
      %v7330 = vrot.slane %v7329, 4
      %v7332 = vshll.u32 %v7086, 16
      %v7334 = vrot.slane %v7332, 5
      %v7335 = vsel %vm1108, %v7330, %v7334
      %v7336 = vshrl.u32 %v7086, 16
      %v7338 = vrot.slane %v7336, 4
      %v7339 = vor.u32 %v7338, %v7334
      %v7340 = vrot.slane %v7339, 4
      %v7342 = vshll.u32 %v7087, 16
      %v7344 = vrot.slane %v7342, 5
      %v7345 = vsel %vm1108, %v7340, %v7344
      %v7347 = vshrl.u32 %v7088, 16
      %v7349 = vrot.slane %v7347, 4
      %v7350 = vshll.u32 %v7088, 16
      %v7352 = vrot.slane %v7350, 5
      %v7353 = vor.u32 %v7349, %v7352
      %v7354 = vrot.slane %v7353, 4
      %v7356 = vshll.u32 %v7089, 16
      %v7358 = vrot.slane %v7356, 5
      %v7359 = vsel %vm1108, %v7354, %v7358
      %v7360 = vshrl.u32 %v7089, 16
      %v7362 = vrot.slane %v7360, 4
      %v7363 = vor.u32 %v7362, %v7358
      %v7364 = vrot.slane %v7363, 4
      %v7366 = vshll.u32 %v7090, 16
      %v7368 = vrot.slane %v7366, 5
      %v7369 = vsel %vm1108, %v7364, %v7368
      %v7371 = vshrl.u32 %v7091, 16
      %v7373 = vrot.slane %v7371, 4
      %v7374 = vshll.u32 %v7091, 16
      %v7376 = vrot.slane %v7374, 5
      %v7377 = vor.u32 %v7373, %v7376
      %v7378 = vrot.slane %v7377, 4
      %v7380 = vshll.u32 %v7092, 16
      %v7382 = vrot.slane %v7380, 5
      %v7383 = vsel %vm1108, %v7378, %v7382
      %v7384 = vshrl.u32 %v7092, 16
      %v7386 = vrot.slane %v7384, 4
      %v7387 = vor.u32 %v7386, %v7382
      %v7388 = vrot.slane %v7387, 4
      %v7390 = vshll.u32 %v7093, 16
      %v7392 = vrot.slane %v7390, 5
      %v7393 = vsel %vm1108, %v7388, %v7392
      %v7395 = vshrl.u32 %v7094, 16
      %v7397 = vrot.slane %v7395, 4
      %v7398 = vshll.u32 %v7094, 16
      %v7400 = vrot.slane %v7398, 5
      %v7401 = vor.u32 %v7397, %v7400
      %v7402 = vrot.slane %v7401, 4
      %v7404 = vshll.u32 %v7095, 16
      %v7406 = vrot.slane %v7404, 5
      %v7407 = vsel %vm1108, %v7402, %v7406
      %v7408 = vshrl.u32 %v7095, 16
      %v7410 = vrot.slane %v7408, 4
      %v7411 = vor.u32 %v7410, %v7406
      %v7412 = vrot.slane %v7411, 4
      %v7414 = vshll.u32 %v7096, 16
      %v7416 = vrot.slane %v7414, 5
      %v7417 = vsel %vm1108, %v7412, %v7416
      %v7419 = vshrl.u32 %v7097, 16
      %v7421 = vrot.slane %v7419, 4
      %v7422 = vshll.u32 %v7097, 16
      %v7424 = vrot.slane %v7422, 5
      %v7425 = vor.u32 %v7421, %v7424
      %v7426 = vrot.slane %v7425, 4
      %v7428 = vshll.u32 %v7098, 16
      %v7430 = vrot.slane %v7428, 5
      %v7431 = vsel %vm1108, %v7426, %v7430
      %v7432 = vshrl.u32 %v7098, 16
      %v7434 = vrot.slane %v7432, 4
      %v7435 = vor.u32 %v7434, %v7430
      %v7436 = vrot.slane %v7435, 4
      %v7438 = vshll.u32 %v7099, 16
      %v7440 = vrot.slane %v7438, 5
      %v7441 = vsel %vm1108, %v7436, %v7440
      %v7443 = vshrl.u32 %v7100, 16
      %v7445 = vrot.slane %v7443, 4
      %v7446 = vshll.u32 %v7100, 16
      %v7448 = vrot.slane %v7446, 5
      %v7449 = vor.u32 %v7445, %v7448
      %v7450 = vrot.slane %v7449, 4
      %v7452 = vshll.u32 %v7101, 16
      %v7454 = vrot.slane %v7452, 5
      %v7455 = vsel %vm1108, %v7450, %v7454
      %v7456 = vshrl.u32 %v7101, 16
      %v7458 = vrot.slane %v7456, 4
      %v7459 = vor.u32 %v7458, %v7454
      %v7460 = vrot.slane %v7459, 4
      %v7462 = vshll.u32 %v7102, 16
      %v7464 = vrot.slane %v7462, 5
      %v7465 = vsel %vm1108, %v7460, %v7464
      %v7467 = vshrl.u32 %v7103, 16
      %v7469 = vrot.slane %v7467, 4
      %v7470 = vshll.u32 %v7103, 16
      %v7472 = vrot.slane %v7470, 5
      %v7473 = vor.u32 %v7469, %v7472
      %v7474 = vrot.slane %v7473, 4
      %v7476 = vshll.u32 %v7104, 16
      %v7478 = vrot.slane %v7476, 5
      %v7479 = vsel %vm1108, %v7474, %v7478
      %v7480 = vshrl.u32 %v7104, 16
      %v7482 = vrot.slane %v7480, 4
      %v7483 = vor.u32 %v7482, %v7478
      %v7484 = vrot.slane %v7483, 4
      %v7486 = vshll.u32 %v7105, 16
      %v7488 = vrot.slane %v7486, 5
      %v7489 = vsel %vm1108, %v7484, %v7488
      %v7490 = vunpack.c.l.b16 %v7119
      %v7491 = vunpack.c.l.b16 %v7129
      %v7492 = vunpack.c.l.b16 %v7143
      %v7493 = vunpack.c.l.b16 %v7153
      %v7494 = vunpack.c.l.b16 %v7167
      %v7495 = vunpack.c.l.b16 %v7177
      %v7496 = vunpack.c.l.b16 %v7191
      %v7497 = vunpack.c.l.b16 %v7201
      %v7498 = vunpack.c.l.b16 %v7215
      %v7499 = vunpack.c.l.b16 %v7225
      %v7500 = vunpack.c.l.b16 %v7239
      %v7501 = vunpack.c.l.b16 %v7249
      %v7502 = vunpack.c.l.b16 %v7263
      %v7503 = vunpack.c.l.b16 %v7273
      %v7504 = vunpack.c.l.b16 %v7287
      %v7505 = vunpack.c.l.b16 %v7297
      %v7506 = vunpack.c.l.b16 %v7311
      %v7507 = vunpack.c.l.b16 %v7321
      %v7508 = vunpack.c.l.b16 %v7335
      %v7509 = vunpack.c.l.b16 %v7345
      %v7510 = vunpack.c.l.b16 %v7359
      %v7511 = vunpack.c.l.b16 %v7369
      %v7512 = vunpack.c.l.b16 %v7383
      %v7513 = vunpack.c.l.b16 %v7393
      %v7514 = vunpack.c.l.b16 %v7407
      %v7515 = vunpack.c.l.b16 %v7417
      %v7516 = vunpack.c.l.b16 %v7431
      %v7517 = vunpack.c.l.b16 %v7441
      %v7518 = vunpack.c.l.b16 %v7455
      %v7519 = vunpack.c.l.b16 %v7465
      %v7520 = vunpack.c.l.b16 %v7479
      %v7521 = vunpack.c.l.b16 %v7489
      %v7522 = vpack.c.b16 %v7491, %v7490
      %v7523 = vpack.c.b16 %v7493, %v7492
      %v7524 = vpack.c.b16 %v7495, %v7494
      %v7525 = vpack.c.b16 %v7497, %v7496
      %v7526 = vpack.c.b16 %v7499, %v7498
      %v7527 = vpack.c.b16 %v7501, %v7500
      %v7528 = vpack.c.b16 %v7503, %v7502
      %v7529 = vpack.c.b16 %v7505, %v7504
      %v7530 = vpack.c.b16 %v7507, %v7506
      %v7531 = vpack.c.b16 %v7509, %v7508
      %v7532 = vpack.c.b16 %v7511, %v7510
      %v7533 = vpack.c.b16 %v7513, %v7512
      %v7534 = vpack.c.b16 %v7515, %v7514
      %v7535 = vpack.c.b16 %v7517, %v7516
      %v7536 = vpack.c.b16 %v7519, %v7518
      %v7537 = vpack.c.b16 %v7521, %v7520
      %7538 = vrot.lane.b32.xlu0 %v7522, 28
      %v7539 = vpop.permute.xlu0 %7538
      %7540 = vrot.lane.b32.xlu0 %v7523, 28
      %v7541 = vpop.permute.xlu0 %7540
      %7542 = vrot.lane.b32.xlu0 %v7524, 28
      %v7543 = vpop.permute.xlu0 %7542
      %7544 = vrot.lane.b32.xlu0 %v7525, 28
      %v7545 = vpop.permute.xlu0 %7544
      %7546 = vrot.lane.b32.xlu0 %v7526, 28
      %v7547 = vpop.permute.xlu0 %7546
      %7548 = vrot.lane.b32.xlu0 %v7527, 28
      %v7549 = vpop.permute.xlu0 %7548
      %7550 = vrot.lane.b32.xlu0 %v7528, 28
      %v7551 = vpop.permute.xlu0 %7550
      %7552 = vrot.lane.b32.xlu0 %v7529, 28
      %v7553 = vpop.permute.xlu0 %7552
      %7554 = vrot.lane.b32.xlu0 %v7530, 28
      %v7555 = vpop.permute.xlu0 %7554
      %7556 = vrot.lane.b32.xlu0 %v7531, 28
      %v7557 = vpop.permute.xlu0 %7556
      %7558 = vrot.lane.b32.xlu0 %v7532, 28
      %v7559 = vpop.permute.xlu0 %7558
      %7560 = vrot.lane.b32.xlu0 %v7533, 28
      %v7561 = vpop.permute.xlu0 %7560
      %7562 = vrot.lane.b32.xlu0 %v7534, 28
      %v7563 = vpop.permute.xlu0 %7562
      %7564 = vrot.lane.b32.xlu0 %v7535, 28
      %v7565 = vpop.permute.xlu0 %7564
      %7566 = vrot.lane.b32.xlu0 %v7536, 28
      %v7567 = vpop.permute.xlu0 %7566
      %7568 = vrot.lane.b32.xlu0 %v7537, 28
      %v7569 = vpop.permute.xlu0 %7568
      %7586 = vst.msk [vmem:[#allocation3] sm:$0xff] %vm3679, %v7539
      %7587 = vst.msk [vmem:[#allocation3 + $0x8] sm:$0xff] %vm3679, %v7541
      %7588 = vst.msk [vmem:[#allocation3 + $0x10] sm:$0xff] %vm3679, %v7543
      %7589 = vst.msk [vmem:[#allocation3 + $0x18] sm:$0xff] %vm3679, %v7545
      %7590 = vst.msk [vmem:[#allocation3 + $0x20] sm:$0xff] %vm3679, %v7547
      %7591 = vst.msk [vmem:[#allocation3 + $0x28] sm:$0xff] %vm3679, %v7549
      %7592 = vst.msk [vmem:[#allocation3 + $0x30] sm:$0xff] %vm3679, %v7551
      %7593 = vst.msk [vmem:[#allocation3 + $0x38] sm:$0xff] %vm3679, %v7553
      %7594 = vst.msk [vmem:[#allocation3 + $0x40] sm:$0xff] %vm3679, %v7555
      %7595 = vst.msk [vmem:[#allocation3 + $0x48] sm:$0xff] %vm3679, %v7557
      %7596 = vst.msk [vmem:[#allocation3 + $0x50] sm:$0xff] %vm3679, %v7559
      %7597 = vst.msk [vmem:[#allocation3 + $0x58] sm:$0xff] %vm3679, %v7561
      %7598 = vst.msk [vmem:[#allocation3 + $0x60] sm:$0xff] %vm3679, %v7563
      %7599 = vst.msk [vmem:[#allocation3 + $0x68] sm:$0xff] %vm3679, %v7565
      %7600 = vst.msk [vmem:[#allocation3 + $0x70] sm:$0xff] %vm3679, %v7567
      %7601 = vst.msk [vmem:[#allocation3 + $0x78] sm:$0xff] %vm3679, %v7569
      %v7602 = vld [vmem:[%s2973] sm:$0xe]
      %v7603 = vld [vmem:[%s2973 + $0x4] sm:$0xf]
      %v7604 = vld [vmem:[%s2973 + $0x8] sm:$0x1]
      %v7605 = vld [vmem:[%s2973 + $0xc] sm:$0xe]
      %v7606 = vld [vmem:[%s2973 + $0x10] sm:$0xf]
      %v7607 = vld [vmem:[%s2973 + $0x14] sm:$0x1]
      %v7608 = vld [vmem:[%s2973 + $0x18] sm:$0xe]
      %v7609 = vld [vmem:[%s2973 + $0x1c] sm:$0xf]
      %v7610 = vld [vmem:[%s2973 + $0x20] sm:$0x1]
      %v7611 = vld [vmem:[%s2973 + $0x24] sm:$0xe]
      %v7612 = vld [vmem:[%s2973 + $0x28] sm:$0xf]
      %v7613 = vld [vmem:[%s2973 + $0x2c] sm:$0x1]
      %v7614 = vld [vmem:[%s2973 + $0x30] sm:$0xe]
      %v7615 = vld [vmem:[%s2973 + $0x34] sm:$0xf]
      %v7616 = vld [vmem:[%s2973 + $0x38] sm:$0x1]
      %v7617 = vld [vmem:[%s2973 + $0x3c] sm:$0xe]
      %v7618 = vld [vmem:[%s2973 + $0x40] sm:$0xf]
      %v7619 = vld [vmem:[%s2973 + $0x44] sm:$0x1]
      %v7620 = vld [vmem:[%s2973 + $0x48] sm:$0xe]
      %v7621 = vld [vmem:[%s2973 + $0x4c] sm:$0xf]
      %v7622 = vld [vmem:[%s2973 + $0x50] sm:$0x1]
      %v7623 = vld [vmem:[%s2973 + $0x54] sm:$0xe]
      %v7624 = vld [vmem:[%s2973 + $0x58] sm:$0xf]
      %v7625 = vld [vmem:[%s2973 + $0x5c] sm:$0x1]
      %v7626 = vld [vmem:[%s2973 + $0x60] sm:$0xe]
      %v7627 = vld [vmem:[%s2973 + $0x64] sm:$0xf]
      %v7628 = vld [vmem:[%s2973 + $0x68] sm:$0x1]
      %v7629 = vld [vmem:[%s2973 + $0x6c] sm:$0xe]
      %v7630 = vld [vmem:[%s2973 + $0x70] sm:$0xf]
      %v7631 = vld [vmem:[%s2973 + $0x74] sm:$0x1]
      %v7632 = vld [vmem:[%s2973 + $0x78] sm:$0xe]
      %v7633 = vld [vmem:[%s2973 + $0x7c] sm:$0xf]
      %v7634 = vld [vmem:[%s2973 + $0x80] sm:$0x1]
      %v7635 = vld [vmem:[%s2973 + $0x84] sm:$0xe]
      %v7636 = vld [vmem:[%s2973 + $0x88] sm:$0xf]
      %v7637 = vld [vmem:[%s2973 + $0x8c] sm:$0x1]
      %v7638 = vld [vmem:[%s2973 + $0x90] sm:$0xe]
      %v7639 = vld [vmem:[%s2973 + $0x94] sm:$0xf]
      %v7640 = vld [vmem:[%s2973 + $0x98] sm:$0x1]
      %v7641 = vld [vmem:[%s2973 + $0x9c] sm:$0xe]
      %v7642 = vld [vmem:[%s2973 + $0xa0] sm:$0xf]
      %v7643 = vld [vmem:[%s2973 + $0xa4] sm:$0x1]
      %v7644 = vld [vmem:[%s2973 + $0xa8] sm:$0xe]
      %v7645 = vld [vmem:[%s2973 + $0xac] sm:$0xf]
      %v7646 = vld [vmem:[%s2973 + $0xb0] sm:$0x1]
      %v7647 = vld [vmem:[%s2973 + $0xb4] sm:$0xe]
      %v7648 = vld [vmem:[%s2973 + $0xb8] sm:$0xf]
      %v7649 = vld [vmem:[%s2973 + $0xbc] sm:$0x1]
      %v7698 = vrot.slane %v7602, 5
      %v7699 = vrot.slane %v7698, 4
      %v7700 = vrot.slane %v7603, 5
      %v7701 = vsel %vm1704, %v7699, %v7700
      %v7702 = vrot.slane %v7700, 4
      %v7703 = vrot.slane %v7604, 5
      %v7704 = vsel %vm1704, %v7702, %v7703
      %v7705 = vrot.slane %v7605, 5
      %v7706 = vrot.slane %v7705, 4
      %v7707 = vrot.slane %v7606, 5
      %v7708 = vsel %vm1704, %v7706, %v7707
      %v7709 = vrot.slane %v7707, 4
      %v7710 = vrot.slane %v7607, 5
      %v7711 = vsel %vm1704, %v7709, %v7710
      %v7712 = vrot.slane %v7608, 5
      %v7713 = vrot.slane %v7712, 4
      %v7714 = vrot.slane %v7609, 5
      %v7715 = vsel %vm1704, %v7713, %v7714
      %v7716 = vrot.slane %v7714, 4
      %v7717 = vrot.slane %v7610, 5
      %v7718 = vsel %vm1704, %v7716, %v7717
      %v7719 = vrot.slane %v7611, 5
      %v7720 = vrot.slane %v7719, 4
      %v7721 = vrot.slane %v7612, 5
      %v7722 = vsel %vm1704, %v7720, %v7721
      %v7723 = vrot.slane %v7721, 4
      %v7724 = vrot.slane %v7613, 5
      %v7725 = vsel %vm1704, %v7723, %v7724
      %v7726 = vrot.slane %v7614, 5
      %v7727 = vrot.slane %v7726, 4
      %v7728 = vrot.slane %v7615, 5
      %v7729 = vsel %vm1704, %v7727, %v7728
      %v7730 = vrot.slane %v7728, 4
      %v7731 = vrot.slane %v7616, 5
      %v7732 = vsel %vm1704, %v7730, %v7731
      %v7733 = vrot.slane %v7617, 5
      %v7734 = vrot.slane %v7733, 4
      %v7735 = vrot.slane %v7618, 5
      %v7736 = vsel %vm1704, %v7734, %v7735
      %v7737 = vrot.slane %v7735, 4
      %v7738 = vrot.slane %v7619, 5
      %v7739 = vsel %vm1704, %v7737, %v7738
      %v7740 = vrot.slane %v7620, 5
      %v7741 = vrot.slane %v7740, 4
      %v7742 = vrot.slane %v7621, 5
      %v7743 = vsel %vm1704, %v7741, %v7742
      %v7744 = vrot.slane %v7742, 4
      %v7745 = vrot.slane %v7622, 5
      %v7746 = vsel %vm1704, %v7744, %v7745
      %v7747 = vrot.slane %v7623, 5
      %v7748 = vrot.slane %v7747, 4
      %v7749 = vrot.slane %v7624, 5
      %v7750 = vsel %vm1704, %v7748, %v7749
      %v7751 = vrot.slane %v7749, 4
      %v7752 = vrot.slane %v7625, 5
      %v7753 = vsel %vm1704, %v7751, %v7752
      %v7754 = vrot.slane %v7626, 5
      %v7755 = vrot.slane %v7754, 4
      %v7756 = vrot.slane %v7627, 5
      %v7757 = vsel %vm1704, %v7755, %v7756
      %v7758 = vrot.slane %v7756, 4
      %v7759 = vrot.slane %v7628, 5
      %v7760 = vsel %vm1704, %v7758, %v7759
      %v7761 = vrot.slane %v7629, 5
      %v7762 = vrot.slane %v7761, 4
      %v7763 = vrot.slane %v7630, 5
      %v7764 = vsel %vm1704, %v7762, %v7763
      %v7765 = vrot.slane %v7763, 4
      %v7766 = vrot.slane %v7631, 5
      %v7767 = vsel %vm1704, %v7765, %v7766
      %v7768 = vrot.slane %v7632, 5
      %v7769 = vrot.slane %v7768, 4
      %v7770 = vrot.slane %v7633, 5
      %v7771 = vsel %vm1704, %v7769, %v7770
      %v7772 = vrot.slane %v7770, 4
      %v7773 = vrot.slane %v7634, 5
      %v7774 = vsel %vm1704, %v7772, %v7773
      %v7775 = vrot.slane %v7635, 5
      %v7776 = vrot.slane %v7775, 4
      %v7777 = vrot.slane %v7636, 5
      %v7778 = vsel %vm1704, %v7776, %v7777
      %v7779 = vrot.slane %v7777, 4
      %v7780 = vrot.slane %v7637, 5
      %v7781 = vsel %vm1704, %v7779, %v7780
      %v7782 = vrot.slane %v7638, 5
      %v7783 = vrot.slane %v7782, 4
      %v7784 = vrot.slane %v7639, 5
      %v7785 = vsel %vm1704, %v7783, %v7784
      %v7786 = vrot.slane %v7784, 4
      %v7787 = vrot.slane %v7640, 5
      %v7788 = vsel %vm1704, %v7786, %v7787
      %v7789 = vrot.slane %v7641, 5
      %v7790 = vrot.slane %v7789, 4
      %v7791 = vrot.slane %v7642, 5
      %v7792 = vsel %vm1704, %v7790, %v7791
      %v7793 = vrot.slane %v7791, 4
      %v7794 = vrot.slane %v7643, 5
      %v7795 = vsel %vm1704, %v7793, %v7794
      %v7796 = vrot.slane %v7644, 5
      %v7797 = vrot.slane %v7796, 4
      %v7798 = vrot.slane %v7645, 5
      %v7799 = vsel %vm1704, %v7797, %v7798
      %v7800 = vrot.slane %v7798, 4
      %v7801 = vrot.slane %v7646, 5
      %v7802 = vsel %vm1704, %v7800, %v7801
      %v7803 = vrot.slane %v7647, 5
      %v7804 = vrot.slane %v7803, 4
      %v7805 = vrot.slane %v7648, 5
      %v7806 = vsel %vm1704, %v7804, %v7805
      %v7807 = vrot.slane %v7805, 4
      %v7808 = vrot.slane %v7649, 5
      %v7809 = vsel %vm1704, %v7807, %v7808
      %v7810 = vunpack.c.l.b16 %v7701
      %v7811 = vunpack.c.l.b16 %v7704
      %v7812 = vunpack.c.l.b16 %v7708
      %v7813 = vunpack.c.l.b16 %v7711
      %v7814 = vunpack.c.l.b16 %v7715
      %v7815 = vunpack.c.l.b16 %v7718
      %v7816 = vunpack.c.l.b16 %v7722
      %v7817 = vunpack.c.l.b16 %v7725
      %v7818 = vunpack.c.l.b16 %v7729
      %v7819 = vunpack.c.l.b16 %v7732
      %v7820 = vunpack.c.l.b16 %v7736
      %v7821 = vunpack.c.l.b16 %v7739
      %v7822 = vunpack.c.l.b16 %v7743
      %v7823 = vunpack.c.l.b16 %v7746
      %v7824 = vunpack.c.l.b16 %v7750
      %v7825 = vunpack.c.l.b16 %v7753
      %v7826 = vunpack.c.l.b16 %v7757
      %v7827 = vunpack.c.l.b16 %v7760
      %v7828 = vunpack.c.l.b16 %v7764
      %v7829 = vunpack.c.l.b16 %v7767
      %v7830 = vunpack.c.l.b16 %v7771
      %v7831 = vunpack.c.l.b16 %v7774
      %v7832 = vunpack.c.l.b16 %v7778
      %v7833 = vunpack.c.l.b16 %v7781
      %v7834 = vunpack.c.l.b16 %v7785
      %v7835 = vunpack.c.l.b16 %v7788
      %v7836 = vunpack.c.l.b16 %v7792
      %v7837 = vunpack.c.l.b16 %v7795
      %v7838 = vunpack.c.l.b16 %v7799
      %v7839 = vunpack.c.l.b16 %v7802
      %v7840 = vunpack.c.l.b16 %v7806
      %v7841 = vunpack.c.l.b16 %v7809
      %v7842 = vpack.c.b16 %v7811, %v7810
      %v7843 = vpack.c.b16 %v7813, %v7812
      %v7844 = vpack.c.b16 %v7815, %v7814
      %v7845 = vpack.c.b16 %v7817, %v7816
      %v7846 = vpack.c.b16 %v7819, %v7818
      %v7847 = vpack.c.b16 %v7821, %v7820
      %v7848 = vpack.c.b16 %v7823, %v7822
      %v7849 = vpack.c.b16 %v7825, %v7824
      %v7850 = vpack.c.b16 %v7827, %v7826
      %v7851 = vpack.c.b16 %v7829, %v7828
      %v7852 = vpack.c.b16 %v7831, %v7830
      %v7853 = vpack.c.b16 %v7833, %v7832
      %v7854 = vpack.c.b16 %v7835, %v7834
      %v7855 = vpack.c.b16 %v7837, %v7836
      %v7856 = vpack.c.b16 %v7839, %v7838
      %v7857 = vpack.c.b16 %v7841, %v7840
      %7858 = vrot.lane.b32.xlu0 %v7842, 32
      %v7859 = vpop.permute.xlu0 %7858
      %7860 = vrot.lane.b32.xlu0 %v7843, 32
      %v7861 = vpop.permute.xlu0 %7860
      %7862 = vrot.lane.b32.xlu0 %v7844, 32
      %v7863 = vpop.permute.xlu0 %7862
      %7864 = vrot.lane.b32.xlu0 %v7845, 32
      %v7865 = vpop.permute.xlu0 %7864
      %7866 = vrot.lane.b32.xlu0 %v7846, 32
      %v7867 = vpop.permute.xlu0 %7866
      %7868 = vrot.lane.b32.xlu0 %v7847, 32
      %v7869 = vpop.permute.xlu0 %7868
      %7870 = vrot.lane.b32.xlu0 %v7848, 32
      %v7871 = vpop.permute.xlu0 %7870
      %7872 = vrot.lane.b32.xlu0 %v7849, 32
      %v7873 = vpop.permute.xlu0 %7872
      %7874 = vrot.lane.b32.xlu0 %v7850, 32
      %v7875 = vpop.permute.xlu0 %7874
      %7876 = vrot.lane.b32.xlu0 %v7851, 32
      %v7877 = vpop.permute.xlu0 %7876
      %7878 = vrot.lane.b32.xlu0 %v7852, 32
      %v7879 = vpop.permute.xlu0 %7878
      %7880 = vrot.lane.b32.xlu0 %v7853, 32
      %v7881 = vpop.permute.xlu0 %7880
      %7882 = vrot.lane.b32.xlu0 %v7854, 32
      %v7883 = vpop.permute.xlu0 %7882
      %7884 = vrot.lane.b32.xlu0 %v7855, 32
      %v7885 = vpop.permute.xlu0 %7884
      %7886 = vrot.lane.b32.xlu0 %v7856, 32
      %v7887 = vpop.permute.xlu0 %7886
      %7888 = vrot.lane.b32.xlu0 %v7857, 32
      %v7889 = vpop.permute.xlu0 %7888
      %7906 = vst.msk [vmem:[#allocation3] sm:$0xff] %vm4000, %v7859
      %7907 = vst.msk [vmem:[#allocation3 + $0x8] sm:$0xff] %vm4000, %v7861
      %7908 = vst.msk [vmem:[#allocation3 + $0x10] sm:$0xff] %vm4000, %v7863
      %7909 = vst.msk [vmem:[#allocation3 + $0x18] sm:$0xff] %vm4000, %v7865
      %7910 = vst.msk [vmem:[#allocation3 + $0x20] sm:$0xff] %vm4000, %v7867
      %7911 = vst.msk [vmem:[#allocation3 + $0x28] sm:$0xff] %vm4000, %v7869
      %7912 = vst.msk [vmem:[#allocation3 + $0x30] sm:$0xff] %vm4000, %v7871
      %7913 = vst.msk [vmem:[#allocation3 + $0x38] sm:$0xff] %vm4000, %v7873
      %7914 = vst.msk [vmem:[#allocation3 + $0x40] sm:$0xff] %vm4000, %v7875
      %7915 = vst.msk [vmem:[#allocation3 + $0x48] sm:$0xff] %vm4000, %v7877
      %7916 = vst.msk [vmem:[#allocation3 + $0x50] sm:$0xff] %vm4000, %v7879
      %7917 = vst.msk [vmem:[#allocation3 + $0x58] sm:$0xff] %vm4000, %v7881
      %7918 = vst.msk [vmem:[#allocation3 + $0x60] sm:$0xff] %vm4000, %v7883
      %7919 = vst.msk [vmem:[#allocation3 + $0x68] sm:$0xff] %vm4000, %v7885
      %7920 = vst.msk [vmem:[#allocation3 + $0x70] sm:$0xff] %vm4000, %v7887
      %7921 = vst.msk [vmem:[#allocation3 + $0x78] sm:$0xff] %vm4000, %v7889
      %v7922 = vld [vmem:[#allocation3] sm:$0xff]
      %v7923 = vld [vmem:[#allocation3 + $0x8] sm:$0xff]
      %v7924 = vld [vmem:[#allocation3 + $0x10] sm:$0xff]
      %v7925 = vld [vmem:[#allocation3 + $0x18] sm:$0xff]
      %v7926 = vld [vmem:[#allocation3 + $0x20] sm:$0xff]
      %v7927 = vld [vmem:[#allocation3 + $0x28] sm:$0xff]
      %v7928 = vld [vmem:[#allocation3 + $0x30] sm:$0xff]
      %v7929 = vld [vmem:[#allocation3 + $0x38] sm:$0xff]
      %v7930 = vld [vmem:[#allocation3 + $0x40] sm:$0xff]
      %v7931 = vld [vmem:[#allocation3 + $0x48] sm:$0xff]
      %v7932 = vld [vmem:[#allocation3 + $0x50] sm:$0xff]
      %v7933 = vld [vmem:[#allocation3 + $0x58] sm:$0xff]
      %v7934 = vld [vmem:[#allocation3 + $0x60] sm:$0xff]
      %v7935 = vld [vmem:[#allocation3 + $0x68] sm:$0xff]
      %v7936 = vld [vmem:[#allocation3 + $0x70] sm:$0xff]
      %v7937 = vld [vmem:[#allocation3 + $0x78] sm:$0xff]
      %v7938 = vld [vmem:[%s3] sm:$0xf]
      %v7939 = vld [vmem:[%s3 + $0x4] sm:$0xf]
      %v7940 = vld [vmem:[%s3 + $0x8] sm:$0xf]
      %v7941 = vld [vmem:[%s3 + $0xc] sm:$0xf]
      %v7942 = vld [vmem:[%s3 + $0x10] sm:$0x3]
      %v7943 = vld [vmem:[%s4] sm:$0x1]
      %v7945 = vlaneseq
      %v7946 = vshrl.u32 %v7945, 7
      %v7947 = vsub.s32 0, %v7946
      %v7948 = vrot.slane %v7943, %v7947
      %v7955 = vunpack.c.l.b16 %v7938
      %v7956 = vunpack.c.l.b16 %v7939
      %v7957 = vunpack.c.l.b16 %v7940
      %v7958 = vunpack.c.l.b16 %v7941
      %v7959 = vunpack.c.l.b16 %v7942
      %v7960 = vpack.c.b16 %v7956, %v7955
      %v7961 = vpack.c.b16 %v7958, %v7957
      %v7962 = vpack.c.b16 %v7959, %v7959
      %v7966 = vsel %vm4060, %v7922, 0
      %v7969 = vsel %vm4060, %v7923, 0
      %v7972 = vsel %vm4060, %v7924, 0
      %v7975 = vsel %vm4060, %v7925, 0
      %v7978 = vsel %vm4060, %v7926, 0
      %v7981 = vsel %vm4060, %v7927, 0
      %v7984 = vsel %vm4060, %v7928, 0
      %v7987 = vsel %vm4060, %v7929, 0
      %v7990 = vsel %vm4060, %v7930, 0
      %v7993 = vsel %vm4060, %v7931, 0
      %v7996 = vsel %vm4060, %v7932, 0
      %v7999 = vsel %vm4060, %v7933, 0
      %v8002 = vsel %vm4060, %v7934, 0
      %v8005 = vsel %vm4060, %v7935, 0
      %v8008 = vsel %vm4060, %v7936, 0
      %v8011 = vsel %vm4060, %v7937, 0
      %v8014 = vsel %vm4109, %v7962, 0
      %8016 = vmatprep.subr.bf16.mxu0 0
      %8017 = vmatpush1.bf16.msra.mxu0 %v7960
      %8018 = vmatprep.subr.bf16.mxu0 0
      %8019 = vmatpush1.bf16.msra.mxu0 %v7961
      %8020 = vmatprep.subr.bf16.mxu0 0
      %8021 = vmatpush1.bf16.msra.mxu0 %v8014
      %8022 = vmatprep.subr.bf16.mxu0 0
      %8023 = vmatpush1.bf16.msra.mxu0 0
      %8024 = vmatprep.subr.bf16.mxu0 0
      %8025 = vmatpush1.bf16.msra.mxu0 0
      %8026 = vmatprep.subr.bf16.mxu0 0
      %8027 = vmatpush1.bf16.msra.mxu0 0
      %8028 = vmatprep.subr.bf16.mxu0 0
      %8029 = vmatpush1.bf16.msra.mxu0 0
      %8030 = vmatprep.subr.bf16.mxu0 0
      %8031 = vmatpush1.bf16.msra.mxu0 0
      %8032 = vmatprep.subr.bf16.mxu0 0
      %8033 = vmatpush1.bf16.msra.mxu0 0
      %8034 = vmatprep.subr.bf16.mxu0 0
      %8035 = vmatpush1.bf16.msra.mxu0 0
      %8036 = vmatprep.subr.bf16.mxu0 0
      %8037 = vmatpush1.bf16.msra.mxu0 0
      %8038 = vmatprep.subr.bf16.mxu0 0
      %8039 = vmatpush1.bf16.msra.mxu0 0
      %8040 = vmatprep.subr.bf16.mxu0 0
      %8041 = vmatpush1.bf16.msra.mxu0 0
      %8042 = vmatprep.subr.bf16.mxu0 0
      %8043 = vmatpush1.bf16.msra.mxu0 0
      %8044 = vmatprep.subr.bf16.mxu0 0
      %8045 = vmatpush1.bf16.msra.mxu0 0
      %8046 = vmatprep.subr.bf16.mxu0 0
      %8047 = vmatpush1.bf16.msra.mxu0 0
      %8048 = vmatprep.mubr.bf16.mxu0 0
      %8049 = vmatmul.mubr.bf16.gmra.mrb[0].mxu0 %v7966
      %v8050 = vpop.f32.mrb[0].mxu0
      %v8051 = vadd.f32 %v7948, %v8050
      %v8052 = vpop.f32.mrb[0].mxu0
      %v8053 = vpop.f32.mrb[0].mxu0
      %v8054 = vadd.f32 %v7948, %v8053
      %v8055 = vpop.f32.mrb[0].mxu0
      %8056 = vmatprep.mubr.bf16.mxu0 0
      %8057 = vmatmul.mubr.bf16.gmra.mrb[0].mxu0 %v7969
      %v8058 = vpop.f32.mrb[0].mxu0
      %v8059 = vadd.f32 %v7948, %v8058
      %v8060 = vpop.f32.mrb[0].mxu0
      %v8061 = vpop.f32.mrb[0].mxu0
      %v8062 = vadd.f32 %v7948, %v8061
      %v8063 = vpop.f32.mrb[0].mxu0
      %8064 = vmatprep.mubr.bf16.mxu0 0
      %8065 = vmatmul.mubr.bf16.gmra.mrb[0].mxu0 %v7972
      %v8066 = vpop.f32.mrb[0].mxu0
      %v8067 = vadd.f32 %v7948, %v8066
      %v8068 = vpop.f32.mrb[0].mxu0
      %v8069 = vpop.f32.mrb[0].mxu0
      %v8070 = vadd.f32 %v7948, %v8069
      %v8071 = vpop.f32.mrb[0].mxu0
      %8072 = vmatprep.mubr.bf16.mxu0 0
      %8073 = vmatmul.mubr.bf16.gmra.mrb[0].mxu0 %v7975
      %v8074 = vpop.f32.mrb[0].mxu0
      %v8075 = vadd.f32 %v7948, %v8074
      %v8076 = vpop.f32.mrb[0].mxu0
      %v8077 = vpop.f32.mrb[0].mxu0
      %v8078 = vadd.f32 %v7948, %v8077
      %v8079 = vpop.f32.mrb[0].mxu0
      %8080 = vmatprep.mubr.bf16.mxu0 0
      %8081 = vmatmul.mubr.bf16.gmra.mrb[0].mxu0 %v7978
      %v8082 = vpop.f32.mrb[0].mxu0
      %v8083 = vadd.f32 %v7948, %v8082
      %v8084 = vpop.f32.mrb[0].mxu0
      %v8085 = vpop.f32.mrb[0].mxu0
      %v8086 = vadd.f32 %v7948, %v8085
      %v8087 = vpop.f32.mrb[0].mxu0
      %8088 = vmatprep.mubr.bf16.mxu0 0
      %8089 = vmatmul.mubr.bf16.gmra.mrb[0].mxu0 %v7981
      %v8090 = vpop.f32.mrb[0].mxu0
      %v8091 = vadd.f32 %v7948, %v8090
      %v8092 = vpop.f32.mrb[0].mxu0
      %v8093 = vpop.f32.mrb[0].mxu0
      %v8094 = vadd.f32 %v7948, %v8093
      %v8095 = vpop.f32.mrb[0].mxu0
      %8096 = vmatprep.mubr.bf16.mxu0 0
      %8097 = vmatmul.mubr.bf16.gmra.mrb[0].mxu0 %v7984
      %v8098 = vpop.f32.mrb[0].mxu0
      %v8099 = vadd.f32 %v7948, %v8098
      %v8100 = vpop.f32.mrb[0].mxu0
      %v8101 = vpop.f32.mrb[0].mxu0
      %v8102 = vadd.f32 %v7948, %v8101
      %v8103 = vpop.f32.mrb[0].mxu0
      %8104 = vmatprep.mubr.bf16.mxu0 0
      %8105 = vmatmul.mubr.bf16.gmra.mrb[0].mxu0 %v7987
      %v8106 = vpop.f32.mrb[0].mxu0
      %v8107 = vadd.f32 %v7948, %v8106
      %v8108 = vpop.f32.mrb[0].mxu0
      %v8109 = vpop.f32.mrb[0].mxu0
      %v8110 = vadd.f32 %v7948, %v8109
      %v8111 = vpop.f32.mrb[0].mxu0
      %8112 = vmatprep.mubr.bf16.mxu0 0
      %8113 = vmatmul.mubr.bf16.gmra.mrb[0].mxu0 %v7990
      %v8114 = vpop.f32.mrb[0].mxu0
      %v8115 = vadd.f32 %v7948, %v8114
      %v8116 = vpop.f32.mrb[0].mxu0
      %v8117 = vpop.f32.mrb[0].mxu0
      %v8118 = vadd.f32 %v7948, %v8117
      %v8119 = vpop.f32.mrb[0].mxu0
      %8120 = vmatprep.mubr.bf16.mxu0 0
      %8121 = vmatmul.mubr.bf16.gmra.mrb[0].mxu0 %v7993
      %v8122 = vpop.f32.mrb[0].mxu0
      %v8123 = vadd.f32 %v7948, %v8122
      %v8124 = vpop.f32.mrb[0].mxu0
      %v8125 = vpop.f32.mrb[0].mxu0
      %v8126 = vadd.f32 %v7948, %v8125
      %v8127 = vpop.f32.mrb[0].mxu0
      %8128 = vmatprep.mubr.bf16.mxu0 0
      %8129 = vmatmul.mubr.bf16.gmra.mrb[0].mxu0 %v7996
      %v8130 = vpop.f32.mrb[0].mxu0
      %v8131 = vadd.f32 %v7948, %v8130
      %v8132 = vpop.f32.mrb[0].mxu0
      %v8133 = vpop.f32.mrb[0].mxu0
      %v8134 = vadd.f32 %v7948, %v8133
      %v8135 = vpop.f32.mrb[0].mxu0
      %8136 = vmatprep.mubr.bf16.mxu0 0
      %8137 = vmatmul.mubr.bf16.gmra.mrb[0].mxu0 %v7999
      %v8138 = vpop.f32.mrb[0].mxu0
      %v8139 = vadd.f32 %v7948, %v8138
      %v8140 = vpop.f32.mrb[0].mxu0
      %v8141 = vpop.f32.mrb[0].mxu0
      %v8142 = vadd.f32 %v7948, %v8141
      %v8143 = vpop.f32.mrb[0].mxu0
      %8144 = vmatprep.mubr.bf16.mxu0 0
      %8145 = vmatmul.mubr.bf16.gmra.mrb[0].mxu0 %v8002
      %v8146 = vpop.f32.mrb[0].mxu0
      %v8147 = vadd.f32 %v7948, %v8146
      %v8148 = vpop.f32.mrb[0].mxu0
      %v8149 = vpop.f32.mrb[0].mxu0
      %v8150 = vadd.f32 %v7948, %v8149
      %v8151 = vpop.f32.mrb[0].mxu0
      %8152 = vmatprep.mubr.bf16.mxu0 0
      %8153 = vmatmul.mubr.bf16.gmra.mrb[0].mxu0 %v8005
      %v8154 = vpop.f32.mrb[0].mxu0
      %v8155 = vadd.f32 %v7948, %v8154
      %v8156 = vpop.f32.mrb[0].mxu0
      %v8157 = vpop.f32.mrb[0].mxu0
      %v8158 = vadd.f32 %v7948, %v8157
      %v8159 = vpop.f32.mrb[0].mxu0
      %8160 = vmatprep.mubr.bf16.mxu0 0
      %8161 = vmatmul.mubr.bf16.gmra.mrb[0].mxu0 %v8008
      %v8162 = vpop.f32.mrb[0].mxu0
      %v8163 = vadd.f32 %v7948, %v8162
      %v8164 = vpop.f32.mrb[0].mxu0
      %v8165 = vpop.f32.mrb[0].mxu0
      %v8166 = vadd.f32 %v7948, %v8165
      %v8167 = vpop.f32.mrb[0].mxu0
      %8168 = vmatprep.mubr.bf16.mxu0 0
      %8169 = vmatmul.mubr.bf16.gmra.mrb[0].mxu0 %v8011
      %v8170 = vpop.f32.mrb[0].mxu0
      %v8171 = vadd.f32 %v7948, %v8170
      %v8172 = vpop.f32.mrb[0].mxu0
      %v8173 = vpop.f32.mrb[0].mxu0
      %v8174 = vadd.f32 %v7948, %v8173
      %v8175 = vpop.f32.mrb[0].mxu0
      %8176 = vdwg.mxu0
      %v8177 = vadd.f32 %v8051, %v226
      %v8178 = vadd.f32 %v8054, %v227
      %v8179 = vadd.f32 %v8059, %v228
      %v8180 = vadd.f32 %v8062, %v229
      %v8181 = vadd.f32 %v8067, %v230
      %v8182 = vadd.f32 %v8070, %v231
      %v8183 = vadd.f32 %v8075, %v232
      %v8184 = vadd.f32 %v8078, %v233
      %v8185 = vadd.f32 %v8083, %v234
      %v8186 = vadd.f32 %v8086, %v235
      %v8187 = vadd.f32 %v8091, %v236
      %v8188 = vadd.f32 %v8094, %v237
      %v8189 = vadd.f32 %v8099, %v238
      %v8190 = vadd.f32 %v8102, %v239
      %v8191 = vadd.f32 %v8107, %v240
      %v8192 = vadd.f32 %v8110, %v241
      %v8193 = vadd.f32 %v8115, %v242
      %v8194 = vadd.f32 %v8118, %v243
      %v8195 = vadd.f32 %v8123, %v244
      %v8196 = vadd.f32 %v8126, %v245
      %v8197 = vadd.f32 %v8131, %v246
      %v8198 = vadd.f32 %v8134, %v247
      %v8199 = vadd.f32 %v8139, %v248
      %v8200 = vadd.f32 %v8142, %v249
      %v8201 = vadd.f32 %v8147, %v250
      %v8202 = vadd.f32 %v8150, %v251
      %v8203 = vadd.f32 %v8155, %v252
      %v8204 = vadd.f32 %v8158, %v253
      %v8205 = vadd.f32 %v8163, %v254
      %v8206 = vadd.f32 %v8166, %v255
      %v8207 = vadd.f32 %v8171, %v256
      %v8208 = vadd.f32 %v8174, %v257
      %v8209 = vmax.f32 %v8177, 0.0
      %v8210 = vmax.f32 %v8178, 0.0
      %v8211 = vmax.f32 %v8179, 0.0
      %v8212 = vmax.f32 %v8180, 0.0
      %v8213 = vmax.f32 %v8181, 0.0
      %v8214 = vmax.f32 %v8182, 0.0
      %v8215 = vmax.f32 %v8183, 0.0
      %v8216 = vmax.f32 %v8184, 0.0
      %v8217 = vmax.f32 %v8185, 0.0
      %v8218 = vmax.f32 %v8186, 0.0
      %v8219 = vmax.f32 %v8187, 0.0
      %v8220 = vmax.f32 %v8188, 0.0
      %v8221 = vmax.f32 %v8189, 0.0
      %v8222 = vmax.f32 %v8190, 0.0
      %v8223 = vmax.f32 %v8191, 0.0
      %v8224 = vmax.f32 %v8192, 0.0
      %v8225 = vmax.f32 %v8193, 0.0
      %v8226 = vmax.f32 %v8194, 0.0
      %v8227 = vmax.f32 %v8195, 0.0
      %v8228 = vmax.f32 %v8196, 0.0
      %v8229 = vmax.f32 %v8197, 0.0
      %v8230 = vmax.f32 %v8198, 0.0
      %v8231 = vmax.f32 %v8199, 0.0
      %v8232 = vmax.f32 %v8200, 0.0
      %v8233 = vmax.f32 %v8201, 0.0
      %v8234 = vmax.f32 %v8202, 0.0
      %v8235 = vmax.f32 %v8203, 0.0
      %v8236 = vmax.f32 %v8204, 0.0
      %v8237 = vmax.f32 %v8205, 0.0
      %v8238 = vmax.f32 %v8206, 0.0
      %v8239 = vmax.f32 %v8207, 0.0
      %v8240 = vmax.f32 %v8208, 0.0
      %8241 = vst.msk [vmem:[%s224] sm:$0xff] %vm1041, %v8209
      %8242 = vst.msk [vmem:[%s224 + $0x8] sm:$0xff] %vm1041, %v8210
      %8243 = vst.msk [vmem:[%s224 + $0x10] sm:$0xff] %vm1041, %v8211
      %8244 = vst.msk [vmem:[%s224 + $0x18] sm:$0xff] %vm1041, %v8212
      %8245 = vst.msk [vmem:[%s224 + $0x20] sm:$0xff] %vm1041, %v8213
      %8246 = vst.msk [vmem:[%s224 + $0x28] sm:$0xff] %vm1041, %v8214
      %8247 = vst.msk [vmem:[%s224 + $0x30] sm:$0xff] %vm1041, %v8215
      %8248 = vst.msk [vmem:[%s224 + $0x38] sm:$0xff] %vm1041, %v8216
      %8249 = vst.msk [vmem:[%s224 + $0x40] sm:$0xff] %vm1041, %v8217
      %8250 = vst.msk [vmem:[%s224 + $0x48] sm:$0xff] %vm1041, %v8218
      %8251 = vst.msk [vmem:[%s224 + $0x50] sm:$0xff] %vm1041, %v8219
      %8252 = vst.msk [vmem:[%s224 + $0x58] sm:$0xff] %vm1041, %v8220
      %8253 = vst.msk [vmem:[%s224 + $0x60] sm:$0xff] %vm1041, %v8221
      %8254 = vst.msk [vmem:[%s224 + $0x68] sm:$0xff] %vm1041, %v8222
      %8255 = vst.msk [vmem:[%s224 + $0x70] sm:$0xff] %vm1041, %v8223
      %8256 = vst.msk [vmem:[%s224 + $0x78] sm:$0xff] %vm1041, %v8224
      %8257 = vst.msk [vmem:[%s224 + $0x80] sm:$0xff] %vm1041, %v8225
      %8258 = vst.msk [vmem:[%s224 + $0x88] sm:$0xff] %vm1041, %v8226
      %8259 = vst.msk [vmem:[%s224 + $0x90] sm:$0xff] %vm1041, %v8227
      %8260 = vst.msk [vmem:[%s224 + $0x98] sm:$0xff] %vm1041, %v8228
      %8261 = vst.msk [vmem:[%s224 + $0xa0] sm:$0xff] %vm1041, %v8229
      %8262 = vst.msk [vmem:[%s224 + $0xa8] sm:$0xff] %vm1041, %v8230
      %8263 = vst.msk [vmem:[%s224 + $0xb0] sm:$0xff] %vm1041, %v8231
      %8264 = vst.msk [vmem:[%s224 + $0xb8] sm:$0xff] %vm1041, %v8232
      %8265 = vst.msk [vmem:[%s224 + $0xc0] sm:$0xff] %vm1041, %v8233
      %8266 = vst.msk [vmem:[%s224 + $0xc8] sm:$0xff] %vm1041, %v8234
      %8267 = vst.msk [vmem:[%s224 + $0xd0] sm:$0xff] %vm1041, %v8235
      %8268 = vst.msk [vmem:[%s224 + $0xd8] sm:$0xff] %vm1041, %v8236
      %8269 = vst.msk [vmem:[%s224 + $0xe0] sm:$0xff] %vm1041, %v8237
      %8270 = vst.msk [vmem:[%s224 + $0xe8] sm:$0xff] %vm1041, %v8238
      %8271 = vst.msk [vmem:[%s224 + $0xf0] sm:$0xff] %vm1041, %v8239
      %8272 = vst.msk [vmem:[%s224 + $0xf8] sm:$0xff] %vm1041, %v8240
      %p8273 = scmp.lt.s32.totalorder %s16, 1
      %s8274 = scalar_select %p8273, %s16, 1
      %s8275 = smul.addr %s8274, 32
      %s8276 = smul.addr %s8275, 8
      %s8277 = scalar_lea.vmem %s5, %s8276
      // Predicated region
      $region41: #{tpu_custom_call.1} parent=39 // pred_check
        %p8278 = pneg %p144
      $region42: #{tpu_custom_call.1} parent=39 // pred_check_branch
        %8280 = sbr.rel (%p8278) target = $region44
      $region43: #{tpu_custom_call.1} parent=39 // pred_region
        _
      $region44: #{tpu_custom_call.1} parent=39 // pred_fallthru
        _
    $region40: #{tpu_custom_call.1} parent=5 // pred_fallthru
      _
    %p8281 = scmp.le.s32.totalorder 2, %s11
    // Predicated region
    $region45: #{tpu_custom_call.1} parent=5 // pred_check
      %p8282 = pneg %p8281
    $region46: #{tpu_custom_call.1} parent=5 // pred_check_branch
      %8284 = sbr.rel (%p8282) target = $region48
    $region47: #{tpu_custom_call.1} parent=5 // pred_region
      %s8285 = ssub.s32 %s11, 2
      // Predicated region
      $region49: #{tpu_custom_call.1} parent=47 // pred_check
        %p8286 = pneg %p150
      $region50: #{tpu_custom_call.1} parent=47 // pred_check_branch
        %8288 = sbr.rel (%p8286) target = $region52
      $region51: #{tpu_custom_call.1} parent=47 // pred_region
        %p8289 = scmp.lt.s32.totalorder %s17, 1
        %s8290 = scalar_select %p8289, %s17, 1
        %s8291 = smul.addr %s8290, 32
        %s8292 = smul.addr %s8291, 8
        %s8293 = scalar_lea.vmem %s5, %s8292
      $region52: #{tpu_custom_call.1} parent=47 // pred_fallthru
        _
    $region48: #{tpu_custom_call.1} parent=5 // pred_fallthru
      _
  $region6: #{tpu_custom_call.1} parent=0 // loop_footer
    %s15 = sadd.s32 1, %s11
  $region7: #{tpu_custom_call.1} parent=0 // loop_footer_branch
    %10 = sbr.rel target = $region3
  $region8: #{tpu_custom_call.1} parent=0 // loop_exit
    _

</llo_original>
